<compile_context>
chip_gen: v7x
topology: tpu7x:2x2x1
jax: 0.10.0
libtpu: 0.0.40
codegen_flags: <defaults>
</compile_context>

<pallas_src>
import functools

import jax
import jax.numpy as jnp
from jax import lax
from jax.experimental import pallas as pl
from jax.experimental.pallas import tpu as pltpu

EPS = 1e-5
RRELU_SLOPE = (1.0 / 8.0 + 1.0 / 3.0) / 2.0      # nn.RReLU eval-mode slope

# Border-mask table: 8 dil=2 offsets (conv1..4) + 8 dil=1 offsets (SA convs).
_OFFSETS = [(-2, -2), (-2, 0), (-2, 2), (0, -2), (0, 2), (2, -2), (2, 0), (2, 2),
            (-1, -1), (-1, 0), (-1, 1), (0, -1), (0, 1), (1, -1), (1, 0), (1, 1)]
_MASK_IDX = {off: i for i, off in enumerate(_OFFSETS)}

# Packed-tap scratch: 3 blocks (taps of x1, x2, x3), 9 taps * 6 ch = 54 rows
# each, padded to 56 rows (sublane aligned). conv2/3/4 read rows [0:56/112/168].
_TAP_BLOCK = 56
_TAP_ROWS = 3 * _TAP_BLOCK


# --------------------------------------------------------------------------
# Fused kernel: conv1..4 (+IN+RReLU), sa1..5, aw1/aw2, conv5/6 (+IN), BRelu,
# and the final recombination; BB batch samples per grid step.
# --------------------------------------------------------------------------
def _mdehaze_kernel(x_ref, mask_ref, wc1_ref, wc2_ref, wc3_ref, wc4_ref,
                    pc_ref, w56_ref, p56_ref, awb_ref, saw_ref, sab_ref,
                    o_ref, taps_ref, *, H, W, BB):
    HW = H * W
    f32 = jnp.float32

    # Hoisted border masks: each (1, HW) row loaded once per grid step.
    mask_rows = {off: mask_ref[pl.ds(i, 1), :] for off, i in _MASK_IDX.items()}

    def shift2d(a, sy, sx):
        """out[:, i*W+j] = a[:, (i+sy)*W+(j+sx)], zero outside the image."""
        if sy == 0 and sx == 0:
            return a
        s = sy * W + sx
        out = pltpu.roll(a, shift=(-s) % HW, axis=1)
        return out * mask_rows[(sy, sx)]

    def taps9(a, dil):
        return [shift2d(a, (ky - 1) * dil, (kx - 1) * dil)
                for ky in range(3) for kx in range(3)]

    def instance_norm(y, gamma, beta):
        # One-pass mean/variance; clamp guards the mild cancellation risk.
        mean = jnp.mean(y, axis=1, keepdims=True)
        var = jnp.maximum(jnp.mean(y * y, axis=1, keepdims=True) - mean * mean, 0.0)
        return (y - mean) * lax.rsqrt(var + EPS) * gamma + beta

    def conv_post(y_lin, pidx):
        y = y_lin + pc_ref[3 * pidx + 0]                         # bias (6,1)
        y = instance_norm(y, pc_ref[3 * pidx + 1], pc_ref[3 * pidx + 2])
        return jnp.where(y >= 0.0, y, RRELU_SLOPE * y)           # RReLU (eval)

    def spatial_attention(s_idx, a, clamp01):
        avg = jnp.mean(a, axis=0, keepdims=True)                 # (1, HW)
        mx = jnp.max(a, axis=0, keepdims=True)                   # (1, HW)
        am = jnp.concatenate([avg, mx], axis=0)                  # (2, HW): 1 roll/tap
        packed = jnp.concatenate(
            [shift2d(am, ky - 1, kx - 1) for ky in range(3) for kx in range(3)],
            axis=0)                                              # (18, HW)
        w = saw_ref[pl.ds(s_idx, 1), :]                          # (1, 18)
        att = jax.nn.sigmoid(
            jnp.dot(w, packed, preferred_element_type=f32) + sab_ref[s_idx])
        y = a * att
        if clamp01:
            y = jnp.clip(y, 0.0, 1.0)                            # BRelu (assumed)
        return y

    pad2 = jnp.zeros((2, HW), f32)

    for b in range(BB):                                          # batch-blocked
        x = x_ref[b]                                             # (3, HW)

        # conv1: single (6,27)x(27,HW) matmul over packed dil=2 taps of x.
        t_x = jnp.concatenate(taps9(x, 2), axis=0)               # (27, HW)
        x1 = conv_post(jnp.dot(wc1_ref[...], t_x, preferred_element_type=f32), 0)

        # conv2/3/4: taps of x1/x2/x3 written ONCE into the shared tap scratch,
        # each conv is a single wide-K matmul over a prefix of it (virtual concat).
        taps_ref[pl.ds(0, _TAP_BLOCK), :] = jnp.concatenate(
            taps9(x1, 2) + [pad2], axis=0)
        x2 = conv_post(jnp.dot(wc2_ref[...], taps_ref[pl.ds(0, _TAP_BLOCK), :],
                               preferred_element_type=f32), 1)
        x2 = spatial_attention(0, x2, False)                     # sa1

        taps_ref[pl.ds(_TAP_BLOCK, _TAP_BLOCK), :] = jnp.concatenate(
            taps9(x2, 2) + [pad2], axis=0)
        x3 = conv_post(jnp.dot(wc3_ref[...], taps_ref[pl.ds(0, 2 * _TAP_BLOCK), :],
                               preferred_element_type=f32), 2)   # conv3(cat(x1,x2))
        x3 = spatial_attention(1, x3, False)                     # sa2

        taps_ref[pl.ds(2 * _TAP_BLOCK, _TAP_BLOCK), :] = jnp.concatenate(
            taps9(x3, 2) + [pad2], axis=0)
        x4 = conv_post(jnp.dot(wc4_ref[...], taps_ref[...],
                               preferred_element_type=f32), 3)   # conv4(cat(x1,x2,x3))
        x4 = spatial_attention(2, x4, False)                     # sa3

        # concat3 + pooled channel stats, built once and shared by both branches.
        cat3 = jnp.concatenate([x1, x2, x3, x4], axis=0)         # (24, HW)
        stats = jnp.concatenate(
            [jnp.max(cat3, axis=1, keepdims=True),
             jnp.mean(cat3, axis=1, keepdims=True)], axis=0)     # (48, 1) [max; avg]

        def branch(br, sa_idx):
            # Aw_block folded into one (24,48)x(48,1) matmul + sigmoid.
            att = jax.nn.sigmoid(jnp.dot(awb_ref[br], stats,
                                         preferred_element_type=f32))     # (24, 1)
            # TODO(synk): att could be folded into the (3,24) weight to skip the
            # (24,HW) scale; kept as a cheap VPU multiply for layout robustness.
            y = jnp.dot(w56_ref[br], cat3 * att,
                        preferred_element_type=f32) + p56_ref[3 * br + 0]
            y = instance_norm(y, p56_ref[3 * br + 1], p56_ref[3 * br + 2])
            return spatial_attention(sa_idx, y, True)            # sa4/sa5 + BRelu

        K = branch(0, 3)
        bias = branch(1, 4)
        o_ref[b] = 0.5 * (K * x - K + bias + 1.0)                # lane-dense store


# --------------------------------------------------------------------------
# Wrapper: NCHW in / NCHW out; only free reshapes outside the kernel.
# --------------------------------------------------------------------------
def _pick_batch_block(n):
    for bb in (4, 2, 1):
        if n % bb == 0:
            return bb
    return 1


def mdehaze_forward(x_nchw, p):
    N, C, H, W = x_nchw.shape
    assert C == 3
    HW = H * W
    BB = _pick_batch_block(N)
    x_flat = x_nchw.reshape(N, C, HW).astype(jnp.float32)

    # Border masks, computed once on the host (same for every sample).
    r = jnp.arange(HW, dtype=jnp.int32) // W
    c = jnp.arange(HW, dtype=jnp.int32) % W
    mask = jnp.stack(
        [((r + sy >= 0) & (r + sy < H) & (c + sx >= 0) & (c + sx < W))
         .astype(jnp.float32) for (sy, sx) in _OFFSETS], axis=0)       # (16, HW)

    kern = functools.partial(_mdehaze_kernel, H=H, W=W, BB=BB)

    flops_px = 2 * 6 * (27 + 54 + 108 + 162) + 2 * 2 * 3 * 24 + 5 * 2 * 18 + 300
    cost = pl.CostEstimate(flops=int(N * HW * flops_px),
                           transcendentals=int(N * (5 * HW + 48)),
                           bytes_accessed=int(2 * N * C * HW * 4 + 64 * 1024))

    # Explicit VMEM budget (scoped defaults: 16 MiB v5e / 32 MiB v6e,v7x).
    vmem_limit = int(min(64 << 20,
                         max(16 << 20, 8 * HW * (_TAP_ROWS + 64 + 6 * BB) * 4)))

    out = pl.pallas_call(
        kern,
        out_shape=jax.ShapeDtypeStruct((N, 3, HW), jnp.float32),
        grid=(N // BB,),
        in_specs=[
            pl.BlockSpec((BB, 3, HW), lambda g: (g, 0, 0)),        # x (batch block)
            pl.BlockSpec((16, HW), lambda g: (0, 0)),              # border masks
            pl.BlockSpec((6, 27), lambda g: (0, 0)),               # conv1 packed
            pl.BlockSpec((6, 56), lambda g: (0, 0)),               # conv2 packed
            pl.BlockSpec((6, 112), lambda g: (0, 0)),              # conv3 packed
            pl.BlockSpec((6, 168), lambda g: (0, 0)),              # conv4 packed
            pl.BlockSpec((12, 6, 1), lambda g: (0, 0, 0)),         # bias/IN 1..4
            pl.BlockSpec((2, 3, 24), lambda g: (0, 0, 0)),         # conv5/6 (1x1)
            pl.BlockSpec((6, 3, 1), lambda g: (0, 0, 0)),          # bias/IN 5,6
            pl.BlockSpec((2, 24, 48), lambda g: (0, 0, 0)),        # Aw folded mats
            pl.BlockSpec((5, 18), lambda g: (0, 0)),               # SA conv weights
            pl.BlockSpec(memory_space=pltpu.MemorySpace.SMEM),     # SA biases (5,)
        ],
        out_specs=pl.BlockSpec((BB, 3, HW), lambda g: (g, 0, 0)),
        scratch_shapes=[pltpu.VMEM((_TAP_ROWS, HW), jnp.float32)],  # packed taps
        compiler_params=pltpu.CompilerParams(
            dimension_semantics=("parallel",),
            vmem_limit_bytes=vmem_limit),
        cost_estimate=cost,
    )(x_flat, mask, p["wc1"], p["wc2"], p["wc3"], p["wc4"], p["pconv"],
      p["w56"], p["p56"], p["awb"], p["saw"], p["sab"])
    return out.reshape(N, 3, H, W)


# --------------------------------------------------------------------------
# Deterministic synthetic parameters, pre-packed host-side into the kernel's
# MXU-friendly layouts.
# --------------------------------------------------------------------------
def _band_matrix(w):
    """Conv1d(k=3, pad=1, no bias) along a length-24 axis as (24,24): y = B @ v."""
    C = 24
    return (w[0] * jnp.eye(C, k=-1, dtype=jnp.float32)
            + w[1] * jnp.eye(C, k=0, dtype=jnp.float32)
            + w[2] * jnp.eye(C, k=1, dtype=jnp.float32))


def _pack_conv3x3(w):
    """(Cout, Cin, 3, 3) -> (Cout, 9*Cin): tap-major, cin fastest within a tap."""
    co, ci, _, _ = w.shape
    return jnp.transpose(w, (0, 2, 3, 1)).reshape(co, 9 * ci)


def _pack_conv3x3_blocks(w, blk=6, pad=2):
    """Split Cin into 6-channel blocks, pack tap-major, pad each block to 56 cols."""
    co, ci, _, _ = w.shape
    cols = []
    for b0 in range(0, ci, blk):
        cols.append(_pack_conv3x3(w[:, b0:b0 + blk]))
        cols.append(jnp.zeros((co, pad), jnp.float32))
    return jnp.concatenate(cols, axis=1)


def init_params(key):
    keys = iter(jax.random.split(key, 64))

    def nrm(shape, scale=0.2):
        return scale * jax.random.normal(next(keys), shape, dtype=jnp.float32)

    p = {}
    # Dilated 3x3 convs, pre-packed to match the in-kernel packed-tap layout.
    p["wc1"] = _pack_conv3x3(nrm((6, 3, 3, 3)))                   # (6, 27)
    p["wc2"] = _pack_conv3x3_blocks(nrm((6, 6, 3, 3)))            # (6, 56)
    p["wc3"] = _pack_conv3x3_blocks(nrm((6, 12, 3, 3)))           # (6, 112)
    p["wc4"] = _pack_conv3x3_blocks(nrm((6, 18, 3, 3)))           # (6, 168)
    rows = []
    for _ in range(4):                                            # conv1..4 + IN1..4
        rows.append(nrm((6, 1), 0.1))                             # conv bias
        rows.append(1.0 + nrm((6, 1), 0.1))                       # IN gamma
        rows.append(nrm((6, 1), 0.1))                             # IN beta
    p["pconv"] = jnp.stack(rows, axis=0)                          # (12, 6, 1)
    # conv5 / conv6 (1x1, 24 -> 3) + IN5/6.
    p["w56"] = nrm((2, 3, 24))
    rows = []
    for _ in range(2):
        rows.append(nrm((3, 1), 0.1))
        rows.append(1.0 + nrm((3, 1), 0.1))
        rows.append(nrm((3, 1), 0.1))
    p["p56"] = jnp.stack(rows, axis=0)                            # (6, 3, 1)
    # sa1..sa5 Conv2d(2,1,3,pad=1): packed (1,18) rows, within-tap order (avg,max)
    # to match the kernel's stacked (2,HW) tap layout.
    p["saw"] = jnp.concatenate(
        [jnp.transpose(nrm((1, 2, 3, 3)), (0, 2, 3, 1)).reshape(1, 18)
         for _ in range(5)], axis=0)                              # (5, 18)
    p["sab"] = nrm((5,), 0.1)
    # Aw_blocks (channel=24 -> kernel_size=3): fold conv3[0]@conv1 / conv3[1]@conv2
    # into (24,24) matrices and pack per branch as [A_max | A_avg] -> (24,48).
    mats = []
    for _ in range(2):                                            # aw1, aw2
        b1 = _band_matrix(nrm((3,)))
        b2 = _band_matrix(nrm((3,)))
        w3 = nrm((2, 3))
        a_max = _band_matrix(w3[0]) @ b1
        a_avg = _band_matrix(w3[1]) @ b2
        mats.append(jnp.concatenate([a_max, a_avg], axis=1))
    p["awb"] = jnp.stack(mats, axis=0)                            # (2, 24, 48)
    return p


if __name__ == "__main__":
    key = jax.random.PRNGKey(0)
    pkey, xkey = jax.random.split(key)
    params = init_params(pkey)
    x = jax.random.normal(xkey, (2, 3, 16, 16), dtype=jnp.float32)  # NCHW

    fwd = jax.jit(mdehaze_forward)
    out = jax.block_until_ready(fwd(x, params))

    assert out.shape == (2, 3, 16, 16), out.shape
    assert bool(jnp.all(jnp.isfinite(out)))
    print("KERNEL_OK")
</pallas_src>

<mosaic_0001>
module attributes {stable_mosaic.version = 11 : i64} {
  func.func @_mdehaze_kernel(%arg0: i32, %arg1: memref<2x3x256xf32, #tpu.memory_space<vmem>>, %arg2: memref<16x256xf32, #tpu.memory_space<vmem>>, %arg3: memref<6x27xf32, #tpu.memory_space<vmem>>, %arg4: memref<6x56xf32, #tpu.memory_space<vmem>>, %arg5: memref<6x112xf32, #tpu.memory_space<vmem>>, %arg6: memref<6x168xf32, #tpu.memory_space<vmem>>, %arg7: memref<12x6x1xf32, #tpu.memory_space<vmem>>, %arg8: memref<2x3x24xf32, #tpu.memory_space<vmem>>, %arg9: memref<6x3x1xf32, #tpu.memory_space<vmem>>, %arg10: memref<2x24x48xf32, #tpu.memory_space<vmem>>, %arg11: memref<5x18xf32, #tpu.memory_space<vmem>>, %arg12: memref<5xf32, #tpu.memory_space<smem>>, %arg13: memref<2x3x256xf32, #tpu.memory_space<vmem>>, %arg14: memref<168x256xf32, #tpu.memory_space<vmem>>) attributes {dimension_semantics = [#tpu.dimension_semantics<parallel>], iteration_bounds = array<i64: 1>, scalar_prefetch = 0 : i64, scratch_operands = 1 : i64, tpu.core_type = #tpu.core_type<tc>, window_params = [{transform_indices = @transform_0, window_bounds = array<i64: 2, 3, 256>}, {pipeline_mode = #tpu.pipeline_mode<synchronous>, transform_indices = @transform_1, window_bounds = array<i64: 16, 256>}, {pipeline_mode = #tpu.pipeline_mode<synchronous>, transform_indices = @transform_2, window_bounds = array<i64: 6, 27>}, {pipeline_mode = #tpu.pipeline_mode<synchronous>, transform_indices = @transform_3, window_bounds = array<i64: 6, 56>}, {pipeline_mode = #tpu.pipeline_mode<synchronous>, transform_indices = @transform_4, window_bounds = array<i64: 6, 112>}, {pipeline_mode = #tpu.pipeline_mode<synchronous>, transform_indices = @transform_5, window_bounds = array<i64: 6, 168>}, {pipeline_mode = #tpu.pipeline_mode<synchronous>, transform_indices = @transform_6, window_bounds = array<i64: 12, 6, 1>}, {pipeline_mode = #tpu.pipeline_mode<synchronous>, transform_indices = @transform_7, window_bounds = array<i64: 2, 3, 24>}, {pipeline_mode = #tpu.pipeline_mode<synchronous>, transform_indices = @transform_8, window_bounds = array<i64: 6, 3, 1>}, {pipeline_mode = #tpu.pipeline_mode<synchronous>, transform_indices = @transform_9, window_bounds = array<i64: 2, 24, 48>}, {pipeline_mode = #tpu.pipeline_mode<synchronous>, transform_indices = @transform_10, window_bounds = array<i64: 5, 18>}, {transform_indices = @transform_11, window_bounds = array<i64: 5>}, {transform_indices = @transform_12, window_bounds = array<i64: 2, 3, 256>}]} {
    %c0 = arith.constant 0 : index
    %c0_0 = arith.constant 0 : index
    %0 = vector.load %arg2[%c0, %c0_0] : memref<16x256xf32, #tpu.memory_space<vmem>>, vector<1x256xf32>
    %c1 = arith.constant 1 : index
    %c0_1 = arith.constant 0 : index
    %1 = vector.load %arg2[%c1, %c0_1] : memref<16x256xf32, #tpu.memory_space<vmem>>, vector<1x256xf32>
    %c2 = arith.constant 2 : index
    %c0_2 = arith.constant 0 : index
    %2 = vector.load %arg2[%c2, %c0_2] : memref<16x256xf32, #tpu.memory_space<vmem>>, vector<1x256xf32>
    %c3 = arith.constant 3 : index
    %c0_3 = arith.constant 0 : index
    %3 = vector.load %arg2[%c3, %c0_3] : memref<16x256xf32, #tpu.memory_space<vmem>>, vector<1x256xf32>
    %c4 = arith.constant 4 : index
    %c0_4 = arith.constant 0 : index
    %4 = vector.load %arg2[%c4, %c0_4] : memref<16x256xf32, #tpu.memory_space<vmem>>, vector<1x256xf32>
    %c5 = arith.constant 5 : index
    %c0_5 = arith.constant 0 : index
    %5 = vector.load %arg2[%c5, %c0_5] : memref<16x256xf32, #tpu.memory_space<vmem>>, vector<1x256xf32>
    %c6 = arith.constant 6 : index
    %c0_6 = arith.constant 0 : index
    %6 = vector.load %arg2[%c6, %c0_6] : memref<16x256xf32, #tpu.memory_space<vmem>>, vector<1x256xf32>
    %c7 = arith.constant 7 : index
    %c0_7 = arith.constant 0 : index
    %7 = vector.load %arg2[%c7, %c0_7] : memref<16x256xf32, #tpu.memory_space<vmem>>, vector<1x256xf32>
    %c8 = arith.constant 8 : index
    %c0_8 = arith.constant 0 : index
    %8 = vector.load %arg2[%c8, %c0_8] : memref<16x256xf32, #tpu.memory_space<vmem>>, vector<1x256xf32>
    %c9 = arith.constant 9 : index
    %c0_9 = arith.constant 0 : index
    %9 = vector.load %arg2[%c9, %c0_9] : memref<16x256xf32, #tpu.memory_space<vmem>>, vector<1x256xf32>
    %c10 = arith.constant 10 : index
    %c0_10 = arith.constant 0 : index
    %10 = vector.load %arg2[%c10, %c0_10] : memref<16x256xf32, #tpu.memory_space<vmem>>, vector<1x256xf32>
    %c11 = arith.constant 11 : index
    %c0_11 = arith.constant 0 : index
    %11 = vector.load %arg2[%c11, %c0_11] : memref<16x256xf32, #tpu.memory_space<vmem>>, vector<1x256xf32>
    %c12 = arith.constant 12 : index
    %c0_12 = arith.constant 0 : index
    %12 = vector.load %arg2[%c12, %c0_12] : memref<16x256xf32, #tpu.memory_space<vmem>>, vector<1x256xf32>
    %c13 = arith.constant 13 : index
    %c0_13 = arith.constant 0 : index
    %13 = vector.load %arg2[%c13, %c0_13] : memref<16x256xf32, #tpu.memory_space<vmem>>, vector<1x256xf32>
    %c14 = arith.constant 14 : index
    %c0_14 = arith.constant 0 : index
    %14 = vector.load %arg2[%c14, %c0_14] : memref<16x256xf32, #tpu.memory_space<vmem>>, vector<1x256xf32>
    %c15 = arith.constant 15 : index
    %c0_15 = arith.constant 0 : index
    %15 = vector.load %arg2[%c15, %c0_15] : memref<16x256xf32, #tpu.memory_space<vmem>>, vector<1x256xf32>
    %cst = arith.constant 0.000000e+00 : f32
    %16 = vector.broadcast %cst : f32 to vector<2x256xf32>
    %c0_16 = arith.constant 0 : index
    %c0_17 = arith.constant 0 : index
    %c0_18 = arith.constant 0 : index
    %17 = vector.load %arg1[%c0_16, %c0_17, %c0_18] : memref<2x3x256xf32, #tpu.memory_space<vmem>>, vector<1x3x256xf32>
    %18 = vector.shape_cast %17 : vector<1x3x256xf32> to vector<3x256xf32>
    %c34_i32 = arith.constant 34 : i32
    %19 = tpu.dynamic_rotate %18 by %c34_i32 dim 1 : vector<3x256xf32>, i32 -> vector<3x256xf32>
    %20 = vector.broadcast %0 : vector<1x256xf32> to vector<3x256xf32>
    %21 = arith.mulf %19, %20 : vector<3x256xf32>
    %c32_i32 = arith.constant 32 : i32
    %22 = tpu.dynamic_rotate %18 by %c32_i32 dim 1 : vector<3x256xf32>, i32 -> vector<3x256xf32>
    %23 = vector.broadcast %1 : vector<1x256xf32> to vector<3x256xf32>
    %24 = arith.mulf %22, %23 : vector<3x256xf32>
    %c30_i32 = arith.constant 30 : i32
    %25 = tpu.dynamic_rotate %18 by %c30_i32 dim 1 : vector<3x256xf32>, i32 -> vector<3x256xf32>
    %26 = vector.broadcast %2 : vector<1x256xf32> to vector<3x256xf32>
    %27 = arith.mulf %25, %26 : vector<3x256xf32>
    %c2_i32 = arith.constant 2 : i32
    %28 = tpu.dynamic_rotate %18 by %c2_i32 dim 1 : vector<3x256xf32>, i32 -> vector<3x256xf32>
    %29 = vector.broadcast %3 : vector<1x256xf32> to vector<3x256xf32>
    %30 = arith.mulf %28, %29 : vector<3x256xf32>
    %c254_i32 = arith.constant 254 : i32
    %31 = tpu.dynamic_rotate %18 by %c254_i32 dim 1 : vector<3x256xf32>, i32 -> vector<3x256xf32>
    %32 = vector.broadcast %4 : vector<1x256xf32> to vector<3x256xf32>
    %33 = arith.mulf %31, %32 : vector<3x256xf32>
    %c226_i32 = arith.constant 226 : i32
    %34 = tpu.dynamic_rotate %18 by %c226_i32 dim 1 : vector<3x256xf32>, i32 -> vector<3x256xf32>
    %35 = vector.broadcast %5 : vector<1x256xf32> to vector<3x256xf32>
    %36 = arith.mulf %34, %35 : vector<3x256xf32>
    %c224_i32 = arith.constant 224 : i32
    %37 = tpu.dynamic_rotate %18 by %c224_i32 dim 1 : vector<3x256xf32>, i32 -> vector<3x256xf32>
    %38 = vector.broadcast %6 : vector<1x256xf32> to vector<3x256xf32>
    %39 = arith.mulf %37, %38 : vector<3x256xf32>
    %c222_i32 = arith.constant 222 : i32
    %40 = tpu.dynamic_rotate %18 by %c222_i32 dim 1 : vector<3x256xf32>, i32 -> vector<3x256xf32>
    %41 = vector.broadcast %7 : vector<1x256xf32> to vector<3x256xf32>
    %42 = arith.mulf %40, %41 : vector<3x256xf32>
    %43 = tpu.concatenate %21, %24, %27, %30, %18, %33, %36, %39, %42 in 0 : vector<3x256xf32>, vector<3x256xf32>, vector<3x256xf32>, vector<3x256xf32>, vector<3x256xf32>, vector<3x256xf32>, vector<3x256xf32>, vector<3x256xf32>, vector<3x256xf32> -> vector<27x256xf32>
    %c0_19 = arith.constant 0 : index
    %c0_20 = arith.constant 0 : index
    %44 = vector.load %arg3[%c0_19, %c0_20] : memref<6x27xf32, #tpu.memory_space<vmem>>, vector<6x27xf32>
    %cst_21 = arith.constant dense<0.000000e+00> : vector<6x256xf32>
    %45 = tpu.matmul %44, %43, %cst_21 {dimension_numbers = #tpu.dot_dimension_numbers<[1], [0], [0], [1], [0, 0, 1, 1], [], []>} : vector<6x27xf32>, vector<27x256xf32>, vector<6x256xf32> -> vector<6x256xf32>
    %c0_22 = arith.constant 0 : index
    %c0_23 = arith.constant 0 : index
    %c0_24 = arith.constant 0 : index
    %46 = vector.load %arg7[%c0_22, %c0_23, %c0_24] : memref<12x6x1xf32, #tpu.memory_space<vmem>>, vector<1x6x1xf32>
    %47 = vector.shape_cast %46 : vector<1x6x1xf32> to vector<6x1xf32>
    %48 = vector.broadcast %47 : vector<6x1xf32> to vector<6x256xf32>
    %49 = arith.addf %45, %48 : vector<6x256xf32>
    %c1_25 = arith.constant 1 : index
    %c0_26 = arith.constant 0 : index
    %c0_27 = arith.constant 0 : index
    %50 = vector.load %arg7[%c1_25, %c0_26, %c0_27] : memref<12x6x1xf32, #tpu.memory_space<vmem>>, vector<1x6x1xf32>
    %51 = vector.shape_cast %50 : vector<1x6x1xf32> to vector<6x1xf32>
    %c2_28 = arith.constant 2 : index
    %c0_29 = arith.constant 0 : index
    %c0_30 = arith.constant 0 : index
    %52 = vector.load %arg7[%c2_28, %c0_29, %c0_30] : memref<12x6x1xf32, #tpu.memory_space<vmem>>, vector<1x6x1xf32>
    %53 = vector.shape_cast %52 : vector<1x6x1xf32> to vector<6x1xf32>
    %cst_31 = arith.constant dense<0.000000e+00> : vector<6xf32>
    %54 = vector.multi_reduction <add>, %49, %cst_31 [1] : vector<6x256xf32> to vector<6xf32>
    %55 = vector.shape_cast %54 : vector<6xf32> to vector<6x1xf32>
    %cst_32 = arith.constant 2.560000e+02 : f32
    %56 = vector.broadcast %cst_32 : f32 to vector<6x1xf32>
    %57 = arith.divf %55, %56 : vector<6x1xf32>
    %58 = arith.mulf %49, %49 : vector<6x256xf32>
    %cst_33 = arith.constant dense<0.000000e+00> : vector<6xf32>
    %59 = vector.multi_reduction <add>, %58, %cst_33 [1] : vector<6x256xf32> to vector<6xf32>
    %60 = vector.shape_cast %59 : vector<6xf32> to vector<6x1xf32>
    %cst_34 = arith.constant 2.560000e+02 : f32
    %61 = vector.broadcast %cst_34 : f32 to vector<6x1xf32>
    %62 = arith.divf %60, %61 : vector<6x1xf32>
    %63 = arith.mulf %57, %57 : vector<6x1xf32>
    %64 = arith.subf %62, %63 : vector<6x1xf32>
    %cst_35 = arith.constant 0.000000e+00 : f32
    %65 = vector.broadcast %cst_35 : f32 to vector<6x1xf32>
    %66 = arith.maximumf %64, %65 : vector<6x1xf32>
    %67 = vector.broadcast %57 : vector<6x1xf32> to vector<6x256xf32>
    %68 = arith.subf %49, %67 : vector<6x256xf32>
    %cst_36 = arith.constant 9.99999974E-6 : f32
    %69 = vector.broadcast %cst_36 : f32 to vector<6x1xf32>
    %70 = arith.addf %66, %69 : vector<6x1xf32>
    %71 = math.rsqrt %70 : vector<6x1xf32>
    %72 = vector.broadcast %71 : vector<6x1xf32> to vector<6x256xf32>
    %73 = arith.mulf %68, %72 : vector<6x256xf32>
    %74 = vector.broadcast %51 : vector<6x1xf32> to vector<6x256xf32>
    %75 = arith.mulf %73, %74 : vector<6x256xf32>
    %76 = vector.broadcast %53 : vector<6x1xf32> to vector<6x256xf32>
    %77 = arith.addf %75, %76 : vector<6x256xf32>
    %cst_37 = arith.constant 0.000000e+00 : f32
    %78 = vector.broadcast %cst_37 : f32 to vector<6x256xf32>
    %79 = arith.cmpf oge, %77, %78 : vector<6x256xf32>
    %cst_38 = arith.constant 0.229166672 : f32
    %80 = vector.broadcast %cst_38 : f32 to vector<6x256xf32>
    %81 = arith.mulf %80, %77 : vector<6x256xf32>
    %82 = arith.select %79, %77, %81 : vector<6x256xi1>, vector<6x256xf32>
    %c34_i32_39 = arith.constant 34 : i32
    %83 = tpu.dynamic_rotate %82 by %c34_i32_39 dim 1 : vector<6x256xf32>, i32 -> vector<6x256xf32>
    %84 = vector.broadcast %0 : vector<1x256xf32> to vector<6x256xf32>
    %85 = arith.mulf %83, %84 : vector<6x256xf32>
    %c32_i32_40 = arith.constant 32 : i32
    %86 = tpu.dynamic_rotate %82 by %c32_i32_40 dim 1 : vector<6x256xf32>, i32 -> vector<6x256xf32>
    %87 = vector.broadcast %1 : vector<1x256xf32> to vector<6x256xf32>
    %88 = arith.mulf %86, %87 : vector<6x256xf32>
    %c30_i32_41 = arith.constant 30 : i32
    %89 = tpu.dynamic_rotate %82 by %c30_i32_41 dim 1 : vector<6x256xf32>, i32 -> vector<6x256xf32>
    %90 = vector.broadcast %2 : vector<1x256xf32> to vector<6x256xf32>
    %91 = arith.mulf %89, %90 : vector<6x256xf32>
    %c2_i32_42 = arith.constant 2 : i32
    %92 = tpu.dynamic_rotate %82 by %c2_i32_42 dim 1 : vector<6x256xf32>, i32 -> vector<6x256xf32>
    %93 = vector.broadcast %3 : vector<1x256xf32> to vector<6x256xf32>
    %94 = arith.mulf %92, %93 : vector<6x256xf32>
    %c254_i32_43 = arith.constant 254 : i32
    %95 = tpu.dynamic_rotate %82 by %c254_i32_43 dim 1 : vector<6x256xf32>, i32 -> vector<6x256xf32>
    %96 = vector.broadcast %4 : vector<1x256xf32> to vector<6x256xf32>
    %97 = arith.mulf %95, %96 : vector<6x256xf32>
    %c226_i32_44 = arith.constant 226 : i32
    %98 = tpu.dynamic_rotate %82 by %c226_i32_44 dim 1 : vector<6x256xf32>, i32 -> vector<6x256xf32>
    %99 = vector.broadcast %5 : vector<1x256xf32> to vector<6x256xf32>
    %100 = arith.mulf %98, %99 : vector<6x256xf32>
    %c224_i32_45 = arith.constant 224 : i32
    %101 = tpu.dynamic_rotate %82 by %c224_i32_45 dim 1 : vector<6x256xf32>, i32 -> vector<6x256xf32>
    %102 = vector.broadcast %6 : vector<1x256xf32> to vector<6x256xf32>
    %103 = arith.mulf %101, %102 : vector<6x256xf32>
    %c222_i32_46 = arith.constant 222 : i32
    %104 = tpu.dynamic_rotate %82 by %c222_i32_46 dim 1 : vector<6x256xf32>, i32 -> vector<6x256xf32>
    %105 = vector.broadcast %7 : vector<1x256xf32> to vector<6x256xf32>
    %106 = arith.mulf %104, %105 : vector<6x256xf32>
    %107 = tpu.concatenate %85, %88, %91, %94, %82, %97, %100, %103, %106, %16 in 0 : vector<6x256xf32>, vector<6x256xf32>, vector<6x256xf32>, vector<6x256xf32>, vector<6x256xf32>, vector<6x256xf32>, vector<6x256xf32>, vector<6x256xf32>, vector<6x256xf32>, vector<2x256xf32> -> vector<56x256xf32>
    %c0_47 = arith.constant 0 : index
    %c0_48 = arith.constant 0 : index
    %108 = vector.load %arg14[%c0_47, %c0_48] : memref<168x256xf32, #tpu.memory_space<vmem>>, vector<56x256xf32>
    tpu.vector_store %arg14[%c0_47, %c0_48], %107 {strides = array<i32>} : memref<168x256xf32, #tpu.memory_space<vmem>>, vector<56x256xf32>,
    %c0_49 = arith.constant 0 : index
    %c0_50 = arith.constant 0 : index
    %109 = vector.load %arg4[%c0_49, %c0_50] : memref<6x56xf32, #tpu.memory_space<vmem>>, vector<6x56xf32>
    %c0_51 = arith.constant 0 : index
    %c0_52 = arith.constant 0 : index
    %110 = vector.load %arg14[%c0_51, %c0_52] : memref<168x256xf32, #tpu.memory_space<vmem>>, vector<56x256xf32>
    %cst_53 = arith.constant dense<0.000000e+00> : vector<6x256xf32>
    %111 = tpu.matmul %109, %110, %cst_53 {dimension_numbers = #tpu.dot_dimension_numbers<[1], [0], [0], [1], [0, 0, 1, 1], [], []>} : vector<6x56xf32>, vector<56x256xf32>, vector<6x256xf32> -> vector<6x256xf32>
    %c3_54 = arith.constant 3 : index
    %c0_55 = arith.constant 0 : index
    %c0_56 = arith.constant 0 : index
    %112 = vector.load %arg7[%c3_54, %c0_55, %c0_56] : memref<12x6x1xf32, #tpu.memory_space<vmem>>, vector<1x6x1xf32>
    %113 = vector.shape_cast %112 : vector<1x6x1xf32> to vector<6x1xf32>
    %114 = vector.broadcast %113 : vector<6x1xf32> to vector<6x256xf32>
    %115 = arith.addf %111, %114 : vector<6x256xf32>
    %c4_57 = arith.constant 4 : index
    %c0_58 = arith.constant 0 : index
    %c0_59 = arith.constant 0 : index
    %116 = vector.load %arg7[%c4_57, %c0_58, %c0_59] : memref<12x6x1xf32, #tpu.memory_space<vmem>>, vector<1x6x1xf32>
    %117 = vector.shape_cast %116 : vector<1x6x1xf32> to vector<6x1xf32>
    %c5_60 = arith.constant 5 : index
    %c0_61 = arith.constant 0 : index
    %c0_62 = arith.constant 0 : index
    %118 = vector.load %arg7[%c5_60, %c0_61, %c0_62] : memref<12x6x1xf32, #tpu.memory_space<vmem>>, vector<1x6x1xf32>
    %119 = vector.shape_cast %118 : vector<1x6x1xf32> to vector<6x1xf32>
    %cst_63 = arith.constant dense<0.000000e+00> : vector<6xf32>
    %120 = vector.multi_reduction <add>, %115, %cst_63 [1] : vector<6x256xf32> to vector<6xf32>
    %121 = vector.shape_cast %120 : vector<6xf32> to vector<6x1xf32>
    %cst_64 = arith.constant 2.560000e+02 : f32
    %122 = vector.broadcast %cst_64 : f32 to vector<6x1xf32>
    %123 = arith.divf %121, %122 : vector<6x1xf32>
    %124 = arith.mulf %115, %115 : vector<6x256xf32>
    %cst_65 = arith.constant dense<0.000000e+00> : vector<6xf32>
    %125 = vector.multi_reduction <add>, %124, %cst_65 [1] : vector<6x256xf32> to vector<6xf32>
    %126 = vector.shape_cast %125 : vector<6xf32> to vector<6x1xf32>
    %cst_66 = arith.constant 2.560000e+02 : f32
    %127 = vector.broadcast %cst_66 : f32 to vector<6x1xf32>
    %128 = arith.divf %126, %127 : vector<6x1xf32>
    %129 = arith.mulf %123, %123 : vector<6x1xf32>
    %130 = arith.subf %128, %129 : vector<6x1xf32>
    %cst_67 = arith.constant 0.000000e+00 : f32
    %131 = vector.broadcast %cst_67 : f32 to vector<6x1xf32>
    %132 = arith.maximumf %130, %131 : vector<6x1xf32>
    %133 = vector.broadcast %123 : vector<6x1xf32> to vector<6x256xf32>
    %134 = arith.subf %115, %133 : vector<6x256xf32>
    %cst_68 = arith.constant 9.99999974E-6 : f32
    %135 = vector.broadcast %cst_68 : f32 to vector<6x1xf32>
    %136 = arith.addf %132, %135 : vector<6x1xf32>
    %137 = math.rsqrt %136 : vector<6x1xf32>
    %138 = vector.broadcast %137 : vector<6x1xf32> to vector<6x256xf32>
    %139 = arith.mulf %134, %138 : vector<6x256xf32>
    %140 = vector.broadcast %117 : vector<6x1xf32> to vector<6x256xf32>
    %141 = arith.mulf %139, %140 : vector<6x256xf32>
    %142 = vector.broadcast %119 : vector<6x1xf32> to vector<6x256xf32>
    %143 = arith.addf %141, %142 : vector<6x256xf32>
    %cst_69 = arith.constant 0.000000e+00 : f32
    %144 = vector.broadcast %cst_69 : f32 to vector<6x256xf32>
    %145 = arith.cmpf oge, %143, %144 : vector<6x256xf32>
    %cst_70 = arith.constant 0.229166672 : f32
    %146 = vector.broadcast %cst_70 : f32 to vector<6x256xf32>
    %147 = arith.mulf %146, %143 : vector<6x256xf32>
    %148 = arith.select %145, %143, %147 : vector<6x256xi1>, vector<6x256xf32>
    %cst_71 = arith.constant dense<0.000000e+00> : vector<256xf32>
    %149 = vector.multi_reduction <add>, %148, %cst_71 [0] : vector<6x256xf32> to vector<256xf32>
    %150 = vector.shape_cast %149 : vector<256xf32> to vector<1x256xf32>
    %cst_72 = arith.constant 6.000000e+00 : f32
    %151 = vector.broadcast %cst_72 : f32 to vector<1x256xf32>
    %152 = arith.divf %150, %151 : vector<1x256xf32>
    %cst_73 = arith.constant dense<0xFF800000> : vector<256xf32>
    %153 = vector.multi_reduction <maximumf>, %148, %cst_73 [0] : vector<6x256xf32> to vector<256xf32>
    %154 = vector.shape_cast %153 : vector<256xf32> to vector<1x256xf32>
    %155 = tpu.concatenate %152, %154 in 0 : vector<1x256xf32>, vector<1x256xf32> -> vector<2x256xf32>
    %c17_i32 = arith.constant 17 : i32
    %156 = tpu.dynamic_rotate %155 by %c17_i32 dim 1 : vector<2x256xf32>, i32 -> vector<2x256xf32>
    %157 = vector.broadcast %8 : vector<1x256xf32> to vector<2x256xf32>
    %158 = arith.mulf %156, %157 : vector<2x256xf32>
    %c16_i32 = arith.constant 16 : i32
    %159 = tpu.dynamic_rotate %155 by %c16_i32 dim 1 : vector<2x256xf32>, i32 -> vector<2x256xf32>
    %160 = vector.broadcast %9 : vector<1x256xf32> to vector<2x256xf32>
    %161 = arith.mulf %159, %160 : vector<2x256xf32>
    %c15_i32 = arith.constant 15 : i32
    %162 = tpu.dynamic_rotate %155 by %c15_i32 dim 1 : vector<2x256xf32>, i32 -> vector<2x256xf32>
    %163 = vector.broadcast %10 : vector<1x256xf32> to vector<2x256xf32>
    %164 = arith.mulf %162, %163 : vector<2x256xf32>
    %c1_i32 = arith.constant 1 : i32
    %165 = tpu.dynamic_rotate %155 by %c1_i32 dim 1 : vector<2x256xf32>, i32 -> vector<2x256xf32>
    %166 = vector.broadcast %11 : vector<1x256xf32> to vector<2x256xf32>
    %167 = arith.mulf %165, %166 : vector<2x256xf32>
    %c255_i32 = arith.constant 255 : i32
    %168 = tpu.dynamic_rotate %155 by %c255_i32 dim 1 : vector<2x256xf32>, i32 -> vector<2x256xf32>
    %169 = vector.broadcast %12 : vector<1x256xf32> to vector<2x256xf32>
    %170 = arith.mulf %168, %169 : vector<2x256xf32>
    %c241_i32 = arith.constant 241 : i32
    %171 = tpu.dynamic_rotate %155 by %c241_i32 dim 1 : vector<2x256xf32>, i32 -> vector<2x256xf32>
    %172 = vector.broadcast %13 : vector<1x256xf32> to vector<2x256xf32>
    %173 = arith.mulf %171, %172 : vector<2x256xf32>
    %c240_i32 = arith.constant 240 : i32
    %174 = tpu.dynamic_rotate %155 by %c240_i32 dim 1 : vector<2x256xf32>, i32 -> vector<2x256xf32>
    %175 = vector.broadcast %14 : vector<1x256xf32> to vector<2x256xf32>
    %176 = arith.mulf %174, %175 : vector<2x256xf32>
    %c239_i32 = arith.constant 239 : i32
    %177 = tpu.dynamic_rotate %155 by %c239_i32 dim 1 : vector<2x256xf32>, i32 -> vector<2x256xf32>
    %178 = vector.broadcast %15 : vector<1x256xf32> to vector<2x256xf32>
    %179 = arith.mulf %177, %178 : vector<2x256xf32>
    %180 = tpu.concatenate %158, %161, %164, %167, %155, %170, %173, %176, %179 in 0 : vector<2x256xf32>, vector<2x256xf32>, vector<2x256xf32>, vector<2x256xf32>, vector<2x256xf32>, vector<2x256xf32>, vector<2x256xf32>, vector<2x256xf32>, vector<2x256xf32> -> vector<18x256xf32>
    %c0_74 = arith.constant 0 : index
    %c0_75 = arith.constant 0 : index
    %181 = vector.load %arg11[%c0_74, %c0_75] : memref<5x18xf32, #tpu.memory_space<vmem>>, vector<1x18xf32>
    %cst_76 = arith.constant dense<0.000000e+00> : vector<1x256xf32>
    %182 = tpu.matmul %181, %180, %cst_76 {dimension_numbers = #tpu.dot_dimension_numbers<[1], [0], [0], [1], [0, 0, 1, 1], [], []>} : vector<1x18xf32>, vector<18x256xf32>, vector<1x256xf32> -> vector<1x256xf32>
    %c0_77 = arith.constant 0 : index
    %183 = memref.load %arg12[%c0_77] : memref<5xf32, #tpu.memory_space<smem>>
    %184 = vector.broadcast %183 : f32 to vector<1x256xf32>
    %185 = arith.addf %182, %184 : vector<1x256xf32>
    %186 = arith.negf %185 : vector<1x256xf32>
    %187 = math.exp %186 : vector<1x256xf32>
    %cst_78 = arith.constant 1.000000e+00 : f32
    %188 = vector.broadcast %cst_78 : f32 to vector<1x256xf32>
    %189 = arith.addf %188, %187 : vector<1x256xf32>
    %190 = arith.divf %188, %189 : vector<1x256xf32>
    %191 = vector.broadcast %190 : vector<1x256xf32> to vector<6x256xf32>
    %192 = arith.mulf %148, %191 : vector<6x256xf32>
    %c34_i32_79 = arith.constant 34 : i32
    %193 = tpu.dynamic_rotate %192 by %c34_i32_79 dim 1 : vector<6x256xf32>, i32 -> vector<6x256xf32>
    %194 = vector.broadcast %0 : vector<1x256xf32> to vector<6x256xf32>
    %195 = arith.mulf %193, %194 : vector<6x256xf32>
    %c32_i32_80 = arith.constant 32 : i32
    %196 = tpu.dynamic_rotate %192 by %c32_i32_80 dim 1 : vector<6x256xf32>, i32 -> vector<6x256xf32>
    %197 = vector.broadcast %1 : vector<1x256xf32> to vector<6x256xf32>
    %198 = arith.mulf %196, %197 : vector<6x256xf32>
    %c30_i32_81 = arith.constant 30 : i32
    %199 = tpu.dynamic_rotate %192 by %c30_i32_81 dim 1 : vector<6x256xf32>, i32 -> vector<6x256xf32>
    %200 = vector.broadcast %2 : vector<1x256xf32> to vector<6x256xf32>
    %201 = arith.mulf %199, %200 : vector<6x256xf32>
    %c2_i32_82 = arith.constant 2 : i32
    %202 = tpu.dynamic_rotate %192 by %c2_i32_82 dim 1 : vector<6x256xf32>, i32 -> vector<6x256xf32>
    %203 = vector.broadcast %3 : vector<1x256xf32> to vector<6x256xf32>
    %204 = arith.mulf %202, %203 : vector<6x256xf32>
    %c254_i32_83 = arith.constant 254 : i32
    %205 = tpu.dynamic_rotate %192 by %c254_i32_83 dim 1 : vector<6x256xf32>, i32 -> vector<6x256xf32>
    %206 = vector.broadcast %4 : vector<1x256xf32> to vector<6x256xf32>
    %207 = arith.mulf %205, %206 : vector<6x256xf32>
    %c226_i32_84 = arith.constant 226 : i32
    %208 = tpu.dynamic_rotate %192 by %c226_i32_84 dim 1 : vector<6x256xf32>, i32 -> vector<6x256xf32>
    %209 = vector.broadcast %5 : vector<1x256xf32> to vector<6x256xf32>
    %210 = arith.mulf %208, %209 : vector<6x256xf32>
    %c224_i32_85 = arith.constant 224 : i32
    %211 = tpu.dynamic_rotate %192 by %c224_i32_85 dim 1 : vector<6x256xf32>, i32 -> vector<6x256xf32>
    %212 = vector.broadcast %6 : vector<1x256xf32> to vector<6x256xf32>
    %213 = arith.mulf %211, %212 : vector<6x256xf32>
    %c222_i32_86 = arith.constant 222 : i32
    %214 = tpu.dynamic_rotate %192 by %c222_i32_86 dim 1 : vector<6x256xf32>, i32 -> vector<6x256xf32>
    %215 = vector.broadcast %7 : vector<1x256xf32> to vector<6x256xf32>
    %216 = arith.mulf %214, %215 : vector<6x256xf32>
    %217 = tpu.concatenate %195, %198, %201, %204, %192, %207, %210, %213, %216, %16 in 0 : vector<6x256xf32>, vector<6x256xf32>, vector<6x256xf32>, vector<6x256xf32>, vector<6x256xf32>, vector<6x256xf32>, vector<6x256xf32>, vector<6x256xf32>, vector<6x256xf32>, vector<2x256xf32> -> vector<56x256xf32>
    %c56 = arith.constant 56 : index
    %c0_87 = arith.constant 0 : index
    %218 = vector.load %arg14[%c56, %c0_87] : memref<168x256xf32, #tpu.memory_space<vmem>>, vector<56x256xf32>
    tpu.vector_store %arg14[%c56, %c0_87], %217 {strides = array<i32>} : memref<168x256xf32, #tpu.memory_space<vmem>>, vector<56x256xf32>,
    %c0_88 = arith.constant 0 : index
    %c0_89 = arith.constant 0 : index
    %219 = vector.load %arg5[%c0_88, %c0_89] : memref<6x112xf32, #tpu.memory_space<vmem>>, vector<6x112xf32>
    %c0_90 = arith.constant 0 : index
    %c0_91 = arith.constant 0 : index
    %220 = vector.load %arg14[%c0_90, %c0_91] : memref<168x256xf32, #tpu.memory_space<vmem>>, vector<112x256xf32>
    %cst_92 = arith.constant dense<0.000000e+00> : vector<6x256xf32>
    %221 = tpu.matmul %219, %220, %cst_92 {dimension_numbers = #tpu.dot_dimension_numbers<[1], [0], [0], [1], [0, 0, 1, 1], [], []>} : vector<6x112xf32>, vector<112x256xf32>, vector<6x256xf32> -> vector<6x256xf32>
    %c6_93 = arith.constant 6 : index
    %c0_94 = arith.constant 0 : index
    %c0_95 = arith.constant 0 : index
    %222 = vector.load %arg7[%c6_93, %c0_94, %c0_95] : memref<12x6x1xf32, #tpu.memory_space<vmem>>, vector<1x6x1xf32>
    %223 = vector.shape_cast %222 : vector<1x6x1xf32> to vector<6x1xf32>
    %224 = vector.broadcast %223 : vector<6x1xf32> to vector<6x256xf32>
    %225 = arith.addf %221, %224 : vector<6x256xf32>
    %c7_96 = arith.constant 7 : index
    %c0_97 = arith.constant 0 : index
    %c0_98 = arith.constant 0 : index
    %226 = vector.load %arg7[%c7_96, %c0_97, %c0_98] : memref<12x6x1xf32, #tpu.memory_space<vmem>>, vector<1x6x1xf32>
    %227 = vector.shape_cast %226 : vector<1x6x1xf32> to vector<6x1xf32>
    %c8_99 = arith.constant 8 : index
    %c0_100 = arith.constant 0 : index
    %c0_101 = arith.constant 0 : index
    %228 = vector.load %arg7[%c8_99, %c0_100, %c0_101] : memref<12x6x1xf32, #tpu.memory_space<vmem>>, vector<1x6x1xf32>
    %229 = vector.shape_cast %228 : vector<1x6x1xf32> to vector<6x1xf32>
    %cst_102 = arith.constant dense<0.000000e+00> : vector<6xf32>
    %230 = vector.multi_reduction <add>, %225, %cst_102 [1] : vector<6x256xf32> to vector<6xf32>
    %231 = vector.shape_cast %230 : vector<6xf32> to vector<6x1xf32>
    %cst_103 = arith.constant 2.560000e+02 : f32
    %232 = vector.broadcast %cst_103 : f32 to vector<6x1xf32>
    %233 = arith.divf %231, %232 : vector<6x1xf32>
    %234 = arith.mulf %225, %225 : vector<6x256xf32>
    %cst_104 = arith.constant dense<0.000000e+00> : vector<6xf32>
    %235 = vector.multi_reduction <add>, %234, %cst_104 [1] : vector<6x256xf32> to vector<6xf32>
    %236 = vector.shape_cast %235 : vector<6xf32> to vector<6x1xf32>
    %cst_105 = arith.constant 2.560000e+02 : f32
    %237 = vector.broadcast %cst_105 : f32 to vector<6x1xf32>
    %238 = arith.divf %236, %237 : vector<6x1xf32>
    %239 = arith.mulf %233, %233 : vector<6x1xf32>
    %240 = arith.subf %238, %239 : vector<6x1xf32>
    %cst_106 = arith.constant 0.000000e+00 : f32
    %241 = vector.broadcast %cst_106 : f32 to vector<6x1xf32>
    %242 = arith.maximumf %240, %241 : vector<6x1xf32>
    %243 = vector.broadcast %233 : vector<6x1xf32> to vector<6x256xf32>
    %244 = arith.subf %225, %243 : vector<6x256xf32>
    %cst_107 = arith.constant 9.99999974E-6 : f32
    %245 = vector.broadcast %cst_107 : f32 to vector<6x1xf32>
    %246 = arith.addf %242, %245 : vector<6x1xf32>
    %247 = math.rsqrt %246 : vector<6x1xf32>
    %248 = vector.broadcast %247 : vector<6x1xf32> to vector<6x256xf32>
    %249 = arith.mulf %244, %248 : vector<6x256xf32>
    %250 = vector.broadcast %227 : vector<6x1xf32> to vector<6x256xf32>
    %251 = arith.mulf %249, %250 : vector<6x256xf32>
    %252 = vector.broadcast %229 : vector<6x1xf32> to vector<6x256xf32>
    %253 = arith.addf %251, %252 : vector<6x256xf32>
    %cst_108 = arith.constant 0.000000e+00 : f32
    %254 = vector.broadcast %cst_108 : f32 to vector<6x256xf32>
    %255 = arith.cmpf oge, %253, %254 : vector<6x256xf32>
    %cst_109 = arith.constant 0.229166672 : f32
    %256 = vector.broadcast %cst_109 : f32 to vector<6x256xf32>
    %257 = arith.mulf %256, %253 : vector<6x256xf32>
    %258 = arith.select %255, %253, %257 : vector<6x256xi1>, vector<6x256xf32>
    %cst_110 = arith.constant dense<0.000000e+00> : vector<256xf32>
    %259 = vector.multi_reduction <add>, %258, %cst_110 [0] : vector<6x256xf32> to vector<256xf32>
    %260 = vector.shape_cast %259 : vector<256xf32> to vector<1x256xf32>
    %cst_111 = arith.constant 6.000000e+00 : f32
    %261 = vector.broadcast %cst_111 : f32 to vector<1x256xf32>
    %262 = arith.divf %260, %261 : vector<1x256xf32>
    %cst_112 = arith.constant dense<0xFF800000> : vector<256xf32>
    %263 = vector.multi_reduction <maximumf>, %258, %cst_112 [0] : vector<6x256xf32> to vector<256xf32>
    %264 = vector.shape_cast %263 : vector<256xf32> to vector<1x256xf32>
    %265 = tpu.concatenate %262, %264 in 0 : vector<1x256xf32>, vector<1x256xf32> -> vector<2x256xf32>
    %c17_i32_113 = arith.constant 17 : i32
    %266 = tpu.dynamic_rotate %265 by %c17_i32_113 dim 1 : vector<2x256xf32>, i32 -> vector<2x256xf32>
    %267 = vector.broadcast %8 : vector<1x256xf32> to vector<2x256xf32>
    %268 = arith.mulf %266, %267 : vector<2x256xf32>
    %c16_i32_114 = arith.constant 16 : i32
    %269 = tpu.dynamic_rotate %265 by %c16_i32_114 dim 1 : vector<2x256xf32>, i32 -> vector<2x256xf32>
    %270 = vector.broadcast %9 : vector<1x256xf32> to vector<2x256xf32>
    %271 = arith.mulf %269, %270 : vector<2x256xf32>
    %c15_i32_115 = arith.constant 15 : i32
    %272 = tpu.dynamic_rotate %265 by %c15_i32_115 dim 1 : vector<2x256xf32>, i32 -> vector<2x256xf32>
    %273 = vector.broadcast %10 : vector<1x256xf32> to vector<2x256xf32>
    %274 = arith.mulf %272, %273 : vector<2x256xf32>
    %c1_i32_116 = arith.constant 1 : i32
    %275 = tpu.dynamic_rotate %265 by %c1_i32_116 dim 1 : vector<2x256xf32>, i32 -> vector<2x256xf32>
    %276 = vector.broadcast %11 : vector<1x256xf32> to vector<2x256xf32>
    %277 = arith.mulf %275, %276 : vector<2x256xf32>
    %c255_i32_117 = arith.constant 255 : i32
    %278 = tpu.dynamic_rotate %265 by %c255_i32_117 dim 1 : vector<2x256xf32>, i32 -> vector<2x256xf32>
    %279 = vector.broadcast %12 : vector<1x256xf32> to vector<2x256xf32>
    %280 = arith.mulf %278, %279 : vector<2x256xf32>
    %c241_i32_118 = arith.constant 241 : i32
    %281 = tpu.dynamic_rotate %265 by %c241_i32_118 dim 1 : vector<2x256xf32>, i32 -> vector<2x256xf32>
    %282 = vector.broadcast %13 : vector<1x256xf32> to vector<2x256xf32>
    %283 = arith.mulf %281, %282 : vector<2x256xf32>
    %c240_i32_119 = arith.constant 240 : i32
    %284 = tpu.dynamic_rotate %265 by %c240_i32_119 dim 1 : vector<2x256xf32>, i32 -> vector<2x256xf32>
    %285 = vector.broadcast %14 : vector<1x256xf32> to vector<2x256xf32>
    %286 = arith.mulf %284, %285 : vector<2x256xf32>
    %c239_i32_120 = arith.constant 239 : i32
    %287 = tpu.dynamic_rotate %265 by %c239_i32_120 dim 1 : vector<2x256xf32>, i32 -> vector<2x256xf32>
    %288 = vector.broadcast %15 : vector<1x256xf32> to vector<2x256xf32>
    %289 = arith.mulf %287, %288 : vector<2x256xf32>
    %290 = tpu.concatenate %268, %271, %274, %277, %265, %280, %283, %286, %289 in 0 : vector<2x256xf32>, vector<2x256xf32>, vector<2x256xf32>, vector<2x256xf32>, vector<2x256xf32>, vector<2x256xf32>, vector<2x256xf32>, vector<2x256xf32>, vector<2x256xf32> -> vector<18x256xf32>
    %c1_121 = arith.constant 1 : index
    %c0_122 = arith.constant 0 : index
    %291 = vector.load %arg11[%c1_121, %c0_122] : memref<5x18xf32, #tpu.memory_space<vmem>>, vector<1x18xf32>
    %cst_123 = arith.constant dense<0.000000e+00> : vector<1x256xf32>
    %292 = tpu.matmul %291, %290, %cst_123 {dimension_numbers = #tpu.dot_dimension_numbers<[1], [0], [0], [1], [0, 0, 1, 1], [], []>} : vector<1x18xf32>, vector<18x256xf32>, vector<1x256xf32> -> vector<1x256xf32>
    %c1_124 = arith.constant 1 : index
    %293 = memref.load %arg12[%c1_124] : memref<5xf32, #tpu.memory_space<smem>>
    %294 = vector.broadcast %293 : f32 to vector<1x256xf32>
    %295 = arith.addf %292, %294 : vector<1x256xf32>
    %296 = arith.negf %295 : vector<1x256xf32>
    %297 = math.exp %296 : vector<1x256xf32>
    %cst_125 = arith.constant 1.000000e+00 : f32
    %298 = vector.broadcast %cst_125 : f32 to vector<1x256xf32>
    %299 = arith.addf %298, %297 : vector<1x256xf32>
    %300 = arith.divf %298, %299 : vector<1x256xf32>
    %301 = vector.broadcast %300 : vector<1x256xf32> to vector<6x256xf32>
    %302 = arith.mulf %258, %301 : vector<6x256xf32>
    %c34_i32_126 = arith.constant 34 : i32
    %303 = tpu.dynamic_rotate %302 by %c34_i32_126 dim 1 : vector<6x256xf32>, i32 -> vector<6x256xf32>
    %304 = vector.broadcast %0 : vector<1x256xf32> to vector<6x256xf32>
    %305 = arith.mulf %303, %304 : vector<6x256xf32>
    %c32_i32_127 = arith.constant 32 : i32
    %306 = tpu.dynamic_rotate %302 by %c32_i32_127 dim 1 : vector<6x256xf32>, i32 -> vector<6x256xf32>
    %307 = vector.broadcast %1 : vector<1x256xf32> to vector<6x256xf32>
    %308 = arith.mulf %306, %307 : vector<6x256xf32>
    %c30_i32_128 = arith.constant 30 : i32
    %309 = tpu.dynamic_rotate %302 by %c30_i32_128 dim 1 : vector<6x256xf32>, i32 -> vector<6x256xf32>
    %310 = vector.broadcast %2 : vector<1x256xf32> to vector<6x256xf32>
    %311 = arith.mulf %309, %310 : vector<6x256xf32>
    %c2_i32_129 = arith.constant 2 : i32
    %312 = tpu.dynamic_rotate %302 by %c2_i32_129 dim 1 : vector<6x256xf32>, i32 -> vector<6x256xf32>
    %313 = vector.broadcast %3 : vector<1x256xf32> to vector<6x256xf32>
    %314 = arith.mulf %312, %313 : vector<6x256xf32>
    %c254_i32_130 = arith.constant 254 : i32
    %315 = tpu.dynamic_rotate %302 by %c254_i32_130 dim 1 : vector<6x256xf32>, i32 -> vector<6x256xf32>
    %316 = vector.broadcast %4 : vector<1x256xf32> to vector<6x256xf32>
    %317 = arith.mulf %315, %316 : vector<6x256xf32>
    %c226_i32_131 = arith.constant 226 : i32
    %318 = tpu.dynamic_rotate %302 by %c226_i32_131 dim 1 : vector<6x256xf32>, i32 -> vector<6x256xf32>
    %319 = vector.broadcast %5 : vector<1x256xf32> to vector<6x256xf32>
    %320 = arith.mulf %318, %319 : vector<6x256xf32>
    %c224_i32_132 = arith.constant 224 : i32
    %321 = tpu.dynamic_rotate %302 by %c224_i32_132 dim 1 : vector<6x256xf32>, i32 -> vector<6x256xf32>
    %322 = vector.broadcast %6 : vector<1x256xf32> to vector<6x256xf32>
    %323 = arith.mulf %321, %322 : vector<6x256xf32>
    %c222_i32_133 = arith.constant 222 : i32
    %324 = tpu.dynamic_rotate %302 by %c222_i32_133 dim 1 : vector<6x256xf32>, i32 -> vector<6x256xf32>
    %325 = vector.broadcast %7 : vector<1x256xf32> to vector<6x256xf32>
    %326 = arith.mulf %324, %325 : vector<6x256xf32>
    %327 = tpu.concatenate %305, %308, %311, %314, %302, %317, %320, %323, %326, %16 in 0 : vector<6x256xf32>, vector<6x256xf32>, vector<6x256xf32>, vector<6x256xf32>, vector<6x256xf32>, vector<6x256xf32>, vector<6x256xf32>, vector<6x256xf32>, vector<6x256xf32>, vector<2x256xf32> -> vector<56x256xf32>
    %c112 = arith.constant 112 : index
    %c0_134 = arith.constant 0 : index
    %328 = vector.load %arg14[%c112, %c0_134] : memref<168x256xf32, #tpu.memory_space<vmem>>, vector<56x256xf32>
    tpu.vector_store %arg14[%c112, %c0_134], %327 {strides = array<i32>} : memref<168x256xf32, #tpu.memory_space<vmem>>, vector<56x256xf32>,
    %c0_135 = arith.constant 0 : index
    %c0_136 = arith.constant 0 : index
    %329 = vector.load %arg6[%c0_135, %c0_136] : memref<6x168xf32, #tpu.memory_space<vmem>>, vector<6x168xf32>
    %c0_137 = arith.constant 0 : index
    %c0_138 = arith.constant 0 : index
    %330 = vector.load %arg14[%c0_137, %c0_138] : memref<168x256xf32, #tpu.memory_space<vmem>>, vector<168x256xf32>
    %cst_139 = arith.constant dense<0.000000e+00> : vector<6x256xf32>
    %331 = tpu.matmul %329, %330, %cst_139 {dimension_numbers = #tpu.dot_dimension_numbers<[1], [0], [0], [1], [0, 0, 1, 1], [], []>} : vector<6x168xf32>, vector<168x256xf32>, vector<6x256xf32> -> vector<6x256xf32>
    %c9_140 = arith.constant 9 : index
    %c0_141 = arith.constant 0 : index
    %c0_142 = arith.constant 0 : index
    %332 = vector.load %arg7[%c9_140, %c0_141, %c0_142] : memref<12x6x1xf32, #tpu.memory_space<vmem>>, vector<1x6x1xf32>
    %333 = vector.shape_cast %332 : vector<1x6x1xf32> to vector<6x1xf32>
    %334 = vector.broadcast %333 : vector<6x1xf32> to vector<6x256xf32>
    %335 = arith.addf %331, %334 : vector<6x256xf32>
    %c10_143 = arith.constant 10 : index
    %c0_144 = arith.constant 0 : index
    %c0_145 = arith.constant 0 : index
    %336 = vector.load %arg7[%c10_143, %c0_144, %c0_145] : memref<12x6x1xf32, #tpu.memory_space<vmem>>, vector<1x6x1xf32>
    %337 = vector.shape_cast %336 : vector<1x6x1xf32> to vector<6x1xf32>
    %c11_146 = arith.constant 11 : index
    %c0_147 = arith.constant 0 : index
    %c0_148 = arith.constant 0 : index
    %338 = vector.load %arg7[%c11_146, %c0_147, %c0_148] : memref<12x6x1xf32, #tpu.memory_space<vmem>>, vector<1x6x1xf32>
    %339 = vector.shape_cast %338 : vector<1x6x1xf32> to vector<6x1xf32>
    %cst_149 = arith.constant dense<0.000000e+00> : vector<6xf32>
    %340 = vector.multi_reduction <add>, %335, %cst_149 [1] : vector<6x256xf32> to vector<6xf32>
    %341 = vector.shape_cast %340 : vector<6xf32> to vector<6x1xf32>
    %cst_150 = arith.constant 2.560000e+02 : f32
    %342 = vector.broadcast %cst_150 : f32 to vector<6x1xf32>
    %343 = arith.divf %341, %342 : vector<6x1xf32>
    %344 = arith.mulf %335, %335 : vector<6x256xf32>
    %cst_151 = arith.constant dense<0.000000e+00> : vector<6xf32>
    %345 = vector.multi_reduction <add>, %344, %cst_151 [1] : vector<6x256xf32> to vector<6xf32>
    %346 = vector.shape_cast %345 : vector<6xf32> to vector<6x1xf32>
    %cst_152 = arith.constant 2.560000e+02 : f32
    %347 = vector.broadcast %cst_152 : f32 to vector<6x1xf32>
    %348 = arith.divf %346, %347 : vector<6x1xf32>
    %349 = arith.mulf %343, %343 : vector<6x1xf32>
    %350 = arith.subf %348, %349 : vector<6x1xf32>
    %cst_153 = arith.constant 0.000000e+00 : f32
    %351 = vector.broadcast %cst_153 : f32 to vector<6x1xf32>
    %352 = arith.maximumf %350, %351 : vector<6x1xf32>
    %353 = vector.broadcast %343 : vector<6x1xf32> to vector<6x256xf32>
    %354 = arith.subf %335, %353 : vector<6x256xf32>
    %cst_154 = arith.constant 9.99999974E-6 : f32
    %355 = vector.broadcast %cst_154 : f32 to vector<6x1xf32>
    %356 = arith.addf %352, %355 : vector<6x1xf32>
    %357 = math.rsqrt %356 : vector<6x1xf32>
    %358 = vector.broadcast %357 : vector<6x1xf32> to vector<6x256xf32>
    %359 = arith.mulf %354, %358 : vector<6x256xf32>
    %360 = vector.broadcast %337 : vector<6x1xf32> to vector<6x256xf32>
    %361 = arith.mulf %359, %360 : vector<6x256xf32>
    %362 = vector.broadcast %339 : vector<6x1xf32> to vector<6x256xf32>
    %363 = arith.addf %361, %362 : vector<6x256xf32>
    %cst_155 = arith.constant 0.000000e+00 : f32
    %364 = vector.broadcast %cst_155 : f32 to vector<6x256xf32>
    %365 = arith.cmpf oge, %363, %364 : vector<6x256xf32>
    %cst_156 = arith.constant 0.229166672 : f32
    %366 = vector.broadcast %cst_156 : f32 to vector<6x256xf32>
    %367 = arith.mulf %366, %363 : vector<6x256xf32>
    %368 = arith.select %365, %363, %367 : vector<6x256xi1>, vector<6x256xf32>
    %cst_157 = arith.constant dense<0.000000e+00> : vector<256xf32>
    %369 = vector.multi_reduction <add>, %368, %cst_157 [0] : vector<6x256xf32> to vector<256xf32>
    %370 = vector.shape_cast %369 : vector<256xf32> to vector<1x256xf32>
    %cst_158 = arith.constant 6.000000e+00 : f32
    %371 = vector.broadcast %cst_158 : f32 to vector<1x256xf32>
    %372 = arith.divf %370, %371 : vector<1x256xf32>
    %cst_159 = arith.constant dense<0xFF800000> : vector<256xf32>
    %373 = vector.multi_reduction <maximumf>, %368, %cst_159 [0] : vector<6x256xf32> to vector<256xf32>
    %374 = vector.shape_cast %373 : vector<256xf32> to vector<1x256xf32>
    %375 = tpu.concatenate %372, %374 in 0 : vector<1x256xf32>, vector<1x256xf32> -> vector<2x256xf32>
    %c17_i32_160 = arith.constant 17 : i32
    %376 = tpu.dynamic_rotate %375 by %c17_i32_160 dim 1 : vector<2x256xf32>, i32 -> vector<2x256xf32>
    %377 = vector.broadcast %8 : vector<1x256xf32> to vector<2x256xf32>
    %378 = arith.mulf %376, %377 : vector<2x256xf32>
    %c16_i32_161 = arith.constant 16 : i32
    %379 = tpu.dynamic_rotate %375 by %c16_i32_161 dim 1 : vector<2x256xf32>, i32 -> vector<2x256xf32>
    %380 = vector.broadcast %9 : vector<1x256xf32> to vector<2x256xf32>
    %381 = arith.mulf %379, %380 : vector<2x256xf32>
    %c15_i32_162 = arith.constant 15 : i32
    %382 = tpu.dynamic_rotate %375 by %c15_i32_162 dim 1 : vector<2x256xf32>, i32 -> vector<2x256xf32>
    %383 = vector.broadcast %10 : vector<1x256xf32> to vector<2x256xf32>
    %384 = arith.mulf %382, %383 : vector<2x256xf32>
    %c1_i32_163 = arith.constant 1 : i32
    %385 = tpu.dynamic_rotate %375 by %c1_i32_163 dim 1 : vector<2x256xf32>, i32 -> vector<2x256xf32>
    %386 = vector.broadcast %11 : vector<1x256xf32> to vector<2x256xf32>
    %387 = arith.mulf %385, %386 : vector<2x256xf32>
    %c255_i32_164 = arith.constant 255 : i32
    %388 = tpu.dynamic_rotate %375 by %c255_i32_164 dim 1 : vector<2x256xf32>, i32 -> vector<2x256xf32>
    %389 = vector.broadcast %12 : vector<1x256xf32> to vector<2x256xf32>
    %390 = arith.mulf %388, %389 : vector<2x256xf32>
    %c241_i32_165 = arith.constant 241 : i32
    %391 = tpu.dynamic_rotate %375 by %c241_i32_165 dim 1 : vector<2x256xf32>, i32 -> vector<2x256xf32>
    %392 = vector.broadcast %13 : vector<1x256xf32> to vector<2x256xf32>
    %393 = arith.mulf %391, %392 : vector<2x256xf32>
    %c240_i32_166 = arith.constant 240 : i32
    %394 = tpu.dynamic_rotate %375 by %c240_i32_166 dim 1 : vector<2x256xf32>, i32 -> vector<2x256xf32>
    %395 = vector.broadcast %14 : vector<1x256xf32> to vector<2x256xf32>
    %396 = arith.mulf %394, %395 : vector<2x256xf32>
    %c239_i32_167 = arith.constant 239 : i32
    %397 = tpu.dynamic_rotate %375 by %c239_i32_167 dim 1 : vector<2x256xf32>, i32 -> vector<2x256xf32>
    %398 = vector.broadcast %15 : vector<1x256xf32> to vector<2x256xf32>
    %399 = arith.mulf %397, %398 : vector<2x256xf32>
    %400 = tpu.concatenate %378, %381, %384, %387, %375, %390, %393, %396, %399 in 0 : vector<2x256xf32>, vector<2x256xf32>, vector<2x256xf32>, vector<2x256xf32>, vector<2x256xf32>, vector<2x256xf32>, vector<2x256xf32>, vector<2x256xf32>, vector<2x256xf32> -> vector<18x256xf32>
    %c2_168 = arith.constant 2 : index
    %c0_169 = arith.constant 0 : index
    %401 = vector.load %arg11[%c2_168, %c0_169] : memref<5x18xf32, #tpu.memory_space<vmem>>, vector<1x18xf32>
    %cst_170 = arith.constant dense<0.000000e+00> : vector<1x256xf32>
    %402 = tpu.matmul %401, %400, %cst_170 {dimension_numbers = #tpu.dot_dimension_numbers<[1], [0], [0], [1], [0, 0, 1, 1], [], []>} : vector<1x18xf32>, vector<18x256xf32>, vector<1x256xf32> -> vector<1x256xf32>
    %c2_171 = arith.constant 2 : index
    %403 = memref.load %arg12[%c2_171] : memref<5xf32, #tpu.memory_space<smem>>
    %404 = vector.broadcast %403 : f32 to vector<1x256xf32>
    %405 = arith.addf %402, %404 : vector<1x256xf32>
    %406 = arith.negf %405 : vector<1x256xf32>
    %407 = math.exp %406 : vector<1x256xf32>
    %cst_172 = arith.constant 1.000000e+00 : f32
    %408 = vector.broadcast %cst_172 : f32 to vector<1x256xf32>
    %409 = arith.addf %408, %407 : vector<1x256xf32>
    %410 = arith.divf %408, %409 : vector<1x256xf32>
    %411 = vector.broadcast %410 : vector<1x256xf32> to vector<6x256xf32>
    %412 = arith.mulf %368, %411 : vector<6x256xf32>
    %413 = tpu.concatenate %82, %192, %302, %412 in 0 : vector<6x256xf32>, vector<6x256xf32>, vector<6x256xf32>, vector<6x256xf32> -> vector<24x256xf32>
    %cst_173 = arith.constant dense<0xFF800000> : vector<24xf32>
    %414 = vector.multi_reduction <maximumf>, %413, %cst_173 [1] : vector<24x256xf32> to vector<24xf32>
    %415 = vector.shape_cast %414 : vector<24xf32> to vector<24x1xf32>
    %cst_174 = arith.constant dense<0.000000e+00> : vector<24xf32>
    %416 = vector.multi_reduction <add>, %413, %cst_174 [1] : vector<24x256xf32> to vector<24xf32>
    %417 = vector.shape_cast %416 : vector<24xf32> to vector<24x1xf32>
    %cst_175 = arith.constant 2.560000e+02 : f32
    %418 = vector.broadcast %cst_175 : f32 to vector<24x1xf32>
    %419 = arith.divf %417, %418 : vector<24x1xf32>
    %420 = tpu.concatenate %415, %419 in 0 : vector<24x1xf32>, vector<24x1xf32> -> vector<48x1xf32>
    %c0_176 = arith.constant 0 : index
    %c0_177 = arith.constant 0 : index
    %c0_178 = arith.constant 0 : index
    %421 = vector.load %arg10[%c0_176, %c0_177, %c0_178] : memref<2x24x48xf32, #tpu.memory_space<vmem>>, vector<1x24x48xf32>
    %422 = vector.shape_cast %421 : vector<1x24x48xf32> to vector<24x48xf32>
    %cst_179 = arith.constant dense<0.000000e+00> : vector<24x1xf32>
    %423 = tpu.matmul %422, %420, %cst_179 {dimension_numbers = #tpu.dot_dimension_numbers<[1], [0], [0], [1], [0, 0, 1, 1], [], []>} : vector<24x48xf32>, vector<48x1xf32>, vector<24x1xf32> -> vector<24x1xf32>
    %424 = arith.negf %423 : vector<24x1xf32>
    %425 = math.exp %424 : vector<24x1xf32>
    %cst_180 = arith.constant 1.000000e+00 : f32
    %426 = vector.broadcast %cst_180 : f32 to vector<24x1xf32>
    %427 = arith.addf %426, %425 : vector<24x1xf32>
    %428 = arith.divf %426, %427 : vector<24x1xf32>
    %c0_181 = arith.constant 0 : index
    %c0_182 = arith.constant 0 : index
    %c0_183 = arith.constant 0 : index
    %429 = vector.load %arg8[%c0_181, %c0_182, %c0_183] : memref<2x3x24xf32, #tpu.memory_space<vmem>>, vector<1x3x24xf32>
    %430 = vector.shape_cast %429 : vector<1x3x24xf32> to vector<3x24xf32>
    %431 = vector.broadcast %428 : vector<24x1xf32> to vector<24x256xf32>
    %432 = arith.mulf %413, %431 : vector<24x256xf32>
    %cst_184 = arith.constant dense<0.000000e+00> : vector<3x256xf32>
    %433 = tpu.matmul %430, %432, %cst_184 {dimension_numbers = #tpu.dot_dimension_numbers<[1], [0], [0], [1], [0, 0, 1, 1], [], []>} : vector<3x24xf32>, vector<24x256xf32>, vector<3x256xf32> -> vector<3x256xf32>
    %c0_185 = arith.constant 0 : index
    %c0_186 = arith.constant 0 : index
    %c0_187 = arith.constant 0 : index
    %434 = vector.load %arg9[%c0_185, %c0_186, %c0_187] : memref<6x3x1xf32, #tpu.memory_space<vmem>>, vector<1x3x1xf32>
    %435 = vector.shape_cast %434 : vector<1x3x1xf32> to vector<3x1xf32>
    %436 = vector.broadcast %435 : vector<3x1xf32> to vector<3x256xf32>
    %437 = arith.addf %433, %436 : vector<3x256xf32>
    %c1_188 = arith.constant 1 : index
    %c0_189 = arith.constant 0 : index
    %c0_190 = arith.constant 0 : index
    %438 = vector.load %arg9[%c1_188, %c0_189, %c0_190] : memref<6x3x1xf32, #tpu.memory_space<vmem>>, vector<1x3x1xf32>
    %439 = vector.shape_cast %438 : vector<1x3x1xf32> to vector<3x1xf32>
    %c2_191 = arith.constant 2 : index
    %c0_192 = arith.constant 0 : index
    %c0_193 = arith.constant 0 : index
    %440 = vector.load %arg9[%c2_191, %c0_192, %c0_193] : memref<6x3x1xf32, #tpu.memory_space<vmem>>, vector<1x3x1xf32>
    %441 = vector.shape_cast %440 : vector<1x3x1xf32> to vector<3x1xf32>
    %cst_194 = arith.constant dense<0.000000e+00> : vector<3xf32>
    %442 = vector.multi_reduction <add>, %437, %cst_194 [1] : vector<3x256xf32> to vector<3xf32>
    %443 = vector.shape_cast %442 : vector<3xf32> to vector<3x1xf32>
    %cst_195 = arith.constant 2.560000e+02 : f32
    %444 = vector.broadcast %cst_195 : f32 to vector<3x1xf32>
    %445 = arith.divf %443, %444 : vector<3x1xf32>
    %446 = arith.mulf %437, %437 : vector<3x256xf32>
    %cst_196 = arith.constant dense<0.000000e+00> : vector<3xf32>
    %447 = vector.multi_reduction <add>, %446, %cst_196 [1] : vector<3x256xf32> to vector<3xf32>
    %448 = vector.shape_cast %447 : vector<3xf32> to vector<3x1xf32>
    %cst_197 = arith.constant 2.560000e+02 : f32
    %449 = vector.broadcast %cst_197 : f32 to vector<3x1xf32>
    %450 = arith.divf %448, %449 : vector<3x1xf32>
    %451 = arith.mulf %445, %445 : vector<3x1xf32>
    %452 = arith.subf %450, %451 : vector<3x1xf32>
    %cst_198 = arith.constant 0.000000e+00 : f32
    %453 = vector.broadcast %cst_198 : f32 to vector<3x1xf32>
    %454 = arith.maximumf %452, %453 : vector<3x1xf32>
    %455 = vector.broadcast %445 : vector<3x1xf32> to vector<3x256xf32>
    %456 = arith.subf %437, %455 : vector<3x256xf32>
    %cst_199 = arith.constant 9.99999974E-6 : f32
    %457 = vector.broadcast %cst_199 : f32 to vector<3x1xf32>
    %458 = arith.addf %454, %457 : vector<3x1xf32>
    %459 = math.rsqrt %458 : vector<3x1xf32>
    %460 = vector.broadcast %459 : vector<3x1xf32> to vector<3x256xf32>
    %461 = arith.mulf %456, %460 : vector<3x256xf32>
    %462 = vector.broadcast %439 : vector<3x1xf32> to vector<3x256xf32>
    %463 = arith.mulf %461, %462 : vector<3x256xf32>
    %464 = vector.broadcast %441 : vector<3x1xf32> to vector<3x256xf32>
    %465 = arith.addf %463, %464 : vector<3x256xf32>
    %cst_200 = arith.constant dense<0.000000e+00> : vector<256xf32>
    %466 = vector.multi_reduction <add>, %465, %cst_200 [0] : vector<3x256xf32> to vector<256xf32>
    %467 = vector.shape_cast %466 : vector<256xf32> to vector<1x256xf32>
    %cst_201 = arith.constant 3.000000e+00 : f32
    %468 = vector.broadcast %cst_201 : f32 to vector<1x256xf32>
    %469 = arith.divf %467, %468 : vector<1x256xf32>
    %cst_202 = arith.constant dense<0xFF800000> : vector<256xf32>
    %470 = vector.multi_reduction <maximumf>, %465, %cst_202 [0] : vector<3x256xf32> to vector<256xf32>
    %471 = vector.shape_cast %470 : vector<256xf32> to vector<1x256xf32>
    %472 = tpu.concatenate %469, %471 in 0 : vector<1x256xf32>, vector<1x256xf32> -> vector<2x256xf32>
    %c17_i32_203 = arith.constant 17 : i32
    %473 = tpu.dynamic_rotate %472 by %c17_i32_203 dim 1 : vector<2x256xf32>, i32 -> vector<2x256xf32>
    %474 = vector.broadcast %8 : vector<1x256xf32> to vector<2x256xf32>
    %475 = arith.mulf %473, %474 : vector<2x256xf32>
    %c16_i32_204 = arith.constant 16 : i32
    %476 = tpu.dynamic_rotate %472 by %c16_i32_204 dim 1 : vector<2x256xf32>, i32 -> vector<2x256xf32>
    %477 = vector.broadcast %9 : vector<1x256xf32> to vector<2x256xf32>
    %478 = arith.mulf %476, %477 : vector<2x256xf32>
    %c15_i32_205 = arith.constant 15 : i32
    %479 = tpu.dynamic_rotate %472 by %c15_i32_205 dim 1 : vector<2x256xf32>, i32 -> vector<2x256xf32>
    %480 = vector.broadcast %10 : vector<1x256xf32> to vector<2x256xf32>
    %481 = arith.mulf %479, %480 : vector<2x256xf32>
    %c1_i32_206 = arith.constant 1 : i32
    %482 = tpu.dynamic_rotate %472 by %c1_i32_206 dim 1 : vector<2x256xf32>, i32 -> vector<2x256xf32>
    %483 = vector.broadcast %11 : vector<1x256xf32> to vector<2x256xf32>
    %484 = arith.mulf %482, %483 : vector<2x256xf32>
    %c255_i32_207 = arith.constant 255 : i32
    %485 = tpu.dynamic_rotate %472 by %c255_i32_207 dim 1 : vector<2x256xf32>, i32 -> vector<2x256xf32>
    %486 = vector.broadcast %12 : vector<1x256xf32> to vector<2x256xf32>
    %487 = arith.mulf %485, %486 : vector<2x256xf32>
    %c241_i32_208 = arith.constant 241 : i32
    %488 = tpu.dynamic_rotate %472 by %c241_i32_208 dim 1 : vector<2x256xf32>, i32 -> vector<2x256xf32>
    %489 = vector.broadcast %13 : vector<1x256xf32> to vector<2x256xf32>
    %490 = arith.mulf %488, %489 : vector<2x256xf32>
    %c240_i32_209 = arith.constant 240 : i32
    %491 = tpu.dynamic_rotate %472 by %c240_i32_209 dim 1 : vector<2x256xf32>, i32 -> vector<2x256xf32>
    %492 = vector.broadcast %14 : vector<1x256xf32> to vector<2x256xf32>
    %493 = arith.mulf %491, %492 : vector<2x256xf32>
    %c239_i32_210 = arith.constant 239 : i32
    %494 = tpu.dynamic_rotate %472 by %c239_i32_210 dim 1 : vector<2x256xf32>, i32 -> vector<2x256xf32>
    %495 = vector.broadcast %15 : vector<1x256xf32> to vector<2x256xf32>
    %496 = arith.mulf %494, %495 : vector<2x256xf32>
    %497 = tpu.concatenate %475, %478, %481, %484, %472, %487, %490, %493, %496 in 0 : vector<2x256xf32>, vector<2x256xf32>, vector<2x256xf32>, vector<2x256xf32>, vector<2x256xf32>, vector<2x256xf32>, vector<2x256xf32>, vector<2x256xf32>, vector<2x256xf32> -> vector<18x256xf32>
    %c3_211 = arith.constant 3 : index
    %c0_212 = arith.constant 0 : index
    %498 = vector.load %arg11[%c3_211, %c0_212] : memref<5x18xf32, #tpu.memory_space<vmem>>, vector<1x18xf32>
    %cst_213 = arith.constant dense<0.000000e+00> : vector<1x256xf32>
    %499 = tpu.matmul %498, %497, %cst_213 {dimension_numbers = #tpu.dot_dimension_numbers<[1], [0], [0], [1], [0, 0, 1, 1], [], []>} : vector<1x18xf32>, vector<18x256xf32>, vector<1x256xf32> -> vector<1x256xf32>
    %c3_214 = arith.constant 3 : index
    %500 = memref.load %arg12[%c3_214] : memref<5xf32, #tpu.memory_space<smem>>
    %501 = vector.broadcast %500 : f32 to vector<1x256xf32>
    %502 = arith.addf %499, %501 : vector<1x256xf32>
    %503 = arith.negf %502 : vector<1x256xf32>
    %504 = math.exp %503 : vector<1x256xf32>
    %cst_215 = arith.constant 1.000000e+00 : f32
    %505 = vector.broadcast %cst_215 : f32 to vector<1x256xf32>
    %506 = arith.addf %505, %504 : vector<1x256xf32>
    %507 = arith.divf %505, %506 : vector<1x256xf32>
    %508 = vector.broadcast %507 : vector<1x256xf32> to vector<3x256xf32>
    %509 = arith.mulf %465, %508 : vector<3x256xf32>
    %cst_216 = arith.constant 0.000000e+00 : f32
    %cst_217 = arith.constant 1.000000e+00 : f32
    %510 = vector.broadcast %cst_216 : f32 to vector<3x256xf32>
    %511 = arith.maximumf %510, %509 : vector<3x256xf32>
    %512 = vector.broadcast %cst_217 : f32 to vector<3x256xf32>
    %513 = arith.minimumf %512, %511 : vector<3x256xf32>
    %c1_218 = arith.constant 1 : index
    %c0_219 = arith.constant 0 : index
    %c0_220 = arith.constant 0 : index
    %514 = vector.load %arg10[%c1_218, %c0_219, %c0_220] : memref<2x24x48xf32, #tpu.memory_space<vmem>>, vector<1x24x48xf32>
    %515 = vector.shape_cast %514 : vector<1x24x48xf32> to vector<24x48xf32>
    %cst_221 = arith.constant dense<0.000000e+00> : vector<24x1xf32>
    %516 = tpu.matmul %515, %420, %cst_221 {dimension_numbers = #tpu.dot_dimension_numbers<[1], [0], [0], [1], [0, 0, 1, 1], [], []>} : vector<24x48xf32>, vector<48x1xf32>, vector<24x1xf32> -> vector<24x1xf32>
    %517 = arith.negf %516 : vector<24x1xf32>
    %518 = math.exp %517 : vector<24x1xf32>
    %cst_222 = arith.constant 1.000000e+00 : f32
    %519 = vector.broadcast %cst_222 : f32 to vector<24x1xf32>
    %520 = arith.addf %519, %518 : vector<24x1xf32>
    %521 = arith.divf %519, %520 : vector<24x1xf32>
    %c1_223 = arith.constant 1 : index
    %c0_224 = arith.constant 0 : index
    %c0_225 = arith.constant 0 : index
    %522 = vector.load %arg8[%c1_223, %c0_224, %c0_225] : memref<2x3x24xf32, #tpu.memory_space<vmem>>, vector<1x3x24xf32>
    %523 = vector.shape_cast %522 : vector<1x3x24xf32> to vector<3x24xf32>
    %524 = vector.broadcast %521 : vector<24x1xf32> to vector<24x256xf32>
    %525 = arith.mulf %413, %524 : vector<24x256xf32>
    %cst_226 = arith.constant dense<0.000000e+00> : vector<3x256xf32>
    %526 = tpu.matmul %523, %525, %cst_226 {dimension_numbers = #tpu.dot_dimension_numbers<[1], [0], [0], [1], [0, 0, 1, 1], [], []>} : vector<3x24xf32>, vector<24x256xf32>, vector<3x256xf32> -> vector<3x256xf32>
    %c3_227 = arith.constant 3 : index
    %c0_228 = arith.constant 0 : index
    %c0_229 = arith.constant 0 : index
    %527 = vector.load %arg9[%c3_227, %c0_228, %c0_229] : memref<6x3x1xf32, #tpu.memory_space<vmem>>, vector<1x3x1xf32>
    %528 = vector.shape_cast %527 : vector<1x3x1xf32> to vector<3x1xf32>
    %529 = vector.broadcast %528 : vector<3x1xf32> to vector<3x256xf32>
    %530 = arith.addf %526, %529 : vector<3x256xf32>
    %c4_230 = arith.constant 4 : index
    %c0_231 = arith.constant 0 : index
    %c0_232 = arith.constant 0 : index
    %531 = vector.load %arg9[%c4_230, %c0_231, %c0_232] : memref<6x3x1xf32, #tpu.memory_space<vmem>>, vector<1x3x1xf32>
    %532 = vector.shape_cast %531 : vector<1x3x1xf32> to vector<3x1xf32>
    %c5_233 = arith.constant 5 : index
    %c0_234 = arith.constant 0 : index
    %c0_235 = arith.constant 0 : index
    %533 = vector.load %arg9[%c5_233, %c0_234, %c0_235] : memref<6x3x1xf32, #tpu.memory_space<vmem>>, vector<1x3x1xf32>
    %534 = vector.shape_cast %533 : vector<1x3x1xf32> to vector<3x1xf32>
    %cst_236 = arith.constant dense<0.000000e+00> : vector<3xf32>
    %535 = vector.multi_reduction <add>, %530, %cst_236 [1] : vector<3x256xf32> to vector<3xf32>
    %536 = vector.shape_cast %535 : vector<3xf32> to vector<3x1xf32>
    %cst_237 = arith.constant 2.560000e+02 : f32
    %537 = vector.broadcast %cst_237 : f32 to vector<3x1xf32>
    %538 = arith.divf %536, %537 : vector<3x1xf32>
    %539 = arith.mulf %530, %530 : vector<3x256xf32>
    %cst_238 = arith.constant dense<0.000000e+00> : vector<3xf32>
    %540 = vector.multi_reduction <add>, %539, %cst_238 [1] : vector<3x256xf32> to vector<3xf32>
    %541 = vector.shape_cast %540 : vector<3xf32> to vector<3x1xf32>
    %cst_239 = arith.constant 2.560000e+02 : f32
    %542 = vector.broadcast %cst_239 : f32 to vector<3x1xf32>
    %543 = arith.divf %541, %542 : vector<3x1xf32>
    %544 = arith.mulf %538, %538 : vector<3x1xf32>
    %545 = arith.subf %543, %544 : vector<3x1xf32>
    %cst_240 = arith.constant 0.000000e+00 : f32
    %546 = vector.broadcast %cst_240 : f32 to vector<3x1xf32>
    %547 = arith.maximumf %545, %546 : vector<3x1xf32>
    %548 = vector.broadcast %538 : vector<3x1xf32> to vector<3x256xf32>
    %549 = arith.subf %530, %548 : vector<3x256xf32>
    %cst_241 = arith.constant 9.99999974E-6 : f32
    %550 = vector.broadcast %cst_241 : f32 to vector<3x1xf32>
    %551 = arith.addf %547, %550 : vector<3x1xf32>
    %552 = math.rsqrt %551 : vector<3x1xf32>
    %553 = vector.broadcast %552 : vector<3x1xf32> to vector<3x256xf32>
    %554 = arith.mulf %549, %553 : vector<3x256xf32>
    %555 = vector.broadcast %532 : vector<3x1xf32> to vector<3x256xf32>
    %556 = arith.mulf %554, %555 : vector<3x256xf32>
    %557 = vector.broadcast %534 : vector<3x1xf32> to vector<3x256xf32>
    %558 = arith.addf %556, %557 : vector<3x256xf32>
    %cst_242 = arith.constant dense<0.000000e+00> : vector<256xf32>
    %559 = vector.multi_reduction <add>, %558, %cst_242 [0] : vector<3x256xf32> to vector<256xf32>
    %560 = vector.shape_cast %559 : vector<256xf32> to vector<1x256xf32>
    %cst_243 = arith.constant 3.000000e+00 : f32
    %561 = vector.broadcast %cst_243 : f32 to vector<1x256xf32>
    %562 = arith.divf %560, %561 : vector<1x256xf32>
    %cst_244 = arith.constant dense<0xFF800000> : vector<256xf32>
    %563 = vector.multi_reduction <maximumf>, %558, %cst_244 [0] : vector<3x256xf32> to vector<256xf32>
    %564 = vector.shape_cast %563 : vector<256xf32> to vector<1x256xf32>
    %565 = tpu.concatenate %562, %564 in 0 : vector<1x256xf32>, vector<1x256xf32> -> vector<2x256xf32>
    %c17_i32_245 = arith.constant 17 : i32
    %566 = tpu.dynamic_rotate %565 by %c17_i32_245 dim 1 : vector<2x256xf32>, i32 -> vector<2x256xf32>
    %567 = vector.broadcast %8 : vector<1x256xf32> to vector<2x256xf32>
    %568 = arith.mulf %566, %567 : vector<2x256xf32>
    %c16_i32_246 = arith.constant 16 : i32
    %569 = tpu.dynamic_rotate %565 by %c16_i32_246 dim 1 : vector<2x256xf32>, i32 -> vector<2x256xf32>
    %570 = vector.broadcast %9 : vector<1x256xf32> to vector<2x256xf32>
    %571 = arith.mulf %569, %570 : vector<2x256xf32>
    %c15_i32_247 = arith.constant 15 : i32
    %572 = tpu.dynamic_rotate %565 by %c15_i32_247 dim 1 : vector<2x256xf32>, i32 -> vector<2x256xf32>
    %573 = vector.broadcast %10 : vector<1x256xf32> to vector<2x256xf32>
    %574 = arith.mulf %572, %573 : vector<2x256xf32>
    %c1_i32_248 = arith.constant 1 : i32
    %575 = tpu.dynamic_rotate %565 by %c1_i32_248 dim 1 : vector<2x256xf32>, i32 -> vector<2x256xf32>
    %576 = vector.broadcast %11 : vector<1x256xf32> to vector<2x256xf32>
    %577 = arith.mulf %575, %576 : vector<2x256xf32>
    %c255_i32_249 = arith.constant 255 : i32
    %578 = tpu.dynamic_rotate %565 by %c255_i32_249 dim 1 : vector<2x256xf32>, i32 -> vector<2x256xf32>
    %579 = vector.broadcast %12 : vector<1x256xf32> to vector<2x256xf32>
    %580 = arith.mulf %578, %579 : vector<2x256xf32>
    %c241_i32_250 = arith.constant 241 : i32
    %581 = tpu.dynamic_rotate %565 by %c241_i32_250 dim 1 : vector<2x256xf32>, i32 -> vector<2x256xf32>
    %582 = vector.broadcast %13 : vector<1x256xf32> to vector<2x256xf32>
    %583 = arith.mulf %581, %582 : vector<2x256xf32>
    %c240_i32_251 = arith.constant 240 : i32
    %584 = tpu.dynamic_rotate %565 by %c240_i32_251 dim 1 : vector<2x256xf32>, i32 -> vector<2x256xf32>
    %585 = vector.broadcast %14 : vector<1x256xf32> to vector<2x256xf32>
    %586 = arith.mulf %584, %585 : vector<2x256xf32>
    %c239_i32_252 = arith.constant 239 : i32
    %587 = tpu.dynamic_rotate %565 by %c239_i32_252 dim 1 : vector<2x256xf32>, i32 -> vector<2x256xf32>
    %588 = vector.broadcast %15 : vector<1x256xf32> to vector<2x256xf32>
    %589 = arith.mulf %587, %588 : vector<2x256xf32>
    %590 = tpu.concatenate %568, %571, %574, %577, %565, %580, %583, %586, %589 in 0 : vector<2x256xf32>, vector<2x256xf32>, vector<2x256xf32>, vector<2x256xf32>, vector<2x256xf32>, vector<2x256xf32>, vector<2x256xf32>, vector<2x256xf32>, vector<2x256xf32> -> vector<18x256xf32>
    %c4_253 = arith.constant 4 : index
    %c0_254 = arith.constant 0 : index
    %591 = vector.load %arg11[%c4_253, %c0_254] : memref<5x18xf32, #tpu.memory_space<vmem>>, vector<1x18xf32>
    %cst_255 = arith.constant dense<0.000000e+00> : vector<1x256xf32>
    %592 = tpu.matmul %591, %590, %cst_255 {dimension_numbers = #tpu.dot_dimension_numbers<[1], [0], [0], [1], [0, 0, 1, 1], [], []>} : vector<1x18xf32>, vector<18x256xf32>, vector<1x256xf32> -> vector<1x256xf32>
    %c4_256 = arith.constant 4 : index
    %593 = memref.load %arg12[%c4_256] : memref<5xf32, #tpu.memory_space<smem>>
    %594 = vector.broadcast %593 : f32 to vector<1x256xf32>
    %595 = arith.addf %592, %594 : vector<1x256xf32>
    %596 = arith.negf %595 : vector<1x256xf32>
    %597 = math.exp %596 : vector<1x256xf32>
    %cst_257 = arith.constant 1.000000e+00 : f32
    %598 = vector.broadcast %cst_257 : f32 to vector<1x256xf32>
    %599 = arith.addf %598, %597 : vector<1x256xf32>
    %600 = arith.divf %598, %599 : vector<1x256xf32>
    %601 = vector.broadcast %600 : vector<1x256xf32> to vector<3x256xf32>
    %602 = arith.mulf %558, %601 : vector<3x256xf32>
    %cst_258 = arith.constant 0.000000e+00 : f32
    %cst_259 = arith.constant 1.000000e+00 : f32
    %603 = vector.broadcast %cst_258 : f32 to vector<3x256xf32>
    %604 = arith.maximumf %603, %602 : vector<3x256xf32>
    %605 = vector.broadcast %cst_259 : f32 to vector<3x256xf32>
    %606 = arith.minimumf %605, %604 : vector<3x256xf32>
    %607 = arith.mulf %513, %18 : vector<3x256xf32>
    %608 = arith.subf %607, %513 : vector<3x256xf32>
    %609 = arith.addf %608, %606 : vector<3x256xf32>
    %cst_260 = arith.constant 1.000000e+00 : f32
    %610 = vector.broadcast %cst_260 : f32 to vector<3x256xf32>
    %611 = arith.addf %609, %610 : vector<3x256xf32>
    %cst_261 = arith.constant 5.000000e-01 : f32
    %612 = vector.broadcast %cst_261 : f32 to vector<3x256xf32>
    %613 = arith.mulf %612, %611 : vector<3x256xf32>
    %c0_262 = arith.constant 0 : index
    %c0_263 = arith.constant 0 : index
    %c0_264 = arith.constant 0 : index
    %614 = vector.load %arg13[%c0_262, %c0_263, %c0_264] : memref<2x3x256xf32, #tpu.memory_space<vmem>>, vector<1x3x256xf32>
    %615 = vector.shape_cast %614 : vector<1x3x256xf32> to vector<3x256xf32>
    %616 = vector.shape_cast %613 : vector<3x256xf32> to vector<1x3x256xf32>
    tpu.vector_store %arg13[%c0_262, %c0_263, %c0_264], %616 {strides = array<i32>} : memref<2x3x256xf32, #tpu.memory_space<vmem>>, vector<1x3x256xf32>,
    %c1_265 = arith.constant 1 : index
    %c0_266 = arith.constant 0 : index
    %c0_267 = arith.constant 0 : index
    %617 = vector.load %arg1[%c1_265, %c0_266, %c0_267] : memref<2x3x256xf32, #tpu.memory_space<vmem>>, vector<1x3x256xf32>
    %618 = vector.shape_cast %617 : vector<1x3x256xf32> to vector<3x256xf32>
    %c34_i32_268 = arith.constant 34 : i32
    %619 = tpu.dynamic_rotate %618 by %c34_i32_268 dim 1 : vector<3x256xf32>, i32 -> vector<3x256xf32>
    %620 = vector.broadcast %0 : vector<1x256xf32> to vector<3x256xf32>
    %621 = arith.mulf %619, %620 : vector<3x256xf32>
    %c32_i32_269 = arith.constant 32 : i32
    %622 = tpu.dynamic_rotate %618 by %c32_i32_269 dim 1 : vector<3x256xf32>, i32 -> vector<3x256xf32>
    %623 = vector.broadcast %1 : vector<1x256xf32> to vector<3x256xf32>
    %624 = arith.mulf %622, %623 : vector<3x256xf32>
    %c30_i32_270 = arith.constant 30 : i32
    %625 = tpu.dynamic_rotate %618 by %c30_i32_270 dim 1 : vector<3x256xf32>, i32 -> vector<3x256xf32>
    %626 = vector.broadcast %2 : vector<1x256xf32> to vector<3x256xf32>
    %627 = arith.mulf %625, %626 : vector<3x256xf32>
    %c2_i32_271 = arith.constant 2 : i32
    %628 = tpu.dynamic_rotate %618 by %c2_i32_271 dim 1 : vector<3x256xf32>, i32 -> vector<3x256xf32>
    %629 = vector.broadcast %3 : vector<1x256xf32> to vector<3x256xf32>
    %630 = arith.mulf %628, %629 : vector<3x256xf32>
    %c254_i32_272 = arith.constant 254 : i32
    %631 = tpu.dynamic_rotate %618 by %c254_i32_272 dim 1 : vector<3x256xf32>, i32 -> vector<3x256xf32>
    %632 = vector.broadcast %4 : vector<1x256xf32> to vector<3x256xf32>
    %633 = arith.mulf %631, %632 : vector<3x256xf32>
    %c226_i32_273 = arith.constant 226 : i32
    %634 = tpu.dynamic_rotate %618 by %c226_i32_273 dim 1 : vector<3x256xf32>, i32 -> vector<3x256xf32>
    %635 = vector.broadcast %5 : vector<1x256xf32> to vector<3x256xf32>
    %636 = arith.mulf %634, %635 : vector<3x256xf32>
    %c224_i32_274 = arith.constant 224 : i32
    %637 = tpu.dynamic_rotate %618 by %c224_i32_274 dim 1 : vector<3x256xf32>, i32 -> vector<3x256xf32>
    %638 = vector.broadcast %6 : vector<1x256xf32> to vector<3x256xf32>
    %639 = arith.mulf %637, %638 : vector<3x256xf32>
    %c222_i32_275 = arith.constant 222 : i32
    %640 = tpu.dynamic_rotate %618 by %c222_i32_275 dim 1 : vector<3x256xf32>, i32 -> vector<3x256xf32>
    %641 = vector.broadcast %7 : vector<1x256xf32> to vector<3x256xf32>
    %642 = arith.mulf %640, %641 : vector<3x256xf32>
    %643 = tpu.concatenate %621, %624, %627, %630, %618, %633, %636, %639, %642 in 0 : vector<3x256xf32>, vector<3x256xf32>, vector<3x256xf32>, vector<3x256xf32>, vector<3x256xf32>, vector<3x256xf32>, vector<3x256xf32>, vector<3x256xf32>, vector<3x256xf32> -> vector<27x256xf32>
    %c0_276 = arith.constant 0 : index
    %c0_277 = arith.constant 0 : index
    %644 = vector.load %arg3[%c0_276, %c0_277] : memref<6x27xf32, #tpu.memory_space<vmem>>, vector<6x27xf32>
    %cst_278 = arith.constant dense<0.000000e+00> : vector<6x256xf32>
    %645 = tpu.matmul %644, %643, %cst_278 {dimension_numbers = #tpu.dot_dimension_numbers<[1], [0], [0], [1], [0, 0, 1, 1], [], []>} : vector<6x27xf32>, vector<27x256xf32>, vector<6x256xf32> -> vector<6x256xf32>
    %c0_279 = arith.constant 0 : index
    %c0_280 = arith.constant 0 : index
    %c0_281 = arith.constant 0 : index
    %646 = vector.load %arg7[%c0_279, %c0_280, %c0_281] : memref<12x6x1xf32, #tpu.memory_space<vmem>>, vector<1x6x1xf32>
    %647 = vector.shape_cast %646 : vector<1x6x1xf32> to vector<6x1xf32>
    %648 = vector.broadcast %647 : vector<6x1xf32> to vector<6x256xf32>
    %649 = arith.addf %645, %648 : vector<6x256xf32>
    %c1_282 = arith.constant 1 : index
    %c0_283 = arith.constant 0 : index
    %c0_284 = arith.constant 0 : index
    %650 = vector.load %arg7[%c1_282, %c0_283, %c0_284] : memref<12x6x1xf32, #tpu.memory_space<vmem>>, vector<1x6x1xf32>
    %651 = vector.shape_cast %650 : vector<1x6x1xf32> to vector<6x1xf32>
    %c2_285 = arith.constant 2 : index
    %c0_286 = arith.constant 0 : index
    %c0_287 = arith.constant 0 : index
    %652 = vector.load %arg7[%c2_285, %c0_286, %c0_287] : memref<12x6x1xf32, #tpu.memory_space<vmem>>, vector<1x6x1xf32>
    %653 = vector.shape_cast %652 : vector<1x6x1xf32> to vector<6x1xf32>
    %cst_288 = arith.constant dense<0.000000e+00> : vector<6xf32>
    %654 = vector.multi_reduction <add>, %649, %cst_288 [1] : vector<6x256xf32> to vector<6xf32>
    %655 = vector.shape_cast %654 : vector<6xf32> to vector<6x1xf32>
    %cst_289 = arith.constant 2.560000e+02 : f32
    %656 = vector.broadcast %cst_289 : f32 to vector<6x1xf32>
    %657 = arith.divf %655, %656 : vector<6x1xf32>
    %658 = arith.mulf %649, %649 : vector<6x256xf32>
    %cst_290 = arith.constant dense<0.000000e+00> : vector<6xf32>
    %659 = vector.multi_reduction <add>, %658, %cst_290 [1] : vector<6x256xf32> to vector<6xf32>
    %660 = vector.shape_cast %659 : vector<6xf32> to vector<6x1xf32>
    %cst_291 = arith.constant 2.560000e+02 : f32
    %661 = vector.broadcast %cst_291 : f32 to vector<6x1xf32>
    %662 = arith.divf %660, %661 : vector<6x1xf32>
    %663 = arith.mulf %657, %657 : vector<6x1xf32>
    %664 = arith.subf %662, %663 : vector<6x1xf32>
    %cst_292 = arith.constant 0.000000e+00 : f32
    %665 = vector.broadcast %cst_292 : f32 to vector<6x1xf32>
    %666 = arith.maximumf %664, %665 : vector<6x1xf32>
    %667 = vector.broadcast %657 : vector<6x1xf32> to vector<6x256xf32>
    %668 = arith.subf %649, %667 : vector<6x256xf32>
    %cst_293 = arith.constant 9.99999974E-6 : f32
    %669 = vector.broadcast %cst_293 : f32 to vector<6x1xf32>
    %670 = arith.addf %666, %669 : vector<6x1xf32>
    %671 = math.rsqrt %670 : vector<6x1xf32>
    %672 = vector.broadcast %671 : vector<6x1xf32> to vector<6x256xf32>
    %673 = arith.mulf %668, %672 : vector<6x256xf32>
    %674 = vector.broadcast %651 : vector<6x1xf32> to vector<6x256xf32>
    %675 = arith.mulf %673, %674 : vector<6x256xf32>
    %676 = vector.broadcast %653 : vector<6x1xf32> to vector<6x256xf32>
    %677 = arith.addf %675, %676 : vector<6x256xf32>
    %cst_294 = arith.constant 0.000000e+00 : f32
    %678 = vector.broadcast %cst_294 : f32 to vector<6x256xf32>
    %679 = arith.cmpf oge, %677, %678 : vector<6x256xf32>
    %cst_295 = arith.constant 0.229166672 : f32
    %680 = vector.broadcast %cst_295 : f32 to vector<6x256xf32>
    %681 = arith.mulf %680, %677 : vector<6x256xf32>
    %682 = arith.select %679, %677, %681 : vector<6x256xi1>, vector<6x256xf32>
    %c34_i32_296 = arith.constant 34 : i32
    %683 = tpu.dynamic_rotate %682 by %c34_i32_296 dim 1 : vector<6x256xf32>, i32 -> vector<6x256xf32>
    %684 = vector.broadcast %0 : vector<1x256xf32> to vector<6x256xf32>
    %685 = arith.mulf %683, %684 : vector<6x256xf32>
    %c32_i32_297 = arith.constant 32 : i32
    %686 = tpu.dynamic_rotate %682 by %c32_i32_297 dim 1 : vector<6x256xf32>, i32 -> vector<6x256xf32>
    %687 = vector.broadcast %1 : vector<1x256xf32> to vector<6x256xf32>
    %688 = arith.mulf %686, %687 : vector<6x256xf32>
    %c30_i32_298 = arith.constant 30 : i32
    %689 = tpu.dynamic_rotate %682 by %c30_i32_298 dim 1 : vector<6x256xf32>, i32 -> vector<6x256xf32>
    %690 = vector.broadcast %2 : vector<1x256xf32> to vector<6x256xf32>
    %691 = arith.mulf %689, %690 : vector<6x256xf32>
    %c2_i32_299 = arith.constant 2 : i32
    %692 = tpu.dynamic_rotate %682 by %c2_i32_299 dim 1 : vector<6x256xf32>, i32 -> vector<6x256xf32>
    %693 = vector.broadcast %3 : vector<1x256xf32> to vector<6x256xf32>
    %694 = arith.mulf %692, %693 : vector<6x256xf32>
    %c254_i32_300 = arith.constant 254 : i32
    %695 = tpu.dynamic_rotate %682 by %c254_i32_300 dim 1 : vector<6x256xf32>, i32 -> vector<6x256xf32>
    %696 = vector.broadcast %4 : vector<1x256xf32> to vector<6x256xf32>
    %697 = arith.mulf %695, %696 : vector<6x256xf32>
    %c226_i32_301 = arith.constant 226 : i32
    %698 = tpu.dynamic_rotate %682 by %c226_i32_301 dim 1 : vector<6x256xf32>, i32 -> vector<6x256xf32>
    %699 = vector.broadcast %5 : vector<1x256xf32> to vector<6x256xf32>
    %700 = arith.mulf %698, %699 : vector<6x256xf32>
    %c224_i32_302 = arith.constant 224 : i32
    %701 = tpu.dynamic_rotate %682 by %c224_i32_302 dim 1 : vector<6x256xf32>, i32 -> vector<6x256xf32>
    %702 = vector.broadcast %6 : vector<1x256xf32> to vector<6x256xf32>
    %703 = arith.mulf %701, %702 : vector<6x256xf32>
    %c222_i32_303 = arith.constant 222 : i32
    %704 = tpu.dynamic_rotate %682 by %c222_i32_303 dim 1 : vector<6x256xf32>, i32 -> vector<6x256xf32>
    %705 = vector.broadcast %7 : vector<1x256xf32> to vector<6x256xf32>
    %706 = arith.mulf %704, %705 : vector<6x256xf32>
    %707 = tpu.concatenate %685, %688, %691, %694, %682, %697, %700, %703, %706, %16 in 0 : vector<6x256xf32>, vector<6x256xf32>, vector<6x256xf32>, vector<6x256xf32>, vector<6x256xf32>, vector<6x256xf32>, vector<6x256xf32>, vector<6x256xf32>, vector<6x256xf32>, vector<2x256xf32> -> vector<56x256xf32>
    %c0_304 = arith.constant 0 : index
    %c0_305 = arith.constant 0 : index
    %708 = vector.load %arg14[%c0_304, %c0_305] : memref<168x256xf32, #tpu.memory_space<vmem>>, vector<56x256xf32>
    tpu.vector_store %arg14[%c0_304, %c0_305], %707 {strides = array<i32>} : memref<168x256xf32, #tpu.memory_space<vmem>>, vector<56x256xf32>,
    %c0_306 = arith.constant 0 : index
    %c0_307 = arith.constant 0 : index
    %709 = vector.load %arg4[%c0_306, %c0_307] : memref<6x56xf32, #tpu.memory_space<vmem>>, vector<6x56xf32>
    %c0_308 = arith.constant 0 : index
    %c0_309 = arith.constant 0 : index
    %710 = vector.load %arg14[%c0_308, %c0_309] : memref<168x256xf32, #tpu.memory_space<vmem>>, vector<56x256xf32>
    %cst_310 = arith.constant dense<0.000000e+00> : vector<6x256xf32>
    %711 = tpu.matmul %709, %710, %cst_310 {dimension_numbers = #tpu.dot_dimension_numbers<[1], [0], [0], [1], [0, 0, 1, 1], [], []>} : vector<6x56xf32>, vector<56x256xf32>, vector<6x256xf32> -> vector<6x256xf32>
    %c3_311 = arith.constant 3 : index
    %c0_312 = arith.constant 0 : index
    %c0_313 = arith.constant 0 : index
    %712 = vector.load %arg7[%c3_311, %c0_312, %c0_313] : memref<12x6x1xf32, #tpu.memory_space<vmem>>, vector<1x6x1xf32>
    %713 = vector.shape_cast %712 : vector<1x6x1xf32> to vector<6x1xf32>
    %714 = vector.broadcast %713 : vector<6x1xf32> to vector<6x256xf32>
    %715 = arith.addf %711, %714 : vector<6x256xf32>
    %c4_314 = arith.constant 4 : index
    %c0_315 = arith.constant 0 : index
    %c0_316 = arith.constant 0 : index
    %716 = vector.load %arg7[%c4_314, %c0_315, %c0_316] : memref<12x6x1xf32, #tpu.memory_space<vmem>>, vector<1x6x1xf32>
    %717 = vector.shape_cast %716 : vector<1x6x1xf32> to vector<6x1xf32>
    %c5_317 = arith.constant 5 : index
    %c0_318 = arith.constant 0 : index
    %c0_319 = arith.constant 0 : index
    %718 = vector.load %arg7[%c5_317, %c0_318, %c0_319] : memref<12x6x1xf32, #tpu.memory_space<vmem>>, vector<1x6x1xf32>
    %719 = vector.shape_cast %718 : vector<1x6x1xf32> to vector<6x1xf32>
    %cst_320 = arith.constant dense<0.000000e+00> : vector<6xf32>
    %720 = vector.multi_reduction <add>, %715, %cst_320 [1] : vector<6x256xf32> to vector<6xf32>
    %721 = vector.shape_cast %720 : vector<6xf32> to vector<6x1xf32>
    %cst_321 = arith.constant 2.560000e+02 : f32
    %722 = vector.broadcast %cst_321 : f32 to vector<6x1xf32>
    %723 = arith.divf %721, %722 : vector<6x1xf32>
    %724 = arith.mulf %715, %715 : vector<6x256xf32>
    %cst_322 = arith.constant dense<0.000000e+00> : vector<6xf32>
    %725 = vector.multi_reduction <add>, %724, %cst_322 [1] : vector<6x256xf32> to vector<6xf32>
    %726 = vector.shape_cast %725 : vector<6xf32> to vector<6x1xf32>
    %cst_323 = arith.constant 2.560000e+02 : f32
    %727 = vector.broadcast %cst_323 : f32 to vector<6x1xf32>
    %728 = arith.divf %726, %727 : vector<6x1xf32>
    %729 = arith.mulf %723, %723 : vector<6x1xf32>
    %730 = arith.subf %728, %729 : vector<6x1xf32>
    %cst_324 = arith.constant 0.000000e+00 : f32
    %731 = vector.broadcast %cst_324 : f32 to vector<6x1xf32>
    %732 = arith.maximumf %730, %731 : vector<6x1xf32>
    %733 = vector.broadcast %723 : vector<6x1xf32> to vector<6x256xf32>
    %734 = arith.subf %715, %733 : vector<6x256xf32>
    %cst_325 = arith.constant 9.99999974E-6 : f32
    %735 = vector.broadcast %cst_325 : f32 to vector<6x1xf32>
    %736 = arith.addf %732, %735 : vector<6x1xf32>
    %737 = math.rsqrt %736 : vector<6x1xf32>
    %738 = vector.broadcast %737 : vector<6x1xf32> to vector<6x256xf32>
    %739 = arith.mulf %734, %738 : vector<6x256xf32>
    %740 = vector.broadcast %717 : vector<6x1xf32> to vector<6x256xf32>
    %741 = arith.mulf %739, %740 : vector<6x256xf32>
    %742 = vector.broadcast %719 : vector<6x1xf32> to vector<6x256xf32>
    %743 = arith.addf %741, %742 : vector<6x256xf32>
    %cst_326 = arith.constant 0.000000e+00 : f32
    %744 = vector.broadcast %cst_326 : f32 to vector<6x256xf32>
    %745 = arith.cmpf oge, %743, %744 : vector<6x256xf32>
    %cst_327 = arith.constant 0.229166672 : f32
    %746 = vector.broadcast %cst_327 : f32 to vector<6x256xf32>
    %747 = arith.mulf %746, %743 : vector<6x256xf32>
    %748 = arith.select %745, %743, %747 : vector<6x256xi1>, vector<6x256xf32>
    %cst_328 = arith.constant dense<0.000000e+00> : vector<256xf32>
    %749 = vector.multi_reduction <add>, %748, %cst_328 [0] : vector<6x256xf32> to vector<256xf32>
    %750 = vector.shape_cast %749 : vector<256xf32> to vector<1x256xf32>
    %cst_329 = arith.constant 6.000000e+00 : f32
    %751 = vector.broadcast %cst_329 : f32 to vector<1x256xf32>
    %752 = arith.divf %750, %751 : vector<1x256xf32>
    %cst_330 = arith.constant dense<0xFF800000> : vector<256xf32>
    %753 = vector.multi_reduction <maximumf>, %748, %cst_330 [0] : vector<6x256xf32> to vector<256xf32>
    %754 = vector.shape_cast %753 : vector<256xf32> to vector<1x256xf32>
    %755 = tpu.concatenate %752, %754 in 0 : vector<1x256xf32>, vector<1x256xf32> -> vector<2x256xf32>
    %c17_i32_331 = arith.constant 17 : i32
    %756 = tpu.dynamic_rotate %755 by %c17_i32_331 dim 1 : vector<2x256xf32>, i32 -> vector<2x256xf32>
    %757 = vector.broadcast %8 : vector<1x256xf32> to vector<2x256xf32>
    %758 = arith.mulf %756, %757 : vector<2x256xf32>
    %c16_i32_332 = arith.constant 16 : i32
    %759 = tpu.dynamic_rotate %755 by %c16_i32_332 dim 1 : vector<2x256xf32>, i32 -> vector<2x256xf32>
    %760 = vector.broadcast %9 : vector<1x256xf32> to vector<2x256xf32>
    %761 = arith.mulf %759, %760 : vector<2x256xf32>
    %c15_i32_333 = arith.constant 15 : i32
    %762 = tpu.dynamic_rotate %755 by %c15_i32_333 dim 1 : vector<2x256xf32>, i32 -> vector<2x256xf32>
    %763 = vector.broadcast %10 : vector<1x256xf32> to vector<2x256xf32>
    %764 = arith.mulf %762, %763 : vector<2x256xf32>
    %c1_i32_334 = arith.constant 1 : i32
    %765 = tpu.dynamic_rotate %755 by %c1_i32_334 dim 1 : vector<2x256xf32>, i32 -> vector<2x256xf32>
    %766 = vector.broadcast %11 : vector<1x256xf32> to vector<2x256xf32>
    %767 = arith.mulf %765, %766 : vector<2x256xf32>
    %c255_i32_335 = arith.constant 255 : i32
    %768 = tpu.dynamic_rotate %755 by %c255_i32_335 dim 1 : vector<2x256xf32>, i32 -> vector<2x256xf32>
    %769 = vector.broadcast %12 : vector<1x256xf32> to vector<2x256xf32>
    %770 = arith.mulf %768, %769 : vector<2x256xf32>
    %c241_i32_336 = arith.constant 241 : i32
    %771 = tpu.dynamic_rotate %755 by %c241_i32_336 dim 1 : vector<2x256xf32>, i32 -> vector<2x256xf32>
    %772 = vector.broadcast %13 : vector<1x256xf32> to vector<2x256xf32>
    %773 = arith.mulf %771, %772 : vector<2x256xf32>
    %c240_i32_337 = arith.constant 240 : i32
    %774 = tpu.dynamic_rotate %755 by %c240_i32_337 dim 1 : vector<2x256xf32>, i32 -> vector<2x256xf32>
    %775 = vector.broadcast %14 : vector<1x256xf32> to vector<2x256xf32>
    %776 = arith.mulf %774, %775 : vector<2x256xf32>
    %c239_i32_338 = arith.constant 239 : i32
    %777 = tpu.dynamic_rotate %755 by %c239_i32_338 dim 1 : vector<2x256xf32>, i32 -> vector<2x256xf32>
    %778 = vector.broadcast %15 : vector<1x256xf32> to vector<2x256xf32>
    %779 = arith.mulf %777, %778 : vector<2x256xf32>
    %780 = tpu.concatenate %758, %761, %764, %767, %755, %770, %773, %776, %779 in 0 : vector<2x256xf32>, vector<2x256xf32>, vector<2x256xf32>, vector<2x256xf32>, vector<2x256xf32>, vector<2x256xf32>, vector<2x256xf32>, vector<2x256xf32>, vector<2x256xf32> -> vector<18x256xf32>
    %c0_339 = arith.constant 0 : index
    %c0_340 = arith.constant 0 : index
    %781 = vector.load %arg11[%c0_339, %c0_340] : memref<5x18xf32, #tpu.memory_space<vmem>>, vector<1x18xf32>
    %cst_341 = arith.constant dense<0.000000e+00> : vector<1x256xf32>
    %782 = tpu.matmul %781, %780, %cst_341 {dimension_numbers = #tpu.dot_dimension_numbers<[1], [0], [0], [1], [0, 0, 1, 1], [], []>} : vector<1x18xf32>, vector<18x256xf32>, vector<1x256xf32> -> vector<1x256xf32>
    %c0_342 = arith.constant 0 : index
    %783 = memref.load %arg12[%c0_342] : memref<5xf32, #tpu.memory_space<smem>>
    %784 = vector.broadcast %783 : f32 to vector<1x256xf32>
    %785 = arith.addf %782, %784 : vector<1x256xf32>
    %786 = arith.negf %785 : vector<1x256xf32>
    %787 = math.exp %786 : vector<1x256xf32>
    %cst_343 = arith.constant 1.000000e+00 : f32
    %788 = vector.broadcast %cst_343 : f32 to vector<1x256xf32>
    %789 = arith.addf %788, %787 : vector<1x256xf32>
    %790 = arith.divf %788, %789 : vector<1x256xf32>
    %791 = vector.broadcast %790 : vector<1x256xf32> to vector<6x256xf32>
    %792 = arith.mulf %748, %791 : vector<6x256xf32>
    %c34_i32_344 = arith.constant 34 : i32
    %793 = tpu.dynamic_rotate %792 by %c34_i32_344 dim 1 : vector<6x256xf32>, i32 -> vector<6x256xf32>
    %794 = vector.broadcast %0 : vector<1x256xf32> to vector<6x256xf32>
    %795 = arith.mulf %793, %794 : vector<6x256xf32>
    %c32_i32_345 = arith.constant 32 : i32
    %796 = tpu.dynamic_rotate %792 by %c32_i32_345 dim 1 : vector<6x256xf32>, i32 -> vector<6x256xf32>
    %797 = vector.broadcast %1 : vector<1x256xf32> to vector<6x256xf32>
    %798 = arith.mulf %796, %797 : vector<6x256xf32>
    %c30_i32_346 = arith.constant 30 : i32
    %799 = tpu.dynamic_rotate %792 by %c30_i32_346 dim 1 : vector<6x256xf32>, i32 -> vector<6x256xf32>
    %800 = vector.broadcast %2 : vector<1x256xf32> to vector<6x256xf32>
    %801 = arith.mulf %799, %800 : vector<6x256xf32>
    %c2_i32_347 = arith.constant 2 : i32
    %802 = tpu.dynamic_rotate %792 by %c2_i32_347 dim 1 : vector<6x256xf32>, i32 -> vector<6x256xf32>
    %803 = vector.broadcast %3 : vector<1x256xf32> to vector<6x256xf32>
    %804 = arith.mulf %802, %803 : vector<6x256xf32>
    %c254_i32_348 = arith.constant 254 : i32
    %805 = tpu.dynamic_rotate %792 by %c254_i32_348 dim 1 : vector<6x256xf32>, i32 -> vector<6x256xf32>
    %806 = vector.broadcast %4 : vector<1x256xf32> to vector<6x256xf32>
    %807 = arith.mulf %805, %806 : vector<6x256xf32>
    %c226_i32_349 = arith.constant 226 : i32
    %808 = tpu.dynamic_rotate %792 by %c226_i32_349 dim 1 : vector<6x256xf32>, i32 -> vector<6x256xf32>
    %809 = vector.broadcast %5 : vector<1x256xf32> to vector<6x256xf32>
    %810 = arith.mulf %808, %809 : vector<6x256xf32>
    %c224_i32_350 = arith.constant 224 : i32
    %811 = tpu.dynamic_rotate %792 by %c224_i32_350 dim 1 : vector<6x256xf32>, i32 -> vector<6x256xf32>
    %812 = vector.broadcast %6 : vector<1x256xf32> to vector<6x256xf32>
    %813 = arith.mulf %811, %812 : vector<6x256xf32>
    %c222_i32_351 = arith.constant 222 : i32
    %814 = tpu.dynamic_rotate %792 by %c222_i32_351 dim 1 : vector<6x256xf32>, i32 -> vector<6x256xf32>
    %815 = vector.broadcast %7 : vector<1x256xf32> to vector<6x256xf32>
    %816 = arith.mulf %814, %815 : vector<6x256xf32>
    %817 = tpu.concatenate %795, %798, %801, %804, %792, %807, %810, %813, %816, %16 in 0 : vector<6x256xf32>, vector<6x256xf32>, vector<6x256xf32>, vector<6x256xf32>, vector<6x256xf32>, vector<6x256xf32>, vector<6x256xf32>, vector<6x256xf32>, vector<6x256xf32>, vector<2x256xf32> -> vector<56x256xf32>
    %c56_352 = arith.constant 56 : index
    %c0_353 = arith.constant 0 : index
    %818 = vector.load %arg14[%c56_352, %c0_353] : memref<168x256xf32, #tpu.memory_space<vmem>>, vector<56x256xf32>
    tpu.vector_store %arg14[%c56_352, %c0_353], %817 {strides = array<i32>} : memref<168x256xf32, #tpu.memory_space<vmem>>, vector<56x256xf32>,
    %c0_354 = arith.constant 0 : index
    %c0_355 = arith.constant 0 : index
    %819 = vector.load %arg5[%c0_354, %c0_355] : memref<6x112xf32, #tpu.memory_space<vmem>>, vector<6x112xf32>
    %c0_356 = arith.constant 0 : index
    %c0_357 = arith.constant 0 : index
    %820 = vector.load %arg14[%c0_356, %c0_357] : memref<168x256xf32, #tpu.memory_space<vmem>>, vector<112x256xf32>
    %cst_358 = arith.constant dense<0.000000e+00> : vector<6x256xf32>
    %821 = tpu.matmul %819, %820, %cst_358 {dimension_numbers = #tpu.dot_dimension_numbers<[1], [0], [0], [1], [0, 0, 1, 1], [], []>} : vector<6x112xf32>, vector<112x256xf32>, vector<6x256xf32> -> vector<6x256xf32>
    %c6_359 = arith.constant 6 : index
    %c0_360 = arith.constant 0 : index
    %c0_361 = arith.constant 0 : index
    %822 = vector.load %arg7[%c6_359, %c0_360, %c0_361] : memref<12x6x1xf32, #tpu.memory_space<vmem>>, vector<1x6x1xf32>
    %823 = vector.shape_cast %822 : vector<1x6x1xf32> to vector<6x1xf32>
    %824 = vector.broadcast %823 : vector<6x1xf32> to vector<6x256xf32>
    %825 = arith.addf %821, %824 : vector<6x256xf32>
    %c7_362 = arith.constant 7 : index
    %c0_363 = arith.constant 0 : index
    %c0_364 = arith.constant 0 : index
    %826 = vector.load %arg7[%c7_362, %c0_363, %c0_364] : memref<12x6x1xf32, #tpu.memory_space<vmem>>, vector<1x6x1xf32>
    %827 = vector.shape_cast %826 : vector<1x6x1xf32> to vector<6x1xf32>
    %c8_365 = arith.constant 8 : index
    %c0_366 = arith.constant 0 : index
    %c0_367 = arith.constant 0 : index
    %828 = vector.load %arg7[%c8_365, %c0_366, %c0_367] : memref<12x6x1xf32, #tpu.memory_space<vmem>>, vector<1x6x1xf32>
    %829 = vector.shape_cast %828 : vector<1x6x1xf32> to vector<6x1xf32>
    %cst_368 = arith.constant dense<0.000000e+00> : vector<6xf32>
    %830 = vector.multi_reduction <add>, %825, %cst_368 [1] : vector<6x256xf32> to vector<6xf32>
    %831 = vector.shape_cast %830 : vector<6xf32> to vector<6x1xf32>
    %cst_369 = arith.constant 2.560000e+02 : f32
    %832 = vector.broadcast %cst_369 : f32 to vector<6x1xf32>
    %833 = arith.divf %831, %832 : vector<6x1xf32>
    %834 = arith.mulf %825, %825 : vector<6x256xf32>
    %cst_370 = arith.constant dense<0.000000e+00> : vector<6xf32>
    %835 = vector.multi_reduction <add>, %834, %cst_370 [1] : vector<6x256xf32> to vector<6xf32>
    %836 = vector.shape_cast %835 : vector<6xf32> to vector<6x1xf32>
    %cst_371 = arith.constant 2.560000e+02 : f32
    %837 = vector.broadcast %cst_371 : f32 to vector<6x1xf32>
    %838 = arith.divf %836, %837 : vector<6x1xf32>
    %839 = arith.mulf %833, %833 : vector<6x1xf32>
    %840 = arith.subf %838, %839 : vector<6x1xf32>
    %cst_372 = arith.constant 0.000000e+00 : f32
    %841 = vector.broadcast %cst_372 : f32 to vector<6x1xf32>
    %842 = arith.maximumf %840, %841 : vector<6x1xf32>
    %843 = vector.broadcast %833 : vector<6x1xf32> to vector<6x256xf32>
    %844 = arith.subf %825, %843 : vector<6x256xf32>
    %cst_373 = arith.constant 9.99999974E-6 : f32
    %845 = vector.broadcast %cst_373 : f32 to vector<6x1xf32>
    %846 = arith.addf %842, %845 : vector<6x1xf32>
    %847 = math.rsqrt %846 : vector<6x1xf32>
    %848 = vector.broadcast %847 : vector<6x1xf32> to vector<6x256xf32>
    %849 = arith.mulf %844, %848 : vector<6x256xf32>
    %850 = vector.broadcast %827 : vector<6x1xf32> to vector<6x256xf32>
    %851 = arith.mulf %849, %850 : vector<6x256xf32>
    %852 = vector.broadcast %829 : vector<6x1xf32> to vector<6x256xf32>
    %853 = arith.addf %851, %852 : vector<6x256xf32>
    %cst_374 = arith.constant 0.000000e+00 : f32
    %854 = vector.broadcast %cst_374 : f32 to vector<6x256xf32>
    %855 = arith.cmpf oge, %853, %854 : vector<6x256xf32>
    %cst_375 = arith.constant 0.229166672 : f32
    %856 = vector.broadcast %cst_375 : f32 to vector<6x256xf32>
    %857 = arith.mulf %856, %853 : vector<6x256xf32>
    %858 = arith.select %855, %853, %857 : vector<6x256xi1>, vector<6x256xf32>
    %cst_376 = arith.constant dense<0.000000e+00> : vector<256xf32>
    %859 = vector.multi_reduction <add>, %858, %cst_376 [0] : vector<6x256xf32> to vector<256xf32>
    %860 = vector.shape_cast %859 : vector<256xf32> to vector<1x256xf32>
    %cst_377 = arith.constant 6.000000e+00 : f32
    %861 = vector.broadcast %cst_377 : f32 to vector<1x256xf32>
    %862 = arith.divf %860, %861 : vector<1x256xf32>
    %cst_378 = arith.constant dense<0xFF800000> : vector<256xf32>
    %863 = vector.multi_reduction <maximumf>, %858, %cst_378 [0] : vector<6x256xf32> to vector<256xf32>
    %864 = vector.shape_cast %863 : vector<256xf32> to vector<1x256xf32>
    %865 = tpu.concatenate %862, %864 in 0 : vector<1x256xf32>, vector<1x256xf32> -> vector<2x256xf32>
    %c17_i32_379 = arith.constant 17 : i32
    %866 = tpu.dynamic_rotate %865 by %c17_i32_379 dim 1 : vector<2x256xf32>, i32 -> vector<2x256xf32>
    %867 = vector.broadcast %8 : vector<1x256xf32> to vector<2x256xf32>
    %868 = arith.mulf %866, %867 : vector<2x256xf32>
    %c16_i32_380 = arith.constant 16 : i32
    %869 = tpu.dynamic_rotate %865 by %c16_i32_380 dim 1 : vector<2x256xf32>, i32 -> vector<2x256xf32>
    %870 = vector.broadcast %9 : vector<1x256xf32> to vector<2x256xf32>
    %871 = arith.mulf %869, %870 : vector<2x256xf32>
    %c15_i32_381 = arith.constant 15 : i32
    %872 = tpu.dynamic_rotate %865 by %c15_i32_381 dim 1 : vector<2x256xf32>, i32 -> vector<2x256xf32>
    %873 = vector.broadcast %10 : vector<1x256xf32> to vector<2x256xf32>
    %874 = arith.mulf %872, %873 : vector<2x256xf32>
    %c1_i32_382 = arith.constant 1 : i32
    %875 = tpu.dynamic_rotate %865 by %c1_i32_382 dim 1 : vector<2x256xf32>, i32 -> vector<2x256xf32>
    %876 = vector.broadcast %11 : vector<1x256xf32> to vector<2x256xf32>
    %877 = arith.mulf %875, %876 : vector<2x256xf32>
    %c255_i32_383 = arith.constant 255 : i32
    %878 = tpu.dynamic_rotate %865 by %c255_i32_383 dim 1 : vector<2x256xf32>, i32 -> vector<2x256xf32>
    %879 = vector.broadcast %12 : vector<1x256xf32> to vector<2x256xf32>
    %880 = arith.mulf %878, %879 : vector<2x256xf32>
    %c241_i32_384 = arith.constant 241 : i32
    %881 = tpu.dynamic_rotate %865 by %c241_i32_384 dim 1 : vector<2x256xf32>, i32 -> vector<2x256xf32>
    %882 = vector.broadcast %13 : vector<1x256xf32> to vector<2x256xf32>
    %883 = arith.mulf %881, %882 : vector<2x256xf32>
    %c240_i32_385 = arith.constant 240 : i32
    %884 = tpu.dynamic_rotate %865 by %c240_i32_385 dim 1 : vector<2x256xf32>, i32 -> vector<2x256xf32>
    %885 = vector.broadcast %14 : vector<1x256xf32> to vector<2x256xf32>
    %886 = arith.mulf %884, %885 : vector<2x256xf32>
    %c239_i32_386 = arith.constant 239 : i32
    %887 = tpu.dynamic_rotate %865 by %c239_i32_386 dim 1 : vector<2x256xf32>, i32 -> vector<2x256xf32>
    %888 = vector.broadcast %15 : vector<1x256xf32> to vector<2x256xf32>
    %889 = arith.mulf %887, %888 : vector<2x256xf32>
    %890 = tpu.concatenate %868, %871, %874, %877, %865, %880, %883, %886, %889 in 0 : vector<2x256xf32>, vector<2x256xf32>, vector<2x256xf32>, vector<2x256xf32>, vector<2x256xf32>, vector<2x256xf32>, vector<2x256xf32>, vector<2x256xf32>, vector<2x256xf32> -> vector<18x256xf32>
    %c1_387 = arith.constant 1 : index
    %c0_388 = arith.constant 0 : index
    %891 = vector.load %arg11[%c1_387, %c0_388] : memref<5x18xf32, #tpu.memory_space<vmem>>, vector<1x18xf32>
    %cst_389 = arith.constant dense<0.000000e+00> : vector<1x256xf32>
    %892 = tpu.matmul %891, %890, %cst_389 {dimension_numbers = #tpu.dot_dimension_numbers<[1], [0], [0], [1], [0, 0, 1, 1], [], []>} : vector<1x18xf32>, vector<18x256xf32>, vector<1x256xf32> -> vector<1x256xf32>
    %c1_390 = arith.constant 1 : index
    %893 = memref.load %arg12[%c1_390] : memref<5xf32, #tpu.memory_space<smem>>
    %894 = vector.broadcast %893 : f32 to vector<1x256xf32>
    %895 = arith.addf %892, %894 : vector<1x256xf32>
    %896 = arith.negf %895 : vector<1x256xf32>
    %897 = math.exp %896 : vector<1x256xf32>
    %cst_391 = arith.constant 1.000000e+00 : f32
    %898 = vector.broadcast %cst_391 : f32 to vector<1x256xf32>
    %899 = arith.addf %898, %897 : vector<1x256xf32>
    %900 = arith.divf %898, %899 : vector<1x256xf32>
    %901 = vector.broadcast %900 : vector<1x256xf32> to vector<6x256xf32>
    %902 = arith.mulf %858, %901 : vector<6x256xf32>
    %c34_i32_392 = arith.constant 34 : i32
    %903 = tpu.dynamic_rotate %902 by %c34_i32_392 dim 1 : vector<6x256xf32>, i32 -> vector<6x256xf32>
    %904 = vector.broadcast %0 : vector<1x256xf32> to vector<6x256xf32>
    %905 = arith.mulf %903, %904 : vector<6x256xf32>
    %c32_i32_393 = arith.constant 32 : i32
    %906 = tpu.dynamic_rotate %902 by %c32_i32_393 dim 1 : vector<6x256xf32>, i32 -> vector<6x256xf32>
    %907 = vector.broadcast %1 : vector<1x256xf32> to vector<6x256xf32>
    %908 = arith.mulf %906, %907 : vector<6x256xf32>
    %c30_i32_394 = arith.constant 30 : i32
    %909 = tpu.dynamic_rotate %902 by %c30_i32_394 dim 1 : vector<6x256xf32>, i32 -> vector<6x256xf32>
    %910 = vector.broadcast %2 : vector<1x256xf32> to vector<6x256xf32>
    %911 = arith.mulf %909, %910 : vector<6x256xf32>
    %c2_i32_395 = arith.constant 2 : i32
    %912 = tpu.dynamic_rotate %902 by %c2_i32_395 dim 1 : vector<6x256xf32>, i32 -> vector<6x256xf32>
    %913 = vector.broadcast %3 : vector<1x256xf32> to vector<6x256xf32>
    %914 = arith.mulf %912, %913 : vector<6x256xf32>
    %c254_i32_396 = arith.constant 254 : i32
    %915 = tpu.dynamic_rotate %902 by %c254_i32_396 dim 1 : vector<6x256xf32>, i32 -> vector<6x256xf32>
    %916 = vector.broadcast %4 : vector<1x256xf32> to vector<6x256xf32>
    %917 = arith.mulf %915, %916 : vector<6x256xf32>
    %c226_i32_397 = arith.constant 226 : i32
    %918 = tpu.dynamic_rotate %902 by %c226_i32_397 dim 1 : vector<6x256xf32>, i32 -> vector<6x256xf32>
    %919 = vector.broadcast %5 : vector<1x256xf32> to vector<6x256xf32>
    %920 = arith.mulf %918, %919 : vector<6x256xf32>
    %c224_i32_398 = arith.constant 224 : i32
    %921 = tpu.dynamic_rotate %902 by %c224_i32_398 dim 1 : vector<6x256xf32>, i32 -> vector<6x256xf32>
    %922 = vector.broadcast %6 : vector<1x256xf32> to vector<6x256xf32>
    %923 = arith.mulf %921, %922 : vector<6x256xf32>
    %c222_i32_399 = arith.constant 222 : i32
    %924 = tpu.dynamic_rotate %902 by %c222_i32_399 dim 1 : vector<6x256xf32>, i32 -> vector<6x256xf32>
    %925 = vector.broadcast %7 : vector<1x256xf32> to vector<6x256xf32>
    %926 = arith.mulf %924, %925 : vector<6x256xf32>
    %927 = tpu.concatenate %905, %908, %911, %914, %902, %917, %920, %923, %926, %16 in 0 : vector<6x256xf32>, vector<6x256xf32>, vector<6x256xf32>, vector<6x256xf32>, vector<6x256xf32>, vector<6x256xf32>, vector<6x256xf32>, vector<6x256xf32>, vector<6x256xf32>, vector<2x256xf32> -> vector<56x256xf32>
    %c112_400 = arith.constant 112 : index
    %c0_401 = arith.constant 0 : index
    %928 = vector.load %arg14[%c112_400, %c0_401] : memref<168x256xf32, #tpu.memory_space<vmem>>, vector<56x256xf32>
    tpu.vector_store %arg14[%c112_400, %c0_401], %927 {strides = array<i32>} : memref<168x256xf32, #tpu.memory_space<vmem>>, vector<56x256xf32>,
    %c0_402 = arith.constant 0 : index
    %c0_403 = arith.constant 0 : index
    %929 = vector.load %arg6[%c0_402, %c0_403] : memref<6x168xf32, #tpu.memory_space<vmem>>, vector<6x168xf32>
    %c0_404 = arith.constant 0 : index
    %c0_405 = arith.constant 0 : index
    %930 = vector.load %arg14[%c0_404, %c0_405] : memref<168x256xf32, #tpu.memory_space<vmem>>, vector<168x256xf32>
    %cst_406 = arith.constant dense<0.000000e+00> : vector<6x256xf32>
    %931 = tpu.matmul %929, %930, %cst_406 {dimension_numbers = #tpu.dot_dimension_numbers<[1], [0], [0], [1], [0, 0, 1, 1], [], []>} : vector<6x168xf32>, vector<168x256xf32>, vector<6x256xf32> -> vector<6x256xf32>
    %c9_407 = arith.constant 9 : index
    %c0_408 = arith.constant 0 : index
    %c0_409 = arith.constant 0 : index
    %932 = vector.load %arg7[%c9_407, %c0_408, %c0_409] : memref<12x6x1xf32, #tpu.memory_space<vmem>>, vector<1x6x1xf32>
    %933 = vector.shape_cast %932 : vector<1x6x1xf32> to vector<6x1xf32>
    %934 = vector.broadcast %933 : vector<6x1xf32> to vector<6x256xf32>
    %935 = arith.addf %931, %934 : vector<6x256xf32>
    %c10_410 = arith.constant 10 : index
    %c0_411 = arith.constant 0 : index
    %c0_412 = arith.constant 0 : index
    %936 = vector.load %arg7[%c10_410, %c0_411, %c0_412] : memref<12x6x1xf32, #tpu.memory_space<vmem>>, vector<1x6x1xf32>
    %937 = vector.shape_cast %936 : vector<1x6x1xf32> to vector<6x1xf32>
    %c11_413 = arith.constant 11 : index
    %c0_414 = arith.constant 0 : index
    %c0_415 = arith.constant 0 : index
    %938 = vector.load %arg7[%c11_413, %c0_414, %c0_415] : memref<12x6x1xf32, #tpu.memory_space<vmem>>, vector<1x6x1xf32>
    %939 = vector.shape_cast %938 : vector<1x6x1xf32> to vector<6x1xf32>
    %cst_416 = arith.constant dense<0.000000e+00> : vector<6xf32>
    %940 = vector.multi_reduction <add>, %935, %cst_416 [1] : vector<6x256xf32> to vector<6xf32>
    %941 = vector.shape_cast %940 : vector<6xf32> to vector<6x1xf32>
    %cst_417 = arith.constant 2.560000e+02 : f32
    %942 = vector.broadcast %cst_417 : f32 to vector<6x1xf32>
    %943 = arith.divf %941, %942 : vector<6x1xf32>
    %944 = arith.mulf %935, %935 : vector<6x256xf32>
    %cst_418 = arith.constant dense<0.000000e+00> : vector<6xf32>
    %945 = vector.multi_reduction <add>, %944, %cst_418 [1] : vector<6x256xf32> to vector<6xf32>
    %946 = vector.shape_cast %945 : vector<6xf32> to vector<6x1xf32>
    %cst_419 = arith.constant 2.560000e+02 : f32
    %947 = vector.broadcast %cst_419 : f32 to vector<6x1xf32>
    %948 = arith.divf %946, %947 : vector<6x1xf32>
    %949 = arith.mulf %943, %943 : vector<6x1xf32>
    %950 = arith.subf %948, %949 : vector<6x1xf32>
    %cst_420 = arith.constant 0.000000e+00 : f32
    %951 = vector.broadcast %cst_420 : f32 to vector<6x1xf32>
    %952 = arith.maximumf %950, %951 : vector<6x1xf32>
    %953 = vector.broadcast %943 : vector<6x1xf32> to vector<6x256xf32>
    %954 = arith.subf %935, %953 : vector<6x256xf32>
    %cst_421 = arith.constant 9.99999974E-6 : f32
    %955 = vector.broadcast %cst_421 : f32 to vector<6x1xf32>
    %956 = arith.addf %952, %955 : vector<6x1xf32>
    %957 = math.rsqrt %956 : vector<6x1xf32>
    %958 = vector.broadcast %957 : vector<6x1xf32> to vector<6x256xf32>
    %959 = arith.mulf %954, %958 : vector<6x256xf32>
    %960 = vector.broadcast %937 : vector<6x1xf32> to vector<6x256xf32>
    %961 = arith.mulf %959, %960 : vector<6x256xf32>
    %962 = vector.broadcast %939 : vector<6x1xf32> to vector<6x256xf32>
    %963 = arith.addf %961, %962 : vector<6x256xf32>
    %cst_422 = arith.constant 0.000000e+00 : f32
    %964 = vector.broadcast %cst_422 : f32 to vector<6x256xf32>
    %965 = arith.cmpf oge, %963, %964 : vector<6x256xf32>
    %cst_423 = arith.constant 0.229166672 : f32
    %966 = vector.broadcast %cst_423 : f32 to vector<6x256xf32>
    %967 = arith.mulf %966, %963 : vector<6x256xf32>
    %968 = arith.select %965, %963, %967 : vector<6x256xi1>, vector<6x256xf32>
    %cst_424 = arith.constant dense<0.000000e+00> : vector<256xf32>
    %969 = vector.multi_reduction <add>, %968, %cst_424 [0] : vector<6x256xf32> to vector<256xf32>
    %970 = vector.shape_cast %969 : vector<256xf32> to vector<1x256xf32>
    %cst_425 = arith.constant 6.000000e+00 : f32
    %971 = vector.broadcast %cst_425 : f32 to vector<1x256xf32>
    %972 = arith.divf %970, %971 : vector<1x256xf32>
    %cst_426 = arith.constant dense<0xFF800000> : vector<256xf32>
    %973 = vector.multi_reduction <maximumf>, %968, %cst_426 [0] : vector<6x256xf32> to vector<256xf32>
    %974 = vector.shape_cast %973 : vector<256xf32> to vector<1x256xf32>
    %975 = tpu.concatenate %972, %974 in 0 : vector<1x256xf32>, vector<1x256xf32> -> vector<2x256xf32>
    %c17_i32_427 = arith.constant 17 : i32
    %976 = tpu.dynamic_rotate %975 by %c17_i32_427 dim 1 : vector<2x256xf32>, i32 -> vector<2x256xf32>
    %977 = vector.broadcast %8 : vector<1x256xf32> to vector<2x256xf32>
    %978 = arith.mulf %976, %977 : vector<2x256xf32>
    %c16_i32_428 = arith.constant 16 : i32
    %979 = tpu.dynamic_rotate %975 by %c16_i32_428 dim 1 : vector<2x256xf32>, i32 -> vector<2x256xf32>
    %980 = vector.broadcast %9 : vector<1x256xf32> to vector<2x256xf32>
    %981 = arith.mulf %979, %980 : vector<2x256xf32>
    %c15_i32_429 = arith.constant 15 : i32
    %982 = tpu.dynamic_rotate %975 by %c15_i32_429 dim 1 : vector<2x256xf32>, i32 -> vector<2x256xf32>
    %983 = vector.broadcast %10 : vector<1x256xf32> to vector<2x256xf32>
    %984 = arith.mulf %982, %983 : vector<2x256xf32>
    %c1_i32_430 = arith.constant 1 : i32
    %985 = tpu.dynamic_rotate %975 by %c1_i32_430 dim 1 : vector<2x256xf32>, i32 -> vector<2x256xf32>
    %986 = vector.broadcast %11 : vector<1x256xf32> to vector<2x256xf32>
    %987 = arith.mulf %985, %986 : vector<2x256xf32>
    %c255_i32_431 = arith.constant 255 : i32
    %988 = tpu.dynamic_rotate %975 by %c255_i32_431 dim 1 : vector<2x256xf32>, i32 -> vector<2x256xf32>
    %989 = vector.broadcast %12 : vector<1x256xf32> to vector<2x256xf32>
    %990 = arith.mulf %988, %989 : vector<2x256xf32>
    %c241_i32_432 = arith.constant 241 : i32
    %991 = tpu.dynamic_rotate %975 by %c241_i32_432 dim 1 : vector<2x256xf32>, i32 -> vector<2x256xf32>
    %992 = vector.broadcast %13 : vector<1x256xf32> to vector<2x256xf32>
    %993 = arith.mulf %991, %992 : vector<2x256xf32>
    %c240_i32_433 = arith.constant 240 : i32
    %994 = tpu.dynamic_rotate %975 by %c240_i32_433 dim 1 : vector<2x256xf32>, i32 -> vector<2x256xf32>
    %995 = vector.broadcast %14 : vector<1x256xf32> to vector<2x256xf32>
    %996 = arith.mulf %994, %995 : vector<2x256xf32>
    %c239_i32_434 = arith.constant 239 : i32
    %997 = tpu.dynamic_rotate %975 by %c239_i32_434 dim 1 : vector<2x256xf32>, i32 -> vector<2x256xf32>
    %998 = vector.broadcast %15 : vector<1x256xf32> to vector<2x256xf32>
    %999 = arith.mulf %997, %998 : vector<2x256xf32>
    %1000 = tpu.concatenate %978, %981, %984, %987, %975, %990, %993, %996, %999 in 0 : vector<2x256xf32>, vector<2x256xf32>, vector<2x256xf32>, vector<2x256xf32>, vector<2x256xf32>, vector<2x256xf32>, vector<2x256xf32>, vector<2x256xf32>, vector<2x256xf32> -> vector<18x256xf32>
    %c2_435 = arith.constant 2 : index
    %c0_436 = arith.constant 0 : index
    %1001 = vector.load %arg11[%c2_435, %c0_436] : memref<5x18xf32, #tpu.memory_space<vmem>>, vector<1x18xf32>
    %cst_437 = arith.constant dense<0.000000e+00> : vector<1x256xf32>
    %1002 = tpu.matmul %1001, %1000, %cst_437 {dimension_numbers = #tpu.dot_dimension_numbers<[1], [0], [0], [1], [0, 0, 1, 1], [], []>} : vector<1x18xf32>, vector<18x256xf32>, vector<1x256xf32> -> vector<1x256xf32>
    %c2_438 = arith.constant 2 : index
    %1003 = memref.load %arg12[%c2_438] : memref<5xf32, #tpu.memory_space<smem>>
    %1004 = vector.broadcast %1003 : f32 to vector<1x256xf32>
    %1005 = arith.addf %1002, %1004 : vector<1x256xf32>
    %1006 = arith.negf %1005 : vector<1x256xf32>
    %1007 = math.exp %1006 : vector<1x256xf32>
    %cst_439 = arith.constant 1.000000e+00 : f32
    %1008 = vector.broadcast %cst_439 : f32 to vector<1x256xf32>
    %1009 = arith.addf %1008, %1007 : vector<1x256xf32>
    %1010 = arith.divf %1008, %1009 : vector<1x256xf32>
    %1011 = vector.broadcast %1010 : vector<1x256xf32> to vector<6x256xf32>
    %1012 = arith.mulf %968, %1011 : vector<6x256xf32>
    %1013 = tpu.concatenate %682, %792, %902, %1012 in 0 : vector<6x256xf32>, vector<6x256xf32>, vector<6x256xf32>, vector<6x256xf32> -> vector<24x256xf32>
    %cst_440 = arith.constant dense<0xFF800000> : vector<24xf32>
    %1014 = vector.multi_reduction <maximumf>, %1013, %cst_440 [1] : vector<24x256xf32> to vector<24xf32>
    %1015 = vector.shape_cast %1014 : vector<24xf32> to vector<24x1xf32>
    %cst_441 = arith.constant dense<0.000000e+00> : vector<24xf32>
    %1016 = vector.multi_reduction <add>, %1013, %cst_441 [1] : vector<24x256xf32> to vector<24xf32>
    %1017 = vector.shape_cast %1016 : vector<24xf32> to vector<24x1xf32>
    %cst_442 = arith.constant 2.560000e+02 : f32
    %1018 = vector.broadcast %cst_442 : f32 to vector<24x1xf32>
    %1019 = arith.divf %1017, %1018 : vector<24x1xf32>
    %1020 = tpu.concatenate %1015, %1019 in 0 : vector<24x1xf32>, vector<24x1xf32> -> vector<48x1xf32>
    %c0_443 = arith.constant 0 : index
    %c0_444 = arith.constant 0 : index
    %c0_445 = arith.constant 0 : index
    %1021 = vector.load %arg10[%c0_443, %c0_444, %c0_445] : memref<2x24x48xf32, #tpu.memory_space<vmem>>, vector<1x24x48xf32>
    %1022 = vector.shape_cast %1021 : vector<1x24x48xf32> to vector<24x48xf32>
    %cst_446 = arith.constant dense<0.000000e+00> : vector<24x1xf32>
    %1023 = tpu.matmul %1022, %1020, %cst_446 {dimension_numbers = #tpu.dot_dimension_numbers<[1], [0], [0], [1], [0, 0, 1, 1], [], []>} : vector<24x48xf32>, vector<48x1xf32>, vector<24x1xf32> -> vector<24x1xf32>
    %1024 = arith.negf %1023 : vector<24x1xf32>
    %1025 = math.exp %1024 : vector<24x1xf32>
    %cst_447 = arith.constant 1.000000e+00 : f32
    %1026 = vector.broadcast %cst_447 : f32 to vector<24x1xf32>
    %1027 = arith.addf %1026, %1025 : vector<24x1xf32>
    %1028 = arith.divf %1026, %1027 : vector<24x1xf32>
    %c0_448 = arith.constant 0 : index
    %c0_449 = arith.constant 0 : index
    %c0_450 = arith.constant 0 : index
    %1029 = vector.load %arg8[%c0_448, %c0_449, %c0_450] : memref<2x3x24xf32, #tpu.memory_space<vmem>>, vector<1x3x24xf32>
    %1030 = vector.shape_cast %1029 : vector<1x3x24xf32> to vector<3x24xf32>
    %1031 = vector.broadcast %1028 : vector<24x1xf32> to vector<24x256xf32>
    %1032 = arith.mulf %1013, %1031 : vector<24x256xf32>
    %cst_451 = arith.constant dense<0.000000e+00> : vector<3x256xf32>
    %1033 = tpu.matmul %1030, %1032, %cst_451 {dimension_numbers = #tpu.dot_dimension_numbers<[1], [0], [0], [1], [0, 0, 1, 1], [], []>} : vector<3x24xf32>, vector<24x256xf32>, vector<3x256xf32> -> vector<3x256xf32>
    %c0_452 = arith.constant 0 : index
    %c0_453 = arith.constant 0 : index
    %c0_454 = arith.constant 0 : index
    %1034 = vector.load %arg9[%c0_452, %c0_453, %c0_454] : memref<6x3x1xf32, #tpu.memory_space<vmem>>, vector<1x3x1xf32>
    %1035 = vector.shape_cast %1034 : vector<1x3x1xf32> to vector<3x1xf32>
    %1036 = vector.broadcast %1035 : vector<3x1xf32> to vector<3x256xf32>
    %1037 = arith.addf %1033, %1036 : vector<3x256xf32>
    %c1_455 = arith.constant 1 : index
    %c0_456 = arith.constant 0 : index
    %c0_457 = arith.constant 0 : index
    %1038 = vector.load %arg9[%c1_455, %c0_456, %c0_457] : memref<6x3x1xf32, #tpu.memory_space<vmem>>, vector<1x3x1xf32>
    %1039 = vector.shape_cast %1038 : vector<1x3x1xf32> to vector<3x1xf32>
    %c2_458 = arith.constant 2 : index
    %c0_459 = arith.constant 0 : index
    %c0_460 = arith.constant 0 : index
    %1040 = vector.load %arg9[%c2_458, %c0_459, %c0_460] : memref<6x3x1xf32, #tpu.memory_space<vmem>>, vector<1x3x1xf32>
    %1041 = vector.shape_cast %1040 : vector<1x3x1xf32> to vector<3x1xf32>
    %cst_461 = arith.constant dense<0.000000e+00> : vector<3xf32>
    %1042 = vector.multi_reduction <add>, %1037, %cst_461 [1] : vector<3x256xf32> to vector<3xf32>
    %1043 = vector.shape_cast %1042 : vector<3xf32> to vector<3x1xf32>
    %cst_462 = arith.constant 2.560000e+02 : f32
    %1044 = vector.broadcast %cst_462 : f32 to vector<3x1xf32>
    %1045 = arith.divf %1043, %1044 : vector<3x1xf32>
    %1046 = arith.mulf %1037, %1037 : vector<3x256xf32>
    %cst_463 = arith.constant dense<0.000000e+00> : vector<3xf32>
    %1047 = vector.multi_reduction <add>, %1046, %cst_463 [1] : vector<3x256xf32> to vector<3xf32>
    %1048 = vector.shape_cast %1047 : vector<3xf32> to vector<3x1xf32>
    %cst_464 = arith.constant 2.560000e+02 : f32
    %1049 = vector.broadcast %cst_464 : f32 to vector<3x1xf32>
    %1050 = arith.divf %1048, %1049 : vector<3x1xf32>
    %1051 = arith.mulf %1045, %1045 : vector<3x1xf32>
    %1052 = arith.subf %1050, %1051 : vector<3x1xf32>
    %cst_465 = arith.constant 0.000000e+00 : f32
    %1053 = vector.broadcast %cst_465 : f32 to vector<3x1xf32>
    %1054 = arith.maximumf %1052, %1053 : vector<3x1xf32>
    %1055 = vector.broadcast %1045 : vector<3x1xf32> to vector<3x256xf32>
    %1056 = arith.subf %1037, %1055 : vector<3x256xf32>
    %cst_466 = arith.constant 9.99999974E-6 : f32
    %1057 = vector.broadcast %cst_466 : f32 to vector<3x1xf32>
    %1058 = arith.addf %1054, %1057 : vector<3x1xf32>
    %1059 = math.rsqrt %1058 : vector<3x1xf32>
    %1060 = vector.broadcast %1059 : vector<3x1xf32> to vector<3x256xf32>
    %1061 = arith.mulf %1056, %1060 : vector<3x256xf32>
    %1062 = vector.broadcast %1039 : vector<3x1xf32> to vector<3x256xf32>
    %1063 = arith.mulf %1061, %1062 : vector<3x256xf32>
    %1064 = vector.broadcast %1041 : vector<3x1xf32> to vector<3x256xf32>
    %1065 = arith.addf %1063, %1064 : vector<3x256xf32>
    %cst_467 = arith.constant dense<0.000000e+00> : vector<256xf32>
    %1066 = vector.multi_reduction <add>, %1065, %cst_467 [0] : vector<3x256xf32> to vector<256xf32>
    %1067 = vector.shape_cast %1066 : vector<256xf32> to vector<1x256xf32>
    %cst_468 = arith.constant 3.000000e+00 : f32
    %1068 = vector.broadcast %cst_468 : f32 to vector<1x256xf32>
    %1069 = arith.divf %1067, %1068 : vector<1x256xf32>
    %cst_469 = arith.constant dense<0xFF800000> : vector<256xf32>
    %1070 = vector.multi_reduction <maximumf>, %1065, %cst_469 [0] : vector<3x256xf32> to vector<256xf32>
    %1071 = vector.shape_cast %1070 : vector<256xf32> to vector<1x256xf32>
    %1072 = tpu.concatenate %1069, %1071 in 0 : vector<1x256xf32>, vector<1x256xf32> -> vector<2x256xf32>
    %c17_i32_470 = arith.constant 17 : i32
    %1073 = tpu.dynamic_rotate %1072 by %c17_i32_470 dim 1 : vector<2x256xf32>, i32 -> vector<2x256xf32>
    %1074 = vector.broadcast %8 : vector<1x256xf32> to vector<2x256xf32>
    %1075 = arith.mulf %1073, %1074 : vector<2x256xf32>
    %c16_i32_471 = arith.constant 16 : i32
    %1076 = tpu.dynamic_rotate %1072 by %c16_i32_471 dim 1 : vector<2x256xf32>, i32 -> vector<2x256xf32>
    %1077 = vector.broadcast %9 : vector<1x256xf32> to vector<2x256xf32>
    %1078 = arith.mulf %1076, %1077 : vector<2x256xf32>
    %c15_i32_472 = arith.constant 15 : i32
    %1079 = tpu.dynamic_rotate %1072 by %c15_i32_472 dim 1 : vector<2x256xf32>, i32 -> vector<2x256xf32>
    %1080 = vector.broadcast %10 : vector<1x256xf32> to vector<2x256xf32>
    %1081 = arith.mulf %1079, %1080 : vector<2x256xf32>
    %c1_i32_473 = arith.constant 1 : i32
    %1082 = tpu.dynamic_rotate %1072 by %c1_i32_473 dim 1 : vector<2x256xf32>, i32 -> vector<2x256xf32>
    %1083 = vector.broadcast %11 : vector<1x256xf32> to vector<2x256xf32>
    %1084 = arith.mulf %1082, %1083 : vector<2x256xf32>
    %c255_i32_474 = arith.constant 255 : i32
    %1085 = tpu.dynamic_rotate %1072 by %c255_i32_474 dim 1 : vector<2x256xf32>, i32 -> vector<2x256xf32>
    %1086 = vector.broadcast %12 : vector<1x256xf32> to vector<2x256xf32>
    %1087 = arith.mulf %1085, %1086 : vector<2x256xf32>
    %c241_i32_475 = arith.constant 241 : i32
    %1088 = tpu.dynamic_rotate %1072 by %c241_i32_475 dim 1 : vector<2x256xf32>, i32 -> vector<2x256xf32>
    %1089 = vector.broadcast %13 : vector<1x256xf32> to vector<2x256xf32>
    %1090 = arith.mulf %1088, %1089 : vector<2x256xf32>
    %c240_i32_476 = arith.constant 240 : i32
    %1091 = tpu.dynamic_rotate %1072 by %c240_i32_476 dim 1 : vector<2x256xf32>, i32 -> vector<2x256xf32>
    %1092 = vector.broadcast %14 : vector<1x256xf32> to vector<2x256xf32>
    %1093 = arith.mulf %1091, %1092 : vector<2x256xf32>
    %c239_i32_477 = arith.constant 239 : i32
    %1094 = tpu.dynamic_rotate %1072 by %c239_i32_477 dim 1 : vector<2x256xf32>, i32 -> vector<2x256xf32>
    %1095 = vector.broadcast %15 : vector<1x256xf32> to vector<2x256xf32>
    %1096 = arith.mulf %1094, %1095 : vector<2x256xf32>
    %1097 = tpu.concatenate %1075, %1078, %1081, %1084, %1072, %1087, %1090, %1093, %1096 in 0 : vector<2x256xf32>, vector<2x256xf32>, vector<2x256xf32>, vector<2x256xf32>, vector<2x256xf32>, vector<2x256xf32>, vector<2x256xf32>, vector<2x256xf32>, vector<2x256xf32> -> vector<18x256xf32>
    %c3_478 = arith.constant 3 : index
    %c0_479 = arith.constant 0 : index
    %1098 = vector.load %arg11[%c3_478, %c0_479] : memref<5x18xf32, #tpu.memory_space<vmem>>, vector<1x18xf32>
    %cst_480 = arith.constant dense<0.000000e+00> : vector<1x256xf32>
    %1099 = tpu.matmul %1098, %1097, %cst_480 {dimension_numbers = #tpu.dot_dimension_numbers<[1], [0], [0], [1], [0, 0, 1, 1], [], []>} : vector<1x18xf32>, vector<18x256xf32>, vector<1x256xf32> -> vector<1x256xf32>
    %c3_481 = arith.constant 3 : index
    %1100 = memref.load %arg12[%c3_481] : memref<5xf32, #tpu.memory_space<smem>>
    %1101 = vector.broadcast %1100 : f32 to vector<1x256xf32>
    %1102 = arith.addf %1099, %1101 : vector<1x256xf32>
    %1103 = arith.negf %1102 : vector<1x256xf32>
    %1104 = math.exp %1103 : vector<1x256xf32>
    %cst_482 = arith.constant 1.000000e+00 : f32
    %1105 = vector.broadcast %cst_482 : f32 to vector<1x256xf32>
    %1106 = arith.addf %1105, %1104 : vector<1x256xf32>
    %1107 = arith.divf %1105, %1106 : vector<1x256xf32>
    %1108 = vector.broadcast %1107 : vector<1x256xf32> to vector<3x256xf32>
    %1109 = arith.mulf %1065, %1108 : vector<3x256xf32>
    %cst_483 = arith.constant 0.000000e+00 : f32
    %cst_484 = arith.constant 1.000000e+00 : f32
    %1110 = vector.broadcast %cst_483 : f32 to vector<3x256xf32>
    %1111 = arith.maximumf %1110, %1109 : vector<3x256xf32>
    %1112 = vector.broadcast %cst_484 : f32 to vector<3x256xf32>
    %1113 = arith.minimumf %1112, %1111 : vector<3x256xf32>
    %c1_485 = arith.constant 1 : index
    %c0_486 = arith.constant 0 : index
    %c0_487 = arith.constant 0 : index
    %1114 = vector.load %arg10[%c1_485, %c0_486, %c0_487] : memref<2x24x48xf32, #tpu.memory_space<vmem>>, vector<1x24x48xf32>
    %1115 = vector.shape_cast %1114 : vector<1x24x48xf32> to vector<24x48xf32>
    %cst_488 = arith.constant dense<0.000000e+00> : vector<24x1xf32>
    %1116 = tpu.matmul %1115, %1020, %cst_488 {dimension_numbers = #tpu.dot_dimension_numbers<[1], [0], [0], [1], [0, 0, 1, 1], [], []>} : vector<24x48xf32>, vector<48x1xf32>, vector<24x1xf32> -> vector<24x1xf32>
    %1117 = arith.negf %1116 : vector<24x1xf32>
    %1118 = math.exp %1117 : vector<24x1xf32>
    %cst_489 = arith.constant 1.000000e+00 : f32
    %1119 = vector.broadcast %cst_489 : f32 to vector<24x1xf32>
    %1120 = arith.addf %1119, %1118 : vector<24x1xf32>
    %1121 = arith.divf %1119, %1120 : vector<24x1xf32>
    %c1_490 = arith.constant 1 : index
    %c0_491 = arith.constant 0 : index
    %c0_492 = arith.constant 0 : index
    %1122 = vector.load %arg8[%c1_490, %c0_491, %c0_492] : memref<2x3x24xf32, #tpu.memory_space<vmem>>, vector<1x3x24xf32>
    %1123 = vector.shape_cast %1122 : vector<1x3x24xf32> to vector<3x24xf32>
    %1124 = vector.broadcast %1121 : vector<24x1xf32> to vector<24x256xf32>
    %1125 = arith.mulf %1013, %1124 : vector<24x256xf32>
    %cst_493 = arith.constant dense<0.000000e+00> : vector<3x256xf32>
    %1126 = tpu.matmul %1123, %1125, %cst_493 {dimension_numbers = #tpu.dot_dimension_numbers<[1], [0], [0], [1], [0, 0, 1, 1], [], []>} : vector<3x24xf32>, vector<24x256xf32>, vector<3x256xf32> -> vector<3x256xf32>
    %c3_494 = arith.constant 3 : index
    %c0_495 = arith.constant 0 : index
    %c0_496 = arith.constant 0 : index
    %1127 = vector.load %arg9[%c3_494, %c0_495, %c0_496] : memref<6x3x1xf32, #tpu.memory_space<vmem>>, vector<1x3x1xf32>
    %1128 = vector.shape_cast %1127 : vector<1x3x1xf32> to vector<3x1xf32>
    %1129 = vector.broadcast %1128 : vector<3x1xf32> to vector<3x256xf32>
    %1130 = arith.addf %1126, %1129 : vector<3x256xf32>
    %c4_497 = arith.constant 4 : index
    %c0_498 = arith.constant 0 : index
    %c0_499 = arith.constant 0 : index
    %1131 = vector.load %arg9[%c4_497, %c0_498, %c0_499] : memref<6x3x1xf32, #tpu.memory_space<vmem>>, vector<1x3x1xf32>
    %1132 = vector.shape_cast %1131 : vector<1x3x1xf32> to vector<3x1xf32>
    %c5_500 = arith.constant 5 : index
    %c0_501 = arith.constant 0 : index
    %c0_502 = arith.constant 0 : index
    %1133 = vector.load %arg9[%c5_500, %c0_501, %c0_502] : memref<6x3x1xf32, #tpu.memory_space<vmem>>, vector<1x3x1xf32>
    %1134 = vector.shape_cast %1133 : vector<1x3x1xf32> to vector<3x1xf32>
    %cst_503 = arith.constant dense<0.000000e+00> : vector<3xf32>
    %1135 = vector.multi_reduction <add>, %1130, %cst_503 [1] : vector<3x256xf32> to vector<3xf32>
    %1136 = vector.shape_cast %1135 : vector<3xf32> to vector<3x1xf32>
    %cst_504 = arith.constant 2.560000e+02 : f32
    %1137 = vector.broadcast %cst_504 : f32 to vector<3x1xf32>
    %1138 = arith.divf %1136, %1137 : vector<3x1xf32>
    %1139 = arith.mulf %1130, %1130 : vector<3x256xf32>
    %cst_505 = arith.constant dense<0.000000e+00> : vector<3xf32>
    %1140 = vector.multi_reduction <add>, %1139, %cst_505 [1] : vector<3x256xf32> to vector<3xf32>
    %1141 = vector.shape_cast %1140 : vector<3xf32> to vector<3x1xf32>
    %cst_506 = arith.constant 2.560000e+02 : f32
    %1142 = vector.broadcast %cst_506 : f32 to vector<3x1xf32>
    %1143 = arith.divf %1141, %1142 : vector<3x1xf32>
    %1144 = arith.mulf %1138, %1138 : vector<3x1xf32>
    %1145 = arith.subf %1143, %1144 : vector<3x1xf32>
    %cst_507 = arith.constant 0.000000e+00 : f32
    %1146 = vector.broadcast %cst_507 : f32 to vector<3x1xf32>
    %1147 = arith.maximumf %1145, %1146 : vector<3x1xf32>
    %1148 = vector.broadcast %1138 : vector<3x1xf32> to vector<3x256xf32>
    %1149 = arith.subf %1130, %1148 : vector<3x256xf32>
    %cst_508 = arith.constant 9.99999974E-6 : f32
    %1150 = vector.broadcast %cst_508 : f32 to vector<3x1xf32>
    %1151 = arith.addf %1147, %1150 : vector<3x1xf32>
    %1152 = math.rsqrt %1151 : vector<3x1xf32>
    %1153 = vector.broadcast %1152 : vector<3x1xf32> to vector<3x256xf32>
    %1154 = arith.mulf %1149, %1153 : vector<3x256xf32>
    %1155 = vector.broadcast %1132 : vector<3x1xf32> to vector<3x256xf32>
    %1156 = arith.mulf %1154, %1155 : vector<3x256xf32>
    %1157 = vector.broadcast %1134 : vector<3x1xf32> to vector<3x256xf32>
    %1158 = arith.addf %1156, %1157 : vector<3x256xf32>
    %cst_509 = arith.constant dense<0.000000e+00> : vector<256xf32>
    %1159 = vector.multi_reduction <add>, %1158, %cst_509 [0] : vector<3x256xf32> to vector<256xf32>
    %1160 = vector.shape_cast %1159 : vector<256xf32> to vector<1x256xf32>
    %cst_510 = arith.constant 3.000000e+00 : f32
    %1161 = vector.broadcast %cst_510 : f32 to vector<1x256xf32>
    %1162 = arith.divf %1160, %1161 : vector<1x256xf32>
    %cst_511 = arith.constant dense<0xFF800000> : vector<256xf32>
    %1163 = vector.multi_reduction <maximumf>, %1158, %cst_511 [0] : vector<3x256xf32> to vector<256xf32>
    %1164 = vector.shape_cast %1163 : vector<256xf32> to vector<1x256xf32>
    %1165 = tpu.concatenate %1162, %1164 in 0 : vector<1x256xf32>, vector<1x256xf32> -> vector<2x256xf32>
    %c17_i32_512 = arith.constant 17 : i32
    %1166 = tpu.dynamic_rotate %1165 by %c17_i32_512 dim 1 : vector<2x256xf32>, i32 -> vector<2x256xf32>
    %1167 = vector.broadcast %8 : vector<1x256xf32> to vector<2x256xf32>
    %1168 = arith.mulf %1166, %1167 : vector<2x256xf32>
    %c16_i32_513 = arith.constant 16 : i32
    %1169 = tpu.dynamic_rotate %1165 by %c16_i32_513 dim 1 : vector<2x256xf32>, i32 -> vector<2x256xf32>
    %1170 = vector.broadcast %9 : vector<1x256xf32> to vector<2x256xf32>
    %1171 = arith.mulf %1169, %1170 : vector<2x256xf32>
    %c15_i32_514 = arith.constant 15 : i32
    %1172 = tpu.dynamic_rotate %1165 by %c15_i32_514 dim 1 : vector<2x256xf32>, i32 -> vector<2x256xf32>
    %1173 = vector.broadcast %10 : vector<1x256xf32> to vector<2x256xf32>
    %1174 = arith.mulf %1172, %1173 : vector<2x256xf32>
    %c1_i32_515 = arith.constant 1 : i32
    %1175 = tpu.dynamic_rotate %1165 by %c1_i32_515 dim 1 : vector<2x256xf32>, i32 -> vector<2x256xf32>
    %1176 = vector.broadcast %11 : vector<1x256xf32> to vector<2x256xf32>
    %1177 = arith.mulf %1175, %1176 : vector<2x256xf32>
    %c255_i32_516 = arith.constant 255 : i32
    %1178 = tpu.dynamic_rotate %1165 by %c255_i32_516 dim 1 : vector<2x256xf32>, i32 -> vector<2x256xf32>
    %1179 = vector.broadcast %12 : vector<1x256xf32> to vector<2x256xf32>
    %1180 = arith.mulf %1178, %1179 : vector<2x256xf32>
    %c241_i32_517 = arith.constant 241 : i32
    %1181 = tpu.dynamic_rotate %1165 by %c241_i32_517 dim 1 : vector<2x256xf32>, i32 -> vector<2x256xf32>
    %1182 = vector.broadcast %13 : vector<1x256xf32> to vector<2x256xf32>
    %1183 = arith.mulf %1181, %1182 : vector<2x256xf32>
    %c240_i32_518 = arith.constant 240 : i32
    %1184 = tpu.dynamic_rotate %1165 by %c240_i32_518 dim 1 : vector<2x256xf32>, i32 -> vector<2x256xf32>
    %1185 = vector.broadcast %14 : vector<1x256xf32> to vector<2x256xf32>
    %1186 = arith.mulf %1184, %1185 : vector<2x256xf32>
    %c239_i32_519 = arith.constant 239 : i32
    %1187 = tpu.dynamic_rotate %1165 by %c239_i32_519 dim 1 : vector<2x256xf32>, i32 -> vector<2x256xf32>
    %1188 = vector.broadcast %15 : vector<1x256xf32> to vector<2x256xf32>
    %1189 = arith.mulf %1187, %1188 : vector<2x256xf32>
    %1190 = tpu.concatenate %1168, %1171, %1174, %1177, %1165, %1180, %1183, %1186, %1189 in 0 : vector<2x256xf32>, vector<2x256xf32>, vector<2x256xf32>, vector<2x256xf32>, vector<2x256xf32>, vector<2x256xf32>, vector<2x256xf32>, vector<2x256xf32>, vector<2x256xf32> -> vector<18x256xf32>
    %c4_520 = arith.constant 4 : index
    %c0_521 = arith.constant 0 : index
    %1191 = vector.load %arg11[%c4_520, %c0_521] : memref<5x18xf32, #tpu.memory_space<vmem>>, vector<1x18xf32>
    %cst_522 = arith.constant dense<0.000000e+00> : vector<1x256xf32>
    %1192 = tpu.matmul %1191, %1190, %cst_522 {dimension_numbers = #tpu.dot_dimension_numbers<[1], [0], [0], [1], [0, 0, 1, 1], [], []>} : vector<1x18xf32>, vector<18x256xf32>, vector<1x256xf32> -> vector<1x256xf32>
    %c4_523 = arith.constant 4 : index
    %1193 = memref.load %arg12[%c4_523] : memref<5xf32, #tpu.memory_space<smem>>
    %1194 = vector.broadcast %1193 : f32 to vector<1x256xf32>
    %1195 = arith.addf %1192, %1194 : vector<1x256xf32>
    %1196 = arith.negf %1195 : vector<1x256xf32>
    %1197 = math.exp %1196 : vector<1x256xf32>
    %cst_524 = arith.constant 1.000000e+00 : f32
    %1198 = vector.broadcast %cst_524 : f32 to vector<1x256xf32>
    %1199 = arith.addf %1198, %1197 : vector<1x256xf32>
    %1200 = arith.divf %1198, %1199 : vector<1x256xf32>
    %1201 = vector.broadcast %1200 : vector<1x256xf32> to vector<3x256xf32>
    %1202 = arith.mulf %1158, %1201 : vector<3x256xf32>
    %cst_525 = arith.constant 0.000000e+00 : f32
    %cst_526 = arith.constant 1.000000e+00 : f32
    %1203 = vector.broadcast %cst_525 : f32 to vector<3x256xf32>
    %1204 = arith.maximumf %1203, %1202 : vector<3x256xf32>
    %1205 = vector.broadcast %cst_526 : f32 to vector<3x256xf32>
    %1206 = arith.minimumf %1205, %1204 : vector<3x256xf32>
    %1207 = arith.mulf %1113, %618 : vector<3x256xf32>
    %1208 = arith.subf %1207, %1113 : vector<3x256xf32>
    %1209 = arith.addf %1208, %1206 : vector<3x256xf32>
    %cst_527 = arith.constant 1.000000e+00 : f32
    %1210 = vector.broadcast %cst_527 : f32 to vector<3x256xf32>
    %1211 = arith.addf %1209, %1210 : vector<3x256xf32>
    %cst_528 = arith.constant 5.000000e-01 : f32
    %1212 = vector.broadcast %cst_528 : f32 to vector<3x256xf32>
    %1213 = arith.mulf %1212, %1211 : vector<3x256xf32>
    %c1_529 = arith.constant 1 : index
    %c0_530 = arith.constant 0 : index
    %c0_531 = arith.constant 0 : index
    %1214 = vector.load %arg13[%c1_529, %c0_530, %c0_531] : memref<2x3x256xf32, #tpu.memory_space<vmem>>, vector<1x3x256xf32>
    %1215 = vector.shape_cast %1214 : vector<1x3x256xf32> to vector<3x256xf32>
    %1216 = vector.shape_cast %1213 : vector<3x256xf32> to vector<1x3x256xf32>
    tpu.vector_store %arg13[%c1_529, %c0_530, %c0_531], %1216 {strides = array<i32>} : memref<2x3x256xf32, #tpu.memory_space<vmem>>, vector<1x3x256xf32>,
    return
  }
  func.func @transform_0(%arg0: i32) -> (i32, i32, i32) {
    %c0_i32 = arith.constant 0 : i32
    %c0_i32_0 = arith.constant 0 : i32
    %c0_i32_1 = arith.constant 0 : i32
    return %arg0, %c0_i32, %c0_i32_0 : i32, i32, i32
  }
  func.func @transform_1(%arg0: i32) -> (i32, i32) {
    %c0_i32 = arith.constant 0 : i32
    %c0_i32_0 = arith.constant 0 : i32
    %c0_i32_1 = arith.constant 0 : i32
    return %c0_i32, %c0_i32_0 : i32, i32
  }
  func.func @transform_2(%arg0: i32) -> (i32, i32) {
    %c0_i32 = arith.constant 0 : i32
    %c0_i32_0 = arith.constant 0 : i32
    %c0_i32_1 = arith.constant 0 : i32
    return %c0_i32, %c0_i32_0 : i32, i32
  }
  func.func @transform_3(%arg0: i32) -> (i32, i32) {
    %c0_i32 = arith.constant 0 : i32
    %c0_i32_0 = arith.constant 0 : i32
    %c0_i32_1 = arith.constant 0 : i32
    return %c0_i32, %c0_i32_0 : i32, i32
  }
  func.func @transform_4(%arg0: i32) -> (i32, i32) {
    %c0_i32 = arith.constant 0 : i32
    %c0_i32_0 = arith.constant 0 : i32
    %c0_i32_1 = arith.constant 0 : i32
    return %c0_i32, %c0_i32_0 : i32, i32
  }
  func.func @transform_5(%arg0: i32) -> (i32, i32) {
    %c0_i32 = arith.constant 0 : i32
    %c0_i32_0 = arith.constant 0 : i32
    %c0_i32_1 = arith.constant 0 : i32
    return %c0_i32, %c0_i32_0 : i32, i32
  }
  func.func @transform_6(%arg0: i32) -> (i32, i32, i32) {
    %c0_i32 = arith.constant 0 : i32
    %c0_i32_0 = arith.constant 0 : i32
    %c0_i32_1 = arith.constant 0 : i32
    %c0_i32_2 = arith.constant 0 : i32
    return %c0_i32, %c0_i32_0, %c0_i32_1 : i32, i32, i32
  }
  func.func @transform_7(%arg0: i32) -> (i32, i32, i32) {
    %c0_i32 = arith.constant 0 : i32
    %c0_i32_0 = arith.constant 0 : i32
    %c0_i32_1 = arith.constant 0 : i32
    %c0_i32_2 = arith.constant 0 : i32
    return %c0_i32, %c0_i32_0, %c0_i32_1 : i32, i32, i32
  }
  func.func @transform_8(%arg0: i32) -> (i32, i32, i32) {
    %c0_i32 = arith.constant 0 : i32
    %c0_i32_0 = arith.constant 0 : i32
    %c0_i32_1 = arith.constant 0 : i32
    %c0_i32_2 = arith.constant 0 : i32
    return %c0_i32, %c0_i32_0, %c0_i32_1 : i32, i32, i32
  }
  func.func @transform_9(%arg0: i32) -> (i32, i32, i32) {
    %c0_i32 = arith.constant 0 : i32
    %c0_i32_0 = arith.constant 0 : i32
    %c0_i32_1 = arith.constant 0 : i32
    %c0_i32_2 = arith.constant 0 : i32
    return %c0_i32, %c0_i32_0, %c0_i32_1 : i32, i32, i32
  }
  func.func @transform_10(%arg0: i32) -> (i32, i32) {
    %c0_i32 = arith.constant 0 : i32
    %c0_i32_0 = arith.constant 0 : i32
    %c0_i32_1 = arith.constant 0 : i32
    return %c0_i32, %c0_i32_0 : i32, i32
  }
  func.func @transform_11(%arg0: i32) -> i32 {
    %c0_i32 = arith.constant 0 : i32
    %c0_i32_0 = arith.constant 0 : i32
    return %c0_i32 : i32
  }
  func.func @transform_12(%arg0: i32) -> (i32, i32, i32) {
    %c0_i32 = arith.constant 0 : i32
    %c0_i32_0 = arith.constant 0 : i32
    %c0_i32_1 = arith.constant 0 : i32
    return %arg0, %c0_i32, %c0_i32_0 : i32, i32, i32
  }
}

</mosaic_0001>

<llo_original>
// kernel: mdehaze_forward.1
$region0: #{mdehaze_forward.1}
  #allocation0 [shape = 'u32[]', space=smem, size = 0x4, offset = 0x4, fixed_abs, tag = 'smem constant byte address 0x4 - core index']
  #allocation1 [shape = 'u32[144,128]{1,0:T(1,128)}', space=vmem, size = 0x12000, scoped, tag = 'internal scratch']
  #allocation2 [shape = 'f32[168,256]{1,0:T(8,128)}', space=vmem, size = 0x2a000, scoped, tag = 'scratch operand']
  %s0 = inlined_call_operand.vmem [shape: f32[2,3,256], index: 0, kind: input, shape index: {}]
  %s1 = inlined_call_operand.vmem [shape: f32[16,256], index: 1, kind: input, shape index: {}]
  %s2 = inlined_call_operand.vmem [shape: f32[6,27], index: 2, kind: input, shape index: {}]
  %s3 = inlined_call_operand.vmem [shape: f32[6,56], index: 3, kind: input, shape index: {}]
  %s4 = inlined_call_operand.vmem [shape: f32[6,112], index: 4, kind: input, shape index: {}]
  %s5 = inlined_call_operand.vmem [shape: f32[6,168], index: 5, kind: input, shape index: {}]
  %s6 = inlined_call_operand.vmem [shape: f32[12,6,1], index: 6, kind: input, shape index: {}]
  %s7 = inlined_call_operand.vmem [shape: f32[2,3,24], index: 7, kind: input, shape index: {}]
  %s8 = inlined_call_operand.vmem [shape: f32[6,3,1], index: 8, kind: input, shape index: {}]
  %s9 = inlined_call_operand.vmem [shape: f32[2,24,48], index: 9, kind: input, shape index: {}]
  %s10 = inlined_call_operand.vmem [shape: f32[5,18], index: 10, kind: input, shape index: {}]
  %s11 = inlined_call_operand.vmem [shape: f32[5], index: 11, kind: input, shape index: {}]
  %s12 = inlined_call_operand.vmem [shape: f32[2,3,256], index: 12, kind: output, shape index: {}]
  %s13 = sld [smem:[#allocation0]]
  $region62: #{mdehaze_forward.1} parent=0
    _
  %s15 = ssub.s32 1, %s13
  %s16 = scalar_select 0, %s15, %s13
  $region1: #{mdehaze_forward.1} parent=0
    #allocation3 [shape = 'u8[512]{0}', space=smem, size = 0x200, scoped, tag = 'input window, operand 11, single buffered']
    #allocation4 [shape = 's32[1]{0}', space=sflag, size = 0x4, scoped, tag = 'scoped memory for mdehaze_forward.1']
    %17 = vsyncpa [#allocation4], 0
    // Predicated region
    $region2: #{mdehaze_forward.1} parent=1 // pred_check
      _
    $region3: #{mdehaze_forward.1} parent=1 // pred_check_branch
      %19 = sbr.rel (0) target = $region5
    $region4: #{mdehaze_forward.1} parent=1 // pred_region
      _
    $region5: #{mdehaze_forward.1} parent=1 // pred_fallthru
      _
    // Predicated region
    $region6: #{mdehaze_forward.1} parent=1 // pred_check
      _
    $region7: #{mdehaze_forward.1} parent=1 // pred_check_branch
      %21 = sbr.rel (0) target = $region9
    $region8: #{mdehaze_forward.1} parent=1 // pred_region
      _
    $region9: #{mdehaze_forward.1} parent=1 // pred_fallthru
      _
    // Predicated region
    $region10: #{mdehaze_forward.1} parent=1 // pred_check
      _
    $region11: #{mdehaze_forward.1} parent=1 // pred_check_branch
      %23 = sbr.rel (0) target = $region13
    $region12: #{mdehaze_forward.1} parent=1 // pred_region
      _
    $region13: #{mdehaze_forward.1} parent=1 // pred_fallthru
      _
    // Predicated region
    $region14: #{mdehaze_forward.1} parent=1 // pred_check
      _
    $region15: #{mdehaze_forward.1} parent=1 // pred_check_branch
      %25 = sbr.rel (0) target = $region17
    $region16: #{mdehaze_forward.1} parent=1 // pred_region
      _
    $region17: #{mdehaze_forward.1} parent=1 // pred_fallthru
      _
    // Predicated region
    $region18: #{mdehaze_forward.1} parent=1 // pred_check
      _
    $region19: #{mdehaze_forward.1} parent=1 // pred_check_branch
      %27 = sbr.rel (0) target = $region21
    $region20: #{mdehaze_forward.1} parent=1 // pred_region
      _
    $region21: #{mdehaze_forward.1} parent=1 // pred_fallthru
      _
    // Predicated region
    $region22: #{mdehaze_forward.1} parent=1 // pred_check
      _
    $region23: #{mdehaze_forward.1} parent=1 // pred_check_branch
      %29 = sbr.rel (0) target = $region25
    $region24: #{mdehaze_forward.1} parent=1 // pred_region
      _
    $region25: #{mdehaze_forward.1} parent=1 // pred_fallthru
      _
    // Predicated region
    $region26: #{mdehaze_forward.1} parent=1 // pred_check
      _
    $region27: #{mdehaze_forward.1} parent=1 // pred_check_branch
      %31 = sbr.rel (0) target = $region29
    $region28: #{mdehaze_forward.1} parent=1 // pred_region
      _
    $region29: #{mdehaze_forward.1} parent=1 // pred_fallthru
      _
    // Predicated region
    $region30: #{mdehaze_forward.1} parent=1 // pred_check
      _
    $region31: #{mdehaze_forward.1} parent=1 // pred_check_branch
      %33 = sbr.rel (0) target = $region33
    $region32: #{mdehaze_forward.1} parent=1 // pred_region
      _
    $region33: #{mdehaze_forward.1} parent=1 // pred_fallthru
      _
    // Predicated region
    $region34: #{mdehaze_forward.1} parent=1 // pred_check
      _
    $region35: #{mdehaze_forward.1} parent=1 // pred_check_branch
      %35 = sbr.rel (0) target = $region37
    $region36: #{mdehaze_forward.1} parent=1 // pred_region
      _
    $region37: #{mdehaze_forward.1} parent=1 // pred_fallthru
      _
    // Predicated region
    $region38: #{mdehaze_forward.1} parent=1 // pred_check
      _
    $region39: #{mdehaze_forward.1} parent=1 // pred_check_branch
      %37 = sbr.rel (0) target = $region41
    $region40: #{mdehaze_forward.1} parent=1 // pred_region
      _
    $region41: #{mdehaze_forward.1} parent=1 // pred_fallthru
      _
    // Predicated region
    $region42: #{mdehaze_forward.1} parent=1 // pred_check
      _
    $region43: #{mdehaze_forward.1} parent=1 // pred_check_branch
      %39 = sbr.rel (0) target = $region45
    $region44: #{mdehaze_forward.1} parent=1 // pred_region
      _
    $region45: #{mdehaze_forward.1} parent=1 // pred_fallthru
      _
    // Predicated region
    $region46: #{mdehaze_forward.1} parent=1 // pred_check
      _
    $region47: #{mdehaze_forward.1} parent=1 // pred_check_branch
      %41 = sbr.rel (0) target = $region49
    $region48: #{mdehaze_forward.1} parent=1 // pred_region
      %s43 = ssub.s32 16, 16
      %44 = vsyncadd [#allocation4], %s43
      %s46 = sshll.u32 %s11, 4
      %s47 = int_to_ptr.vmem [resolvable:$true] %s46
      %49 = dma.vmem_to_smem %s47, 16, [#allocation3], [#allocation4]
    $region49: #{mdehaze_forward.1} parent=1 // pred_fallthru
      _
    // Predicated region
    $region50: #{mdehaze_forward.1} parent=1 // pred_check
      _
    $region51: #{mdehaze_forward.1} parent=1 // pred_check_branch
      %51 = sbr.rel (0) target = $region53
    $region52: #{mdehaze_forward.1} parent=1 // pred_region
      %52 = dma.done [#allocation4], 16
    $region53: #{mdehaze_forward.1} parent=1 // pred_fallthru
      _
    %53 = sfence
    %v54 = vld [vmem:[%s1] ss:$8 sm:$0x3]
    %s55 = scalar_lea.vmem %s1, 1
    %v56 = vld [vmem:[%s55] ss:$8 sm:$0x3]
    %s57 = scalar_lea.vmem %s1, 2
    %v58 = vld [vmem:[%s57] ss:$8 sm:$0x3]
    %s59 = scalar_lea.vmem %s1, 3
    %v60 = vld [vmem:[%s59] ss:$8 sm:$0x3]
    %s61 = scalar_lea.vmem %s1, 4
    %v62 = vld [vmem:[%s61] ss:$8 sm:$0x3]
    %s63 = scalar_lea.vmem %s1, 5
    %v64 = vld [vmem:[%s63] ss:$8 sm:$0x3]
    %s65 = scalar_lea.vmem %s1, 6
    %v66 = vld [vmem:[%s65] ss:$8 sm:$0x3]
    %s67 = scalar_lea.vmem %s1, 7
    %v68 = vld [vmem:[%s67] ss:$8 sm:$0x3]
    %s69 = scalar_lea.vmem %s1, 16
    %v70 = vld [vmem:[%s69] ss:$8 sm:$0x3]
    %s71 = scalar_lea.vmem %s1, 17
    %v72 = vld [vmem:[%s71] ss:$8 sm:$0x3]
    %s73 = scalar_lea.vmem %s1, 18
    %v74 = vld [vmem:[%s73] ss:$8 sm:$0x3]
    %s75 = scalar_lea.vmem %s1, 19
    %v76 = vld [vmem:[%s75] ss:$8 sm:$0x3]
    %s77 = scalar_lea.vmem %s1, 20
    %v78 = vld [vmem:[%s77] ss:$8 sm:$0x3]
    %s79 = scalar_lea.vmem %s1, 21
    %v80 = vld [vmem:[%s79] ss:$8 sm:$0x3]
    %s81 = scalar_lea.vmem %s1, 22
    %v82 = vld [vmem:[%s81] ss:$8 sm:$0x3]
    %s83 = scalar_lea.vmem %s1, 23
    %v84 = vld [vmem:[%s83] ss:$8 sm:$0x3]
    %v85 = vld [vmem:[%s0] sm:$0x77]
    %v87 = vcombine.high %v85, %v85
    %89 = vrot.lane.b32.xlu0 %v85, 34
    %v90 = vpop.permute.xlu0 %89
    %91 = vrot.lane.b32.xlu0 %v87, 34
    %v92 = vpop.permute.xlu0 %91
    %v93 = vlaneseq
    %v94 = vand.u32 %v93, 127
    %vm95 = vcmp.lt.s32.totalorder %v94, 34
    %v96 = vsel %vm95, %v90, %v92
    %v97 = vsel %vm95, %v92, %v90
    %v99 = vlaneseq
    %v100 = vshrl.u32 %v99, 7
    %v101 = vsub.s32 0, %v100
    %v102 = vrot.slane %v54, %v101
    %v103 = vlaneseq
    %v104 = vshrl.u32 %v103, 7
    %v105 = vsub.s32 1, %v104
    %v106 = vrot.slane %v54, %v105
    %v109 = vmul.f32 %v97, %v102
    %v110 = vmul.f32 %v96, %v106
    %111 = vrot.lane.b32.xlu0 %v85, 32
    %v112 = vpop.permute.xlu0 %111
    %113 = vrot.lane.b32.xlu0 %v87, 32
    %v114 = vpop.permute.xlu0 %113
    %vm115 = vcmp.lt.s32.totalorder %v94, 32
    %v116 = vsel %vm115, %v112, %v114
    %v117 = vsel %vm115, %v114, %v112
    %v119 = vlaneseq
    %v120 = vshrl.u32 %v119, 7
    %v121 = vsub.s32 0, %v120
    %v122 = vrot.slane %v56, %v121
    %v123 = vlaneseq
    %v124 = vshrl.u32 %v123, 7
    %v125 = vsub.s32 1, %v124
    %v126 = vrot.slane %v56, %v125
    %v129 = vmul.f32 %v117, %v122
    %v130 = vmul.f32 %v116, %v126
    %131 = vrot.lane.b32.xlu0 %v85, 30
    %v132 = vpop.permute.xlu0 %131
    %133 = vrot.lane.b32.xlu0 %v87, 30
    %v134 = vpop.permute.xlu0 %133
    %vm135 = vcmp.lt.s32.totalorder %v94, 30
    %v136 = vsel %vm135, %v132, %v134
    %v137 = vsel %vm135, %v134, %v132
    %v139 = vlaneseq
    %v140 = vshrl.u32 %v139, 7
    %v141 = vsub.s32 0, %v140
    %v142 = vrot.slane %v58, %v141
    %v143 = vlaneseq
    %v144 = vshrl.u32 %v143, 7
    %v145 = vsub.s32 1, %v144
    %v146 = vrot.slane %v58, %v145
    %v149 = vmul.f32 %v137, %v142
    %v150 = vmul.f32 %v136, %v146
    %151 = vrot.lane.b32.xlu0 %v85, 2
    %v152 = vpop.permute.xlu0 %151
    %153 = vrot.lane.b32.xlu0 %v87, 2
    %v154 = vpop.permute.xlu0 %153
    %vm155 = vcmp.lt.s32.totalorder %v94, 2
    %v156 = vsel %vm155, %v152, %v154
    %v157 = vsel %vm155, %v154, %v152
    %v159 = vlaneseq
    %v160 = vshrl.u32 %v159, 7
    %v161 = vsub.s32 0, %v160
    %v162 = vrot.slane %v60, %v161
    %v163 = vlaneseq
    %v164 = vshrl.u32 %v163, 7
    %v165 = vsub.s32 1, %v164
    %v166 = vrot.slane %v60, %v165
    %v169 = vmul.f32 %v157, %v162
    %v170 = vmul.f32 %v156, %v166
    %171 = vrot.lane.b32.xlu0 %v85, 126
    %v172 = vpop.permute.xlu0 %171
    %173 = vrot.lane.b32.xlu0 %v87, 126
    %v174 = vpop.permute.xlu0 %173
    %vm175 = vcmp.lt.s32.totalorder %v94, 126
    %v176 = vsel %vm175, %v172, %v174
    %v177 = vsel %vm175, %v174, %v172
    %v179 = vlaneseq
    %v180 = vshrl.u32 %v179, 7
    %v181 = vsub.s32 0, %v180
    %v182 = vrot.slane %v62, %v181
    %v183 = vlaneseq
    %v184 = vshrl.u32 %v183, 7
    %v185 = vsub.s32 1, %v184
    %v186 = vrot.slane %v62, %v185
    %v189 = vmul.f32 %v176, %v182
    %v190 = vmul.f32 %v177, %v186
    %191 = vrot.lane.b32.xlu0 %v85, 98
    %v192 = vpop.permute.xlu0 %191
    %193 = vrot.lane.b32.xlu0 %v87, 98
    %v194 = vpop.permute.xlu0 %193
    %vm195 = vcmp.lt.s32.totalorder %v94, 98
    %v196 = vsel %vm195, %v192, %v194
    %v197 = vsel %vm195, %v194, %v192
    %v199 = vlaneseq
    %v200 = vshrl.u32 %v199, 7
    %v201 = vsub.s32 0, %v200
    %v202 = vrot.slane %v64, %v201
    %v203 = vlaneseq
    %v204 = vshrl.u32 %v203, 7
    %v205 = vsub.s32 1, %v204
    %v206 = vrot.slane %v64, %v205
    %v209 = vmul.f32 %v196, %v202
    %v210 = vmul.f32 %v197, %v206
    %211 = vrot.lane.b32.xlu0 %v85, 96
    %v212 = vpop.permute.xlu0 %211
    %213 = vrot.lane.b32.xlu0 %v87, 96
    %v214 = vpop.permute.xlu0 %213
    %vm215 = vcmp.lt.s32.totalorder %v94, 96
    %v216 = vsel %vm215, %v212, %v214
    %v217 = vsel %vm215, %v214, %v212
    %v219 = vlaneseq
    %v220 = vshrl.u32 %v219, 7
    %v221 = vsub.s32 0, %v220
    %v222 = vrot.slane %v66, %v221
    %v223 = vlaneseq
    %v224 = vshrl.u32 %v223, 7
    %v225 = vsub.s32 1, %v224
    %v226 = vrot.slane %v66, %v225
    %v229 = vmul.f32 %v216, %v222
    %v230 = vmul.f32 %v217, %v226
    %231 = vrot.lane.b32.xlu0 %v85, 94
    %v232 = vpop.permute.xlu0 %231
    %233 = vrot.lane.b32.xlu0 %v87, 94
    %v234 = vpop.permute.xlu0 %233
    %vm235 = vcmp.lt.s32.totalorder %v94, 94
    %v236 = vsel %vm235, %v232, %v234
    %v237 = vsel %vm235, %v234, %v232
    %v239 = vlaneseq
    %v240 = vshrl.u32 %v239, 7
    %v241 = vsub.s32 0, %v240
    %v242 = vrot.slane %v68, %v241
    %v243 = vlaneseq
    %v244 = vshrl.u32 %v243, 7
    %v245 = vsub.s32 1, %v244
    %v246 = vrot.slane %v68, %v245
    %v249 = vmul.f32 %v236, %v242
    %v250 = vmul.f32 %v237, %v246
    %v253 = vrot.slane %v129, 5
    %v254 = vrot.slane %v130, 5
    %v259 = vrot.slane %v149, 2
    %v260 = vrot.slane %v150, 2
    %v265 = vrot.slane %v169, 7
    %v266 = vrot.slane %v170, 7
    %v269 = vcombine.low %v85, %v85
    %v273 = vrot.slane %v189, 1
    %v274 = vrot.slane %v190, 1
    %v279 = vrot.slane %v209, 6
    %v280 = vrot.slane %v210, 6
    %v285 = vrot.slane %v229, 3
    %v286 = vrot.slane %v230, 3
    %vm289 = vcmask 1042432
    %v290 = vsel %vm289, %v109, %v253
    %v291 = vsel %vm289, %v110, %v254
    %vm292 = vcmask 1045504
    %v293 = vsel %vm292, %v290, %v259
    %v294 = vsel %vm292, %v291, %v260
    %vm295 = vcmask 1040384
    %v296 = vsel %vm295, %v259, %v265
    %v297 = vsel %vm295, %v260, %v266
    %vm298 = vcmask 1043456
    %v299 = vsel %vm298, %v296, %v269
    %v300 = vsel %vm298, %v297, %v85
    %vm301 = vcmask 1046528
    %v302 = vsel %vm301, %v299, %v273
    %v303 = vsel %vm301, %v300, %v274
    %vm304 = vcmask 1041408
    %v305 = vsel %vm304, %v273, %v279
    %v306 = vsel %vm304, %v274, %v280
    %vm307 = vcmask 1044480
    %v308 = vsel %vm307, %v305, %v285
    %v309 = vsel %vm307, %v306, %v286
    %v310 = vld [vmem:[%s2] sm:$0x3f]
    %v311 = vld [vmem:[%s6] sm:$0x3f]
    %313 = vset.pattern.permute.xlu0 0
    %314 = vperm.xlu0 %313, %v311
    %v315 = vpop.permute.xlu0 %314
    %vm317 = vcmask 220160
    %v319 = vsel %vm317, %v310, 0
    %v322 = vsel %vm289, %v249, 0
    %v325 = vsel %vm289, %v250, 0
    %327 = vmatprep.subr.mxu0 %v294
    %328 = vmatpush1.msra.mxu0 %v293
    %329 = vmatprep.subr.mxu0 %v303
    %330 = vmatpush1.msra.mxu0 %v302
    %331 = vmatprep.subr.mxu0 %v309
    %332 = vmatpush1.msra.mxu0 %v308
    %333 = vmatprep.subr.mxu0 %v325
    %334 = vmatpush1.msra.mxu0 %v322
    %335 = vmatprep.subr.mxu0 0.0
    %336 = vmatpush1.msra.mxu0 0.0
    %337 = vmatprep.subr.mxu0 0.0
    %338 = vmatpush1.msra.mxu0 0.0
    %339 = vmatprep.subr.mxu0 0.0
    %340 = vmatpush1.msra.mxu0 0.0
    %341 = vmatprep.subr.mxu0 0.0
    %342 = vmatpush1.msra.mxu0 0.0
    %343 = vmatprep.subr.mxu0 0.0
    %344 = vmatpush1.msra.mxu0 0.0
    %345 = vmatprep.subr.mxu0 0.0
    %346 = vmatpush1.msra.mxu0 0.0
    %347 = vmatprep.subr.mxu0 0.0
    %348 = vmatpush1.msra.mxu0 0.0
    %349 = vmatprep.subr.mxu0 0.0
    %350 = vmatpush1.msra.mxu0 0.0
    %351 = vmatprep.subr.mxu0 0.0
    %352 = vmatpush1.msra.mxu0 0.0
    %353 = vmatprep.subr.mxu0 0.0
    %354 = vmatpush1.msra.mxu0 0.0
    %355 = vmatprep.subr.mxu0 0.0
    %356 = vmatpush1.msra.mxu0 0.0
    %357 = vmatprep.subr.mxu0 0.0
    %358 = vmatpush1.msra.mxu0 0.0
    %359 = vmatprep.subr.mxu0 0.0
    %360 = vmatpush1.msra.mxu0 0.0
    %361 = vmatprep.subr.mxu0 0.0
    %362 = vmatpush1.msra.mxu0 0.0
    %363 = vmatprep.subr.mxu0 0.0
    %364 = vmatpush1.msra.mxu0 0.0
    %365 = vmatprep.subr.mxu0 0.0
    %366 = vmatpush1.msra.mxu0 0.0
    %367 = vmatprep.subr.mxu0 0.0
    %368 = vmatpush1.msra.mxu0 0.0
    %369 = vmatprep.subr.mxu0 0.0
    %370 = vmatpush1.msra.mxu0 0.0
    %371 = vmatprep.subr.mxu0 0.0
    %372 = vmatpush1.msra.mxu0 0.0
    %373 = vmatprep.subr.mxu0 0.0
    %374 = vmatpush1.msra.mxu0 0.0
    %375 = vmatprep.subr.mxu0 0.0
    %376 = vmatpush1.msra.mxu0 0.0
    %377 = vmatprep.subr.mxu0 0.0
    %378 = vmatpush1.msra.mxu0 0.0
    %379 = vmatprep.subr.mxu0 0.0
    %380 = vmatpush1.msra.mxu0 0.0
    %381 = vmatprep.subr.mxu0 0.0
    %382 = vmatpush1.msra.mxu0 0.0
    %383 = vmatprep.subr.mxu0 0.0
    %384 = vmatpush1.msra.mxu0 0.0
    %385 = vmatprep.subr.mxu0 0.0
    %386 = vmatpush1.msra.mxu0 0.0
    %387 = vmatprep.subr.mxu0 0.0
    %388 = vmatpush1.msra.mxu0 0.0
    %389 = vmatprep.subr.mxu0 0.0
    %390 = vmatpush1.msra.mxu0 0.0
    %391 = vmatprep.mubr.f32.mxu0 0.0
    %392 = vmatmul.mubr.f32.gmra.mrb[0].mxu0 %v319
    %v393 = vpop.f32.mrb[0].mxu0
    %v394 = vadd.f32 %v315, %v393
    %v395 = vpop.f32.mrb[0].mxu0
    %v396 = vadd.f32 %v315, %v395
    %397 = vdwg.mxu0
    %s398 = scalar_lea.vmem %s6, 8
    %v399 = vld [vmem:[%s398] sm:$0x3f]
    %s400 = scalar_lea.vmem %s6, 16
    %v401 = vld [vmem:[%s400] sm:$0x3f]
    %v402 = vsel %vm292, %v394, 0.0
    %v403 = vsel %vm292, %v396, 0.0
    %v404 = vadd.f32 %v402, %v403
    %405 = vadd.xlane.f32.xlu0 %v404
    %v406 = vpop.xlane.xlu0 %405
    %v407 = vrcp.pop 256.0
    %v408 = vmul.f32 %v406, %v407
    %v409 = vmul.f32 %v394, %v394
    %v410 = vmul.f32 %v396, %v396
    %v411 = vsel %vm292, %v409, 0.0
    %v412 = vsel %vm292, %v410, 0.0
    %v413 = vadd.f32 %v411, %v412
    %414 = vadd.xlane.f32.xlu0 %v413
    %v415 = vpop.xlane.xlu0 %414
    %v416 = vmul.f32 %v415, %v407
    %v417 = vmul.f32 %v408, %v408
    %v418 = vsub.f32 %v416, %v417
    %v419 = vmax.f32 %v418, 0.0
    %v420 = vsub.f32 %v394, %v408
    %v421 = vsub.f32 %v396, %v408
    %v422 = vadd.f32 %v419, 1e-05
    %v423 = vrsqrt.pop %v422
    %v424 = vmul.f32 %v420, %v423
    %v425 = vmul.f32 %v421, %v423
    %427 = vset.pattern.permute.xlu0 0
    %428 = vperm.xlu0 %427, %v399
    %v429 = vpop.permute.xlu0 %428
    %v431 = vmul.f32 %v424, %v429
    %v432 = vmul.f32 %v425, %v429
    %434 = vset.pattern.permute.xlu0 0
    %435 = vperm.xlu0 %434, %v401
    %v436 = vpop.permute.xlu0 %435
    %v438 = vadd.f32 %v431, %v436
    %v439 = vadd.f32 %v432, %v436
    %vm440 = vcmp.ge.f32.partialorder %v438, 0.0
    %vm441 = vcmp.ge.f32.partialorder %v439, 0.0
    %v442 = vmul.f32 %v438, 0.22916667
    %v443 = vmul.f32 %v439, 0.22916667
    %v444 = vsel %vm440, %v438, %v442
    %v445 = vsel %vm441, %v439, %v443
    %446 = vrot.lane.b32.xlu0 %v444, 34
    %v447 = vpop.permute.xlu0 %446
    %448 = vrot.lane.b32.xlu0 %v445, 34
    %v449 = vpop.permute.xlu0 %448
    %v450 = vsel %vm95, %v447, %v449
    %v451 = vsel %vm95, %v449, %v447
    %v452 = vmul.f32 %v451, %v102
    %v453 = vmul.f32 %v450, %v106
    %454 = vrot.lane.b32.xlu0 %v444, 32
    %v455 = vpop.permute.xlu0 %454
    %456 = vrot.lane.b32.xlu0 %v445, 32
    %v457 = vpop.permute.xlu0 %456
    %v458 = vsel %vm115, %v455, %v457
    %v459 = vsel %vm115, %v457, %v455
    %v460 = vmul.f32 %v459, %v122
    %v461 = vmul.f32 %v458, %v126
    %462 = vrot.lane.b32.xlu0 %v444, 30
    %v463 = vpop.permute.xlu0 %462
    %464 = vrot.lane.b32.xlu0 %v445, 30
    %v465 = vpop.permute.xlu0 %464
    %v466 = vsel %vm135, %v463, %v465
    %v467 = vsel %vm135, %v465, %v463
    %v468 = vmul.f32 %v467, %v142
    %v469 = vmul.f32 %v466, %v146
    %470 = vrot.lane.b32.xlu0 %v444, 2
    %v471 = vpop.permute.xlu0 %470
    %472 = vrot.lane.b32.xlu0 %v445, 2
    %v473 = vpop.permute.xlu0 %472
    %v474 = vsel %vm155, %v471, %v473
    %v475 = vsel %vm155, %v473, %v471
    %v476 = vmul.f32 %v475, %v162
    %v477 = vmul.f32 %v474, %v166
    %478 = vrot.lane.b32.xlu0 %v444, 126
    %v479 = vpop.permute.xlu0 %478
    %480 = vrot.lane.b32.xlu0 %v445, 126
    %v481 = vpop.permute.xlu0 %480
    %v482 = vsel %vm175, %v479, %v481
    %v483 = vsel %vm175, %v481, %v479
    %v484 = vmul.f32 %v482, %v182
    %v485 = vmul.f32 %v483, %v186
    %486 = vrot.lane.b32.xlu0 %v444, 98
    %v487 = vpop.permute.xlu0 %486
    %488 = vrot.lane.b32.xlu0 %v445, 98
    %v489 = vpop.permute.xlu0 %488
    %v490 = vsel %vm195, %v487, %v489
    %v491 = vsel %vm195, %v489, %v487
    %v492 = vmul.f32 %v490, %v202
    %v493 = vmul.f32 %v491, %v206
    %494 = vrot.lane.b32.xlu0 %v444, 96
    %v495 = vpop.permute.xlu0 %494
    %496 = vrot.lane.b32.xlu0 %v445, 96
    %v497 = vpop.permute.xlu0 %496
    %v498 = vsel %vm215, %v495, %v497
    %v499 = vsel %vm215, %v497, %v495
    %v500 = vmul.f32 %v498, %v222
    %v501 = vmul.f32 %v499, %v226
    %502 = vrot.lane.b32.xlu0 %v444, 94
    %v503 = vpop.permute.xlu0 %502
    %504 = vrot.lane.b32.xlu0 %v445, 94
    %v505 = vpop.permute.xlu0 %504
    %v506 = vsel %vm235, %v503, %v505
    %v507 = vsel %vm235, %v505, %v503
    %v508 = vmul.f32 %v506, %v242
    %v509 = vmul.f32 %v507, %v246
    %v512 = vrot.slane %v460, 2
    %v513 = vrot.slane %v461, 2
    %v518 = vrot.slane %v468, 4
    %v519 = vrot.slane %v469, 4
    %v524 = vrot.slane %v476, 6
    %v525 = vrot.slane %v477, 6
    %v530 = vrot.slane %v484, 2
    %v531 = vrot.slane %v485, 2
    %v536 = vrot.slane %v492, 4
    %v537 = vrot.slane %v493, 4
    %v542 = vrot.slane %v500, 6
    %v543 = vrot.slane %v501, 6
    %v546 = vsel %vm292, %v452, %v512
    %v547 = vsel %vm292, %v453, %v513
    %v548 = vsel %vm298, %v512, %v518
    %v549 = vsel %vm298, %v513, %v519
    %v550 = vsel %vm304, %v518, %v524
    %v551 = vsel %vm304, %v519, %v525
    %v552 = vsel %vm292, %v444, %v530
    %v553 = vsel %vm292, %v445, %v531
    %v554 = vsel %vm298, %v530, %v536
    %v555 = vsel %vm298, %v531, %v537
    %v556 = vsel %vm304, %v536, %v542
    %v557 = vsel %vm304, %v537, %v543
    %v558 = vsel %vm292, %v508, 0.0
    %v559 = vsel %vm292, %v509, 0.0
    %560 = vst [vmem:[#allocation2] sm:$0xff] %v546
    %561 = vst [vmem:[#allocation2 + $0x8] sm:$0xff] %v547
    %562 = vst [vmem:[#allocation2 + $0x10] sm:$0xff] %v548
    %563 = vst [vmem:[#allocation2 + $0x18] sm:$0xff] %v549
    %564 = vst [vmem:[#allocation2 + $0x20] sm:$0xff] %v550
    %565 = vst [vmem:[#allocation2 + $0x28] sm:$0xff] %v551
    %566 = vst [vmem:[#allocation2 + $0x30] sm:$0xff] %v552
    %567 = vst [vmem:[#allocation2 + $0x38] sm:$0xff] %v553
    %568 = vst [vmem:[#allocation2 + $0x40] sm:$0xff] %v554
    %569 = vst [vmem:[#allocation2 + $0x48] sm:$0xff] %v555
    %570 = vst [vmem:[#allocation2 + $0x50] sm:$0xff] %v556
    %571 = vst [vmem:[#allocation2 + $0x58] sm:$0xff] %v557
    %572 = vst [vmem:[#allocation2 + $0x60] sm:$0xff] %v558
    %573 = vst [vmem:[#allocation2 + $0x68] sm:$0xff] %v559
    %v574 = vld [vmem:[%s3] sm:$0x3f]
    %v575 = vld [vmem:[#allocation2] sm:$0xff]
    %v576 = vld [vmem:[#allocation2 + $0x8] sm:$0xff]
    %v577 = vld [vmem:[#allocation2 + $0x10] sm:$0xff]
    %v578 = vld [vmem:[#allocation2 + $0x18] sm:$0xff]
    %v579 = vld [vmem:[#allocation2 + $0x20] sm:$0xff]
    %v580 = vld [vmem:[#allocation2 + $0x28] sm:$0xff]
    %v581 = vld [vmem:[#allocation2 + $0x30] sm:$0xff]
    %v582 = vld [vmem:[#allocation2 + $0x38] sm:$0xff]
    %v583 = vld [vmem:[#allocation2 + $0x40] sm:$0xff]
    %v584 = vld [vmem:[#allocation2 + $0x48] sm:$0xff]
    %v585 = vld [vmem:[#allocation2 + $0x50] sm:$0xff]
    %v586 = vld [vmem:[#allocation2 + $0x58] sm:$0xff]
    %v587 = vld [vmem:[#allocation2 + $0x60] sm:$0xff]
    %v588 = vld [vmem:[#allocation2 + $0x68] sm:$0xff]
    %s589 = scalar_lea.vmem %s6, 24
    %v590 = vld [vmem:[%s589] sm:$0x3f]
    %592 = vset.pattern.permute.xlu0 0
    %593 = vperm.xlu0 %592, %v590
    %v594 = vpop.permute.xlu0 %593
    %vm596 = vcmask 457728
    %v598 = vsel %vm596, %v574, 0
    %600 = vmatprep.subr.mxu0 %v576
    %601 = vmatpush1.msra.mxu0 %v575
    %602 = vmatprep.subr.mxu0 %v578
    %603 = vmatpush1.msra.mxu0 %v577
    %604 = vmatprep.subr.mxu0 %v580
    %605 = vmatpush1.msra.mxu0 %v579
    %606 = vmatprep.subr.mxu0 %v582
    %607 = vmatpush1.msra.mxu0 %v581
    %608 = vmatprep.subr.mxu0 %v584
    %609 = vmatpush1.msra.mxu0 %v583
    %610 = vmatprep.subr.mxu0 %v586
    %611 = vmatpush1.msra.mxu0 %v585
    %612 = vmatprep.subr.mxu0 %v588
    %613 = vmatpush1.msra.mxu0 %v587
    %614 = vmatprep.subr.mxu0 0.0
    %615 = vmatpush1.msra.mxu0 0.0
    %616 = vmatprep.subr.mxu0 0.0
    %617 = vmatpush1.msra.mxu0 0.0
    %618 = vmatprep.subr.mxu0 0.0
    %619 = vmatpush1.msra.mxu0 0.0
    %620 = vmatprep.subr.mxu0 0.0
    %621 = vmatpush1.msra.mxu0 0.0
    %622 = vmatprep.subr.mxu0 0.0
    %623 = vmatpush1.msra.mxu0 0.0
    %624 = vmatprep.subr.mxu0 0.0
    %625 = vmatpush1.msra.mxu0 0.0
    %626 = vmatprep.subr.mxu0 0.0
    %627 = vmatpush1.msra.mxu0 0.0
    %628 = vmatprep.subr.mxu0 0.0
    %629 = vmatpush1.msra.mxu0 0.0
    %630 = vmatprep.subr.mxu0 0.0
    %631 = vmatpush1.msra.mxu0 0.0
    %632 = vmatprep.subr.mxu0 0.0
    %633 = vmatpush1.msra.mxu0 0.0
    %634 = vmatprep.subr.mxu0 0.0
    %635 = vmatpush1.msra.mxu0 0.0
    %636 = vmatprep.subr.mxu0 0.0
    %637 = vmatpush1.msra.mxu0 0.0
    %638 = vmatprep.subr.mxu0 0.0
    %639 = vmatpush1.msra.mxu0 0.0
    %640 = vmatprep.subr.mxu0 0.0
    %641 = vmatpush1.msra.mxu0 0.0
    %642 = vmatprep.subr.mxu0 0.0
    %643 = vmatpush1.msra.mxu0 0.0
    %644 = vmatprep.subr.mxu0 0.0
    %645 = vmatpush1.msra.mxu0 0.0
    %646 = vmatprep.subr.mxu0 0.0
    %647 = vmatpush1.msra.mxu0 0.0
    %648 = vmatprep.subr.mxu0 0.0
    %649 = vmatpush1.msra.mxu0 0.0
    %650 = vmatprep.subr.mxu0 0.0
    %651 = vmatpush1.msra.mxu0 0.0
    %652 = vmatprep.subr.mxu0 0.0
    %653 = vmatpush1.msra.mxu0 0.0
    %654 = vmatprep.subr.mxu0 0.0
    %655 = vmatpush1.msra.mxu0 0.0
    %656 = vmatprep.subr.mxu0 0.0
    %657 = vmatpush1.msra.mxu0 0.0
    %658 = vmatprep.subr.mxu0 0.0
    %659 = vmatpush1.msra.mxu0 0.0
    %660 = vmatprep.subr.mxu0 0.0
    %661 = vmatpush1.msra.mxu0 0.0
    %662 = vmatprep.subr.mxu0 0.0
    %663 = vmatpush1.msra.mxu0 0.0
    %664 = vmatprep.mubr.f32.mxu0 0.0
    %665 = vmatmul.mubr.f32.gmra.mrb[0].mxu0 %v598
    %v666 = vpop.f32.mrb[0].mxu0
    %v667 = vadd.f32 %v594, %v666
    %v668 = vpop.f32.mrb[0].mxu0
    %v669 = vadd.f32 %v594, %v668
    %670 = vdwg.mxu0
    %s671 = scalar_lea.vmem %s6, 32
    %v672 = vld [vmem:[%s671] sm:$0x3f]
    %s673 = scalar_lea.vmem %s6, 40
    %v674 = vld [vmem:[%s673] sm:$0x3f]
    %v675 = vsel %vm292, %v667, 0.0
    %v676 = vsel %vm292, %v669, 0.0
    %v677 = vadd.f32 %v675, %v676
    %678 = vadd.xlane.f32.xlu0 %v677
    %v679 = vpop.xlane.xlu0 %678
    %v680 = vmul.f32 %v679, %v407
    %v681 = vmul.f32 %v667, %v667
    %v682 = vmul.f32 %v669, %v669
    %v683 = vsel %vm292, %v681, 0.0
    %v684 = vsel %vm292, %v682, 0.0
    %v685 = vadd.f32 %v683, %v684
    %686 = vadd.xlane.f32.xlu0 %v685
    %v687 = vpop.xlane.xlu0 %686
    %v688 = vmul.f32 %v687, %v407
    %v689 = vmul.f32 %v680, %v680
    %v690 = vsub.f32 %v688, %v689
    %v691 = vmax.f32 %v690, 0.0
    %v692 = vsub.f32 %v667, %v680
    %v693 = vsub.f32 %v669, %v680
    %v694 = vadd.f32 %v691, 1e-05
    %v695 = vrsqrt.pop %v694
    %v696 = vmul.f32 %v692, %v695
    %v697 = vmul.f32 %v693, %v695
    %699 = vset.pattern.permute.xlu0 0
    %700 = vperm.xlu0 %699, %v672
    %v701 = vpop.permute.xlu0 %700
    %v703 = vmul.f32 %v696, %v701
    %v704 = vmul.f32 %v697, %v701
    %706 = vset.pattern.permute.xlu0 0
    %707 = vperm.xlu0 %706, %v674
    %v708 = vpop.permute.xlu0 %707
    %v710 = vadd.f32 %v703, %v708
    %v711 = vadd.f32 %v704, %v708
    %vm712 = vcmp.ge.f32.partialorder %v710, 0.0
    %vm713 = vcmp.ge.f32.partialorder %v711, 0.0
    %v714 = vmul.f32 %v710, 0.22916667
    %v715 = vmul.f32 %v711, 0.22916667
    %v716 = vsel %vm712, %v710, %v714
    %v717 = vsel %vm713, %v711, %v715
    %v718 = vsel %vm292, %v716, 0.0
    %v719 = vrot.slane %v718, 4
    %v720 = vadd.f32 %v718, %v719
    %v721 = vrot.slane %v720, 2
    %v722 = vadd.f32 %v720, %v721
    %v723 = vrot.slane %v722, 1
    %v724 = vadd.f32 %v722, %v723
    %v725 = vsel %vm292, %v717, 0.0
    %v726 = vrot.slane %v725, 4
    %v727 = vadd.f32 %v725, %v726
    %v728 = vrot.slane %v727, 2
    %v729 = vadd.f32 %v727, %v728
    %v730 = vrot.slane %v729, 1
    %v731 = vadd.f32 %v729, %v730
    %v732 = vrcp.pop 6.0
    %v733 = vmul.f32 %v724, %v732
    %v734 = vmul.f32 %v731, %v732
    %v735 = vsel %vm292, %v716, -inf
    %v736 = vrot.slane %v735, 4
    %v737 = vmax.f32 %v735, %v736
    %v738 = vrot.slane %v737, 2
    %v739 = vmax.f32 %v737, %v738
    %v740 = vrot.slane %v739, 1
    %v741 = vmax.f32 %v739, %v740
    %v742 = vsel %vm292, %v717, -inf
    %v743 = vrot.slane %v742, 4
    %v744 = vmax.f32 %v742, %v743
    %v745 = vrot.slane %v744, 2
    %v746 = vmax.f32 %v744, %v745
    %v747 = vrot.slane %v746, 1
    %v748 = vmax.f32 %v746, %v747
    %v749 = vsel %vm295, %v733, %v741
    %v750 = vsel %vm295, %v734, %v748
    %751 = vrot.lane.b32.xlu0 %v749, 17
    %v752 = vpop.permute.xlu0 %751
    %753 = vrot.lane.b32.xlu0 %v750, 17
    %v754 = vpop.permute.xlu0 %753
    %vm755 = vcmp.lt.s32.totalorder %v94, 17
    %v756 = vsel %vm755, %v752, %v754
    %v757 = vsel %vm755, %v754, %v752
    %v759 = vlaneseq
    %v760 = vshrl.u32 %v759, 7
    %v761 = vsub.s32 0, %v760
    %v762 = vrot.slane %v70, %v761
    %v763 = vlaneseq
    %v764 = vshrl.u32 %v763, 7
    %v765 = vsub.s32 1, %v764
    %v766 = vrot.slane %v70, %v765
    %v769 = vmul.f32 %v757, %v762
    %v770 = vmul.f32 %v756, %v766
    %771 = vrot.lane.b32.xlu0 %v749, 16
    %v772 = vpop.permute.xlu0 %771
    %773 = vrot.lane.b32.xlu0 %v750, 16
    %v774 = vpop.permute.xlu0 %773
    %vm775 = vcmp.lt.s32.totalorder %v94, 16
    %v776 = vsel %vm775, %v772, %v774
    %v777 = vsel %vm775, %v774, %v772
    %v779 = vlaneseq
    %v780 = vshrl.u32 %v779, 7
    %v781 = vsub.s32 0, %v780
    %v782 = vrot.slane %v72, %v781
    %v783 = vlaneseq
    %v784 = vshrl.u32 %v783, 7
    %v785 = vsub.s32 1, %v784
    %v786 = vrot.slane %v72, %v785
    %v789 = vmul.f32 %v777, %v782
    %v790 = vmul.f32 %v776, %v786
    %791 = vrot.lane.b32.xlu0 %v749, 15
    %v792 = vpop.permute.xlu0 %791
    %793 = vrot.lane.b32.xlu0 %v750, 15
    %v794 = vpop.permute.xlu0 %793
    %vm795 = vcmp.lt.s32.totalorder %v94, 15
    %v796 = vsel %vm795, %v792, %v794
    %v797 = vsel %vm795, %v794, %v792
    %v799 = vlaneseq
    %v800 = vshrl.u32 %v799, 7
    %v801 = vsub.s32 0, %v800
    %v802 = vrot.slane %v74, %v801
    %v803 = vlaneseq
    %v804 = vshrl.u32 %v803, 7
    %v805 = vsub.s32 1, %v804
    %v806 = vrot.slane %v74, %v805
    %v809 = vmul.f32 %v797, %v802
    %v810 = vmul.f32 %v796, %v806
    %811 = vrot.lane.b32.xlu0 %v749, 1
    %v812 = vpop.permute.xlu0 %811
    %813 = vrot.lane.b32.xlu0 %v750, 1
    %v814 = vpop.permute.xlu0 %813
    %vm815 = vcmp.lt.s32.totalorder %v94, 1
    %v816 = vsel %vm815, %v812, %v814
    %v817 = vsel %vm815, %v814, %v812
    %v819 = vlaneseq
    %v820 = vshrl.u32 %v819, 7
    %v821 = vsub.s32 0, %v820
    %v822 = vrot.slane %v76, %v821
    %v823 = vlaneseq
    %v824 = vshrl.u32 %v823, 7
    %v825 = vsub.s32 1, %v824
    %v826 = vrot.slane %v76, %v825
    %v829 = vmul.f32 %v817, %v822
    %v830 = vmul.f32 %v816, %v826
    %831 = vrot.lane.b32.xlu0 %v749, 127
    %v832 = vpop.permute.xlu0 %831
    %833 = vrot.lane.b32.xlu0 %v750, 127
    %v834 = vpop.permute.xlu0 %833
    %vm835 = vcmp.lt.s32.totalorder %v94, 127
    %v836 = vsel %vm835, %v832, %v834
    %v837 = vsel %vm835, %v834, %v832
    %v839 = vlaneseq
    %v840 = vshrl.u32 %v839, 7
    %v841 = vsub.s32 0, %v840
    %v842 = vrot.slane %v78, %v841
    %v843 = vlaneseq
    %v844 = vshrl.u32 %v843, 7
    %v845 = vsub.s32 1, %v844
    %v846 = vrot.slane %v78, %v845
    %v849 = vmul.f32 %v836, %v842
    %v850 = vmul.f32 %v837, %v846
    %851 = vrot.lane.b32.xlu0 %v749, 113
    %v852 = vpop.permute.xlu0 %851
    %853 = vrot.lane.b32.xlu0 %v750, 113
    %v854 = vpop.permute.xlu0 %853
    %vm855 = vcmp.lt.s32.totalorder %v94, 113
    %v856 = vsel %vm855, %v852, %v854
    %v857 = vsel %vm855, %v854, %v852
    %v859 = vlaneseq
    %v860 = vshrl.u32 %v859, 7
    %v861 = vsub.s32 0, %v860
    %v862 = vrot.slane %v80, %v861
    %v863 = vlaneseq
    %v864 = vshrl.u32 %v863, 7
    %v865 = vsub.s32 1, %v864
    %v866 = vrot.slane %v80, %v865
    %v869 = vmul.f32 %v856, %v862
    %v870 = vmul.f32 %v857, %v866
    %871 = vrot.lane.b32.xlu0 %v749, 112
    %v872 = vpop.permute.xlu0 %871
    %873 = vrot.lane.b32.xlu0 %v750, 112
    %v874 = vpop.permute.xlu0 %873
    %vm875 = vcmp.lt.s32.totalorder %v94, 112
    %v876 = vsel %vm875, %v872, %v874
    %v877 = vsel %vm875, %v874, %v872
    %v879 = vlaneseq
    %v880 = vshrl.u32 %v879, 7
    %v881 = vsub.s32 0, %v880
    %v882 = vrot.slane %v82, %v881
    %v883 = vlaneseq
    %v884 = vshrl.u32 %v883, 7
    %v885 = vsub.s32 1, %v884
    %v886 = vrot.slane %v82, %v885
    %v889 = vmul.f32 %v876, %v882
    %v890 = vmul.f32 %v877, %v886
    %891 = vrot.lane.b32.xlu0 %v749, 111
    %v892 = vpop.permute.xlu0 %891
    %893 = vrot.lane.b32.xlu0 %v750, 111
    %v894 = vpop.permute.xlu0 %893
    %vm895 = vcmp.lt.s32.totalorder %v94, 111
    %v896 = vsel %vm895, %v892, %v894
    %v897 = vsel %vm895, %v894, %v892
    %v899 = vlaneseq
    %v900 = vshrl.u32 %v899, 7
    %v901 = vsub.s32 0, %v900
    %v902 = vrot.slane %v84, %v901
    %v903 = vlaneseq
    %v904 = vshrl.u32 %v903, 7
    %v905 = vsub.s32 1, %v904
    %v906 = vrot.slane %v84, %v905
    %v909 = vmul.f32 %v896, %v902
    %v910 = vmul.f32 %v897, %v906
    %v913 = vrot.slane %v789, 6
    %v914 = vrot.slane %v790, 6
    %v919 = vrot.slane %v809, 4
    %v920 = vrot.slane %v810, 4
    %v925 = vrot.slane %v829, 2
    %v926 = vrot.slane %v830, 2
    %v931 = vrot.slane %v849, 6
    %v932 = vrot.slane %v850, 6
    %v937 = vrot.slane %v869, 4
    %v938 = vrot.slane %v870, 4
    %v943 = vrot.slane %v889, 2
    %v944 = vrot.slane %v890, 2
    %v947 = vsel %vm304, %v769, %v913
    %v948 = vsel %vm304, %v770, %v914
    %v949 = vsel %vm298, %v947, %v919
    %v950 = vsel %vm298, %v948, %v920
    %v951 = vsel %vm292, %v949, %v925
    %v952 = vsel %vm292, %v950, %v926
    %v953 = vsel %vm304, %v749, %v931
    %v954 = vsel %vm304, %v750, %v932
    %v955 = vsel %vm298, %v953, %v937
    %v956 = vsel %vm298, %v954, %v938
    %v957 = vsel %vm292, %v955, %v943
    %v958 = vsel %vm292, %v956, %v944
    %v959 = vld [vmem:[%s10] sm:$0x1]
    %s960 = sld [smem:[#allocation3]]
    %v961 = vstv %s960
    %vm962 = vcmask 146432
    %v964 = vsel %vm962, %v959, 0
    %v967 = vsel %vm304, %v909, 0
    %v970 = vsel %vm304, %v910, 0
    %972 = vmatprep.subr.mxu0 %v952
    %973 = vmatpush1.msra.mxu0 %v951
    %974 = vmatprep.subr.mxu0 %v958
    %975 = vmatpush1.msra.mxu0 %v957
    %976 = vmatprep.subr.mxu0 %v970
    %977 = vmatpush1.msra.mxu0 %v967
    %978 = vmatprep.subr.mxu0 0.0
    %979 = vmatpush1.msra.mxu0 0.0
    %980 = vmatprep.subr.mxu0 0.0
    %981 = vmatpush1.msra.mxu0 0.0
    %982 = vmatprep.subr.mxu0 0.0
    %983 = vmatpush1.msra.mxu0 0.0
    %984 = vmatprep.subr.mxu0 0.0
    %985 = vmatpush1.msra.mxu0 0.0
    %986 = vmatprep.subr.mxu0 0.0
    %987 = vmatpush1.msra.mxu0 0.0
    %988 = vmatprep.subr.mxu0 0.0
    %989 = vmatpush1.msra.mxu0 0.0
    %990 = vmatprep.subr.mxu0 0.0
    %991 = vmatpush1.msra.mxu0 0.0
    %992 = vmatprep.subr.mxu0 0.0
    %993 = vmatpush1.msra.mxu0 0.0
    %994 = vmatprep.subr.mxu0 0.0
    %995 = vmatpush1.msra.mxu0 0.0
    %996 = vmatprep.subr.mxu0 0.0
    %997 = vmatpush1.msra.mxu0 0.0
    %998 = vmatprep.subr.mxu0 0.0
    %999 = vmatpush1.msra.mxu0 0.0
    %1000 = vmatprep.subr.mxu0 0.0
    %1001 = vmatpush1.msra.mxu0 0.0
    %1002 = vmatprep.subr.mxu0 0.0
    %1003 = vmatpush1.msra.mxu0 0.0
    %1004 = vmatprep.subr.mxu0 0.0
    %1005 = vmatpush1.msra.mxu0 0.0
    %1006 = vmatprep.subr.mxu0 0.0
    %1007 = vmatpush1.msra.mxu0 0.0
    %1008 = vmatprep.subr.mxu0 0.0
    %1009 = vmatpush1.msra.mxu0 0.0
    %1010 = vmatprep.subr.mxu0 0.0
    %1011 = vmatpush1.msra.mxu0 0.0
    %1012 = vmatprep.subr.mxu0 0.0
    %1013 = vmatpush1.msra.mxu0 0.0
    %1014 = vmatprep.subr.mxu0 0.0
    %1015 = vmatpush1.msra.mxu0 0.0
    %1016 = vmatprep.subr.mxu0 0.0
    %1017 = vmatpush1.msra.mxu0 0.0
    %1018 = vmatprep.subr.mxu0 0.0
    %1019 = vmatpush1.msra.mxu0 0.0
    %1020 = vmatprep.subr.mxu0 0.0
    %1021 = vmatpush1.msra.mxu0 0.0
    %1022 = vmatprep.subr.mxu0 0.0
    %1023 = vmatpush1.msra.mxu0 0.0
    %1024 = vmatprep.subr.mxu0 0.0
    %1025 = vmatpush1.msra.mxu0 0.0
    %1026 = vmatprep.subr.mxu0 0.0
    %1027 = vmatpush1.msra.mxu0 0.0
    %1028 = vmatprep.subr.mxu0 0.0
    %1029 = vmatpush1.msra.mxu0 0.0
    %1030 = vmatprep.subr.mxu0 0.0
    %1031 = vmatpush1.msra.mxu0 0.0
    %1032 = vmatprep.subr.mxu0 0.0
    %1033 = vmatpush1.msra.mxu0 0.0
    %1034 = vmatprep.subr.mxu0 0.0
    %1035 = vmatpush1.msra.mxu0 0.0
    %1036 = vmatprep.mubr.f32.mxu0 0.0
    %1037 = vmatmul.mubr.f32.gmra.mrb[0].mxu0 %v964
    %v1038 = vpop.f32.mrb[0].mxu0
    %v1039 = vadd.f32 %v961, %v1038
    %v1040 = vpop.f32.mrb[0].mxu0
    %v1041 = vadd.f32 %v961, %v1040
    %1042 = vdwg.mxu0
    %v1043 = vxor.u32 %v1039, 2147483648
    %v1044 = vxor.u32 %v1041, 2147483648
    %v1045 = vmul.f32 %v1043, 1.442695
    %v1046 = vpow.pop %v1045
    %v1047 = vmul.f32 %v1044, 1.442695
    %v1048 = vpow.pop %v1047
    %v1049 = vadd.f32 %v1046, 1.0
    %v1050 = vadd.f32 %v1048, 1.0
    %v1051 = vrcp.pop %v1049
    %v1052 = vmul.f32 1.0, %v1051
    %v1053 = vrcp.pop %v1050
    %v1054 = vmul.f32 1.0, %v1053
    %v1055 = vlaneseq
    %v1056 = vshrl.u32 %v1055, 7
    %v1057 = vsub.s32 0, %v1056
    %v1058 = vrot.slane %v1052, %v1057
    %v1059 = vlaneseq
    %v1060 = vshrl.u32 %v1059, 7
    %v1061 = vsub.s32 0, %v1060
    %v1062 = vrot.slane %v1054, %v1061
    %v1063 = vmul.f32 %v716, %v1058
    %v1064 = vmul.f32 %v717, %v1062
    %1065 = vrot.lane.b32.xlu0 %v1063, 34
    %v1066 = vpop.permute.xlu0 %1065
    %1067 = vrot.lane.b32.xlu0 %v1064, 34
    %v1068 = vpop.permute.xlu0 %1067
    %v1069 = vsel %vm95, %v1066, %v1068
    %v1070 = vsel %vm95, %v1068, %v1066
    %v1071 = vmul.f32 %v1070, %v102
    %v1072 = vmul.f32 %v1069, %v106
    %1073 = vrot.lane.b32.xlu0 %v1063, 32
    %v1074 = vpop.permute.xlu0 %1073
    %1075 = vrot.lane.b32.xlu0 %v1064, 32
    %v1076 = vpop.permute.xlu0 %1075
    %v1077 = vsel %vm115, %v1074, %v1076
    %v1078 = vsel %vm115, %v1076, %v1074
    %v1079 = vmul.f32 %v1078, %v122
    %v1080 = vmul.f32 %v1077, %v126
    %1081 = vrot.lane.b32.xlu0 %v1063, 30
    %v1082 = vpop.permute.xlu0 %1081
    %1083 = vrot.lane.b32.xlu0 %v1064, 30
    %v1084 = vpop.permute.xlu0 %1083
    %v1085 = vsel %vm135, %v1082, %v1084
    %v1086 = vsel %vm135, %v1084, %v1082
    %v1087 = vmul.f32 %v1086, %v142
    %v1088 = vmul.f32 %v1085, %v146
    %1089 = vrot.lane.b32.xlu0 %v1063, 2
    %v1090 = vpop.permute.xlu0 %1089
    %1091 = vrot.lane.b32.xlu0 %v1064, 2
    %v1092 = vpop.permute.xlu0 %1091
    %v1093 = vsel %vm155, %v1090, %v1092
    %v1094 = vsel %vm155, %v1092, %v1090
    %v1095 = vmul.f32 %v1094, %v162
    %v1096 = vmul.f32 %v1093, %v166
    %1097 = vrot.lane.b32.xlu0 %v1063, 126
    %v1098 = vpop.permute.xlu0 %1097
    %1099 = vrot.lane.b32.xlu0 %v1064, 126
    %v1100 = vpop.permute.xlu0 %1099
    %v1101 = vsel %vm175, %v1098, %v1100
    %v1102 = vsel %vm175, %v1100, %v1098
    %v1103 = vmul.f32 %v1101, %v182
    %v1104 = vmul.f32 %v1102, %v186
    %1105 = vrot.lane.b32.xlu0 %v1063, 98
    %v1106 = vpop.permute.xlu0 %1105
    %1107 = vrot.lane.b32.xlu0 %v1064, 98
    %v1108 = vpop.permute.xlu0 %1107
    %v1109 = vsel %vm195, %v1106, %v1108
    %v1110 = vsel %vm195, %v1108, %v1106
    %v1111 = vmul.f32 %v1109, %v202
    %v1112 = vmul.f32 %v1110, %v206
    %1113 = vrot.lane.b32.xlu0 %v1063, 96
    %v1114 = vpop.permute.xlu0 %1113
    %1115 = vrot.lane.b32.xlu0 %v1064, 96
    %v1116 = vpop.permute.xlu0 %1115
    %v1117 = vsel %vm215, %v1114, %v1116
    %v1118 = vsel %vm215, %v1116, %v1114
    %v1119 = vmul.f32 %v1117, %v222
    %v1120 = vmul.f32 %v1118, %v226
    %1121 = vrot.lane.b32.xlu0 %v1063, 94
    %v1122 = vpop.permute.xlu0 %1121
    %1123 = vrot.lane.b32.xlu0 %v1064, 94
    %v1124 = vpop.permute.xlu0 %1123
    %v1125 = vsel %vm235, %v1122, %v1124
    %v1126 = vsel %vm235, %v1124, %v1122
    %v1127 = vmul.f32 %v1125, %v242
    %v1128 = vmul.f32 %v1126, %v246
    %v1131 = vrot.slane %v1079, 2
    %v1132 = vrot.slane %v1080, 2
    %v1137 = vrot.slane %v1087, 4
    %v1138 = vrot.slane %v1088, 4
    %v1143 = vrot.slane %v1095, 6
    %v1144 = vrot.slane %v1096, 6
    %v1149 = vrot.slane %v1103, 2
    %v1150 = vrot.slane %v1104, 2
    %v1155 = vrot.slane %v1111, 4
    %v1156 = vrot.slane %v1112, 4
    %v1161 = vrot.slane %v1119, 6
    %v1162 = vrot.slane %v1120, 6
    %v1165 = vsel %vm292, %v1071, %v1131
    %v1166 = vsel %vm292, %v1072, %v1132
    %v1167 = vsel %vm298, %v1131, %v1137
    %v1168 = vsel %vm298, %v1132, %v1138
    %v1169 = vsel %vm304, %v1137, %v1143
    %v1170 = vsel %vm304, %v1138, %v1144
    %v1171 = vsel %vm292, %v1063, %v1149
    %v1172 = vsel %vm292, %v1064, %v1150
    %v1173 = vsel %vm298, %v1149, %v1155
    %v1174 = vsel %vm298, %v1150, %v1156
    %v1175 = vsel %vm304, %v1155, %v1161
    %v1176 = vsel %vm304, %v1156, %v1162
    %v1177 = vsel %vm292, %v1127, 0.0
    %v1178 = vsel %vm292, %v1128, 0.0
    %1179 = vst [vmem:[#allocation2 + $0x70] sm:$0xff] %v1165
    %1180 = vst [vmem:[#allocation2 + $0x78] sm:$0xff] %v1166
    %1181 = vst [vmem:[#allocation2 + $0x80] sm:$0xff] %v1167
    %1182 = vst [vmem:[#allocation2 + $0x88] sm:$0xff] %v1168
    %1183 = vst [vmem:[#allocation2 + $0x90] sm:$0xff] %v1169
    %1184 = vst [vmem:[#allocation2 + $0x98] sm:$0xff] %v1170
    %1185 = vst [vmem:[#allocation2 + $0xa0] sm:$0xff] %v1171
    %1186 = vst [vmem:[#allocation2 + $0xa8] sm:$0xff] %v1172
    %1187 = vst [vmem:[#allocation2 + $0xb0] sm:$0xff] %v1173
    %1188 = vst [vmem:[#allocation2 + $0xb8] sm:$0xff] %v1174
    %1189 = vst [vmem:[#allocation2 + $0xc0] sm:$0xff] %v1175
    %1190 = vst [vmem:[#allocation2 + $0xc8] sm:$0xff] %v1176
    %1191 = vst [vmem:[#allocation2 + $0xd0] sm:$0xff] %v1177
    %1192 = vst [vmem:[#allocation2 + $0xd8] sm:$0xff] %v1178
    %v1193 = vld [vmem:[%s4] sm:$0x3f]
    %v1194 = vld [vmem:[#allocation2] sm:$0xff]
    %v1195 = vld [vmem:[#allocation2 + $0x8] sm:$0xff]
    %v1196 = vld [vmem:[#allocation2 + $0x10] sm:$0xff]
    %v1197 = vld [vmem:[#allocation2 + $0x18] sm:$0xff]
    %v1198 = vld [vmem:[#allocation2 + $0x20] sm:$0xff]
    %v1199 = vld [vmem:[#allocation2 + $0x28] sm:$0xff]
    %v1200 = vld [vmem:[#allocation2 + $0x30] sm:$0xff]
    %v1201 = vld [vmem:[#allocation2 + $0x38] sm:$0xff]
    %v1202 = vld [vmem:[#allocation2 + $0x40] sm:$0xff]
    %v1203 = vld [vmem:[#allocation2 + $0x48] sm:$0xff]
    %v1204 = vld [vmem:[#allocation2 + $0x50] sm:$0xff]
    %v1205 = vld [vmem:[#allocation2 + $0x58] sm:$0xff]
    %v1206 = vld [vmem:[#allocation2 + $0x60] sm:$0xff]
    %v1207 = vld [vmem:[#allocation2 + $0x68] sm:$0xff]
    %v1208 = vld [vmem:[#allocation2 + $0x70] sm:$0xff]
    %v1209 = vld [vmem:[#allocation2 + $0x78] sm:$0xff]
    %v1210 = vld [vmem:[#allocation2 + $0x80] sm:$0xff]
    %v1211 = vld [vmem:[#allocation2 + $0x88] sm:$0xff]
    %v1212 = vld [vmem:[#allocation2 + $0x90] sm:$0xff]
    %v1213 = vld [vmem:[#allocation2 + $0x98] sm:$0xff]
    %v1214 = vld [vmem:[#allocation2 + $0xa0] sm:$0xff]
    %v1215 = vld [vmem:[#allocation2 + $0xa8] sm:$0xff]
    %v1216 = vld [vmem:[#allocation2 + $0xb0] sm:$0xff]
    %v1217 = vld [vmem:[#allocation2 + $0xb8] sm:$0xff]
    %v1218 = vld [vmem:[#allocation2 + $0xc0] sm:$0xff]
    %v1219 = vld [vmem:[#allocation2 + $0xc8] sm:$0xff]
    %v1220 = vld [vmem:[#allocation2 + $0xd0] sm:$0xff]
    %v1221 = vld [vmem:[#allocation2 + $0xd8] sm:$0xff]
    %s1222 = scalar_lea.vmem %s6, 48
    %v1223 = vld [vmem:[%s1222] sm:$0x3f]
    %1225 = vset.pattern.permute.xlu0 0
    %1226 = vperm.xlu0 %1225, %v1223
    %v1227 = vpop.permute.xlu0 %1226
    %vm1229 = vcmask 916480
    %v1231 = vsel %vm1229, %v1193, 0
    %1233 = vmatprep.subr.mxu0 %v1195
    %1234 = vmatpush1.msra.mxu0 %v1194
    %1235 = vmatprep.subr.mxu0 %v1197
    %1236 = vmatpush1.msra.mxu0 %v1196
    %1237 = vmatprep.subr.mxu0 %v1199
    %1238 = vmatpush1.msra.mxu0 %v1198
    %1239 = vmatprep.subr.mxu0 %v1201
    %1240 = vmatpush1.msra.mxu0 %v1200
    %1241 = vmatprep.subr.mxu0 %v1203
    %1242 = vmatpush1.msra.mxu0 %v1202
    %1243 = vmatprep.subr.mxu0 %v1205
    %1244 = vmatpush1.msra.mxu0 %v1204
    %1245 = vmatprep.subr.mxu0 %v1207
    %1246 = vmatpush1.msra.mxu0 %v1206
    %1247 = vmatprep.subr.mxu0 %v1209
    %1248 = vmatpush1.msra.mxu0 %v1208
    %1249 = vmatprep.subr.mxu0 %v1211
    %1250 = vmatpush1.msra.mxu0 %v1210
    %1251 = vmatprep.subr.mxu0 %v1213
    %1252 = vmatpush1.msra.mxu0 %v1212
    %1253 = vmatprep.subr.mxu0 %v1215
    %1254 = vmatpush1.msra.mxu0 %v1214
    %1255 = vmatprep.subr.mxu0 %v1217
    %1256 = vmatpush1.msra.mxu0 %v1216
    %1257 = vmatprep.subr.mxu0 %v1219
    %1258 = vmatpush1.msra.mxu0 %v1218
    %1259 = vmatprep.subr.mxu0 %v1221
    %1260 = vmatpush1.msra.mxu0 %v1220
    %1261 = vmatprep.subr.mxu0 0.0
    %1262 = vmatpush1.msra.mxu0 0.0
    %1263 = vmatprep.subr.mxu0 0.0
    %1264 = vmatpush1.msra.mxu0 0.0
    %1265 = vmatprep.subr.mxu0 0.0
    %1266 = vmatpush1.msra.mxu0 0.0
    %1267 = vmatprep.subr.mxu0 0.0
    %1268 = vmatpush1.msra.mxu0 0.0
    %1269 = vmatprep.subr.mxu0 0.0
    %1270 = vmatpush1.msra.mxu0 0.0
    %1271 = vmatprep.subr.mxu0 0.0
    %1272 = vmatpush1.msra.mxu0 0.0
    %1273 = vmatprep.subr.mxu0 0.0
    %1274 = vmatpush1.msra.mxu0 0.0
    %1275 = vmatprep.subr.mxu0 0.0
    %1276 = vmatpush1.msra.mxu0 0.0
    %1277 = vmatprep.subr.mxu0 0.0
    %1278 = vmatpush1.msra.mxu0 0.0
    %1279 = vmatprep.subr.mxu0 0.0
    %1280 = vmatpush1.msra.mxu0 0.0
    %1281 = vmatprep.subr.mxu0 0.0
    %1282 = vmatpush1.msra.mxu0 0.0
    %1283 = vmatprep.subr.mxu0 0.0
    %1284 = vmatpush1.msra.mxu0 0.0
    %1285 = vmatprep.subr.mxu0 0.0
    %1286 = vmatpush1.msra.mxu0 0.0
    %1287 = vmatprep.subr.mxu0 0.0
    %1288 = vmatpush1.msra.mxu0 0.0
    %1289 = vmatprep.subr.mxu0 0.0
    %1290 = vmatpush1.msra.mxu0 0.0
    %1291 = vmatprep.subr.mxu0 0.0
    %1292 = vmatpush1.msra.mxu0 0.0
    %1293 = vmatprep.subr.mxu0 0.0
    %1294 = vmatpush1.msra.mxu0 0.0
    %1295 = vmatprep.subr.mxu0 0.0
    %1296 = vmatpush1.msra.mxu0 0.0
    %1297 = vmatprep.mubr.f32.mxu0 0.0
    %1298 = vmatmul.mubr.f32.gmra.mrb[0].mxu0 %v1231
    %v1299 = vpop.f32.mrb[0].mxu0
    %v1300 = vadd.f32 %v1227, %v1299
    %v1301 = vpop.f32.mrb[0].mxu0
    %v1302 = vadd.f32 %v1227, %v1301
    %1303 = vdwg.mxu0
    %s1304 = scalar_lea.vmem %s6, 56
    %v1305 = vld [vmem:[%s1304] sm:$0x3f]
    %s1306 = scalar_lea.vmem %s6, 64
    %v1307 = vld [vmem:[%s1306] sm:$0x3f]
    %v1308 = vsel %vm292, %v1300, 0.0
    %v1309 = vsel %vm292, %v1302, 0.0
    %v1310 = vadd.f32 %v1308, %v1309
    %1311 = vadd.xlane.f32.xlu0 %v1310
    %v1312 = vpop.xlane.xlu0 %1311
    %v1313 = vmul.f32 %v1312, %v407
    %v1314 = vmul.f32 %v1300, %v1300
    %v1315 = vmul.f32 %v1302, %v1302
    %v1316 = vsel %vm292, %v1314, 0.0
    %v1317 = vsel %vm292, %v1315, 0.0
    %v1318 = vadd.f32 %v1316, %v1317
    %1319 = vadd.xlane.f32.xlu0 %v1318
    %v1320 = vpop.xlane.xlu0 %1319
    %v1321 = vmul.f32 %v1320, %v407
    %v1322 = vmul.f32 %v1313, %v1313
    %v1323 = vsub.f32 %v1321, %v1322
    %v1324 = vmax.f32 %v1323, 0.0
    %v1325 = vsub.f32 %v1300, %v1313
    %v1326 = vsub.f32 %v1302, %v1313
    %v1327 = vadd.f32 %v1324, 1e-05
    %v1328 = vrsqrt.pop %v1327
    %v1329 = vmul.f32 %v1325, %v1328
    %v1330 = vmul.f32 %v1326, %v1328
    %1332 = vset.pattern.permute.xlu0 0
    %1333 = vperm.xlu0 %1332, %v1305
    %v1334 = vpop.permute.xlu0 %1333
    %v1336 = vmul.f32 %v1329, %v1334
    %v1337 = vmul.f32 %v1330, %v1334
    %1339 = vset.pattern.permute.xlu0 0
    %1340 = vperm.xlu0 %1339, %v1307
    %v1341 = vpop.permute.xlu0 %1340
    %v1343 = vadd.f32 %v1336, %v1341
    %v1344 = vadd.f32 %v1337, %v1341
    %vm1345 = vcmp.ge.f32.partialorder %v1343, 0.0
    %vm1346 = vcmp.ge.f32.partialorder %v1344, 0.0
    %v1347 = vmul.f32 %v1343, 0.22916667
    %v1348 = vmul.f32 %v1344, 0.22916667
    %v1349 = vsel %vm1345, %v1343, %v1347
    %v1350 = vsel %vm1346, %v1344, %v1348
    %v1351 = vsel %vm292, %v1349, 0.0
    %v1352 = vrot.slane %v1351, 4
    %v1353 = vadd.f32 %v1351, %v1352
    %v1354 = vrot.slane %v1353, 2
    %v1355 = vadd.f32 %v1353, %v1354
    %v1356 = vrot.slane %v1355, 1
    %v1357 = vadd.f32 %v1355, %v1356
    %v1358 = vsel %vm292, %v1350, 0.0
    %v1359 = vrot.slane %v1358, 4
    %v1360 = vadd.f32 %v1358, %v1359
    %v1361 = vrot.slane %v1360, 2
    %v1362 = vadd.f32 %v1360, %v1361
    %v1363 = vrot.slane %v1362, 1
    %v1364 = vadd.f32 %v1362, %v1363
    %v1365 = vmul.f32 %v1357, %v732
    %v1366 = vmul.f32 %v1364, %v732
    %v1367 = vsel %vm292, %v1349, -inf
    %v1368 = vrot.slane %v1367, 4
    %v1369 = vmax.f32 %v1367, %v1368
    %v1370 = vrot.slane %v1369, 2
    %v1371 = vmax.f32 %v1369, %v1370
    %v1372 = vrot.slane %v1371, 1
    %v1373 = vmax.f32 %v1371, %v1372
    %v1374 = vsel %vm292, %v1350, -inf
    %v1375 = vrot.slane %v1374, 4
    %v1376 = vmax.f32 %v1374, %v1375
    %v1377 = vrot.slane %v1376, 2
    %v1378 = vmax.f32 %v1376, %v1377
    %v1379 = vrot.slane %v1378, 1
    %v1380 = vmax.f32 %v1378, %v1379
    %v1381 = vsel %vm295, %v1365, %v1373
    %v1382 = vsel %vm295, %v1366, %v1380
    %1383 = vrot.lane.b32.xlu0 %v1381, 17
    %v1384 = vpop.permute.xlu0 %1383
    %1385 = vrot.lane.b32.xlu0 %v1382, 17
    %v1386 = vpop.permute.xlu0 %1385
    %v1387 = vsel %vm755, %v1384, %v1386
    %v1388 = vsel %vm755, %v1386, %v1384
    %v1389 = vmul.f32 %v1388, %v762
    %v1390 = vmul.f32 %v1387, %v766
    %1391 = vrot.lane.b32.xlu0 %v1381, 16
    %v1392 = vpop.permute.xlu0 %1391
    %1393 = vrot.lane.b32.xlu0 %v1382, 16
    %v1394 = vpop.permute.xlu0 %1393
    %v1395 = vsel %vm775, %v1392, %v1394
    %v1396 = vsel %vm775, %v1394, %v1392
    %v1397 = vmul.f32 %v1396, %v782
    %v1398 = vmul.f32 %v1395, %v786
    %1399 = vrot.lane.b32.xlu0 %v1381, 15
    %v1400 = vpop.permute.xlu0 %1399
    %1401 = vrot.lane.b32.xlu0 %v1382, 15
    %v1402 = vpop.permute.xlu0 %1401
    %v1403 = vsel %vm795, %v1400, %v1402
    %v1404 = vsel %vm795, %v1402, %v1400
    %v1405 = vmul.f32 %v1404, %v802
    %v1406 = vmul.f32 %v1403, %v806
    %1407 = vrot.lane.b32.xlu0 %v1381, 1
    %v1408 = vpop.permute.xlu0 %1407
    %1409 = vrot.lane.b32.xlu0 %v1382, 1
    %v1410 = vpop.permute.xlu0 %1409
    %v1411 = vsel %vm815, %v1408, %v1410
    %v1412 = vsel %vm815, %v1410, %v1408
    %v1413 = vmul.f32 %v1412, %v822
    %v1414 = vmul.f32 %v1411, %v826
    %1415 = vrot.lane.b32.xlu0 %v1381, 127
    %v1416 = vpop.permute.xlu0 %1415
    %1417 = vrot.lane.b32.xlu0 %v1382, 127
    %v1418 = vpop.permute.xlu0 %1417
    %v1419 = vsel %vm835, %v1416, %v1418
    %v1420 = vsel %vm835, %v1418, %v1416
    %v1421 = vmul.f32 %v1419, %v842
    %v1422 = vmul.f32 %v1420, %v846
    %1423 = vrot.lane.b32.xlu0 %v1381, 113
    %v1424 = vpop.permute.xlu0 %1423
    %1425 = vrot.lane.b32.xlu0 %v1382, 113
    %v1426 = vpop.permute.xlu0 %1425
    %v1427 = vsel %vm855, %v1424, %v1426
    %v1428 = vsel %vm855, %v1426, %v1424
    %v1429 = vmul.f32 %v1427, %v862
    %v1430 = vmul.f32 %v1428, %v866
    %1431 = vrot.lane.b32.xlu0 %v1381, 112
    %v1432 = vpop.permute.xlu0 %1431
    %1433 = vrot.lane.b32.xlu0 %v1382, 112
    %v1434 = vpop.permute.xlu0 %1433
    %v1435 = vsel %vm875, %v1432, %v1434
    %v1436 = vsel %vm875, %v1434, %v1432
    %v1437 = vmul.f32 %v1435, %v882
    %v1438 = vmul.f32 %v1436, %v886
    %1439 = vrot.lane.b32.xlu0 %v1381, 111
    %v1440 = vpop.permute.xlu0 %1439
    %1441 = vrot.lane.b32.xlu0 %v1382, 111
    %v1442 = vpop.permute.xlu0 %1441
    %v1443 = vsel %vm895, %v1440, %v1442
    %v1444 = vsel %vm895, %v1442, %v1440
    %v1445 = vmul.f32 %v1443, %v902
    %v1446 = vmul.f32 %v1444, %v906
    %v1449 = vrot.slane %v1397, 6
    %v1450 = vrot.slane %v1398, 6
    %v1455 = vrot.slane %v1405, 4
    %v1456 = vrot.slane %v1406, 4
    %v1461 = vrot.slane %v1413, 2
    %v1462 = vrot.slane %v1414, 2
    %v1467 = vrot.slane %v1421, 6
    %v1468 = vrot.slane %v1422, 6
    %v1473 = vrot.slane %v1429, 4
    %v1474 = vrot.slane %v1430, 4
    %v1479 = vrot.slane %v1437, 2
    %v1480 = vrot.slane %v1438, 2
    %v1483 = vsel %vm304, %v1389, %v1449
    %v1484 = vsel %vm304, %v1390, %v1450
    %v1485 = vsel %vm298, %v1483, %v1455
    %v1486 = vsel %vm298, %v1484, %v1456
    %v1487 = vsel %vm292, %v1485, %v1461
    %v1488 = vsel %vm292, %v1486, %v1462
    %v1489 = vsel %vm304, %v1381, %v1467
    %v1490 = vsel %vm304, %v1382, %v1468
    %v1491 = vsel %vm298, %v1489, %v1473
    %v1492 = vsel %vm298, %v1490, %v1474
    %v1493 = vsel %vm292, %v1491, %v1479
    %v1494 = vsel %vm292, %v1492, %v1480
    %v1495 = vld [vmem:[%s10 + $0x1] sm:$0x1]
    %s1496 = sld [smem:[#allocation3 + $0x1]]
    %v1497 = vstv %s1496
    %v1499 = vsel %vm962, %v1495, 0
    %v1502 = vsel %vm304, %v1445, 0
    %v1505 = vsel %vm304, %v1446, 0
    %1507 = vmatprep.subr.mxu0 %v1488
    %1508 = vmatpush1.msra.mxu0 %v1487
    %1509 = vmatprep.subr.mxu0 %v1494
    %1510 = vmatpush1.msra.mxu0 %v1493
    %1511 = vmatprep.subr.mxu0 %v1505
    %1512 = vmatpush1.msra.mxu0 %v1502
    %1513 = vmatprep.subr.mxu0 0.0
    %1514 = vmatpush1.msra.mxu0 0.0
    %1515 = vmatprep.subr.mxu0 0.0
    %1516 = vmatpush1.msra.mxu0 0.0
    %1517 = vmatprep.subr.mxu0 0.0
    %1518 = vmatpush1.msra.mxu0 0.0
    %1519 = vmatprep.subr.mxu0 0.0
    %1520 = vmatpush1.msra.mxu0 0.0
    %1521 = vmatprep.subr.mxu0 0.0
    %1522 = vmatpush1.msra.mxu0 0.0
    %1523 = vmatprep.subr.mxu0 0.0
    %1524 = vmatpush1.msra.mxu0 0.0
    %1525 = vmatprep.subr.mxu0 0.0
    %1526 = vmatpush1.msra.mxu0 0.0
    %1527 = vmatprep.subr.mxu0 0.0
    %1528 = vmatpush1.msra.mxu0 0.0
    %1529 = vmatprep.subr.mxu0 0.0
    %1530 = vmatpush1.msra.mxu0 0.0
    %1531 = vmatprep.subr.mxu0 0.0
    %1532 = vmatpush1.msra.mxu0 0.0
    %1533 = vmatprep.subr.mxu0 0.0
    %1534 = vmatpush1.msra.mxu0 0.0
    %1535 = vmatprep.subr.mxu0 0.0
    %1536 = vmatpush1.msra.mxu0 0.0
    %1537 = vmatprep.subr.mxu0 0.0
    %1538 = vmatpush1.msra.mxu0 0.0
    %1539 = vmatprep.subr.mxu0 0.0
    %1540 = vmatpush1.msra.mxu0 0.0
    %1541 = vmatprep.subr.mxu0 0.0
    %1542 = vmatpush1.msra.mxu0 0.0
    %1543 = vmatprep.subr.mxu0 0.0
    %1544 = vmatpush1.msra.mxu0 0.0
    %1545 = vmatprep.subr.mxu0 0.0
    %1546 = vmatpush1.msra.mxu0 0.0
    %1547 = vmatprep.subr.mxu0 0.0
    %1548 = vmatpush1.msra.mxu0 0.0
    %1549 = vmatprep.subr.mxu0 0.0
    %1550 = vmatpush1.msra.mxu0 0.0
    %1551 = vmatprep.subr.mxu0 0.0
    %1552 = vmatpush1.msra.mxu0 0.0
    %1553 = vmatprep.subr.mxu0 0.0
    %1554 = vmatpush1.msra.mxu0 0.0
    %1555 = vmatprep.subr.mxu0 0.0
    %1556 = vmatpush1.msra.mxu0 0.0
    %1557 = vmatprep.subr.mxu0 0.0
    %1558 = vmatpush1.msra.mxu0 0.0
    %1559 = vmatprep.subr.mxu0 0.0
    %1560 = vmatpush1.msra.mxu0 0.0
    %1561 = vmatprep.subr.mxu0 0.0
    %1562 = vmatpush1.msra.mxu0 0.0
    %1563 = vmatprep.subr.mxu0 0.0
    %1564 = vmatpush1.msra.mxu0 0.0
    %1565 = vmatprep.subr.mxu0 0.0
    %1566 = vmatpush1.msra.mxu0 0.0
    %1567 = vmatprep.subr.mxu0 0.0
    %1568 = vmatpush1.msra.mxu0 0.0
    %1569 = vmatprep.subr.mxu0 0.0
    %1570 = vmatpush1.msra.mxu0 0.0
    %1571 = vmatprep.mubr.f32.mxu0 0.0
    %1572 = vmatmul.mubr.f32.gmra.mrb[0].mxu0 %v1499
    %v1573 = vpop.f32.mrb[0].mxu0
    %v1574 = vadd.f32 %v1497, %v1573
    %v1575 = vpop.f32.mrb[0].mxu0
    %v1576 = vadd.f32 %v1497, %v1575
    %1577 = vdwg.mxu0
    %v1578 = vxor.u32 %v1574, 2147483648
    %v1579 = vxor.u32 %v1576, 2147483648
    %v1580 = vmul.f32 %v1578, 1.442695
    %v1581 = vpow.pop %v1580
    %v1582 = vmul.f32 %v1579, 1.442695
    %v1583 = vpow.pop %v1582
    %v1584 = vadd.f32 %v1581, 1.0
    %v1585 = vadd.f32 %v1583, 1.0
    %v1586 = vrcp.pop %v1584
    %v1587 = vmul.f32 1.0, %v1586
    %v1588 = vrcp.pop %v1585
    %v1589 = vmul.f32 1.0, %v1588
    %v1590 = vlaneseq
    %v1591 = vshrl.u32 %v1590, 7
    %v1592 = vsub.s32 0, %v1591
    %v1593 = vrot.slane %v1587, %v1592
    %v1594 = vlaneseq
    %v1595 = vshrl.u32 %v1594, 7
    %v1596 = vsub.s32 0, %v1595
    %v1597 = vrot.slane %v1589, %v1596
    %v1598 = vmul.f32 %v1349, %v1593
    %v1599 = vmul.f32 %v1350, %v1597
    %1600 = vrot.lane.b32.xlu0 %v1598, 34
    %v1601 = vpop.permute.xlu0 %1600
    %1602 = vrot.lane.b32.xlu0 %v1599, 34
    %v1603 = vpop.permute.xlu0 %1602
    %v1604 = vsel %vm95, %v1601, %v1603
    %v1605 = vsel %vm95, %v1603, %v1601
    %v1606 = vmul.f32 %v1605, %v102
    %v1607 = vmul.f32 %v1604, %v106
    %1608 = vrot.lane.b32.xlu0 %v1598, 32
    %v1609 = vpop.permute.xlu0 %1608
    %1610 = vrot.lane.b32.xlu0 %v1599, 32
    %v1611 = vpop.permute.xlu0 %1610
    %v1612 = vsel %vm115, %v1609, %v1611
    %v1613 = vsel %vm115, %v1611, %v1609
    %v1614 = vmul.f32 %v1613, %v122
    %v1615 = vmul.f32 %v1612, %v126
    %1616 = vrot.lane.b32.xlu0 %v1598, 30
    %v1617 = vpop.permute.xlu0 %1616
    %1618 = vrot.lane.b32.xlu0 %v1599, 30
    %v1619 = vpop.permute.xlu0 %1618
    %v1620 = vsel %vm135, %v1617, %v1619
    %v1621 = vsel %vm135, %v1619, %v1617
    %v1622 = vmul.f32 %v1621, %v142
    %v1623 = vmul.f32 %v1620, %v146
    %1624 = vrot.lane.b32.xlu0 %v1598, 2
    %v1625 = vpop.permute.xlu0 %1624
    %1626 = vrot.lane.b32.xlu0 %v1599, 2
    %v1627 = vpop.permute.xlu0 %1626
    %v1628 = vsel %vm155, %v1625, %v1627
    %v1629 = vsel %vm155, %v1627, %v1625
    %v1630 = vmul.f32 %v1629, %v162
    %v1631 = vmul.f32 %v1628, %v166
    %1632 = vrot.lane.b32.xlu0 %v1598, 126
    %v1633 = vpop.permute.xlu0 %1632
    %1634 = vrot.lane.b32.xlu0 %v1599, 126
    %v1635 = vpop.permute.xlu0 %1634
    %v1636 = vsel %vm175, %v1633, %v1635
    %v1637 = vsel %vm175, %v1635, %v1633
    %v1638 = vmul.f32 %v1636, %v182
    %v1639 = vmul.f32 %v1637, %v186
    %1640 = vrot.lane.b32.xlu0 %v1598, 98
    %v1641 = vpop.permute.xlu0 %1640
    %1642 = vrot.lane.b32.xlu0 %v1599, 98
    %v1643 = vpop.permute.xlu0 %1642
    %v1644 = vsel %vm195, %v1641, %v1643
    %v1645 = vsel %vm195, %v1643, %v1641
    %v1646 = vmul.f32 %v1644, %v202
    %v1647 = vmul.f32 %v1645, %v206
    %1648 = vrot.lane.b32.xlu0 %v1598, 96
    %v1649 = vpop.permute.xlu0 %1648
    %1650 = vrot.lane.b32.xlu0 %v1599, 96
    %v1651 = vpop.permute.xlu0 %1650
    %v1652 = vsel %vm215, %v1649, %v1651
    %v1653 = vsel %vm215, %v1651, %v1649
    %v1654 = vmul.f32 %v1652, %v222
    %v1655 = vmul.f32 %v1653, %v226
    %1656 = vrot.lane.b32.xlu0 %v1598, 94
    %v1657 = vpop.permute.xlu0 %1656
    %1658 = vrot.lane.b32.xlu0 %v1599, 94
    %v1659 = vpop.permute.xlu0 %1658
    %v1660 = vsel %vm235, %v1657, %v1659
    %v1661 = vsel %vm235, %v1659, %v1657
    %v1662 = vmul.f32 %v1660, %v242
    %v1663 = vmul.f32 %v1661, %v246
    %v1666 = vrot.slane %v1614, 2
    %v1667 = vrot.slane %v1615, 2
    %v1672 = vrot.slane %v1622, 4
    %v1673 = vrot.slane %v1623, 4
    %v1678 = vrot.slane %v1630, 6
    %v1679 = vrot.slane %v1631, 6
    %v1684 = vrot.slane %v1638, 2
    %v1685 = vrot.slane %v1639, 2
    %v1690 = vrot.slane %v1646, 4
    %v1691 = vrot.slane %v1647, 4
    %v1696 = vrot.slane %v1654, 6
    %v1697 = vrot.slane %v1655, 6
    %v1700 = vsel %vm292, %v1606, %v1666
    %v1701 = vsel %vm292, %v1607, %v1667
    %v1702 = vsel %vm298, %v1666, %v1672
    %v1703 = vsel %vm298, %v1667, %v1673
    %v1704 = vsel %vm304, %v1672, %v1678
    %v1705 = vsel %vm304, %v1673, %v1679
    %v1706 = vsel %vm292, %v1598, %v1684
    %v1707 = vsel %vm292, %v1599, %v1685
    %v1708 = vsel %vm298, %v1684, %v1690
    %v1709 = vsel %vm298, %v1685, %v1691
    %v1710 = vsel %vm304, %v1690, %v1696
    %v1711 = vsel %vm304, %v1691, %v1697
    %v1712 = vsel %vm292, %v1662, 0.0
    %v1713 = vsel %vm292, %v1663, 0.0
    %1714 = vst [vmem:[#allocation2 + $0xe0] sm:$0xff] %v1700
    %1715 = vst [vmem:[#allocation2 + $0xe8] sm:$0xff] %v1701
    %1716 = vst [vmem:[#allocation2 + $0xf0] sm:$0xff] %v1702
    %1717 = vst [vmem:[#allocation2 + $0xf8] sm:$0xff] %v1703
    %1718 = vst [vmem:[#allocation2 + $0x100] sm:$0xff] %v1704
    %1719 = vst [vmem:[#allocation2 + $0x108] sm:$0xff] %v1705
    %1720 = vst [vmem:[#allocation2 + $0x110] sm:$0xff] %v1706
    %1721 = vst [vmem:[#allocation2 + $0x118] sm:$0xff] %v1707
    %1722 = vst [vmem:[#allocation2 + $0x120] sm:$0xff] %v1708
    %1723 = vst [vmem:[#allocation2 + $0x128] sm:$0xff] %v1709
    %1724 = vst [vmem:[#allocation2 + $0x130] sm:$0xff] %v1710
    %1725 = vst [vmem:[#allocation2 + $0x138] sm:$0xff] %v1711
    %1726 = vst [vmem:[#allocation2 + $0x140] sm:$0xff] %v1712
    %1727 = vst [vmem:[#allocation2 + $0x148] sm:$0xff] %v1713
    %v1728 = vld [vmem:[%s5] sm:$0x3f]
    %v1729 = vld [vmem:[%s5 + $0x8] sm:$0x3f]
    %v1730 = vld [vmem:[#allocation2] sm:$0xff]
    %v1731 = vld [vmem:[#allocation2 + $0x8] sm:$0xff]
    %v1732 = vld [vmem:[#allocation2 + $0x10] sm:$0xff]
    %v1733 = vld [vmem:[#allocation2 + $0x18] sm:$0xff]
    %v1734 = vld [vmem:[#allocation2 + $0x20] sm:$0xff]
    %v1735 = vld [vmem:[#allocation2 + $0x28] sm:$0xff]
    %v1736 = vld [vmem:[#allocation2 + $0x30] sm:$0xff]
    %v1737 = vld [vmem:[#allocation2 + $0x38] sm:$0xff]
    %v1738 = vld [vmem:[#allocation2 + $0x40] sm:$0xff]
    %v1739 = vld [vmem:[#allocation2 + $0x48] sm:$0xff]
    %v1740 = vld [vmem:[#allocation2 + $0x50] sm:$0xff]
    %v1741 = vld [vmem:[#allocation2 + $0x58] sm:$0xff]
    %v1742 = vld [vmem:[#allocation2 + $0x60] sm:$0xff]
    %v1743 = vld [vmem:[#allocation2 + $0x68] sm:$0xff]
    %v1744 = vld [vmem:[#allocation2 + $0x70] sm:$0xff]
    %v1745 = vld [vmem:[#allocation2 + $0x78] sm:$0xff]
    %v1746 = vld [vmem:[#allocation2 + $0x80] sm:$0xff]
    %v1747 = vld [vmem:[#allocation2 + $0x88] sm:$0xff]
    %v1748 = vld [vmem:[#allocation2 + $0x90] sm:$0xff]
    %v1749 = vld [vmem:[#allocation2 + $0x98] sm:$0xff]
    %v1750 = vld [vmem:[#allocation2 + $0xa0] sm:$0xff]
    %v1751 = vld [vmem:[#allocation2 + $0xa8] sm:$0xff]
    %v1752 = vld [vmem:[#allocation2 + $0xb0] sm:$0xff]
    %v1753 = vld [vmem:[#allocation2 + $0xb8] sm:$0xff]
    %v1754 = vld [vmem:[#allocation2 + $0xc0] sm:$0xff]
    %v1755 = vld [vmem:[#allocation2 + $0xc8] sm:$0xff]
    %v1756 = vld [vmem:[#allocation2 + $0xd0] sm:$0xff]
    %v1757 = vld [vmem:[#allocation2 + $0xd8] sm:$0xff]
    %v1758 = vld [vmem:[#allocation2 + $0xe0] sm:$0xff]
    %v1759 = vld [vmem:[#allocation2 + $0xe8] sm:$0xff]
    %v1760 = vld [vmem:[#allocation2 + $0xf0] sm:$0xff]
    %v1761 = vld [vmem:[#allocation2 + $0xf8] sm:$0xff]
    %v1762 = vld [vmem:[#allocation2 + $0x100] sm:$0xff]
    %v1763 = vld [vmem:[#allocation2 + $0x108] sm:$0xff]
    %v1764 = vld [vmem:[#allocation2 + $0x110] sm:$0xff]
    %v1765 = vld [vmem:[#allocation2 + $0x118] sm:$0xff]
    %v1766 = vld [vmem:[#allocation2 + $0x120] sm:$0xff]
    %v1767 = vld [vmem:[#allocation2 + $0x128] sm:$0xff]
    %v1768 = vld [vmem:[#allocation2 + $0x130] sm:$0xff]
    %v1769 = vld [vmem:[#allocation2 + $0x138] sm:$0xff]
    %v1770 = vld [vmem:[#allocation2 + $0x140] sm:$0xff]
    %v1771 = vld [vmem:[#allocation2 + $0x148] sm:$0xff]
    %s1772 = scalar_lea.vmem %s6, 72
    %v1773 = vld [vmem:[%s1772] sm:$0x3f]
    %1775 = vset.pattern.permute.xlu0 0
    %1776 = vperm.xlu0 %1775, %v1773
    %v1777 = vpop.permute.xlu0 %1776
    %vm1779 = vcmask 326656
    %v1781 = vsel %vm1779, %v1729, 0
    %1783 = vmatprep.subr.mxu0 %v1731
    %1784 = vmatpush1.msra.mxu0 %v1730
    %1785 = vmatprep.subr.mxu0 %v1733
    %1786 = vmatpush1.msra.mxu0 %v1732
    %1787 = vmatprep.subr.mxu0 %v1735
    %1788 = vmatpush1.msra.mxu0 %v1734
    %1789 = vmatprep.subr.mxu0 %v1737
    %1790 = vmatpush1.msra.mxu0 %v1736
    %1791 = vmatprep.subr.mxu0 %v1739
    %1792 = vmatpush1.msra.mxu0 %v1738
    %1793 = vmatprep.subr.mxu0 %v1741
    %1794 = vmatpush1.msra.mxu0 %v1740
    %1795 = vmatprep.subr.mxu0 %v1743
    %1796 = vmatpush1.msra.mxu0 %v1742
    %1797 = vmatprep.subr.mxu0 %v1745
    %1798 = vmatpush1.msra.mxu0 %v1744
    %1799 = vmatprep.subr.mxu0 %v1747
    %1800 = vmatpush1.msra.mxu0 %v1746
    %1801 = vmatprep.subr.mxu0 %v1749
    %1802 = vmatpush1.msra.mxu0 %v1748
    %1803 = vmatprep.subr.mxu0 %v1751
    %1804 = vmatpush1.msra.mxu0 %v1750
    %1805 = vmatprep.subr.mxu0 %v1753
    %1806 = vmatpush1.msra.mxu0 %v1752
    %1807 = vmatprep.subr.mxu0 %v1755
    %1808 = vmatpush1.msra.mxu0 %v1754
    %1809 = vmatprep.subr.mxu0 %v1757
    %1810 = vmatpush1.msra.mxu0 %v1756
    %1811 = vmatprep.subr.mxu0 %v1759
    %1812 = vmatpush1.msra.mxu0 %v1758
    %1813 = vmatprep.subr.mxu0 %v1761
    %1814 = vmatpush1.msra.mxu0 %v1760
    %1815 = vmatprep.subr.mxu0 %v1763
    %1816 = vmatpush1.msra.mxu0 %v1762
    %1817 = vmatprep.subr.mxu0 %v1765
    %1818 = vmatpush1.msra.mxu0 %v1764
    %1819 = vmatprep.subr.mxu0 %v1767
    %1820 = vmatpush1.msra.mxu0 %v1766
    %1821 = vmatprep.subr.mxu0 %v1769
    %1822 = vmatpush1.msra.mxu0 %v1768
    %1823 = vmatprep.subr.mxu0 %v1771
    %1824 = vmatpush1.msra.mxu0 %v1770
    %1825 = vmatprep.subr.mxu0 0.0
    %1826 = vmatpush1.msra.mxu0 0.0
    %1827 = vmatprep.subr.mxu0 0.0
    %1828 = vmatpush1.msra.mxu0 0.0
    %1829 = vmatprep.subr.mxu0 0.0
    %1830 = vmatpush1.msra.mxu0 0.0
    %1831 = vmatprep.subr.mxu0 0.0
    %1832 = vmatpush1.msra.mxu0 0.0
    %1833 = vmatprep.subr.mxu0 0.0
    %1834 = vmatpush1.msra.mxu0 0.0
    %1835 = vmatprep.subr.mxu0 0.0
    %1836 = vmatpush1.msra.mxu0 0.0
    %1837 = vmatprep.subr.mxu0 0.0
    %1838 = vmatpush1.msra.mxu0 0.0
    %1839 = vmatprep.subr.mxu0 0.0
    %1840 = vmatpush1.msra.mxu0 0.0
    %1841 = vmatprep.subr.mxu0 0.0
    %1842 = vmatpush1.msra.mxu0 0.0
    %1843 = vmatprep.subr.mxu0 0.0
    %1844 = vmatpush1.msra.mxu0 0.0
    %1845 = vmatprep.subr.mxu0 0.0
    %1846 = vmatpush1.msra.mxu0 0.0
    %1847 = vmatprep.mubr.f32.mxu0 %v1781
    %1848 = vmatmul.mubr.f32.gmra.mrb[0].mxu0 %v1728
    %v1849 = vpop.f32.mrb[0].mxu0
    %v1850 = vadd.f32 %v1777, %v1849
    %v1851 = vpop.f32.mrb[0].mxu0
    %v1852 = vadd.f32 %v1777, %v1851
    %1853 = vdwg.mxu0
    %s1854 = scalar_lea.vmem %s6, 80
    %v1855 = vld [vmem:[%s1854] sm:$0x3f]
    %s1856 = scalar_lea.vmem %s6, 88
    %v1857 = vld [vmem:[%s1856] sm:$0x3f]
    %v1858 = vsel %vm292, %v1850, 0.0
    %v1859 = vsel %vm292, %v1852, 0.0
    %v1860 = vadd.f32 %v1858, %v1859
    %1861 = vadd.xlane.f32.xlu0 %v1860
    %v1862 = vpop.xlane.xlu0 %1861
    %v1863 = vmul.f32 %v1862, %v407
    %v1864 = vmul.f32 %v1850, %v1850
    %v1865 = vmul.f32 %v1852, %v1852
    %v1866 = vsel %vm292, %v1864, 0.0
    %v1867 = vsel %vm292, %v1865, 0.0
    %v1868 = vadd.f32 %v1866, %v1867
    %1869 = vadd.xlane.f32.xlu0 %v1868
    %v1870 = vpop.xlane.xlu0 %1869
    %v1871 = vmul.f32 %v1870, %v407
    %v1872 = vmul.f32 %v1863, %v1863
    %v1873 = vsub.f32 %v1871, %v1872
    %v1874 = vmax.f32 %v1873, 0.0
    %v1875 = vsub.f32 %v1850, %v1863
    %v1876 = vsub.f32 %v1852, %v1863
    %v1877 = vadd.f32 %v1874, 1e-05
    %v1878 = vrsqrt.pop %v1877
    %v1879 = vmul.f32 %v1875, %v1878
    %v1880 = vmul.f32 %v1876, %v1878
    %1882 = vset.pattern.permute.xlu0 0
    %1883 = vperm.xlu0 %1882, %v1855
    %v1884 = vpop.permute.xlu0 %1883
    %v1886 = vmul.f32 %v1879, %v1884
    %v1887 = vmul.f32 %v1880, %v1884
    %1889 = vset.pattern.permute.xlu0 0
    %1890 = vperm.xlu0 %1889, %v1857
    %v1891 = vpop.permute.xlu0 %1890
    %v1893 = vadd.f32 %v1886, %v1891
    %v1894 = vadd.f32 %v1887, %v1891
    %vm1895 = vcmp.ge.f32.partialorder %v1893, 0.0
    %vm1896 = vcmp.ge.f32.partialorder %v1894, 0.0
    %v1897 = vmul.f32 %v1893, 0.22916667
    %v1898 = vmul.f32 %v1894, 0.22916667
    %v1899 = vsel %vm1895, %v1893, %v1897
    %v1900 = vsel %vm1896, %v1894, %v1898
    %v1901 = vsel %vm292, %v1899, 0.0
    %v1902 = vrot.slane %v1901, 4
    %v1903 = vadd.f32 %v1901, %v1902
    %v1904 = vrot.slane %v1903, 2
    %v1905 = vadd.f32 %v1903, %v1904
    %v1906 = vrot.slane %v1905, 1
    %v1907 = vadd.f32 %v1905, %v1906
    %v1908 = vsel %vm292, %v1900, 0.0
    %v1909 = vrot.slane %v1908, 4
    %v1910 = vadd.f32 %v1908, %v1909
    %v1911 = vrot.slane %v1910, 2
    %v1912 = vadd.f32 %v1910, %v1911
    %v1913 = vrot.slane %v1912, 1
    %v1914 = vadd.f32 %v1912, %v1913
    %v1915 = vmul.f32 %v1907, %v732
    %v1916 = vmul.f32 %v1914, %v732
    %v1917 = vsel %vm292, %v1899, -inf
    %v1918 = vrot.slane %v1917, 4
    %v1919 = vmax.f32 %v1917, %v1918
    %v1920 = vrot.slane %v1919, 2
    %v1921 = vmax.f32 %v1919, %v1920
    %v1922 = vrot.slane %v1921, 1
    %v1923 = vmax.f32 %v1921, %v1922
    %v1924 = vsel %vm292, %v1900, -inf
    %v1925 = vrot.slane %v1924, 4
    %v1926 = vmax.f32 %v1924, %v1925
    %v1927 = vrot.slane %v1926, 2
    %v1928 = vmax.f32 %v1926, %v1927
    %v1929 = vrot.slane %v1928, 1
    %v1930 = vmax.f32 %v1928, %v1929
    %v1931 = vsel %vm295, %v1915, %v1923
    %v1932 = vsel %vm295, %v1916, %v1930
    %1933 = vrot.lane.b32.xlu0 %v1931, 17
    %v1934 = vpop.permute.xlu0 %1933
    %1935 = vrot.lane.b32.xlu0 %v1932, 17
    %v1936 = vpop.permute.xlu0 %1935
    %v1937 = vsel %vm755, %v1934, %v1936
    %v1938 = vsel %vm755, %v1936, %v1934
    %v1939 = vmul.f32 %v1938, %v762
    %v1940 = vmul.f32 %v1937, %v766
    %1941 = vrot.lane.b32.xlu0 %v1931, 16
    %v1942 = vpop.permute.xlu0 %1941
    %1943 = vrot.lane.b32.xlu0 %v1932, 16
    %v1944 = vpop.permute.xlu0 %1943
    %v1945 = vsel %vm775, %v1942, %v1944
    %v1946 = vsel %vm775, %v1944, %v1942
    %v1947 = vmul.f32 %v1946, %v782
    %v1948 = vmul.f32 %v1945, %v786
    %1949 = vrot.lane.b32.xlu0 %v1931, 15
    %v1950 = vpop.permute.xlu0 %1949
    %1951 = vrot.lane.b32.xlu0 %v1932, 15
    %v1952 = vpop.permute.xlu0 %1951
    %v1953 = vsel %vm795, %v1950, %v1952
    %v1954 = vsel %vm795, %v1952, %v1950
    %v1955 = vmul.f32 %v1954, %v802
    %v1956 = vmul.f32 %v1953, %v806
    %1957 = vrot.lane.b32.xlu0 %v1931, 1
    %v1958 = vpop.permute.xlu0 %1957
    %1959 = vrot.lane.b32.xlu0 %v1932, 1
    %v1960 = vpop.permute.xlu0 %1959
    %v1961 = vsel %vm815, %v1958, %v1960
    %v1962 = vsel %vm815, %v1960, %v1958
    %v1963 = vmul.f32 %v1962, %v822
    %v1964 = vmul.f32 %v1961, %v826
    %1965 = vrot.lane.b32.xlu0 %v1931, 127
    %v1966 = vpop.permute.xlu0 %1965
    %1967 = vrot.lane.b32.xlu0 %v1932, 127
    %v1968 = vpop.permute.xlu0 %1967
    %v1969 = vsel %vm835, %v1966, %v1968
    %v1970 = vsel %vm835, %v1968, %v1966
    %v1971 = vmul.f32 %v1969, %v842
    %v1972 = vmul.f32 %v1970, %v846
    %1973 = vrot.lane.b32.xlu0 %v1931, 113
    %v1974 = vpop.permute.xlu0 %1973
    %1975 = vrot.lane.b32.xlu0 %v1932, 113
    %v1976 = vpop.permute.xlu0 %1975
    %v1977 = vsel %vm855, %v1974, %v1976
    %v1978 = vsel %vm855, %v1976, %v1974
    %v1979 = vmul.f32 %v1977, %v862
    %v1980 = vmul.f32 %v1978, %v866
    %1981 = vrot.lane.b32.xlu0 %v1931, 112
    %v1982 = vpop.permute.xlu0 %1981
    %1983 = vrot.lane.b32.xlu0 %v1932, 112
    %v1984 = vpop.permute.xlu0 %1983
    %v1985 = vsel %vm875, %v1982, %v1984
    %v1986 = vsel %vm875, %v1984, %v1982
    %v1987 = vmul.f32 %v1985, %v882
    %v1988 = vmul.f32 %v1986, %v886
    %1989 = vrot.lane.b32.xlu0 %v1931, 111
    %v1990 = vpop.permute.xlu0 %1989
    %1991 = vrot.lane.b32.xlu0 %v1932, 111
    %v1992 = vpop.permute.xlu0 %1991
    %v1993 = vsel %vm895, %v1990, %v1992
    %v1994 = vsel %vm895, %v1992, %v1990
    %v1995 = vmul.f32 %v1993, %v902
    %v1996 = vmul.f32 %v1994, %v906
    %v1999 = vrot.slane %v1947, 6
    %v2000 = vrot.slane %v1948, 6
    %v2005 = vrot.slane %v1955, 4
    %v2006 = vrot.slane %v1956, 4
    %v2011 = vrot.slane %v1963, 2
    %v2012 = vrot.slane %v1964, 2
    %v2017 = vrot.slane %v1971, 6
    %v2018 = vrot.slane %v1972, 6
    %v2023 = vrot.slane %v1979, 4
    %v2024 = vrot.slane %v1980, 4
    %v2029 = vrot.slane %v1987, 2
    %v2030 = vrot.slane %v1988, 2
    %v2033 = vsel %vm304, %v1939, %v1999
    %v2034 = vsel %vm304, %v1940, %v2000
    %v2035 = vsel %vm298, %v2033, %v2005
    %v2036 = vsel %vm298, %v2034, %v2006
    %v2037 = vsel %vm292, %v2035, %v2011
    %v2038 = vsel %vm292, %v2036, %v2012
    %v2039 = vsel %vm304, %v1931, %v2017
    %v2040 = vsel %vm304, %v1932, %v2018
    %v2041 = vsel %vm298, %v2039, %v2023
    %v2042 = vsel %vm298, %v2040, %v2024
    %v2043 = vsel %vm292, %v2041, %v2029
    %v2044 = vsel %vm292, %v2042, %v2030
    %v2045 = vld [vmem:[%s10 + $0x2] sm:$0x1]
    %s2046 = sld [smem:[#allocation3 + $0x2]]
    %v2047 = vstv %s2046
    %v2049 = vsel %vm962, %v2045, 0
    %v2052 = vsel %vm304, %v1995, 0
    %v2055 = vsel %vm304, %v1996, 0
    %2057 = vmatprep.subr.mxu0 %v2038
    %2058 = vmatpush1.msra.mxu0 %v2037
    %2059 = vmatprep.subr.mxu0 %v2044
    %2060 = vmatpush1.msra.mxu0 %v2043
    %2061 = vmatprep.subr.mxu0 %v2055
    %2062 = vmatpush1.msra.mxu0 %v2052
    %2063 = vmatprep.subr.mxu0 0.0
    %2064 = vmatpush1.msra.mxu0 0.0
    %2065 = vmatprep.subr.mxu0 0.0
    %2066 = vmatpush1.msra.mxu0 0.0
    %2067 = vmatprep.subr.mxu0 0.0
    %2068 = vmatpush1.msra.mxu0 0.0
    %2069 = vmatprep.subr.mxu0 0.0
    %2070 = vmatpush1.msra.mxu0 0.0
    %2071 = vmatprep.subr.mxu0 0.0
    %2072 = vmatpush1.msra.mxu0 0.0
    %2073 = vmatprep.subr.mxu0 0.0
    %2074 = vmatpush1.msra.mxu0 0.0
    %2075 = vmatprep.subr.mxu0 0.0
    %2076 = vmatpush1.msra.mxu0 0.0
    %2077 = vmatprep.subr.mxu0 0.0
    %2078 = vmatpush1.msra.mxu0 0.0
    %2079 = vmatprep.subr.mxu0 0.0
    %2080 = vmatpush1.msra.mxu0 0.0
    %2081 = vmatprep.subr.mxu0 0.0
    %2082 = vmatpush1.msra.mxu0 0.0
    %2083 = vmatprep.subr.mxu0 0.0
    %2084 = vmatpush1.msra.mxu0 0.0
    %2085 = vmatprep.subr.mxu0 0.0
    %2086 = vmatpush1.msra.mxu0 0.0
    %2087 = vmatprep.subr.mxu0 0.0
    %2088 = vmatpush1.msra.mxu0 0.0
    %2089 = vmatprep.subr.mxu0 0.0
    %2090 = vmatpush1.msra.mxu0 0.0
    %2091 = vmatprep.subr.mxu0 0.0
    %2092 = vmatpush1.msra.mxu0 0.0
    %2093 = vmatprep.subr.mxu0 0.0
    %2094 = vmatpush1.msra.mxu0 0.0
    %2095 = vmatprep.subr.mxu0 0.0
    %2096 = vmatpush1.msra.mxu0 0.0
    %2097 = vmatprep.subr.mxu0 0.0
    %2098 = vmatpush1.msra.mxu0 0.0
    %2099 = vmatprep.subr.mxu0 0.0
    %2100 = vmatpush1.msra.mxu0 0.0
    %2101 = vmatprep.subr.mxu0 0.0
    %2102 = vmatpush1.msra.mxu0 0.0
    %2103 = vmatprep.subr.mxu0 0.0
    %2104 = vmatpush1.msra.mxu0 0.0
    %2105 = vmatprep.subr.mxu0 0.0
    %2106 = vmatpush1.msra.mxu0 0.0
    %2107 = vmatprep.subr.mxu0 0.0
    %2108 = vmatpush1.msra.mxu0 0.0
    %2109 = vmatprep.subr.mxu0 0.0
    %2110 = vmatpush1.msra.mxu0 0.0
    %2111 = vmatprep.subr.mxu0 0.0
    %2112 = vmatpush1.msra.mxu0 0.0
    %2113 = vmatprep.subr.mxu0 0.0
    %2114 = vmatpush1.msra.mxu0 0.0
    %2115 = vmatprep.subr.mxu0 0.0
    %2116 = vmatpush1.msra.mxu0 0.0
    %2117 = vmatprep.subr.mxu0 0.0
    %2118 = vmatpush1.msra.mxu0 0.0
    %2119 = vmatprep.subr.mxu0 0.0
    %2120 = vmatpush1.msra.mxu0 0.0
    %2121 = vmatprep.mubr.f32.mxu0 0.0
    %2122 = vmatmul.mubr.f32.gmra.mrb[0].mxu0 %v2049
    %v2123 = vpop.f32.mrb[0].mxu0
    %v2124 = vadd.f32 %v2047, %v2123
    %v2125 = vpop.f32.mrb[0].mxu0
    %v2126 = vadd.f32 %v2047, %v2125
    %2127 = vdwg.mxu0
    %v2128 = vxor.u32 %v2124, 2147483648
    %v2129 = vxor.u32 %v2126, 2147483648
    %v2130 = vmul.f32 %v2128, 1.442695
    %v2131 = vpow.pop %v2130
    %v2132 = vmul.f32 %v2129, 1.442695
    %v2133 = vpow.pop %v2132
    %v2134 = vadd.f32 %v2131, 1.0
    %v2135 = vadd.f32 %v2133, 1.0
    %v2136 = vrcp.pop %v2134
    %v2137 = vmul.f32 1.0, %v2136
    %v2138 = vrcp.pop %v2135
    %v2139 = vmul.f32 1.0, %v2138
    %v2140 = vlaneseq
    %v2141 = vshrl.u32 %v2140, 7
    %v2142 = vsub.s32 0, %v2141
    %v2143 = vrot.slane %v2137, %v2142
    %v2144 = vlaneseq
    %v2145 = vshrl.u32 %v2144, 7
    %v2146 = vsub.s32 0, %v2145
    %v2147 = vrot.slane %v2139, %v2146
    %v2148 = vmul.f32 %v1899, %v2143
    %v2149 = vmul.f32 %v1900, %v2147
    %v2152 = vrot.slane %v1063, 2
    %v2153 = vrot.slane %v1064, 2
    %v2158 = vrot.slane %v1598, 4
    %v2159 = vrot.slane %v1599, 4
    %v2164 = vrot.slane %v2148, 6
    %v2165 = vrot.slane %v2149, 6
    %v2168 = vsel %vm292, %v444, %v2152
    %v2169 = vsel %vm292, %v445, %v2153
    %v2170 = vsel %vm298, %v2152, %v2158
    %v2171 = vsel %vm298, %v2153, %v2159
    %v2172 = vsel %vm304, %v2158, %v2164
    %v2173 = vsel %vm304, %v2159, %v2165
    %v2174 = vmax.f32 %v2168, %v2169
    %2175 = vmax.xlane.f32.xlu0 %v2174
    %v2176 = vpop.xlane.xlu0 %2175
    %v2177 = vmax.f32 %v2170, %v2171
    %2178 = vmax.xlane.f32.xlu0 %v2177
    %v2179 = vpop.xlane.xlu0 %2178
    %v2180 = vmax.f32 %v2172, %v2173
    %2181 = vmax.xlane.f32.xlu0 %v2180
    %v2182 = vpop.xlane.xlu0 %2181
    %v2183 = vadd.f32 %v2168, %v2169
    %2184 = vadd.xlane.f32.xlu0 %v2183
    %v2185 = vpop.xlane.xlu0 %2184
    %v2186 = vadd.f32 %v2170, %v2171
    %2187 = vadd.xlane.f32.xlu0 %v2186
    %v2188 = vpop.xlane.xlu0 %2187
    %v2189 = vadd.f32 %v2172, %v2173
    %2190 = vadd.xlane.f32.xlu0 %v2189
    %v2191 = vpop.xlane.xlu0 %2190
    %v2192 = vmul.f32 %v2185, %v407
    %v2193 = vmul.f32 %v2188, %v407
    %v2194 = vmul.f32 %v2191, %v407
    %v2195 = vld [vmem:[%s9] sm:$0xff]
    %v2196 = vld [vmem:[%s9 + $0x8] sm:$0xff]
    %v2197 = vld [vmem:[%s9 + $0x10] sm:$0xff]
    %vm2198 = vcmask 392192
    %v2200 = vsel %vm2198, %v2195, 0
    %v2203 = vsel %vm2198, %v2196, 0
    %v2206 = vsel %vm2198, %v2197, 0
    %2208 = vmatprep.subr.mxu0 0.0
    %2209 = vmatpush1.msra.mxu0 %v2176
    %2210 = vmatprep.subr.mxu0 0.0
    %2211 = vmatpush1.msra.mxu0 %v2179
    %2212 = vmatprep.subr.mxu0 0.0
    %2213 = vmatpush1.msra.mxu0 %v2182
    %2214 = vmatprep.subr.mxu0 0.0
    %2215 = vmatpush1.msra.mxu0 %v2192
    %2216 = vmatprep.subr.mxu0 0.0
    %2217 = vmatpush1.msra.mxu0 %v2193
    %2218 = vmatprep.subr.mxu0 0.0
    %2219 = vmatpush1.msra.mxu0 %v2194
    %2220 = vmatprep.subr.mxu0 0.0
    %2221 = vmatpush1.msra.mxu0 0.0
    %2222 = vmatprep.subr.mxu0 0.0
    %2223 = vmatpush1.msra.mxu0 0.0
    %2224 = vmatprep.subr.mxu0 0.0
    %2225 = vmatpush1.msra.mxu0 0.0
    %2226 = vmatprep.subr.mxu0 0.0
    %2227 = vmatpush1.msra.mxu0 0.0
    %2228 = vmatprep.subr.mxu0 0.0
    %2229 = vmatpush1.msra.mxu0 0.0
    %2230 = vmatprep.subr.mxu0 0.0
    %2231 = vmatpush1.msra.mxu0 0.0
    %2232 = vmatprep.subr.mxu0 0.0
    %2233 = vmatpush1.msra.mxu0 0.0
    %2234 = vmatprep.subr.mxu0 0.0
    %2235 = vmatpush1.msra.mxu0 0.0
    %2236 = vmatprep.subr.mxu0 0.0
    %2237 = vmatpush1.msra.mxu0 0.0
    %2238 = vmatprep.subr.mxu0 0.0
    %2239 = vmatpush1.msra.mxu0 0.0
    %2240 = vmatprep.subr.mxu0 0.0
    %2241 = vmatpush1.msra.mxu0 0.0
    %2242 = vmatprep.subr.mxu0 0.0
    %2243 = vmatpush1.msra.mxu0 0.0
    %2244 = vmatprep.subr.mxu0 0.0
    %2245 = vmatpush1.msra.mxu0 0.0
    %2246 = vmatprep.subr.mxu0 0.0
    %2247 = vmatpush1.msra.mxu0 0.0
    %2248 = vmatprep.subr.mxu0 0.0
    %2249 = vmatpush1.msra.mxu0 0.0
    %2250 = vmatprep.subr.mxu0 0.0
    %2251 = vmatpush1.msra.mxu0 0.0
    %2252 = vmatprep.subr.mxu0 0.0
    %2253 = vmatpush1.msra.mxu0 0.0
    %2254 = vmatprep.subr.mxu0 0.0
    %2255 = vmatpush1.msra.mxu0 0.0
    %2256 = vmatprep.subr.mxu0 0.0
    %2257 = vmatpush1.msra.mxu0 0.0
    %2258 = vmatprep.subr.mxu0 0.0
    %2259 = vmatpush1.msra.mxu0 0.0
    %2260 = vmatprep.subr.mxu0 0.0
    %2261 = vmatpush1.msra.mxu0 0.0
    %2262 = vmatprep.subr.mxu0 0.0
    %2263 = vmatpush1.msra.mxu0 0.0
    %2264 = vmatprep.subr.mxu0 0.0
    %2265 = vmatpush1.msra.mxu0 0.0
    %2266 = vmatprep.subr.mxu0 0.0
    %2267 = vmatpush1.msra.mxu0 0.0
    %2268 = vmatprep.subr.mxu0 0.0
    %2269 = vmatpush1.msra.mxu0 0.0
    %2270 = vmatprep.subr.mxu0 0.0
    %2271 = vmatpush1.msra.mxu0 0.0
    %2272 = vmatprep.mubr.f32.mxu0 0.0
    %2273 = vmatmul.mubr.f32.gmra.mrb[0].mxu0 %v2200
    %v2274 = vpop.f32.mrb[0].mxu0
    %v2275 = vadd.f32 0.0, %v2274
    %v2276 = vpop.f32.mrb[0].mxu0
    %2277 = vmatprep.mubr.f32.mxu0 0.0
    %2278 = vmatmul.mubr.f32.gmra.mrb[0].mxu0 %v2203
    %v2279 = vpop.f32.mrb[0].mxu0
    %v2280 = vadd.f32 0.0, %v2279
    %v2281 = vpop.f32.mrb[0].mxu0
    %2282 = vmatprep.mubr.f32.mxu0 0.0
    %2283 = vmatmul.mubr.f32.gmra.mrb[0].mxu0 %v2206
    %v2284 = vpop.f32.mrb[0].mxu0
    %v2285 = vadd.f32 0.0, %v2284
    %v2286 = vpop.f32.mrb[0].mxu0
    %2287 = vdwg.mxu0
    %v2288 = vxor.u32 %v2275, 2147483648
    %v2289 = vxor.u32 %v2280, 2147483648
    %v2290 = vxor.u32 %v2285, 2147483648
    %v2291 = vmul.f32 %v2288, 1.442695
    %v2292 = vpow.pop %v2291
    %v2293 = vmul.f32 %v2289, 1.442695
    %v2294 = vpow.pop %v2293
    %v2295 = vmul.f32 %v2290, 1.442695
    %v2296 = vpow.pop %v2295
    %v2297 = vadd.f32 %v2292, 1.0
    %v2298 = vadd.f32 %v2294, 1.0
    %v2299 = vadd.f32 %v2296, 1.0
    %v2300 = vrcp.pop %v2297
    %v2301 = vmul.f32 1.0, %v2300
    %v2302 = vrcp.pop %v2298
    %v2303 = vmul.f32 1.0, %v2302
    %v2304 = vrcp.pop %v2299
    %v2305 = vmul.f32 1.0, %v2304
    %v2306 = vld [vmem:[%s7] sm:$0x7]
    %2308 = vset.pattern.permute.xlu0 0
    %2309 = vperm.xlu0 %2308, %v2301
    %v2310 = vpop.permute.xlu0 %2309
    %2313 = vset.pattern.permute.xlu0 0
    %2314 = vperm.xlu0 %2313, %v2303
    %v2315 = vpop.permute.xlu0 %2314
    %2318 = vset.pattern.permute.xlu0 0
    %2319 = vperm.xlu0 %2318, %v2305
    %v2320 = vpop.permute.xlu0 %2319
    %v2322 = vmul.f32 %v2168, %v2310
    %v2323 = vmul.f32 %v2169, %v2310
    %v2324 = vmul.f32 %v2170, %v2315
    %v2325 = vmul.f32 %v2171, %v2315
    %v2326 = vmul.f32 %v2172, %v2320
    %v2327 = vmul.f32 %v2173, %v2320
    %v2328 = vld [vmem:[%s8] sm:$0x7]
    %2330 = vset.pattern.permute.xlu0 0
    %2331 = vperm.xlu0 %2330, %v2328
    %v2332 = vpop.permute.xlu0 %2331
    %vm2334 = vcmask 195584
    %v2336 = vsel %vm2334, %v2306, 0
    %2338 = vmatprep.subr.mxu0 %v2323
    %2339 = vmatpush1.msra.mxu0 %v2322
    %2340 = vmatprep.subr.mxu0 %v2325
    %2341 = vmatpush1.msra.mxu0 %v2324
    %2342 = vmatprep.subr.mxu0 %v2327
    %2343 = vmatpush1.msra.mxu0 %v2326
    %2344 = vmatprep.subr.mxu0 0.0
    %2345 = vmatpush1.msra.mxu0 0.0
    %2346 = vmatprep.subr.mxu0 0.0
    %2347 = vmatpush1.msra.mxu0 0.0
    %2348 = vmatprep.subr.mxu0 0.0
    %2349 = vmatpush1.msra.mxu0 0.0
    %2350 = vmatprep.subr.mxu0 0.0
    %2351 = vmatpush1.msra.mxu0 0.0
    %2352 = vmatprep.subr.mxu0 0.0
    %2353 = vmatpush1.msra.mxu0 0.0
    %2354 = vmatprep.subr.mxu0 0.0
    %2355 = vmatpush1.msra.mxu0 0.0
    %2356 = vmatprep.subr.mxu0 0.0
    %2357 = vmatpush1.msra.mxu0 0.0
    %2358 = vmatprep.subr.mxu0 0.0
    %2359 = vmatpush1.msra.mxu0 0.0
    %2360 = vmatprep.subr.mxu0 0.0
    %2361 = vmatpush1.msra.mxu0 0.0
    %2362 = vmatprep.subr.mxu0 0.0
    %2363 = vmatpush1.msra.mxu0 0.0
    %2364 = vmatprep.subr.mxu0 0.0
    %2365 = vmatpush1.msra.mxu0 0.0
    %2366 = vmatprep.subr.mxu0 0.0
    %2367 = vmatpush1.msra.mxu0 0.0
    %2368 = vmatprep.subr.mxu0 0.0
    %2369 = vmatpush1.msra.mxu0 0.0
    %2370 = vmatprep.subr.mxu0 0.0
    %2371 = vmatpush1.msra.mxu0 0.0
    %2372 = vmatprep.subr.mxu0 0.0
    %2373 = vmatpush1.msra.mxu0 0.0
    %2374 = vmatprep.subr.mxu0 0.0
    %2375 = vmatpush1.msra.mxu0 0.0
    %2376 = vmatprep.subr.mxu0 0.0
    %2377 = vmatpush1.msra.mxu0 0.0
    %2378 = vmatprep.subr.mxu0 0.0
    %2379 = vmatpush1.msra.mxu0 0.0
    %2380 = vmatprep.subr.mxu0 0.0
    %2381 = vmatpush1.msra.mxu0 0.0
    %2382 = vmatprep.subr.mxu0 0.0
    %2383 = vmatpush1.msra.mxu0 0.0
    %2384 = vmatprep.subr.mxu0 0.0
    %2385 = vmatpush1.msra.mxu0 0.0
    %2386 = vmatprep.subr.mxu0 0.0
    %2387 = vmatpush1.msra.mxu0 0.0
    %2388 = vmatprep.subr.mxu0 0.0
    %2389 = vmatpush1.msra.mxu0 0.0
    %2390 = vmatprep.subr.mxu0 0.0
    %2391 = vmatpush1.msra.mxu0 0.0
    %2392 = vmatprep.subr.mxu0 0.0
    %2393 = vmatpush1.msra.mxu0 0.0
    %2394 = vmatprep.subr.mxu0 0.0
    %2395 = vmatpush1.msra.mxu0 0.0
    %2396 = vmatprep.subr.mxu0 0.0
    %2397 = vmatpush1.msra.mxu0 0.0
    %2398 = vmatprep.subr.mxu0 0.0
    %2399 = vmatpush1.msra.mxu0 0.0
    %2400 = vmatprep.subr.mxu0 0.0
    %2401 = vmatpush1.msra.mxu0 0.0
    %2402 = vmatprep.mubr.f32.mxu0 0.0
    %2403 = vmatmul.mubr.f32.gmra.mrb[0].mxu0 %v2336
    %v2404 = vpop.f32.mrb[0].mxu0
    %v2405 = vadd.f32 %v2332, %v2404
    %v2406 = vpop.f32.mrb[0].mxu0
    %v2407 = vadd.f32 %v2332, %v2406
    %2408 = vdwg.mxu0
    %s2409 = scalar_lea.vmem %s8, 4
    %v2410 = vld [vmem:[%s2409] sm:$0x7]
    %s2411 = scalar_lea.vmem %s8, 8
    %v2412 = vld [vmem:[%s2411] sm:$0x7]
    %v2413 = vsel %vm289, %v2405, 0.0
    %v2414 = vsel %vm289, %v2407, 0.0
    %v2415 = vadd.f32 %v2413, %v2414
    %2416 = vadd.xlane.f32.xlu0 %v2415
    %v2417 = vpop.xlane.xlu0 %2416
    %v2418 = vmul.f32 %v2417, %v407
    %v2419 = vmul.f32 %v2405, %v2405
    %v2420 = vmul.f32 %v2407, %v2407
    %v2421 = vsel %vm289, %v2419, 0.0
    %v2422 = vsel %vm289, %v2420, 0.0
    %v2423 = vadd.f32 %v2421, %v2422
    %2424 = vadd.xlane.f32.xlu0 %v2423
    %v2425 = vpop.xlane.xlu0 %2424
    %v2426 = vmul.f32 %v2425, %v407
    %v2427 = vmul.f32 %v2418, %v2418
    %v2428 = vsub.f32 %v2426, %v2427
    %v2429 = vmax.f32 %v2428, 0.0
    %v2430 = vsub.f32 %v2405, %v2418
    %v2431 = vsub.f32 %v2407, %v2418
    %v2432 = vadd.f32 %v2429, 1e-05
    %v2433 = vrsqrt.pop %v2432
    %v2434 = vmul.f32 %v2430, %v2433
    %v2435 = vmul.f32 %v2431, %v2433
    %2437 = vset.pattern.permute.xlu0 0
    %2438 = vperm.xlu0 %2437, %v2410
    %v2439 = vpop.permute.xlu0 %2438
    %v2441 = vmul.f32 %v2434, %v2439
    %v2442 = vmul.f32 %v2435, %v2439
    %2444 = vset.pattern.permute.xlu0 0
    %2445 = vperm.xlu0 %2444, %v2412
    %v2446 = vpop.permute.xlu0 %2445
    %v2448 = vadd.f32 %v2441, %v2446
    %v2449 = vadd.f32 %v2442, %v2446
    %v2450 = vsel %vm289, %v2448, 0.0
    %v2451 = vrot.slane %v2450, 4
    %v2452 = vadd.f32 %v2450, %v2451
    %v2453 = vrot.slane %v2452, 2
    %v2454 = vadd.f32 %v2452, %v2453
    %v2455 = vrot.slane %v2454, 1
    %v2456 = vadd.f32 %v2454, %v2455
    %v2457 = vsel %vm289, %v2449, 0.0
    %v2458 = vrot.slane %v2457, 4
    %v2459 = vadd.f32 %v2457, %v2458
    %v2460 = vrot.slane %v2459, 2
    %v2461 = vadd.f32 %v2459, %v2460
    %v2462 = vrot.slane %v2461, 1
    %v2463 = vadd.f32 %v2461, %v2462
    %v2464 = vrcp.pop 3.0
    %v2465 = vmul.f32 %v2456, %v2464
    %v2466 = vmul.f32 %v2463, %v2464
    %v2467 = vsel %vm289, %v2448, -inf
    %v2468 = vrot.slane %v2467, 4
    %v2469 = vmax.f32 %v2467, %v2468
    %v2470 = vrot.slane %v2469, 2
    %v2471 = vmax.f32 %v2469, %v2470
    %v2472 = vrot.slane %v2471, 1
    %v2473 = vmax.f32 %v2471, %v2472
    %v2474 = vsel %vm289, %v2449, -inf
    %v2475 = vrot.slane %v2474, 4
    %v2476 = vmax.f32 %v2474, %v2475
    %v2477 = vrot.slane %v2476, 2
    %v2478 = vmax.f32 %v2476, %v2477
    %v2479 = vrot.slane %v2478, 1
    %v2480 = vmax.f32 %v2478, %v2479
    %v2481 = vsel %vm295, %v2465, %v2473
    %v2482 = vsel %vm295, %v2466, %v2480
    %2483 = vrot.lane.b32.xlu0 %v2481, 17
    %v2484 = vpop.permute.xlu0 %2483
    %2485 = vrot.lane.b32.xlu0 %v2482, 17
    %v2486 = vpop.permute.xlu0 %2485
    %v2487 = vsel %vm755, %v2484, %v2486
    %v2488 = vsel %vm755, %v2486, %v2484
    %v2489 = vmul.f32 %v2488, %v762
    %v2490 = vmul.f32 %v2487, %v766
    %2491 = vrot.lane.b32.xlu0 %v2481, 16
    %v2492 = vpop.permute.xlu0 %2491
    %2493 = vrot.lane.b32.xlu0 %v2482, 16
    %v2494 = vpop.permute.xlu0 %2493
    %v2495 = vsel %vm775, %v2492, %v2494
    %v2496 = vsel %vm775, %v2494, %v2492
    %v2497 = vmul.f32 %v2496, %v782
    %v2498 = vmul.f32 %v2495, %v786
    %2499 = vrot.lane.b32.xlu0 %v2481, 15
    %v2500 = vpop.permute.xlu0 %2499
    %2501 = vrot.lane.b32.xlu0 %v2482, 15
    %v2502 = vpop.permute.xlu0 %2501
    %v2503 = vsel %vm795, %v2500, %v2502
    %v2504 = vsel %vm795, %v2502, %v2500
    %v2505 = vmul.f32 %v2504, %v802
    %v2506 = vmul.f32 %v2503, %v806
    %2507 = vrot.lane.b32.xlu0 %v2481, 1
    %v2508 = vpop.permute.xlu0 %2507
    %2509 = vrot.lane.b32.xlu0 %v2482, 1
    %v2510 = vpop.permute.xlu0 %2509
    %v2511 = vsel %vm815, %v2508, %v2510
    %v2512 = vsel %vm815, %v2510, %v2508
    %v2513 = vmul.f32 %v2512, %v822
    %v2514 = vmul.f32 %v2511, %v826
    %2515 = vrot.lane.b32.xlu0 %v2481, 127
    %v2516 = vpop.permute.xlu0 %2515
    %2517 = vrot.lane.b32.xlu0 %v2482, 127
    %v2518 = vpop.permute.xlu0 %2517
    %v2519 = vsel %vm835, %v2516, %v2518
    %v2520 = vsel %vm835, %v2518, %v2516
    %v2521 = vmul.f32 %v2519, %v842
    %v2522 = vmul.f32 %v2520, %v846
    %2523 = vrot.lane.b32.xlu0 %v2481, 113
    %v2524 = vpop.permute.xlu0 %2523
    %2525 = vrot.lane.b32.xlu0 %v2482, 113
    %v2526 = vpop.permute.xlu0 %2525
    %v2527 = vsel %vm855, %v2524, %v2526
    %v2528 = vsel %vm855, %v2526, %v2524
    %v2529 = vmul.f32 %v2527, %v862
    %v2530 = vmul.f32 %v2528, %v866
    %2531 = vrot.lane.b32.xlu0 %v2481, 112
    %v2532 = vpop.permute.xlu0 %2531
    %2533 = vrot.lane.b32.xlu0 %v2482, 112
    %v2534 = vpop.permute.xlu0 %2533
    %v2535 = vsel %vm875, %v2532, %v2534
    %v2536 = vsel %vm875, %v2534, %v2532
    %v2537 = vmul.f32 %v2535, %v882
    %v2538 = vmul.f32 %v2536, %v886
    %2539 = vrot.lane.b32.xlu0 %v2481, 111
    %v2540 = vpop.permute.xlu0 %2539
    %2541 = vrot.lane.b32.xlu0 %v2482, 111
    %v2542 = vpop.permute.xlu0 %2541
    %v2543 = vsel %vm895, %v2540, %v2542
    %v2544 = vsel %vm895, %v2542, %v2540
    %v2545 = vmul.f32 %v2543, %v902
    %v2546 = vmul.f32 %v2544, %v906
    %v2549 = vrot.slane %v2497, 6
    %v2550 = vrot.slane %v2498, 6
    %v2555 = vrot.slane %v2505, 4
    %v2556 = vrot.slane %v2506, 4
    %v2561 = vrot.slane %v2513, 2
    %v2562 = vrot.slane %v2514, 2
    %v2567 = vrot.slane %v2521, 6
    %v2568 = vrot.slane %v2522, 6
    %v2573 = vrot.slane %v2529, 4
    %v2574 = vrot.slane %v2530, 4
    %v2579 = vrot.slane %v2537, 2
    %v2580 = vrot.slane %v2538, 2
    %v2583 = vsel %vm304, %v2489, %v2549
    %v2584 = vsel %vm304, %v2490, %v2550
    %v2585 = vsel %vm298, %v2583, %v2555
    %v2586 = vsel %vm298, %v2584, %v2556
    %v2587 = vsel %vm292, %v2585, %v2561
    %v2588 = vsel %vm292, %v2586, %v2562
    %v2589 = vsel %vm304, %v2481, %v2567
    %v2590 = vsel %vm304, %v2482, %v2568
    %v2591 = vsel %vm298, %v2589, %v2573
    %v2592 = vsel %vm298, %v2590, %v2574
    %v2593 = vsel %vm292, %v2591, %v2579
    %v2594 = vsel %vm292, %v2592, %v2580
    %v2595 = vld [vmem:[%s10 + $0x3] sm:$0x1]
    %s2596 = sld [smem:[#allocation3 + $0x3]]
    %v2597 = vstv %s2596
    %v2599 = vsel %vm962, %v2595, 0
    %v2602 = vsel %vm304, %v2545, 0
    %v2605 = vsel %vm304, %v2546, 0
    %2607 = vmatprep.subr.mxu0 %v2588
    %2608 = vmatpush1.msra.mxu0 %v2587
    %2609 = vmatprep.subr.mxu0 %v2594
    %2610 = vmatpush1.msra.mxu0 %v2593
    %2611 = vmatprep.subr.mxu0 %v2605
    %2612 = vmatpush1.msra.mxu0 %v2602
    %2613 = vmatprep.subr.mxu0 0.0
    %2614 = vmatpush1.msra.mxu0 0.0
    %2615 = vmatprep.subr.mxu0 0.0
    %2616 = vmatpush1.msra.mxu0 0.0
    %2617 = vmatprep.subr.mxu0 0.0
    %2618 = vmatpush1.msra.mxu0 0.0
    %2619 = vmatprep.subr.mxu0 0.0
    %2620 = vmatpush1.msra.mxu0 0.0
    %2621 = vmatprep.subr.mxu0 0.0
    %2622 = vmatpush1.msra.mxu0 0.0
    %2623 = vmatprep.subr.mxu0 0.0
    %2624 = vmatpush1.msra.mxu0 0.0
    %2625 = vmatprep.subr.mxu0 0.0
    %2626 = vmatpush1.msra.mxu0 0.0
    %2627 = vmatprep.subr.mxu0 0.0
    %2628 = vmatpush1.msra.mxu0 0.0
    %2629 = vmatprep.subr.mxu0 0.0
    %2630 = vmatpush1.msra.mxu0 0.0
    %2631 = vmatprep.subr.mxu0 0.0
    %2632 = vmatpush1.msra.mxu0 0.0
    %2633 = vmatprep.subr.mxu0 0.0
    %2634 = vmatpush1.msra.mxu0 0.0
    %2635 = vmatprep.subr.mxu0 0.0
    %2636 = vmatpush1.msra.mxu0 0.0
    %2637 = vmatprep.subr.mxu0 0.0
    %2638 = vmatpush1.msra.mxu0 0.0
    %2639 = vmatprep.subr.mxu0 0.0
    %2640 = vmatpush1.msra.mxu0 0.0
    %2641 = vmatprep.subr.mxu0 0.0
    %2642 = vmatpush1.msra.mxu0 0.0
    %2643 = vmatprep.subr.mxu0 0.0
    %2644 = vmatpush1.msra.mxu0 0.0
    %2645 = vmatprep.subr.mxu0 0.0
    %2646 = vmatpush1.msra.mxu0 0.0
    %2647 = vmatprep.subr.mxu0 0.0
    %2648 = vmatpush1.msra.mxu0 0.0
    %2649 = vmatprep.subr.mxu0 0.0
    %2650 = vmatpush1.msra.mxu0 0.0
    %2651 = vmatprep.subr.mxu0 0.0
    %2652 = vmatpush1.msra.mxu0 0.0
    %2653 = vmatprep.subr.mxu0 0.0
    %2654 = vmatpush1.msra.mxu0 0.0
    %2655 = vmatprep.subr.mxu0 0.0
    %2656 = vmatpush1.msra.mxu0 0.0
    %2657 = vmatprep.subr.mxu0 0.0
    %2658 = vmatpush1.msra.mxu0 0.0
    %2659 = vmatprep.subr.mxu0 0.0
    %2660 = vmatpush1.msra.mxu0 0.0
    %2661 = vmatprep.subr.mxu0 0.0
    %2662 = vmatpush1.msra.mxu0 0.0
    %2663 = vmatprep.subr.mxu0 0.0
    %2664 = vmatpush1.msra.mxu0 0.0
    %2665 = vmatprep.subr.mxu0 0.0
    %2666 = vmatpush1.msra.mxu0 0.0
    %2667 = vmatprep.subr.mxu0 0.0
    %2668 = vmatpush1.msra.mxu0 0.0
    %2669 = vmatprep.subr.mxu0 0.0
    %2670 = vmatpush1.msra.mxu0 0.0
    %2671 = vmatprep.mubr.f32.mxu0 0.0
    %2672 = vmatmul.mubr.f32.gmra.mrb[0].mxu0 %v2599
    %v2673 = vpop.f32.mrb[0].mxu0
    %v2674 = vadd.f32 %v2597, %v2673
    %v2675 = vpop.f32.mrb[0].mxu0
    %v2676 = vadd.f32 %v2597, %v2675
    %2677 = vdwg.mxu0
    %v2678 = vxor.u32 %v2674, 2147483648
    %v2679 = vxor.u32 %v2676, 2147483648
    %v2680 = vmul.f32 %v2678, 1.442695
    %v2681 = vpow.pop %v2680
    %v2682 = vmul.f32 %v2679, 1.442695
    %v2683 = vpow.pop %v2682
    %v2684 = vadd.f32 %v2681, 1.0
    %v2685 = vadd.f32 %v2683, 1.0
    %v2686 = vrcp.pop %v2684
    %v2687 = vmul.f32 1.0, %v2686
    %v2688 = vrcp.pop %v2685
    %v2689 = vmul.f32 1.0, %v2688
    %v2690 = vlaneseq
    %v2691 = vshrl.u32 %v2690, 7
    %v2692 = vsub.s32 0, %v2691
    %v2693 = vrot.slane %v2687, %v2692
    %v2694 = vlaneseq
    %v2695 = vshrl.u32 %v2694, 7
    %v2696 = vsub.s32 0, %v2695
    %v2697 = vrot.slane %v2689, %v2696
    %v2698 = vmul.f32 %v2448, %v2693
    %v2699 = vmul.f32 %v2449, %v2697
    %v2700 = vmax.f32 %v2698, 0.0
    %v2701 = vmax.f32 %v2699, 0.0
    %v2702 = vmin.f32 %v2700, 1.0
    %v2703 = vmin.f32 %v2701, 1.0
    %s2704 = scalar_lea.vmem %s9, 24
    %v2705 = vld [vmem:[%s2704] sm:$0xff]
    %v2706 = vld [vmem:[%s2704 + $0x8] sm:$0xff]
    %v2707 = vld [vmem:[%s2704 + $0x10] sm:$0xff]
    %v2709 = vsel %vm2198, %v2705, 0
    %v2712 = vsel %vm2198, %v2706, 0
    %v2715 = vsel %vm2198, %v2707, 0
    %2717 = vmatprep.subr.mxu0 0.0
    %2718 = vmatpush1.msra.mxu0 %v2176
    %2719 = vmatprep.subr.mxu0 0.0
    %2720 = vmatpush1.msra.mxu0 %v2179
    %2721 = vmatprep.subr.mxu0 0.0
    %2722 = vmatpush1.msra.mxu0 %v2182
    %2723 = vmatprep.subr.mxu0 0.0
    %2724 = vmatpush1.msra.mxu0 %v2192
    %2725 = vmatprep.subr.mxu0 0.0
    %2726 = vmatpush1.msra.mxu0 %v2193
    %2727 = vmatprep.subr.mxu0 0.0
    %2728 = vmatpush1.msra.mxu0 %v2194
    %2729 = vmatprep.subr.mxu0 0.0
    %2730 = vmatpush1.msra.mxu0 0.0
    %2731 = vmatprep.subr.mxu0 0.0
    %2732 = vmatpush1.msra.mxu0 0.0
    %2733 = vmatprep.subr.mxu0 0.0
    %2734 = vmatpush1.msra.mxu0 0.0
    %2735 = vmatprep.subr.mxu0 0.0
    %2736 = vmatpush1.msra.mxu0 0.0
    %2737 = vmatprep.subr.mxu0 0.0
    %2738 = vmatpush1.msra.mxu0 0.0
    %2739 = vmatprep.subr.mxu0 0.0
    %2740 = vmatpush1.msra.mxu0 0.0
    %2741 = vmatprep.subr.mxu0 0.0
    %2742 = vmatpush1.msra.mxu0 0.0
    %2743 = vmatprep.subr.mxu0 0.0
    %2744 = vmatpush1.msra.mxu0 0.0
    %2745 = vmatprep.subr.mxu0 0.0
    %2746 = vmatpush1.msra.mxu0 0.0
    %2747 = vmatprep.subr.mxu0 0.0
    %2748 = vmatpush1.msra.mxu0 0.0
    %2749 = vmatprep.subr.mxu0 0.0
    %2750 = vmatpush1.msra.mxu0 0.0
    %2751 = vmatprep.subr.mxu0 0.0
    %2752 = vmatpush1.msra.mxu0 0.0
    %2753 = vmatprep.subr.mxu0 0.0
    %2754 = vmatpush1.msra.mxu0 0.0
    %2755 = vmatprep.subr.mxu0 0.0
    %2756 = vmatpush1.msra.mxu0 0.0
    %2757 = vmatprep.subr.mxu0 0.0
    %2758 = vmatpush1.msra.mxu0 0.0
    %2759 = vmatprep.subr.mxu0 0.0
    %2760 = vmatpush1.msra.mxu0 0.0
    %2761 = vmatprep.subr.mxu0 0.0
    %2762 = vmatpush1.msra.mxu0 0.0
    %2763 = vmatprep.subr.mxu0 0.0
    %2764 = vmatpush1.msra.mxu0 0.0
    %2765 = vmatprep.subr.mxu0 0.0
    %2766 = vmatpush1.msra.mxu0 0.0
    %2767 = vmatprep.subr.mxu0 0.0
    %2768 = vmatpush1.msra.mxu0 0.0
    %2769 = vmatprep.subr.mxu0 0.0
    %2770 = vmatpush1.msra.mxu0 0.0
    %2771 = vmatprep.subr.mxu0 0.0
    %2772 = vmatpush1.msra.mxu0 0.0
    %2773 = vmatprep.subr.mxu0 0.0
    %2774 = vmatpush1.msra.mxu0 0.0
    %2775 = vmatprep.subr.mxu0 0.0
    %2776 = vmatpush1.msra.mxu0 0.0
    %2777 = vmatprep.subr.mxu0 0.0
    %2778 = vmatpush1.msra.mxu0 0.0
    %2779 = vmatprep.subr.mxu0 0.0
    %2780 = vmatpush1.msra.mxu0 0.0
    %2781 = vmatprep.mubr.f32.mxu0 0.0
    %2782 = vmatmul.mubr.f32.gmra.mrb[0].mxu0 %v2709
    %v2783 = vpop.f32.mrb[0].mxu0
    %v2784 = vadd.f32 0.0, %v2783
    %v2785 = vpop.f32.mrb[0].mxu0
    %2786 = vmatprep.mubr.f32.mxu0 0.0
    %2787 = vmatmul.mubr.f32.gmra.mrb[0].mxu0 %v2712
    %v2788 = vpop.f32.mrb[0].mxu0
    %v2789 = vadd.f32 0.0, %v2788
    %v2790 = vpop.f32.mrb[0].mxu0
    %2791 = vmatprep.mubr.f32.mxu0 0.0
    %2792 = vmatmul.mubr.f32.gmra.mrb[0].mxu0 %v2715
    %v2793 = vpop.f32.mrb[0].mxu0
    %v2794 = vadd.f32 0.0, %v2793
    %v2795 = vpop.f32.mrb[0].mxu0
    %2796 = vdwg.mxu0
    %v2797 = vxor.u32 %v2784, 2147483648
    %v2798 = vxor.u32 %v2789, 2147483648
    %v2799 = vxor.u32 %v2794, 2147483648
    %v2800 = vmul.f32 %v2797, 1.442695
    %v2801 = vpow.pop %v2800
    %v2802 = vmul.f32 %v2798, 1.442695
    %v2803 = vpow.pop %v2802
    %v2804 = vmul.f32 %v2799, 1.442695
    %v2805 = vpow.pop %v2804
    %v2806 = vadd.f32 %v2801, 1.0
    %v2807 = vadd.f32 %v2803, 1.0
    %v2808 = vadd.f32 %v2805, 1.0
    %v2809 = vrcp.pop %v2806
    %v2810 = vmul.f32 1.0, %v2809
    %v2811 = vrcp.pop %v2807
    %v2812 = vmul.f32 1.0, %v2811
    %v2813 = vrcp.pop %v2808
    %v2814 = vmul.f32 1.0, %v2813
    %s2815 = scalar_lea.vmem %s7, 4
    %v2816 = vld [vmem:[%s2815] sm:$0x7]
    %2818 = vset.pattern.permute.xlu0 0
    %2819 = vperm.xlu0 %2818, %v2810
    %v2820 = vpop.permute.xlu0 %2819
    %2823 = vset.pattern.permute.xlu0 0
    %2824 = vperm.xlu0 %2823, %v2812
    %v2825 = vpop.permute.xlu0 %2824
    %2828 = vset.pattern.permute.xlu0 0
    %2829 = vperm.xlu0 %2828, %v2814
    %v2830 = vpop.permute.xlu0 %2829
    %v2832 = vmul.f32 %v2168, %v2820
    %v2833 = vmul.f32 %v2169, %v2820
    %v2834 = vmul.f32 %v2170, %v2825
    %v2835 = vmul.f32 %v2171, %v2825
    %v2836 = vmul.f32 %v2172, %v2830
    %v2837 = vmul.f32 %v2173, %v2830
    %s2838 = scalar_lea.vmem %s8, 12
    %v2839 = vld [vmem:[%s2838] sm:$0x7]
    %2841 = vset.pattern.permute.xlu0 0
    %2842 = vperm.xlu0 %2841, %v2839
    %v2843 = vpop.permute.xlu0 %2842
    %v2846 = vsel %vm2334, %v2816, 0
    %2848 = vmatprep.subr.mxu0 %v2833
    %2849 = vmatpush1.msra.mxu0 %v2832
    %2850 = vmatprep.subr.mxu0 %v2835
    %2851 = vmatpush1.msra.mxu0 %v2834
    %2852 = vmatprep.subr.mxu0 %v2837
    %2853 = vmatpush1.msra.mxu0 %v2836
    %2854 = vmatprep.subr.mxu0 0.0
    %2855 = vmatpush1.msra.mxu0 0.0
    %2856 = vmatprep.subr.mxu0 0.0
    %2857 = vmatpush1.msra.mxu0 0.0
    %2858 = vmatprep.subr.mxu0 0.0
    %2859 = vmatpush1.msra.mxu0 0.0
    %2860 = vmatprep.subr.mxu0 0.0
    %2861 = vmatpush1.msra.mxu0 0.0
    %2862 = vmatprep.subr.mxu0 0.0
    %2863 = vmatpush1.msra.mxu0 0.0
    %2864 = vmatprep.subr.mxu0 0.0
    %2865 = vmatpush1.msra.mxu0 0.0
    %2866 = vmatprep.subr.mxu0 0.0
    %2867 = vmatpush1.msra.mxu0 0.0
    %2868 = vmatprep.subr.mxu0 0.0
    %2869 = vmatpush1.msra.mxu0 0.0
    %2870 = vmatprep.subr.mxu0 0.0
    %2871 = vmatpush1.msra.mxu0 0.0
    %2872 = vmatprep.subr.mxu0 0.0
    %2873 = vmatpush1.msra.mxu0 0.0
    %2874 = vmatprep.subr.mxu0 0.0
    %2875 = vmatpush1.msra.mxu0 0.0
    %2876 = vmatprep.subr.mxu0 0.0
    %2877 = vmatpush1.msra.mxu0 0.0
    %2878 = vmatprep.subr.mxu0 0.0
    %2879 = vmatpush1.msra.mxu0 0.0
    %2880 = vmatprep.subr.mxu0 0.0
    %2881 = vmatpush1.msra.mxu0 0.0
    %2882 = vmatprep.subr.mxu0 0.0
    %2883 = vmatpush1.msra.mxu0 0.0
    %2884 = vmatprep.subr.mxu0 0.0
    %2885 = vmatpush1.msra.mxu0 0.0
    %2886 = vmatprep.subr.mxu0 0.0
    %2887 = vmatpush1.msra.mxu0 0.0
    %2888 = vmatprep.subr.mxu0 0.0
    %2889 = vmatpush1.msra.mxu0 0.0
    %2890 = vmatprep.subr.mxu0 0.0
    %2891 = vmatpush1.msra.mxu0 0.0
    %2892 = vmatprep.subr.mxu0 0.0
    %2893 = vmatpush1.msra.mxu0 0.0
    %2894 = vmatprep.subr.mxu0 0.0
    %2895 = vmatpush1.msra.mxu0 0.0
    %2896 = vmatprep.subr.mxu0 0.0
    %2897 = vmatpush1.msra.mxu0 0.0
    %2898 = vmatprep.subr.mxu0 0.0
    %2899 = vmatpush1.msra.mxu0 0.0
    %2900 = vmatprep.subr.mxu0 0.0
    %2901 = vmatpush1.msra.mxu0 0.0
    %2902 = vmatprep.subr.mxu0 0.0
    %2903 = vmatpush1.msra.mxu0 0.0
    %2904 = vmatprep.subr.mxu0 0.0
    %2905 = vmatpush1.msra.mxu0 0.0
    %2906 = vmatprep.subr.mxu0 0.0
    %2907 = vmatpush1.msra.mxu0 0.0
    %2908 = vmatprep.subr.mxu0 0.0
    %2909 = vmatpush1.msra.mxu0 0.0
    %2910 = vmatprep.subr.mxu0 0.0
    %2911 = vmatpush1.msra.mxu0 0.0
    %2912 = vmatprep.mubr.f32.mxu0 0.0
    %2913 = vmatmul.mubr.f32.gmra.mrb[0].mxu0 %v2846
    %v2914 = vpop.f32.mrb[0].mxu0
    %v2915 = vadd.f32 %v2843, %v2914
    %v2916 = vpop.f32.mrb[0].mxu0
    %v2917 = vadd.f32 %v2843, %v2916
    %2918 = vdwg.mxu0
    %s2919 = scalar_lea.vmem %s8, 16
    %v2920 = vld [vmem:[%s2919] sm:$0x7]
    %s2921 = scalar_lea.vmem %s8, 20
    %v2922 = vld [vmem:[%s2921] sm:$0x7]
    %v2923 = vsel %vm289, %v2915, 0.0
    %v2924 = vsel %vm289, %v2917, 0.0
    %v2925 = vadd.f32 %v2923, %v2924
    %2926 = vadd.xlane.f32.xlu0 %v2925
    %v2927 = vpop.xlane.xlu0 %2926
    %v2928 = vmul.f32 %v2927, %v407
    %v2929 = vmul.f32 %v2915, %v2915
    %v2930 = vmul.f32 %v2917, %v2917
    %v2931 = vsel %vm289, %v2929, 0.0
    %v2932 = vsel %vm289, %v2930, 0.0
    %v2933 = vadd.f32 %v2931, %v2932
    %2934 = vadd.xlane.f32.xlu0 %v2933
    %v2935 = vpop.xlane.xlu0 %2934
    %v2936 = vmul.f32 %v2935, %v407
    %v2937 = vmul.f32 %v2928, %v2928
    %v2938 = vsub.f32 %v2936, %v2937
    %v2939 = vmax.f32 %v2938, 0.0
    %v2940 = vsub.f32 %v2915, %v2928
    %v2941 = vsub.f32 %v2917, %v2928
    %v2942 = vadd.f32 %v2939, 1e-05
    %v2943 = vrsqrt.pop %v2942
    %v2944 = vmul.f32 %v2940, %v2943
    %v2945 = vmul.f32 %v2941, %v2943
    %2947 = vset.pattern.permute.xlu0 0
    %2948 = vperm.xlu0 %2947, %v2920
    %v2949 = vpop.permute.xlu0 %2948
    %v2951 = vmul.f32 %v2944, %v2949
    %v2952 = vmul.f32 %v2945, %v2949
    %2954 = vset.pattern.permute.xlu0 0
    %2955 = vperm.xlu0 %2954, %v2922
    %v2956 = vpop.permute.xlu0 %2955
    %v2958 = vadd.f32 %v2951, %v2956
    %v2959 = vadd.f32 %v2952, %v2956
    %v2960 = vsel %vm289, %v2958, 0.0
    %v2961 = vrot.slane %v2960, 4
    %v2962 = vadd.f32 %v2960, %v2961
    %v2963 = vrot.slane %v2962, 2
    %v2964 = vadd.f32 %v2962, %v2963
    %v2965 = vrot.slane %v2964, 1
    %v2966 = vadd.f32 %v2964, %v2965
    %v2967 = vsel %vm289, %v2959, 0.0
    %v2968 = vrot.slane %v2967, 4
    %v2969 = vadd.f32 %v2967, %v2968
    %v2970 = vrot.slane %v2969, 2
    %v2971 = vadd.f32 %v2969, %v2970
    %v2972 = vrot.slane %v2971, 1
    %v2973 = vadd.f32 %v2971, %v2972
    %v2974 = vmul.f32 %v2966, %v2464
    %v2975 = vmul.f32 %v2973, %v2464
    %v2976 = vsel %vm289, %v2958, -inf
    %v2977 = vrot.slane %v2976, 4
    %v2978 = vmax.f32 %v2976, %v2977
    %v2979 = vrot.slane %v2978, 2
    %v2980 = vmax.f32 %v2978, %v2979
    %v2981 = vrot.slane %v2980, 1
    %v2982 = vmax.f32 %v2980, %v2981
    %v2983 = vsel %vm289, %v2959, -inf
    %v2984 = vrot.slane %v2983, 4
    %v2985 = vmax.f32 %v2983, %v2984
    %v2986 = vrot.slane %v2985, 2
    %v2987 = vmax.f32 %v2985, %v2986
    %v2988 = vrot.slane %v2987, 1
    %v2989 = vmax.f32 %v2987, %v2988
    %v2990 = vsel %vm295, %v2974, %v2982
    %v2991 = vsel %vm295, %v2975, %v2989
    %2992 = vrot.lane.b32.xlu0 %v2990, 17
    %v2993 = vpop.permute.xlu0 %2992
    %2994 = vrot.lane.b32.xlu0 %v2991, 17
    %v2995 = vpop.permute.xlu0 %2994
    %v2996 = vsel %vm755, %v2993, %v2995
    %v2997 = vsel %vm755, %v2995, %v2993
    %v2998 = vmul.f32 %v2997, %v762
    %v2999 = vmul.f32 %v2996, %v766
    %3000 = vrot.lane.b32.xlu0 %v2990, 16
    %v3001 = vpop.permute.xlu0 %3000
    %3002 = vrot.lane.b32.xlu0 %v2991, 16
    %v3003 = vpop.permute.xlu0 %3002
    %v3004 = vsel %vm775, %v3001, %v3003
    %v3005 = vsel %vm775, %v3003, %v3001
    %v3006 = vmul.f32 %v3005, %v782
    %v3007 = vmul.f32 %v3004, %v786
    %3008 = vrot.lane.b32.xlu0 %v2990, 15
    %v3009 = vpop.permute.xlu0 %3008
    %3010 = vrot.lane.b32.xlu0 %v2991, 15
    %v3011 = vpop.permute.xlu0 %3010
    %v3012 = vsel %vm795, %v3009, %v3011
    %v3013 = vsel %vm795, %v3011, %v3009
    %v3014 = vmul.f32 %v3013, %v802
    %v3015 = vmul.f32 %v3012, %v806
    %3016 = vrot.lane.b32.xlu0 %v2990, 1
    %v3017 = vpop.permute.xlu0 %3016
    %3018 = vrot.lane.b32.xlu0 %v2991, 1
    %v3019 = vpop.permute.xlu0 %3018
    %v3020 = vsel %vm815, %v3017, %v3019
    %v3021 = vsel %vm815, %v3019, %v3017
    %v3022 = vmul.f32 %v3021, %v822
    %v3023 = vmul.f32 %v3020, %v826
    %3024 = vrot.lane.b32.xlu0 %v2990, 127
    %v3025 = vpop.permute.xlu0 %3024
    %3026 = vrot.lane.b32.xlu0 %v2991, 127
    %v3027 = vpop.permute.xlu0 %3026
    %v3028 = vsel %vm835, %v3025, %v3027
    %v3029 = vsel %vm835, %v3027, %v3025
    %v3030 = vmul.f32 %v3028, %v842
    %v3031 = vmul.f32 %v3029, %v846
    %3032 = vrot.lane.b32.xlu0 %v2990, 113
    %v3033 = vpop.permute.xlu0 %3032
    %3034 = vrot.lane.b32.xlu0 %v2991, 113
    %v3035 = vpop.permute.xlu0 %3034
    %v3036 = vsel %vm855, %v3033, %v3035
    %v3037 = vsel %vm855, %v3035, %v3033
    %v3038 = vmul.f32 %v3036, %v862
    %v3039 = vmul.f32 %v3037, %v866
    %3040 = vrot.lane.b32.xlu0 %v2990, 112
    %v3041 = vpop.permute.xlu0 %3040
    %3042 = vrot.lane.b32.xlu0 %v2991, 112
    %v3043 = vpop.permute.xlu0 %3042
    %v3044 = vsel %vm875, %v3041, %v3043
    %v3045 = vsel %vm875, %v3043, %v3041
    %v3046 = vmul.f32 %v3044, %v882
    %v3047 = vmul.f32 %v3045, %v886
    %3048 = vrot.lane.b32.xlu0 %v2990, 111
    %v3049 = vpop.permute.xlu0 %3048
    %3050 = vrot.lane.b32.xlu0 %v2991, 111
    %v3051 = vpop.permute.xlu0 %3050
    %v3052 = vsel %vm895, %v3049, %v3051
    %v3053 = vsel %vm895, %v3051, %v3049
    %v3054 = vmul.f32 %v3052, %v902
    %v3055 = vmul.f32 %v3053, %v906
    %v3058 = vrot.slane %v3006, 6
    %v3059 = vrot.slane %v3007, 6
    %v3064 = vrot.slane %v3014, 4
    %v3065 = vrot.slane %v3015, 4
    %v3070 = vrot.slane %v3022, 2
    %v3071 = vrot.slane %v3023, 2
    %v3076 = vrot.slane %v3030, 6
    %v3077 = vrot.slane %v3031, 6
    %v3082 = vrot.slane %v3038, 4
    %v3083 = vrot.slane %v3039, 4
    %v3088 = vrot.slane %v3046, 2
    %v3089 = vrot.slane %v3047, 2
    %v3092 = vsel %vm304, %v2998, %v3058
    %v3093 = vsel %vm304, %v2999, %v3059
    %v3094 = vsel %vm298, %v3092, %v3064
    %v3095 = vsel %vm298, %v3093, %v3065
    %v3096 = vsel %vm292, %v3094, %v3070
    %v3097 = vsel %vm292, %v3095, %v3071
    %v3098 = vsel %vm304, %v2990, %v3076
    %v3099 = vsel %vm304, %v2991, %v3077
    %v3100 = vsel %vm298, %v3098, %v3082
    %v3101 = vsel %vm298, %v3099, %v3083
    %v3102 = vsel %vm292, %v3100, %v3088
    %v3103 = vsel %vm292, %v3101, %v3089
    %v3104 = vld [vmem:[%s10 + $0x4] sm:$0x1]
    %s3105 = sld [smem:[#allocation3 + $0x4]]
    %v3106 = vstv %s3105
    %v3108 = vsel %vm962, %v3104, 0
    %v3111 = vsel %vm304, %v3054, 0
    %v3114 = vsel %vm304, %v3055, 0
    %3116 = vmatprep.subr.mxu0 %v3097
    %3117 = vmatpush1.msra.mxu0 %v3096
    %3118 = vmatprep.subr.mxu0 %v3103
    %3119 = vmatpush1.msra.mxu0 %v3102
    %3120 = vmatprep.subr.mxu0 %v3114
    %3121 = vmatpush1.msra.mxu0 %v3111
    %3122 = vmatprep.subr.mxu0 0.0
    %3123 = vmatpush1.msra.mxu0 0.0
    %3124 = vmatprep.subr.mxu0 0.0
    %3125 = vmatpush1.msra.mxu0 0.0
    %3126 = vmatprep.subr.mxu0 0.0
    %3127 = vmatpush1.msra.mxu0 0.0
    %3128 = vmatprep.subr.mxu0 0.0
    %3129 = vmatpush1.msra.mxu0 0.0
    %3130 = vmatprep.subr.mxu0 0.0
    %3131 = vmatpush1.msra.mxu0 0.0
    %3132 = vmatprep.subr.mxu0 0.0
    %3133 = vmatpush1.msra.mxu0 0.0
    %3134 = vmatprep.subr.mxu0 0.0
    %3135 = vmatpush1.msra.mxu0 0.0
    %3136 = vmatprep.subr.mxu0 0.0
    %3137 = vmatpush1.msra.mxu0 0.0
    %3138 = vmatprep.subr.mxu0 0.0
    %3139 = vmatpush1.msra.mxu0 0.0
    %3140 = vmatprep.subr.mxu0 0.0
    %3141 = vmatpush1.msra.mxu0 0.0
    %3142 = vmatprep.subr.mxu0 0.0
    %3143 = vmatpush1.msra.mxu0 0.0
    %3144 = vmatprep.subr.mxu0 0.0
    %3145 = vmatpush1.msra.mxu0 0.0
    %3146 = vmatprep.subr.mxu0 0.0
    %3147 = vmatpush1.msra.mxu0 0.0
    %3148 = vmatprep.subr.mxu0 0.0
    %3149 = vmatpush1.msra.mxu0 0.0
    %3150 = vmatprep.subr.mxu0 0.0
    %3151 = vmatpush1.msra.mxu0 0.0
    %3152 = vmatprep.subr.mxu0 0.0
    %3153 = vmatpush1.msra.mxu0 0.0
    %3154 = vmatprep.subr.mxu0 0.0
    %3155 = vmatpush1.msra.mxu0 0.0
    %3156 = vmatprep.subr.mxu0 0.0
    %3157 = vmatpush1.msra.mxu0 0.0
    %3158 = vmatprep.subr.mxu0 0.0
    %3159 = vmatpush1.msra.mxu0 0.0
    %3160 = vmatprep.subr.mxu0 0.0
    %3161 = vmatpush1.msra.mxu0 0.0
    %3162 = vmatprep.subr.mxu0 0.0
    %3163 = vmatpush1.msra.mxu0 0.0
    %3164 = vmatprep.subr.mxu0 0.0
    %3165 = vmatpush1.msra.mxu0 0.0
    %3166 = vmatprep.subr.mxu0 0.0
    %3167 = vmatpush1.msra.mxu0 0.0
    %3168 = vmatprep.subr.mxu0 0.0
    %3169 = vmatpush1.msra.mxu0 0.0
    %3170 = vmatprep.subr.mxu0 0.0
    %3171 = vmatpush1.msra.mxu0 0.0
    %3172 = vmatprep.subr.mxu0 0.0
    %3173 = vmatpush1.msra.mxu0 0.0
    %3174 = vmatprep.subr.mxu0 0.0
    %3175 = vmatpush1.msra.mxu0 0.0
    %3176 = vmatprep.subr.mxu0 0.0
    %3177 = vmatpush1.msra.mxu0 0.0
    %3178 = vmatprep.subr.mxu0 0.0
    %3179 = vmatpush1.msra.mxu0 0.0
    %3180 = vmatprep.mubr.f32.mxu0 0.0
    %3181 = vmatmul.mubr.f32.gmra.mrb[0].mxu0 %v3108
    %v3182 = vpop.f32.mrb[0].mxu0
    %v3183 = vadd.f32 %v3106, %v3182
    %v3184 = vpop.f32.mrb[0].mxu0
    %v3185 = vadd.f32 %v3106, %v3184
    %3186 = vdwg.mxu0
    %v3187 = vxor.u32 %v3183, 2147483648
    %v3188 = vxor.u32 %v3185, 2147483648
    %v3189 = vmul.f32 %v3187, 1.442695
    %v3190 = vpow.pop %v3189
    %v3191 = vmul.f32 %v3188, 1.442695
    %v3192 = vpow.pop %v3191
    %v3193 = vadd.f32 %v3190, 1.0
    %v3194 = vadd.f32 %v3192, 1.0
    %v3195 = vrcp.pop %v3193
    %v3196 = vmul.f32 1.0, %v3195
    %v3197 = vrcp.pop %v3194
    %v3198 = vmul.f32 1.0, %v3197
    %v3199 = vlaneseq
    %v3200 = vshrl.u32 %v3199, 7
    %v3201 = vsub.s32 0, %v3200
    %v3202 = vrot.slane %v3196, %v3201
    %v3203 = vlaneseq
    %v3204 = vshrl.u32 %v3203, 7
    %v3205 = vsub.s32 0, %v3204
    %v3206 = vrot.slane %v3198, %v3205
    %v3207 = vmul.f32 %v2958, %v3202
    %v3208 = vmul.f32 %v2959, %v3206
    %v3209 = vmax.f32 %v3207, 0.0
    %v3210 = vmax.f32 %v3208, 0.0
    %v3211 = vmin.f32 %v3209, 1.0
    %v3212 = vmin.f32 %v3210, 1.0
    %v3213 = vmul.f32 %v2702, %v85
    %v3214 = vmul.f32 %v2703, %v87
    %v3215 = vsub.f32 %v3213, %v2702
    %v3216 = vsub.f32 %v3214, %v2703
    %v3217 = vadd.f32 %v3215, %v3211
    %v3218 = vadd.f32 %v3216, %v3212
    %v3219 = vadd.f32 %v3217, 1.0
    %v3220 = vadd.f32 %v3218, 1.0
    %v3221 = vmul.f32 %v3219, 0.5
    %v3222 = vmul.f32 %v3220, 0.5
    %v3225 = vcombine.low %v3221, %v3222
    %3227 = vst [vmem:[%s12] sm:$0x77] %v3225
    %s3228 = scalar_lea.vmem %s0, 8
    %v3229 = vld [vmem:[%s3228] sm:$0x77]
    %v3231 = vcombine.high %v3229, %v3229
    %3233 = vrot.lane.b32.xlu0 %v3229, 34
    %v3234 = vpop.permute.xlu0 %3233
    %3235 = vrot.lane.b32.xlu0 %v3231, 34
    %v3236 = vpop.permute.xlu0 %3235
    %v3237 = vsel %vm95, %v3234, %v3236
    %v3238 = vsel %vm95, %v3236, %v3234
    %v3239 = vmul.f32 %v3238, %v102
    %v3240 = vmul.f32 %v3237, %v106
    %3241 = vrot.lane.b32.xlu0 %v3229, 32
    %v3242 = vpop.permute.xlu0 %3241
    %3243 = vrot.lane.b32.xlu0 %v3231, 32
    %v3244 = vpop.permute.xlu0 %3243
    %v3245 = vsel %vm115, %v3242, %v3244
    %v3246 = vsel %vm115, %v3244, %v3242
    %v3247 = vmul.f32 %v3246, %v122
    %v3248 = vmul.f32 %v3245, %v126
    %3249 = vrot.lane.b32.xlu0 %v3229, 30
    %v3250 = vpop.permute.xlu0 %3249
    %3251 = vrot.lane.b32.xlu0 %v3231, 30
    %v3252 = vpop.permute.xlu0 %3251
    %v3253 = vsel %vm135, %v3250, %v3252
    %v3254 = vsel %vm135, %v3252, %v3250
    %v3255 = vmul.f32 %v3254, %v142
    %v3256 = vmul.f32 %v3253, %v146
    %3257 = vrot.lane.b32.xlu0 %v3229, 2
    %v3258 = vpop.permute.xlu0 %3257
    %3259 = vrot.lane.b32.xlu0 %v3231, 2
    %v3260 = vpop.permute.xlu0 %3259
    %v3261 = vsel %vm155, %v3258, %v3260
    %v3262 = vsel %vm155, %v3260, %v3258
    %v3263 = vmul.f32 %v3262, %v162
    %v3264 = vmul.f32 %v3261, %v166
    %3265 = vrot.lane.b32.xlu0 %v3229, 126
    %v3266 = vpop.permute.xlu0 %3265
    %3267 = vrot.lane.b32.xlu0 %v3231, 126
    %v3268 = vpop.permute.xlu0 %3267
    %v3269 = vsel %vm175, %v3266, %v3268
    %v3270 = vsel %vm175, %v3268, %v3266
    %v3271 = vmul.f32 %v3269, %v182
    %v3272 = vmul.f32 %v3270, %v186
    %3273 = vrot.lane.b32.xlu0 %v3229, 98
    %v3274 = vpop.permute.xlu0 %3273
    %3275 = vrot.lane.b32.xlu0 %v3231, 98
    %v3276 = vpop.permute.xlu0 %3275
    %v3277 = vsel %vm195, %v3274, %v3276
    %v3278 = vsel %vm195, %v3276, %v3274
    %v3279 = vmul.f32 %v3277, %v202
    %v3280 = vmul.f32 %v3278, %v206
    %3281 = vrot.lane.b32.xlu0 %v3229, 96
    %v3282 = vpop.permute.xlu0 %3281
    %3283 = vrot.lane.b32.xlu0 %v3231, 96
    %v3284 = vpop.permute.xlu0 %3283
    %v3285 = vsel %vm215, %v3282, %v3284
    %v3286 = vsel %vm215, %v3284, %v3282
    %v3287 = vmul.f32 %v3285, %v222
    %v3288 = vmul.f32 %v3286, %v226
    %3289 = vrot.lane.b32.xlu0 %v3229, 94
    %v3290 = vpop.permute.xlu0 %3289
    %3291 = vrot.lane.b32.xlu0 %v3231, 94
    %v3292 = vpop.permute.xlu0 %3291
    %v3293 = vsel %vm235, %v3290, %v3292
    %v3294 = vsel %vm235, %v3292, %v3290
    %v3295 = vmul.f32 %v3293, %v242
    %v3296 = vmul.f32 %v3294, %v246
    %v3299 = vrot.slane %v3247, 5
    %v3300 = vrot.slane %v3248, 5
    %v3305 = vrot.slane %v3255, 2
    %v3306 = vrot.slane %v3256, 2
    %v3311 = vrot.slane %v3263, 7
    %v3312 = vrot.slane %v3264, 7
    %v3315 = vcombine.low %v3229, %v3229
    %v3319 = vrot.slane %v3271, 1
    %v3320 = vrot.slane %v3272, 1
    %v3325 = vrot.slane %v3279, 6
    %v3326 = vrot.slane %v3280, 6
    %v3331 = vrot.slane %v3287, 3
    %v3332 = vrot.slane %v3288, 3
    %v3335 = vsel %vm289, %v3239, %v3299
    %v3336 = vsel %vm289, %v3240, %v3300
    %v3337 = vsel %vm292, %v3335, %v3305
    %v3338 = vsel %vm292, %v3336, %v3306
    %v3339 = vsel %vm295, %v3305, %v3311
    %v3340 = vsel %vm295, %v3306, %v3312
    %v3341 = vsel %vm298, %v3339, %v3315
    %v3342 = vsel %vm298, %v3340, %v3229
    %v3343 = vsel %vm301, %v3341, %v3319
    %v3344 = vsel %vm301, %v3342, %v3320
    %v3345 = vsel %vm304, %v3319, %v3325
    %v3346 = vsel %vm304, %v3320, %v3326
    %v3347 = vsel %vm307, %v3345, %v3331
    %v3348 = vsel %vm307, %v3346, %v3332
    %v3349 = vld [vmem:[%s2] sm:$0x3f]
    %v3350 = vld [vmem:[%s6] sm:$0x3f]
    %3352 = vset.pattern.permute.xlu0 0
    %3353 = vperm.xlu0 %3352, %v3350
    %v3354 = vpop.permute.xlu0 %3353
    %v3357 = vsel %vm317, %v3349, 0
    %v3360 = vsel %vm289, %v3295, 0
    %v3363 = vsel %vm289, %v3296, 0
    %3365 = vmatprep.subr.mxu0 %v3338
    %3366 = vmatpush1.msra.mxu0 %v3337
    %3367 = vmatprep.subr.mxu0 %v3344
    %3368 = vmatpush1.msra.mxu0 %v3343
    %3369 = vmatprep.subr.mxu0 %v3348
    %3370 = vmatpush1.msra.mxu0 %v3347
    %3371 = vmatprep.subr.mxu0 %v3363
    %3372 = vmatpush1.msra.mxu0 %v3360
    %3373 = vmatprep.subr.mxu0 0.0
    %3374 = vmatpush1.msra.mxu0 0.0
    %3375 = vmatprep.subr.mxu0 0.0
    %3376 = vmatpush1.msra.mxu0 0.0
    %3377 = vmatprep.subr.mxu0 0.0
    %3378 = vmatpush1.msra.mxu0 0.0
    %3379 = vmatprep.subr.mxu0 0.0
    %3380 = vmatpush1.msra.mxu0 0.0
    %3381 = vmatprep.subr.mxu0 0.0
    %3382 = vmatpush1.msra.mxu0 0.0
    %3383 = vmatprep.subr.mxu0 0.0
    %3384 = vmatpush1.msra.mxu0 0.0
    %3385 = vmatprep.subr.mxu0 0.0
    %3386 = vmatpush1.msra.mxu0 0.0
    %3387 = vmatprep.subr.mxu0 0.0
    %3388 = vmatpush1.msra.mxu0 0.0
    %3389 = vmatprep.subr.mxu0 0.0
    %3390 = vmatpush1.msra.mxu0 0.0
    %3391 = vmatprep.subr.mxu0 0.0
    %3392 = vmatpush1.msra.mxu0 0.0
    %3393 = vmatprep.subr.mxu0 0.0
    %3394 = vmatpush1.msra.mxu0 0.0
    %3395 = vmatprep.subr.mxu0 0.0
    %3396 = vmatpush1.msra.mxu0 0.0
    %3397 = vmatprep.subr.mxu0 0.0
    %3398 = vmatpush1.msra.mxu0 0.0
    %3399 = vmatprep.subr.mxu0 0.0
    %3400 = vmatpush1.msra.mxu0 0.0
    %3401 = vmatprep.subr.mxu0 0.0
    %3402 = vmatpush1.msra.mxu0 0.0
    %3403 = vmatprep.subr.mxu0 0.0
    %3404 = vmatpush1.msra.mxu0 0.0
    %3405 = vmatprep.subr.mxu0 0.0
    %3406 = vmatpush1.msra.mxu0 0.0
    %3407 = vmatprep.subr.mxu0 0.0
    %3408 = vmatpush1.msra.mxu0 0.0
    %3409 = vmatprep.subr.mxu0 0.0
    %3410 = vmatpush1.msra.mxu0 0.0
    %3411 = vmatprep.subr.mxu0 0.0
    %3412 = vmatpush1.msra.mxu0 0.0
    %3413 = vmatprep.subr.mxu0 0.0
    %3414 = vmatpush1.msra.mxu0 0.0
    %3415 = vmatprep.subr.mxu0 0.0
    %3416 = vmatpush1.msra.mxu0 0.0
    %3417 = vmatprep.subr.mxu0 0.0
    %3418 = vmatpush1.msra.mxu0 0.0
    %3419 = vmatprep.subr.mxu0 0.0
    %3420 = vmatpush1.msra.mxu0 0.0
    %3421 = vmatprep.subr.mxu0 0.0
    %3422 = vmatpush1.msra.mxu0 0.0
    %3423 = vmatprep.subr.mxu0 0.0
    %3424 = vmatpush1.msra.mxu0 0.0
    %3425 = vmatprep.subr.mxu0 0.0
    %3426 = vmatpush1.msra.mxu0 0.0
    %3427 = vmatprep.subr.mxu0 0.0
    %3428 = vmatpush1.msra.mxu0 0.0
    %3429 = vmatprep.mubr.f32.mxu0 0.0
    %3430 = vmatmul.mubr.f32.gmra.mrb[0].mxu0 %v3357
    %v3431 = vpop.f32.mrb[0].mxu0
    %v3432 = vadd.f32 %v3354, %v3431
    %v3433 = vpop.f32.mrb[0].mxu0
    %v3434 = vadd.f32 %v3354, %v3433
    %3435 = vdwg.mxu0
    %v3436 = vld [vmem:[%s398] sm:$0x3f]
    %v3437 = vld [vmem:[%s400] sm:$0x3f]
    %v3438 = vsel %vm292, %v3432, 0.0
    %v3439 = vsel %vm292, %v3434, 0.0
    %v3440 = vadd.f32 %v3438, %v3439
    %3441 = vadd.xlane.f32.xlu0 %v3440
    %v3442 = vpop.xlane.xlu0 %3441
    %v3443 = vmul.f32 %v3442, %v407
    %v3444 = vmul.f32 %v3432, %v3432
    %v3445 = vmul.f32 %v3434, %v3434
    %v3446 = vsel %vm292, %v3444, 0.0
    %v3447 = vsel %vm292, %v3445, 0.0
    %v3448 = vadd.f32 %v3446, %v3447
    %3449 = vadd.xlane.f32.xlu0 %v3448
    %v3450 = vpop.xlane.xlu0 %3449
    %v3451 = vmul.f32 %v3450, %v407
    %v3452 = vmul.f32 %v3443, %v3443
    %v3453 = vsub.f32 %v3451, %v3452
    %v3454 = vmax.f32 %v3453, 0.0
    %v3455 = vsub.f32 %v3432, %v3443
    %v3456 = vsub.f32 %v3434, %v3443
    %v3457 = vadd.f32 %v3454, 1e-05
    %v3458 = vrsqrt.pop %v3457
    %v3459 = vmul.f32 %v3455, %v3458
    %v3460 = vmul.f32 %v3456, %v3458
    %3462 = vset.pattern.permute.xlu0 0
    %3463 = vperm.xlu0 %3462, %v3436
    %v3464 = vpop.permute.xlu0 %3463
    %v3466 = vmul.f32 %v3459, %v3464
    %v3467 = vmul.f32 %v3460, %v3464
    %3469 = vset.pattern.permute.xlu0 0
    %3470 = vperm.xlu0 %3469, %v3437
    %v3471 = vpop.permute.xlu0 %3470
    %v3473 = vadd.f32 %v3466, %v3471
    %v3474 = vadd.f32 %v3467, %v3471
    %vm3475 = vcmp.ge.f32.partialorder %v3473, 0.0
    %vm3476 = vcmp.ge.f32.partialorder %v3474, 0.0
    %v3477 = vmul.f32 %v3473, 0.22916667
    %v3478 = vmul.f32 %v3474, 0.22916667
    %v3479 = vsel %vm3475, %v3473, %v3477
    %v3480 = vsel %vm3476, %v3474, %v3478
    %3481 = vrot.lane.b32.xlu0 %v3479, 34
    %v3482 = vpop.permute.xlu0 %3481
    %3483 = vrot.lane.b32.xlu0 %v3480, 34
    %v3484 = vpop.permute.xlu0 %3483
    %v3485 = vsel %vm95, %v3482, %v3484
    %v3486 = vsel %vm95, %v3484, %v3482
    %v3487 = vmul.f32 %v3486, %v102
    %v3488 = vmul.f32 %v3485, %v106
    %3489 = vrot.lane.b32.xlu0 %v3479, 32
    %v3490 = vpop.permute.xlu0 %3489
    %3491 = vrot.lane.b32.xlu0 %v3480, 32
    %v3492 = vpop.permute.xlu0 %3491
    %v3493 = vsel %vm115, %v3490, %v3492
    %v3494 = vsel %vm115, %v3492, %v3490
    %v3495 = vmul.f32 %v3494, %v122
    %v3496 = vmul.f32 %v3493, %v126
    %3497 = vrot.lane.b32.xlu0 %v3479, 30
    %v3498 = vpop.permute.xlu0 %3497
    %3499 = vrot.lane.b32.xlu0 %v3480, 30
    %v3500 = vpop.permute.xlu0 %3499
    %v3501 = vsel %vm135, %v3498, %v3500
    %v3502 = vsel %vm135, %v3500, %v3498
    %v3503 = vmul.f32 %v3502, %v142
    %v3504 = vmul.f32 %v3501, %v146
    %3505 = vrot.lane.b32.xlu0 %v3479, 2
    %v3506 = vpop.permute.xlu0 %3505
    %3507 = vrot.lane.b32.xlu0 %v3480, 2
    %v3508 = vpop.permute.xlu0 %3507
    %v3509 = vsel %vm155, %v3506, %v3508
    %v3510 = vsel %vm155, %v3508, %v3506
    %v3511 = vmul.f32 %v3510, %v162
    %v3512 = vmul.f32 %v3509, %v166
    %3513 = vrot.lane.b32.xlu0 %v3479, 126
    %v3514 = vpop.permute.xlu0 %3513
    %3515 = vrot.lane.b32.xlu0 %v3480, 126
    %v3516 = vpop.permute.xlu0 %3515
    %v3517 = vsel %vm175, %v3514, %v3516
    %v3518 = vsel %vm175, %v3516, %v3514
    %v3519 = vmul.f32 %v3517, %v182
    %v3520 = vmul.f32 %v3518, %v186
    %3521 = vrot.lane.b32.xlu0 %v3479, 98
    %v3522 = vpop.permute.xlu0 %3521
    %3523 = vrot.lane.b32.xlu0 %v3480, 98
    %v3524 = vpop.permute.xlu0 %3523
    %v3525 = vsel %vm195, %v3522, %v3524
    %v3526 = vsel %vm195, %v3524, %v3522
    %v3527 = vmul.f32 %v3525, %v202
    %v3528 = vmul.f32 %v3526, %v206
    %3529 = vrot.lane.b32.xlu0 %v3479, 96
    %v3530 = vpop.permute.xlu0 %3529
    %3531 = vrot.lane.b32.xlu0 %v3480, 96
    %v3532 = vpop.permute.xlu0 %3531
    %v3533 = vsel %vm215, %v3530, %v3532
    %v3534 = vsel %vm215, %v3532, %v3530
    %v3535 = vmul.f32 %v3533, %v222
    %v3536 = vmul.f32 %v3534, %v226
    %3537 = vrot.lane.b32.xlu0 %v3479, 94
    %v3538 = vpop.permute.xlu0 %3537
    %3539 = vrot.lane.b32.xlu0 %v3480, 94
    %v3540 = vpop.permute.xlu0 %3539
    %v3541 = vsel %vm235, %v3538, %v3540
    %v3542 = vsel %vm235, %v3540, %v3538
    %v3543 = vmul.f32 %v3541, %v242
    %v3544 = vmul.f32 %v3542, %v246
    %v3547 = vrot.slane %v3495, 2
    %v3548 = vrot.slane %v3496, 2
    %v3553 = vrot.slane %v3503, 4
    %v3554 = vrot.slane %v3504, 4
    %v3559 = vrot.slane %v3511, 6
    %v3560 = vrot.slane %v3512, 6
    %v3565 = vrot.slane %v3519, 2
    %v3566 = vrot.slane %v3520, 2
    %v3571 = vrot.slane %v3527, 4
    %v3572 = vrot.slane %v3528, 4
    %v3577 = vrot.slane %v3535, 6
    %v3578 = vrot.slane %v3536, 6
    %v3581 = vsel %vm292, %v3487, %v3547
    %v3582 = vsel %vm292, %v3488, %v3548
    %v3583 = vsel %vm298, %v3547, %v3553
    %v3584 = vsel %vm298, %v3548, %v3554
    %v3585 = vsel %vm304, %v3553, %v3559
    %v3586 = vsel %vm304, %v3554, %v3560
    %v3587 = vsel %vm292, %v3479, %v3565
    %v3588 = vsel %vm292, %v3480, %v3566
    %v3589 = vsel %vm298, %v3565, %v3571
    %v3590 = vsel %vm298, %v3566, %v3572
    %v3591 = vsel %vm304, %v3571, %v3577
    %v3592 = vsel %vm304, %v3572, %v3578
    %v3593 = vsel %vm292, %v3543, 0.0
    %v3594 = vsel %vm292, %v3544, 0.0
    %3595 = vst [vmem:[#allocation2] sm:$0xff] %v3581
    %3596 = vst [vmem:[#allocation2 + $0x8] sm:$0xff] %v3582
    %3597 = vst [vmem:[#allocation2 + $0x10] sm:$0xff] %v3583
    %3598 = vst [vmem:[#allocation2 + $0x18] sm:$0xff] %v3584
    %3599 = vst [vmem:[#allocation2 + $0x20] sm:$0xff] %v3585
    %3600 = vst [vmem:[#allocation2 + $0x28] sm:$0xff] %v3586
    %3601 = vst [vmem:[#allocation2 + $0x30] sm:$0xff] %v3587
    %3602 = vst [vmem:[#allocation2 + $0x38] sm:$0xff] %v3588
    %3603 = vst [vmem:[#allocation2 + $0x40] sm:$0xff] %v3589
    %3604 = vst [vmem:[#allocation2 + $0x48] sm:$0xff] %v3590
    %3605 = vst [vmem:[#allocation2 + $0x50] sm:$0xff] %v3591
    %3606 = vst [vmem:[#allocation2 + $0x58] sm:$0xff] %v3592
    %3607 = vst [vmem:[#allocation2 + $0x60] sm:$0xff] %v3593
    %3608 = vst [vmem:[#allocation2 + $0x68] sm:$0xff] %v3594
    %v3609 = vld [vmem:[%s3] sm:$0x3f]
    %v3610 = vld [vmem:[#allocation2] sm:$0xff]
    %v3611 = vld [vmem:[#allocation2 + $0x8] sm:$0xff]
    %v3612 = vld [vmem:[#allocation2 + $0x10] sm:$0xff]
    %v3613 = vld [vmem:[#allocation2 + $0x18] sm:$0xff]
    %v3614 = vld [vmem:[#allocation2 + $0x20] sm:$0xff]
    %v3615 = vld [vmem:[#allocation2 + $0x28] sm:$0xff]
    %v3616 = vld [vmem:[#allocation2 + $0x30] sm:$0xff]
    %v3617 = vld [vmem:[#allocation2 + $0x38] sm:$0xff]
    %v3618 = vld [vmem:[#allocation2 + $0x40] sm:$0xff]
    %v3619 = vld [vmem:[#allocation2 + $0x48] sm:$0xff]
    %v3620 = vld [vmem:[#allocation2 + $0x50] sm:$0xff]
    %v3621 = vld [vmem:[#allocation2 + $0x58] sm:$0xff]
    %v3622 = vld [vmem:[#allocation2 + $0x60] sm:$0xff]
    %v3623 = vld [vmem:[#allocation2 + $0x68] sm:$0xff]
    %v3624 = vld [vmem:[%s589] sm:$0x3f]
    %3626 = vset.pattern.permute.xlu0 0
    %3627 = vperm.xlu0 %3626, %v3624
    %v3628 = vpop.permute.xlu0 %3627
    %v3631 = vsel %vm596, %v3609, 0
    %3633 = vmatprep.subr.mxu0 %v3611
    %3634 = vmatpush1.msra.mxu0 %v3610
    %3635 = vmatprep.subr.mxu0 %v3613
    %3636 = vmatpush1.msra.mxu0 %v3612
    %3637 = vmatprep.subr.mxu0 %v3615
    %3638 = vmatpush1.msra.mxu0 %v3614
    %3639 = vmatprep.subr.mxu0 %v3617
    %3640 = vmatpush1.msra.mxu0 %v3616
    %3641 = vmatprep.subr.mxu0 %v3619
    %3642 = vmatpush1.msra.mxu0 %v3618
    %3643 = vmatprep.subr.mxu0 %v3621
    %3644 = vmatpush1.msra.mxu0 %v3620
    %3645 = vmatprep.subr.mxu0 %v3623
    %3646 = vmatpush1.msra.mxu0 %v3622
    %3647 = vmatprep.subr.mxu0 0.0
    %3648 = vmatpush1.msra.mxu0 0.0
    %3649 = vmatprep.subr.mxu0 0.0
    %3650 = vmatpush1.msra.mxu0 0.0
    %3651 = vmatprep.subr.mxu0 0.0
    %3652 = vmatpush1.msra.mxu0 0.0
    %3653 = vmatprep.subr.mxu0 0.0
    %3654 = vmatpush1.msra.mxu0 0.0
    %3655 = vmatprep.subr.mxu0 0.0
    %3656 = vmatpush1.msra.mxu0 0.0
    %3657 = vmatprep.subr.mxu0 0.0
    %3658 = vmatpush1.msra.mxu0 0.0
    %3659 = vmatprep.subr.mxu0 0.0
    %3660 = vmatpush1.msra.mxu0 0.0
    %3661 = vmatprep.subr.mxu0 0.0
    %3662 = vmatpush1.msra.mxu0 0.0
    %3663 = vmatprep.subr.mxu0 0.0
    %3664 = vmatpush1.msra.mxu0 0.0
    %3665 = vmatprep.subr.mxu0 0.0
    %3666 = vmatpush1.msra.mxu0 0.0
    %3667 = vmatprep.subr.mxu0 0.0
    %3668 = vmatpush1.msra.mxu0 0.0
    %3669 = vmatprep.subr.mxu0 0.0
    %3670 = vmatpush1.msra.mxu0 0.0
    %3671 = vmatprep.subr.mxu0 0.0
    %3672 = vmatpush1.msra.mxu0 0.0
    %3673 = vmatprep.subr.mxu0 0.0
    %3674 = vmatpush1.msra.mxu0 0.0
    %3675 = vmatprep.subr.mxu0 0.0
    %3676 = vmatpush1.msra.mxu0 0.0
    %3677 = vmatprep.subr.mxu0 0.0
    %3678 = vmatpush1.msra.mxu0 0.0
    %3679 = vmatprep.subr.mxu0 0.0
    %3680 = vmatpush1.msra.mxu0 0.0
    %3681 = vmatprep.subr.mxu0 0.0
    %3682 = vmatpush1.msra.mxu0 0.0
    %3683 = vmatprep.subr.mxu0 0.0
    %3684 = vmatpush1.msra.mxu0 0.0
    %3685 = vmatprep.subr.mxu0 0.0
    %3686 = vmatpush1.msra.mxu0 0.0
    %3687 = vmatprep.subr.mxu0 0.0
    %3688 = vmatpush1.msra.mxu0 0.0
    %3689 = vmatprep.subr.mxu0 0.0
    %3690 = vmatpush1.msra.mxu0 0.0
    %3691 = vmatprep.subr.mxu0 0.0
    %3692 = vmatpush1.msra.mxu0 0.0
    %3693 = vmatprep.subr.mxu0 0.0
    %3694 = vmatpush1.msra.mxu0 0.0
    %3695 = vmatprep.subr.mxu0 0.0
    %3696 = vmatpush1.msra.mxu0 0.0
    %3697 = vmatprep.mubr.f32.mxu0 0.0
    %3698 = vmatmul.mubr.f32.gmra.mrb[0].mxu0 %v3631
    %v3699 = vpop.f32.mrb[0].mxu0
    %v3700 = vadd.f32 %v3628, %v3699
    %v3701 = vpop.f32.mrb[0].mxu0
    %v3702 = vadd.f32 %v3628, %v3701
    %3703 = vdwg.mxu0
    %v3704 = vld [vmem:[%s671] sm:$0x3f]
    %v3705 = vld [vmem:[%s673] sm:$0x3f]
    %v3706 = vsel %vm292, %v3700, 0.0
    %v3707 = vsel %vm292, %v3702, 0.0
    %v3708 = vadd.f32 %v3706, %v3707
    %3709 = vadd.xlane.f32.xlu0 %v3708
    %v3710 = vpop.xlane.xlu0 %3709
    %v3711 = vmul.f32 %v3710, %v407
    %v3712 = vmul.f32 %v3700, %v3700
    %v3713 = vmul.f32 %v3702, %v3702
    %v3714 = vsel %vm292, %v3712, 0.0
    %v3715 = vsel %vm292, %v3713, 0.0
    %v3716 = vadd.f32 %v3714, %v3715
    %3717 = vadd.xlane.f32.xlu0 %v3716
    %v3718 = vpop.xlane.xlu0 %3717
    %v3719 = vmul.f32 %v3718, %v407
    %v3720 = vmul.f32 %v3711, %v3711
    %v3721 = vsub.f32 %v3719, %v3720
    %v3722 = vmax.f32 %v3721, 0.0
    %v3723 = vsub.f32 %v3700, %v3711
    %v3724 = vsub.f32 %v3702, %v3711
    %v3725 = vadd.f32 %v3722, 1e-05
    %v3726 = vrsqrt.pop %v3725
    %v3727 = vmul.f32 %v3723, %v3726
    %v3728 = vmul.f32 %v3724, %v3726
    %3730 = vset.pattern.permute.xlu0 0
    %3731 = vperm.xlu0 %3730, %v3704
    %v3732 = vpop.permute.xlu0 %3731
    %v3734 = vmul.f32 %v3727, %v3732
    %v3735 = vmul.f32 %v3728, %v3732
    %3737 = vset.pattern.permute.xlu0 0
    %3738 = vperm.xlu0 %3737, %v3705
    %v3739 = vpop.permute.xlu0 %3738
    %v3741 = vadd.f32 %v3734, %v3739
    %v3742 = vadd.f32 %v3735, %v3739
    %vm3743 = vcmp.ge.f32.partialorder %v3741, 0.0
    %vm3744 = vcmp.ge.f32.partialorder %v3742, 0.0
    %v3745 = vmul.f32 %v3741, 0.22916667
    %v3746 = vmul.f32 %v3742, 0.22916667
    %v3747 = vsel %vm3743, %v3741, %v3745
    %v3748 = vsel %vm3744, %v3742, %v3746
    %v3749 = vsel %vm292, %v3747, 0.0
    %v3750 = vrot.slane %v3749, 4
    %v3751 = vadd.f32 %v3749, %v3750
    %v3752 = vrot.slane %v3751, 2
    %v3753 = vadd.f32 %v3751, %v3752
    %v3754 = vrot.slane %v3753, 1
    %v3755 = vadd.f32 %v3753, %v3754
    %v3756 = vsel %vm292, %v3748, 0.0
    %v3757 = vrot.slane %v3756, 4
    %v3758 = vadd.f32 %v3756, %v3757
    %v3759 = vrot.slane %v3758, 2
    %v3760 = vadd.f32 %v3758, %v3759
    %v3761 = vrot.slane %v3760, 1
    %v3762 = vadd.f32 %v3760, %v3761
    %v3763 = vmul.f32 %v3755, %v732
    %v3764 = vmul.f32 %v3762, %v732
    %v3765 = vsel %vm292, %v3747, -inf
    %v3766 = vrot.slane %v3765, 4
    %v3767 = vmax.f32 %v3765, %v3766
    %v3768 = vrot.slane %v3767, 2
    %v3769 = vmax.f32 %v3767, %v3768
    %v3770 = vrot.slane %v3769, 1
    %v3771 = vmax.f32 %v3769, %v3770
    %v3772 = vsel %vm292, %v3748, -inf
    %v3773 = vrot.slane %v3772, 4
    %v3774 = vmax.f32 %v3772, %v3773
    %v3775 = vrot.slane %v3774, 2
    %v3776 = vmax.f32 %v3774, %v3775
    %v3777 = vrot.slane %v3776, 1
    %v3778 = vmax.f32 %v3776, %v3777
    %v3779 = vsel %vm295, %v3763, %v3771
    %v3780 = vsel %vm295, %v3764, %v3778
    %3781 = vrot.lane.b32.xlu0 %v3779, 17
    %v3782 = vpop.permute.xlu0 %3781
    %3783 = vrot.lane.b32.xlu0 %v3780, 17
    %v3784 = vpop.permute.xlu0 %3783
    %v3785 = vsel %vm755, %v3782, %v3784
    %v3786 = vsel %vm755, %v3784, %v3782
    %v3787 = vmul.f32 %v3786, %v762
    %v3788 = vmul.f32 %v3785, %v766
    %3789 = vrot.lane.b32.xlu0 %v3779, 16
    %v3790 = vpop.permute.xlu0 %3789
    %3791 = vrot.lane.b32.xlu0 %v3780, 16
    %v3792 = vpop.permute.xlu0 %3791
    %v3793 = vsel %vm775, %v3790, %v3792
    %v3794 = vsel %vm775, %v3792, %v3790
    %v3795 = vmul.f32 %v3794, %v782
    %v3796 = vmul.f32 %v3793, %v786
    %3797 = vrot.lane.b32.xlu0 %v3779, 15
    %v3798 = vpop.permute.xlu0 %3797
    %3799 = vrot.lane.b32.xlu0 %v3780, 15
    %v3800 = vpop.permute.xlu0 %3799
    %v3801 = vsel %vm795, %v3798, %v3800
    %v3802 = vsel %vm795, %v3800, %v3798
    %v3803 = vmul.f32 %v3802, %v802
    %v3804 = vmul.f32 %v3801, %v806
    %3805 = vrot.lane.b32.xlu0 %v3779, 1
    %v3806 = vpop.permute.xlu0 %3805
    %3807 = vrot.lane.b32.xlu0 %v3780, 1
    %v3808 = vpop.permute.xlu0 %3807
    %v3809 = vsel %vm815, %v3806, %v3808
    %v3810 = vsel %vm815, %v3808, %v3806
    %v3811 = vmul.f32 %v3810, %v822
    %v3812 = vmul.f32 %v3809, %v826
    %3813 = vrot.lane.b32.xlu0 %v3779, 127
    %v3814 = vpop.permute.xlu0 %3813
    %3815 = vrot.lane.b32.xlu0 %v3780, 127
    %v3816 = vpop.permute.xlu0 %3815
    %v3817 = vsel %vm835, %v3814, %v3816
    %v3818 = vsel %vm835, %v3816, %v3814
    %v3819 = vmul.f32 %v3817, %v842
    %v3820 = vmul.f32 %v3818, %v846
    %3821 = vrot.lane.b32.xlu0 %v3779, 113
    %v3822 = vpop.permute.xlu0 %3821
    %3823 = vrot.lane.b32.xlu0 %v3780, 113
    %v3824 = vpop.permute.xlu0 %3823
    %v3825 = vsel %vm855, %v3822, %v3824
    %v3826 = vsel %vm855, %v3824, %v3822
    %v3827 = vmul.f32 %v3825, %v862
    %v3828 = vmul.f32 %v3826, %v866
    %3829 = vrot.lane.b32.xlu0 %v3779, 112
    %v3830 = vpop.permute.xlu0 %3829
    %3831 = vrot.lane.b32.xlu0 %v3780, 112
    %v3832 = vpop.permute.xlu0 %3831
    %v3833 = vsel %vm875, %v3830, %v3832
    %v3834 = vsel %vm875, %v3832, %v3830
    %v3835 = vmul.f32 %v3833, %v882
    %v3836 = vmul.f32 %v3834, %v886
    %3837 = vrot.lane.b32.xlu0 %v3779, 111
    %v3838 = vpop.permute.xlu0 %3837
    %3839 = vrot.lane.b32.xlu0 %v3780, 111
    %v3840 = vpop.permute.xlu0 %3839
    %v3841 = vsel %vm895, %v3838, %v3840
    %v3842 = vsel %vm895, %v3840, %v3838
    %v3843 = vmul.f32 %v3841, %v902
    %v3844 = vmul.f32 %v3842, %v906
    %v3847 = vrot.slane %v3795, 6
    %v3848 = vrot.slane %v3796, 6
    %v3853 = vrot.slane %v3803, 4
    %v3854 = vrot.slane %v3804, 4
    %v3859 = vrot.slane %v3811, 2
    %v3860 = vrot.slane %v3812, 2
    %v3865 = vrot.slane %v3819, 6
    %v3866 = vrot.slane %v3820, 6
    %v3871 = vrot.slane %v3827, 4
    %v3872 = vrot.slane %v3828, 4
    %v3877 = vrot.slane %v3835, 2
    %v3878 = vrot.slane %v3836, 2
    %v3881 = vsel %vm304, %v3787, %v3847
    %v3882 = vsel %vm304, %v3788, %v3848
    %v3883 = vsel %vm298, %v3881, %v3853
    %v3884 = vsel %vm298, %v3882, %v3854
    %v3885 = vsel %vm292, %v3883, %v3859
    %v3886 = vsel %vm292, %v3884, %v3860
    %v3887 = vsel %vm304, %v3779, %v3865
    %v3888 = vsel %vm304, %v3780, %v3866
    %v3889 = vsel %vm298, %v3887, %v3871
    %v3890 = vsel %vm298, %v3888, %v3872
    %v3891 = vsel %vm292, %v3889, %v3877
    %v3892 = vsel %vm292, %v3890, %v3878
    %v3893 = vld [vmem:[%s10] sm:$0x1]
    %s3894 = sld [smem:[#allocation3]]
    %v3895 = vstv %s3894
    %v3897 = vsel %vm962, %v3893, 0
    %v3900 = vsel %vm304, %v3843, 0
    %v3903 = vsel %vm304, %v3844, 0
    %3905 = vmatprep.subr.mxu0 %v3886
    %3906 = vmatpush1.msra.mxu0 %v3885
    %3907 = vmatprep.subr.mxu0 %v3892
    %3908 = vmatpush1.msra.mxu0 %v3891
    %3909 = vmatprep.subr.mxu0 %v3903
    %3910 = vmatpush1.msra.mxu0 %v3900
    %3911 = vmatprep.subr.mxu0 0.0
    %3912 = vmatpush1.msra.mxu0 0.0
    %3913 = vmatprep.subr.mxu0 0.0
    %3914 = vmatpush1.msra.mxu0 0.0
    %3915 = vmatprep.subr.mxu0 0.0
    %3916 = vmatpush1.msra.mxu0 0.0
    %3917 = vmatprep.subr.mxu0 0.0
    %3918 = vmatpush1.msra.mxu0 0.0
    %3919 = vmatprep.subr.mxu0 0.0
    %3920 = vmatpush1.msra.mxu0 0.0
    %3921 = vmatprep.subr.mxu0 0.0
    %3922 = vmatpush1.msra.mxu0 0.0
    %3923 = vmatprep.subr.mxu0 0.0
    %3924 = vmatpush1.msra.mxu0 0.0
    %3925 = vmatprep.subr.mxu0 0.0
    %3926 = vmatpush1.msra.mxu0 0.0
    %3927 = vmatprep.subr.mxu0 0.0
    %3928 = vmatpush1.msra.mxu0 0.0
    %3929 = vmatprep.subr.mxu0 0.0
    %3930 = vmatpush1.msra.mxu0 0.0
    %3931 = vmatprep.subr.mxu0 0.0
    %3932 = vmatpush1.msra.mxu0 0.0
    %3933 = vmatprep.subr.mxu0 0.0
    %3934 = vmatpush1.msra.mxu0 0.0
    %3935 = vmatprep.subr.mxu0 0.0
    %3936 = vmatpush1.msra.mxu0 0.0
    %3937 = vmatprep.subr.mxu0 0.0
    %3938 = vmatpush1.msra.mxu0 0.0
    %3939 = vmatprep.subr.mxu0 0.0
    %3940 = vmatpush1.msra.mxu0 0.0
    %3941 = vmatprep.subr.mxu0 0.0
    %3942 = vmatpush1.msra.mxu0 0.0
    %3943 = vmatprep.subr.mxu0 0.0
    %3944 = vmatpush1.msra.mxu0 0.0
    %3945 = vmatprep.subr.mxu0 0.0
    %3946 = vmatpush1.msra.mxu0 0.0
    %3947 = vmatprep.subr.mxu0 0.0
    %3948 = vmatpush1.msra.mxu0 0.0
    %3949 = vmatprep.subr.mxu0 0.0
    %3950 = vmatpush1.msra.mxu0 0.0
    %3951 = vmatprep.subr.mxu0 0.0
    %3952 = vmatpush1.msra.mxu0 0.0
    %3953 = vmatprep.subr.mxu0 0.0
    %3954 = vmatpush1.msra.mxu0 0.0
    %3955 = vmatprep.subr.mxu0 0.0
    %3956 = vmatpush1.msra.mxu0 0.0
    %3957 = vmatprep.subr.mxu0 0.0
    %3958 = vmatpush1.msra.mxu0 0.0
    %3959 = vmatprep.subr.mxu0 0.0
    %3960 = vmatpush1.msra.mxu0 0.0
    %3961 = vmatprep.subr.mxu0 0.0
    %3962 = vmatpush1.msra.mxu0 0.0
    %3963 = vmatprep.subr.mxu0 0.0
    %3964 = vmatpush1.msra.mxu0 0.0
    %3965 = vmatprep.subr.mxu0 0.0
    %3966 = vmatpush1.msra.mxu0 0.0
    %3967 = vmatprep.subr.mxu0 0.0
    %3968 = vmatpush1.msra.mxu0 0.0
    %3969 = vmatprep.mubr.f32.mxu0 0.0
    %3970 = vmatmul.mubr.f32.gmra.mrb[0].mxu0 %v3897
    %v3971 = vpop.f32.mrb[0].mxu0
    %v3972 = vadd.f32 %v3895, %v3971
    %v3973 = vpop.f32.mrb[0].mxu0
    %v3974 = vadd.f32 %v3895, %v3973
    %3975 = vdwg.mxu0
    %v3976 = vxor.u32 %v3972, 2147483648
    %v3977 = vxor.u32 %v3974, 2147483648
    %v3978 = vmul.f32 %v3976, 1.442695
    %v3979 = vpow.pop %v3978
    %v3980 = vmul.f32 %v3977, 1.442695
    %v3981 = vpow.pop %v3980
    %v3982 = vadd.f32 %v3979, 1.0
    %v3983 = vadd.f32 %v3981, 1.0
    %v3984 = vrcp.pop %v3982
    %v3985 = vmul.f32 1.0, %v3984
    %v3986 = vrcp.pop %v3983
    %v3987 = vmul.f32 1.0, %v3986
    %v3988 = vlaneseq
    %v3989 = vshrl.u32 %v3988, 7
    %v3990 = vsub.s32 0, %v3989
    %v3991 = vrot.slane %v3985, %v3990
    %v3992 = vlaneseq
    %v3993 = vshrl.u32 %v3992, 7
    %v3994 = vsub.s32 0, %v3993
    %v3995 = vrot.slane %v3987, %v3994
    %v3996 = vmul.f32 %v3747, %v3991
    %v3997 = vmul.f32 %v3748, %v3995
    %3998 = vrot.lane.b32.xlu0 %v3996, 34
    %v3999 = vpop.permute.xlu0 %3998
    %4000 = vrot.lane.b32.xlu0 %v3997, 34
    %v4001 = vpop.permute.xlu0 %4000
    %v4002 = vsel %vm95, %v3999, %v4001
    %v4003 = vsel %vm95, %v4001, %v3999
    %v4004 = vmul.f32 %v4003, %v102
    %v4005 = vmul.f32 %v4002, %v106
    %4006 = vrot.lane.b32.xlu0 %v3996, 32
    %v4007 = vpop.permute.xlu0 %4006
    %4008 = vrot.lane.b32.xlu0 %v3997, 32
    %v4009 = vpop.permute.xlu0 %4008
    %v4010 = vsel %vm115, %v4007, %v4009
    %v4011 = vsel %vm115, %v4009, %v4007
    %v4012 = vmul.f32 %v4011, %v122
    %v4013 = vmul.f32 %v4010, %v126
    %4014 = vrot.lane.b32.xlu0 %v3996, 30
    %v4015 = vpop.permute.xlu0 %4014
    %4016 = vrot.lane.b32.xlu0 %v3997, 30
    %v4017 = vpop.permute.xlu0 %4016
    %v4018 = vsel %vm135, %v4015, %v4017
    %v4019 = vsel %vm135, %v4017, %v4015
    %v4020 = vmul.f32 %v4019, %v142
    %v4021 = vmul.f32 %v4018, %v146
    %4022 = vrot.lane.b32.xlu0 %v3996, 2
    %v4023 = vpop.permute.xlu0 %4022
    %4024 = vrot.lane.b32.xlu0 %v3997, 2
    %v4025 = vpop.permute.xlu0 %4024
    %v4026 = vsel %vm155, %v4023, %v4025
    %v4027 = vsel %vm155, %v4025, %v4023
    %v4028 = vmul.f32 %v4027, %v162
    %v4029 = vmul.f32 %v4026, %v166
    %4030 = vrot.lane.b32.xlu0 %v3996, 126
    %v4031 = vpop.permute.xlu0 %4030
    %4032 = vrot.lane.b32.xlu0 %v3997, 126
    %v4033 = vpop.permute.xlu0 %4032
    %v4034 = vsel %vm175, %v4031, %v4033
    %v4035 = vsel %vm175, %v4033, %v4031
    %v4036 = vmul.f32 %v4034, %v182
    %v4037 = vmul.f32 %v4035, %v186
    %4038 = vrot.lane.b32.xlu0 %v3996, 98
    %v4039 = vpop.permute.xlu0 %4038
    %4040 = vrot.lane.b32.xlu0 %v3997, 98
    %v4041 = vpop.permute.xlu0 %4040
    %v4042 = vsel %vm195, %v4039, %v4041
    %v4043 = vsel %vm195, %v4041, %v4039
    %v4044 = vmul.f32 %v4042, %v202
    %v4045 = vmul.f32 %v4043, %v206
    %4046 = vrot.lane.b32.xlu0 %v3996, 96
    %v4047 = vpop.permute.xlu0 %4046
    %4048 = vrot.lane.b32.xlu0 %v3997, 96
    %v4049 = vpop.permute.xlu0 %4048
    %v4050 = vsel %vm215, %v4047, %v4049
    %v4051 = vsel %vm215, %v4049, %v4047
    %v4052 = vmul.f32 %v4050, %v222
    %v4053 = vmul.f32 %v4051, %v226
    %4054 = vrot.lane.b32.xlu0 %v3996, 94
    %v4055 = vpop.permute.xlu0 %4054
    %4056 = vrot.lane.b32.xlu0 %v3997, 94
    %v4057 = vpop.permute.xlu0 %4056
    %v4058 = vsel %vm235, %v4055, %v4057
    %v4059 = vsel %vm235, %v4057, %v4055
    %v4060 = vmul.f32 %v4058, %v242
    %v4061 = vmul.f32 %v4059, %v246
    %v4064 = vrot.slane %v4012, 2
    %v4065 = vrot.slane %v4013, 2
    %v4070 = vrot.slane %v4020, 4
    %v4071 = vrot.slane %v4021, 4
    %v4076 = vrot.slane %v4028, 6
    %v4077 = vrot.slane %v4029, 6
    %v4082 = vrot.slane %v4036, 2
    %v4083 = vrot.slane %v4037, 2
    %v4088 = vrot.slane %v4044, 4
    %v4089 = vrot.slane %v4045, 4
    %v4094 = vrot.slane %v4052, 6
    %v4095 = vrot.slane %v4053, 6
    %v4098 = vsel %vm292, %v4004, %v4064
    %v4099 = vsel %vm292, %v4005, %v4065
    %v4100 = vsel %vm298, %v4064, %v4070
    %v4101 = vsel %vm298, %v4065, %v4071
    %v4102 = vsel %vm304, %v4070, %v4076
    %v4103 = vsel %vm304, %v4071, %v4077
    %v4104 = vsel %vm292, %v3996, %v4082
    %v4105 = vsel %vm292, %v3997, %v4083
    %v4106 = vsel %vm298, %v4082, %v4088
    %v4107 = vsel %vm298, %v4083, %v4089
    %v4108 = vsel %vm304, %v4088, %v4094
    %v4109 = vsel %vm304, %v4089, %v4095
    %v4110 = vsel %vm292, %v4060, 0.0
    %v4111 = vsel %vm292, %v4061, 0.0
    %4112 = vst [vmem:[#allocation2 + $0x70] sm:$0xff] %v4098
    %4113 = vst [vmem:[#allocation2 + $0x78] sm:$0xff] %v4099
    %4114 = vst [vmem:[#allocation2 + $0x80] sm:$0xff] %v4100
    %4115 = vst [vmem:[#allocation2 + $0x88] sm:$0xff] %v4101
    %4116 = vst [vmem:[#allocation2 + $0x90] sm:$0xff] %v4102
    %4117 = vst [vmem:[#allocation2 + $0x98] sm:$0xff] %v4103
    %4118 = vst [vmem:[#allocation2 + $0xa0] sm:$0xff] %v4104
    %4119 = vst [vmem:[#allocation2 + $0xa8] sm:$0xff] %v4105
    %4120 = vst [vmem:[#allocation2 + $0xb0] sm:$0xff] %v4106
    %4121 = vst [vmem:[#allocation2 + $0xb8] sm:$0xff] %v4107
    %4122 = vst [vmem:[#allocation2 + $0xc0] sm:$0xff] %v4108
    %4123 = vst [vmem:[#allocation2 + $0xc8] sm:$0xff] %v4109
    %4124 = vst [vmem:[#allocation2 + $0xd0] sm:$0xff] %v4110
    %4125 = vst [vmem:[#allocation2 + $0xd8] sm:$0xff] %v4111
    %v4126 = vld [vmem:[%s4] sm:$0x3f]
    %v4127 = vld [vmem:[#allocation2] sm:$0xff]
    %v4128 = vld [vmem:[#allocation2 + $0x8] sm:$0xff]
    %v4129 = vld [vmem:[#allocation2 + $0x10] sm:$0xff]
    %v4130 = vld [vmem:[#allocation2 + $0x18] sm:$0xff]
    %v4131 = vld [vmem:[#allocation2 + $0x20] sm:$0xff]
    %v4132 = vld [vmem:[#allocation2 + $0x28] sm:$0xff]
    %v4133 = vld [vmem:[#allocation2 + $0x30] sm:$0xff]
    %v4134 = vld [vmem:[#allocation2 + $0x38] sm:$0xff]
    %v4135 = vld [vmem:[#allocation2 + $0x40] sm:$0xff]
    %v4136 = vld [vmem:[#allocation2 + $0x48] sm:$0xff]
    %v4137 = vld [vmem:[#allocation2 + $0x50] sm:$0xff]
    %v4138 = vld [vmem:[#allocation2 + $0x58] sm:$0xff]
    %v4139 = vld [vmem:[#allocation2 + $0x60] sm:$0xff]
    %v4140 = vld [vmem:[#allocation2 + $0x68] sm:$0xff]
    %v4141 = vld [vmem:[#allocation2 + $0x70] sm:$0xff]
    %v4142 = vld [vmem:[#allocation2 + $0x78] sm:$0xff]
    %v4143 = vld [vmem:[#allocation2 + $0x80] sm:$0xff]
    %v4144 = vld [vmem:[#allocation2 + $0x88] sm:$0xff]
    %v4145 = vld [vmem:[#allocation2 + $0x90] sm:$0xff]
    %v4146 = vld [vmem:[#allocation2 + $0x98] sm:$0xff]
    %v4147 = vld [vmem:[#allocation2 + $0xa0] sm:$0xff]
    %v4148 = vld [vmem:[#allocation2 + $0xa8] sm:$0xff]
    %v4149 = vld [vmem:[#allocation2 + $0xb0] sm:$0xff]
    %v4150 = vld [vmem:[#allocation2 + $0xb8] sm:$0xff]
    %v4151 = vld [vmem:[#allocation2 + $0xc0] sm:$0xff]
    %v4152 = vld [vmem:[#allocation2 + $0xc8] sm:$0xff]
    %v4153 = vld [vmem:[#allocation2 + $0xd0] sm:$0xff]
    %v4154 = vld [vmem:[#allocation2 + $0xd8] sm:$0xff]
    %v4155 = vld [vmem:[%s1222] sm:$0x3f]
    %4157 = vset.pattern.permute.xlu0 0
    %4158 = vperm.xlu0 %4157, %v4155
    %v4159 = vpop.permute.xlu0 %4158
    %v4162 = vsel %vm1229, %v4126, 0
    %4164 = vmatprep.subr.mxu0 %v4128
    %4165 = vmatpush1.msra.mxu0 %v4127
    %4166 = vmatprep.subr.mxu0 %v4130
    %4167 = vmatpush1.msra.mxu0 %v4129
    %4168 = vmatprep.subr.mxu0 %v4132
    %4169 = vmatpush1.msra.mxu0 %v4131
    %4170 = vmatprep.subr.mxu0 %v4134
    %4171 = vmatpush1.msra.mxu0 %v4133
    %4172 = vmatprep.subr.mxu0 %v4136
    %4173 = vmatpush1.msra.mxu0 %v4135
    %4174 = vmatprep.subr.mxu0 %v4138
    %4175 = vmatpush1.msra.mxu0 %v4137
    %4176 = vmatprep.subr.mxu0 %v4140
    %4177 = vmatpush1.msra.mxu0 %v4139
    %4178 = vmatprep.subr.mxu0 %v4142
    %4179 = vmatpush1.msra.mxu0 %v4141
    %4180 = vmatprep.subr.mxu0 %v4144
    %4181 = vmatpush1.msra.mxu0 %v4143
    %4182 = vmatprep.subr.mxu0 %v4146
    %4183 = vmatpush1.msra.mxu0 %v4145
    %4184 = vmatprep.subr.mxu0 %v4148
    %4185 = vmatpush1.msra.mxu0 %v4147
    %4186 = vmatprep.subr.mxu0 %v4150
    %4187 = vmatpush1.msra.mxu0 %v4149
    %4188 = vmatprep.subr.mxu0 %v4152
    %4189 = vmatpush1.msra.mxu0 %v4151
    %4190 = vmatprep.subr.mxu0 %v4154
    %4191 = vmatpush1.msra.mxu0 %v4153
    %4192 = vmatprep.subr.mxu0 0.0
    %4193 = vmatpush1.msra.mxu0 0.0
    %4194 = vmatprep.subr.mxu0 0.0
    %4195 = vmatpush1.msra.mxu0 0.0
    %4196 = vmatprep.subr.mxu0 0.0
    %4197 = vmatpush1.msra.mxu0 0.0
    %4198 = vmatprep.subr.mxu0 0.0
    %4199 = vmatpush1.msra.mxu0 0.0
    %4200 = vmatprep.subr.mxu0 0.0
    %4201 = vmatpush1.msra.mxu0 0.0
    %4202 = vmatprep.subr.mxu0 0.0
    %4203 = vmatpush1.msra.mxu0 0.0
    %4204 = vmatprep.subr.mxu0 0.0
    %4205 = vmatpush1.msra.mxu0 0.0
    %4206 = vmatprep.subr.mxu0 0.0
    %4207 = vmatpush1.msra.mxu0 0.0
    %4208 = vmatprep.subr.mxu0 0.0
    %4209 = vmatpush1.msra.mxu0 0.0
    %4210 = vmatprep.subr.mxu0 0.0
    %4211 = vmatpush1.msra.mxu0 0.0
    %4212 = vmatprep.subr.mxu0 0.0
    %4213 = vmatpush1.msra.mxu0 0.0
    %4214 = vmatprep.subr.mxu0 0.0
    %4215 = vmatpush1.msra.mxu0 0.0
    %4216 = vmatprep.subr.mxu0 0.0
    %4217 = vmatpush1.msra.mxu0 0.0
    %4218 = vmatprep.subr.mxu0 0.0
    %4219 = vmatpush1.msra.mxu0 0.0
    %4220 = vmatprep.subr.mxu0 0.0
    %4221 = vmatpush1.msra.mxu0 0.0
    %4222 = vmatprep.subr.mxu0 0.0
    %4223 = vmatpush1.msra.mxu0 0.0
    %4224 = vmatprep.subr.mxu0 0.0
    %4225 = vmatpush1.msra.mxu0 0.0
    %4226 = vmatprep.subr.mxu0 0.0
    %4227 = vmatpush1.msra.mxu0 0.0
    %4228 = vmatprep.mubr.f32.mxu0 0.0
    %4229 = vmatmul.mubr.f32.gmra.mrb[0].mxu0 %v4162
    %v4230 = vpop.f32.mrb[0].mxu0
    %v4231 = vadd.f32 %v4159, %v4230
    %v4232 = vpop.f32.mrb[0].mxu0
    %v4233 = vadd.f32 %v4159, %v4232
    %4234 = vdwg.mxu0
    %v4235 = vld [vmem:[%s1304] sm:$0x3f]
    %v4236 = vld [vmem:[%s1306] sm:$0x3f]
    %v4237 = vsel %vm292, %v4231, 0.0
    %v4238 = vsel %vm292, %v4233, 0.0
    %v4239 = vadd.f32 %v4237, %v4238
    %4240 = vadd.xlane.f32.xlu0 %v4239
    %v4241 = vpop.xlane.xlu0 %4240
    %v4242 = vmul.f32 %v4241, %v407
    %v4243 = vmul.f32 %v4231, %v4231
    %v4244 = vmul.f32 %v4233, %v4233
    %v4245 = vsel %vm292, %v4243, 0.0
    %v4246 = vsel %vm292, %v4244, 0.0
    %v4247 = vadd.f32 %v4245, %v4246
    %4248 = vadd.xlane.f32.xlu0 %v4247
    %v4249 = vpop.xlane.xlu0 %4248
    %v4250 = vmul.f32 %v4249, %v407
    %v4251 = vmul.f32 %v4242, %v4242
    %v4252 = vsub.f32 %v4250, %v4251
    %v4253 = vmax.f32 %v4252, 0.0
    %v4254 = vsub.f32 %v4231, %v4242
    %v4255 = vsub.f32 %v4233, %v4242
    %v4256 = vadd.f32 %v4253, 1e-05
    %v4257 = vrsqrt.pop %v4256
    %v4258 = vmul.f32 %v4254, %v4257
    %v4259 = vmul.f32 %v4255, %v4257
    %4261 = vset.pattern.permute.xlu0 0
    %4262 = vperm.xlu0 %4261, %v4235
    %v4263 = vpop.permute.xlu0 %4262
    %v4265 = vmul.f32 %v4258, %v4263
    %v4266 = vmul.f32 %v4259, %v4263
    %4268 = vset.pattern.permute.xlu0 0
    %4269 = vperm.xlu0 %4268, %v4236
    %v4270 = vpop.permute.xlu0 %4269
    %v4272 = vadd.f32 %v4265, %v4270
    %v4273 = vadd.f32 %v4266, %v4270
    %vm4274 = vcmp.ge.f32.partialorder %v4272, 0.0
    %vm4275 = vcmp.ge.f32.partialorder %v4273, 0.0
    %v4276 = vmul.f32 %v4272, 0.22916667
    %v4277 = vmul.f32 %v4273, 0.22916667
    %v4278 = vsel %vm4274, %v4272, %v4276
    %v4279 = vsel %vm4275, %v4273, %v4277
    %v4280 = vsel %vm292, %v4278, 0.0
    %v4281 = vrot.slane %v4280, 4
    %v4282 = vadd.f32 %v4280, %v4281
    %v4283 = vrot.slane %v4282, 2
    %v4284 = vadd.f32 %v4282, %v4283
    %v4285 = vrot.slane %v4284, 1
    %v4286 = vadd.f32 %v4284, %v4285
    %v4287 = vsel %vm292, %v4279, 0.0
    %v4288 = vrot.slane %v4287, 4
    %v4289 = vadd.f32 %v4287, %v4288
    %v4290 = vrot.slane %v4289, 2
    %v4291 = vadd.f32 %v4289, %v4290
    %v4292 = vrot.slane %v4291, 1
    %v4293 = vadd.f32 %v4291, %v4292
    %v4294 = vmul.f32 %v4286, %v732
    %v4295 = vmul.f32 %v4293, %v732
    %v4296 = vsel %vm292, %v4278, -inf
    %v4297 = vrot.slane %v4296, 4
    %v4298 = vmax.f32 %v4296, %v4297
    %v4299 = vrot.slane %v4298, 2
    %v4300 = vmax.f32 %v4298, %v4299
    %v4301 = vrot.slane %v4300, 1
    %v4302 = vmax.f32 %v4300, %v4301
    %v4303 = vsel %vm292, %v4279, -inf
    %v4304 = vrot.slane %v4303, 4
    %v4305 = vmax.f32 %v4303, %v4304
    %v4306 = vrot.slane %v4305, 2
    %v4307 = vmax.f32 %v4305, %v4306
    %v4308 = vrot.slane %v4307, 1
    %v4309 = vmax.f32 %v4307, %v4308
    %v4310 = vsel %vm295, %v4294, %v4302
    %v4311 = vsel %vm295, %v4295, %v4309
    %4312 = vrot.lane.b32.xlu0 %v4310, 17
    %v4313 = vpop.permute.xlu0 %4312
    %4314 = vrot.lane.b32.xlu0 %v4311, 17
    %v4315 = vpop.permute.xlu0 %4314
    %v4316 = vsel %vm755, %v4313, %v4315
    %v4317 = vsel %vm755, %v4315, %v4313
    %v4318 = vmul.f32 %v4317, %v762
    %v4319 = vmul.f32 %v4316, %v766
    %4320 = vrot.lane.b32.xlu0 %v4310, 16
    %v4321 = vpop.permute.xlu0 %4320
    %4322 = vrot.lane.b32.xlu0 %v4311, 16
    %v4323 = vpop.permute.xlu0 %4322
    %v4324 = vsel %vm775, %v4321, %v4323
    %v4325 = vsel %vm775, %v4323, %v4321
    %v4326 = vmul.f32 %v4325, %v782
    %v4327 = vmul.f32 %v4324, %v786
    %4328 = vrot.lane.b32.xlu0 %v4310, 15
    %v4329 = vpop.permute.xlu0 %4328
    %4330 = vrot.lane.b32.xlu0 %v4311, 15
    %v4331 = vpop.permute.xlu0 %4330
    %v4332 = vsel %vm795, %v4329, %v4331
    %v4333 = vsel %vm795, %v4331, %v4329
    %v4334 = vmul.f32 %v4333, %v802
    %v4335 = vmul.f32 %v4332, %v806
    %4336 = vrot.lane.b32.xlu0 %v4310, 1
    %v4337 = vpop.permute.xlu0 %4336
    %4338 = vrot.lane.b32.xlu0 %v4311, 1
    %v4339 = vpop.permute.xlu0 %4338
    %v4340 = vsel %vm815, %v4337, %v4339
    %v4341 = vsel %vm815, %v4339, %v4337
    %v4342 = vmul.f32 %v4341, %v822
    %v4343 = vmul.f32 %v4340, %v826
    %4344 = vrot.lane.b32.xlu0 %v4310, 127
    %v4345 = vpop.permute.xlu0 %4344
    %4346 = vrot.lane.b32.xlu0 %v4311, 127
    %v4347 = vpop.permute.xlu0 %4346
    %v4348 = vsel %vm835, %v4345, %v4347
    %v4349 = vsel %vm835, %v4347, %v4345
    %v4350 = vmul.f32 %v4348, %v842
    %v4351 = vmul.f32 %v4349, %v846
    %4352 = vrot.lane.b32.xlu0 %v4310, 113
    %v4353 = vpop.permute.xlu0 %4352
    %4354 = vrot.lane.b32.xlu0 %v4311, 113
    %v4355 = vpop.permute.xlu0 %4354
    %v4356 = vsel %vm855, %v4353, %v4355
    %v4357 = vsel %vm855, %v4355, %v4353
    %v4358 = vmul.f32 %v4356, %v862
    %v4359 = vmul.f32 %v4357, %v866
    %4360 = vrot.lane.b32.xlu0 %v4310, 112
    %v4361 = vpop.permute.xlu0 %4360
    %4362 = vrot.lane.b32.xlu0 %v4311, 112
    %v4363 = vpop.permute.xlu0 %4362
    %v4364 = vsel %vm875, %v4361, %v4363
    %v4365 = vsel %vm875, %v4363, %v4361
    %v4366 = vmul.f32 %v4364, %v882
    %v4367 = vmul.f32 %v4365, %v886
    %4368 = vrot.lane.b32.xlu0 %v4310, 111
    %v4369 = vpop.permute.xlu0 %4368
    %4370 = vrot.lane.b32.xlu0 %v4311, 111
    %v4371 = vpop.permute.xlu0 %4370
    %v4372 = vsel %vm895, %v4369, %v4371
    %v4373 = vsel %vm895, %v4371, %v4369
    %v4374 = vmul.f32 %v4372, %v902
    %v4375 = vmul.f32 %v4373, %v906
    %v4378 = vrot.slane %v4326, 6
    %v4379 = vrot.slane %v4327, 6
    %v4384 = vrot.slane %v4334, 4
    %v4385 = vrot.slane %v4335, 4
    %v4390 = vrot.slane %v4342, 2
    %v4391 = vrot.slane %v4343, 2
    %v4396 = vrot.slane %v4350, 6
    %v4397 = vrot.slane %v4351, 6
    %v4402 = vrot.slane %v4358, 4
    %v4403 = vrot.slane %v4359, 4
    %v4408 = vrot.slane %v4366, 2
    %v4409 = vrot.slane %v4367, 2
    %v4412 = vsel %vm304, %v4318, %v4378
    %v4413 = vsel %vm304, %v4319, %v4379
    %v4414 = vsel %vm298, %v4412, %v4384
    %v4415 = vsel %vm298, %v4413, %v4385
    %v4416 = vsel %vm292, %v4414, %v4390
    %v4417 = vsel %vm292, %v4415, %v4391
    %v4418 = vsel %vm304, %v4310, %v4396
    %v4419 = vsel %vm304, %v4311, %v4397
    %v4420 = vsel %vm298, %v4418, %v4402
    %v4421 = vsel %vm298, %v4419, %v4403
    %v4422 = vsel %vm292, %v4420, %v4408
    %v4423 = vsel %vm292, %v4421, %v4409
    %v4424 = vld [vmem:[%s10 + $0x1] sm:$0x1]
    %s4425 = sld [smem:[#allocation3 + $0x1]]
    %v4426 = vstv %s4425
    %v4428 = vsel %vm962, %v4424, 0
    %v4431 = vsel %vm304, %v4374, 0
    %v4434 = vsel %vm304, %v4375, 0
    %4436 = vmatprep.subr.mxu0 %v4417
    %4437 = vmatpush1.msra.mxu0 %v4416
    %4438 = vmatprep.subr.mxu0 %v4423
    %4439 = vmatpush1.msra.mxu0 %v4422
    %4440 = vmatprep.subr.mxu0 %v4434
    %4441 = vmatpush1.msra.mxu0 %v4431
    %4442 = vmatprep.subr.mxu0 0.0
    %4443 = vmatpush1.msra.mxu0 0.0
    %4444 = vmatprep.subr.mxu0 0.0
    %4445 = vmatpush1.msra.mxu0 0.0
    %4446 = vmatprep.subr.mxu0 0.0
    %4447 = vmatpush1.msra.mxu0 0.0
    %4448 = vmatprep.subr.mxu0 0.0
    %4449 = vmatpush1.msra.mxu0 0.0
    %4450 = vmatprep.subr.mxu0 0.0
    %4451 = vmatpush1.msra.mxu0 0.0
    %4452 = vmatprep.subr.mxu0 0.0
    %4453 = vmatpush1.msra.mxu0 0.0
    %4454 = vmatprep.subr.mxu0 0.0
    %4455 = vmatpush1.msra.mxu0 0.0
    %4456 = vmatprep.subr.mxu0 0.0
    %4457 = vmatpush1.msra.mxu0 0.0
    %4458 = vmatprep.subr.mxu0 0.0
    %4459 = vmatpush1.msra.mxu0 0.0
    %4460 = vmatprep.subr.mxu0 0.0
    %4461 = vmatpush1.msra.mxu0 0.0
    %4462 = vmatprep.subr.mxu0 0.0
    %4463 = vmatpush1.msra.mxu0 0.0
    %4464 = vmatprep.subr.mxu0 0.0
    %4465 = vmatpush1.msra.mxu0 0.0
    %4466 = vmatprep.subr.mxu0 0.0
    %4467 = vmatpush1.msra.mxu0 0.0
    %4468 = vmatprep.subr.mxu0 0.0
    %4469 = vmatpush1.msra.mxu0 0.0
    %4470 = vmatprep.subr.mxu0 0.0
    %4471 = vmatpush1.msra.mxu0 0.0
    %4472 = vmatprep.subr.mxu0 0.0
    %4473 = vmatpush1.msra.mxu0 0.0
    %4474 = vmatprep.subr.mxu0 0.0
    %4475 = vmatpush1.msra.mxu0 0.0
    %4476 = vmatprep.subr.mxu0 0.0
    %4477 = vmatpush1.msra.mxu0 0.0
    %4478 = vmatprep.subr.mxu0 0.0
    %4479 = vmatpush1.msra.mxu0 0.0
    %4480 = vmatprep.subr.mxu0 0.0
    %4481 = vmatpush1.msra.mxu0 0.0
    %4482 = vmatprep.subr.mxu0 0.0
    %4483 = vmatpush1.msra.mxu0 0.0
    %4484 = vmatprep.subr.mxu0 0.0
    %4485 = vmatpush1.msra.mxu0 0.0
    %4486 = vmatprep.subr.mxu0 0.0
    %4487 = vmatpush1.msra.mxu0 0.0
    %4488 = vmatprep.subr.mxu0 0.0
    %4489 = vmatpush1.msra.mxu0 0.0
    %4490 = vmatprep.subr.mxu0 0.0
    %4491 = vmatpush1.msra.mxu0 0.0
    %4492 = vmatprep.subr.mxu0 0.0
    %4493 = vmatpush1.msra.mxu0 0.0
    %4494 = vmatprep.subr.mxu0 0.0
    %4495 = vmatpush1.msra.mxu0 0.0
    %4496 = vmatprep.subr.mxu0 0.0
    %4497 = vmatpush1.msra.mxu0 0.0
    %4498 = vmatprep.subr.mxu0 0.0
    %4499 = vmatpush1.msra.mxu0 0.0
    %4500 = vmatprep.mubr.f32.mxu0 0.0
    %4501 = vmatmul.mubr.f32.gmra.mrb[0].mxu0 %v4428
    %v4502 = vpop.f32.mrb[0].mxu0
    %v4503 = vadd.f32 %v4426, %v4502
    %v4504 = vpop.f32.mrb[0].mxu0
    %v4505 = vadd.f32 %v4426, %v4504
    %4506 = vdwg.mxu0
    %v4507 = vxor.u32 %v4503, 2147483648
    %v4508 = vxor.u32 %v4505, 2147483648
    %v4509 = vmul.f32 %v4507, 1.442695
    %v4510 = vpow.pop %v4509
    %v4511 = vmul.f32 %v4508, 1.442695
    %v4512 = vpow.pop %v4511
    %v4513 = vadd.f32 %v4510, 1.0
    %v4514 = vadd.f32 %v4512, 1.0
    %v4515 = vrcp.pop %v4513
    %v4516 = vmul.f32 1.0, %v4515
    %v4517 = vrcp.pop %v4514
    %v4518 = vmul.f32 1.0, %v4517
    %v4519 = vlaneseq
    %v4520 = vshrl.u32 %v4519, 7
    %v4521 = vsub.s32 0, %v4520
    %v4522 = vrot.slane %v4516, %v4521
    %v4523 = vlaneseq
    %v4524 = vshrl.u32 %v4523, 7
    %v4525 = vsub.s32 0, %v4524
    %v4526 = vrot.slane %v4518, %v4525
    %v4527 = vmul.f32 %v4278, %v4522
    %v4528 = vmul.f32 %v4279, %v4526
    %4529 = vrot.lane.b32.xlu0 %v4527, 34
    %v4530 = vpop.permute.xlu0 %4529
    %4531 = vrot.lane.b32.xlu0 %v4528, 34
    %v4532 = vpop.permute.xlu0 %4531
    %v4533 = vsel %vm95, %v4530, %v4532
    %v4534 = vsel %vm95, %v4532, %v4530
    %v4535 = vmul.f32 %v4534, %v102
    %v4536 = vmul.f32 %v4533, %v106
    %4537 = vrot.lane.b32.xlu0 %v4527, 32
    %v4538 = vpop.permute.xlu0 %4537
    %4539 = vrot.lane.b32.xlu0 %v4528, 32
    %v4540 = vpop.permute.xlu0 %4539
    %v4541 = vsel %vm115, %v4538, %v4540
    %v4542 = vsel %vm115, %v4540, %v4538
    %v4543 = vmul.f32 %v4542, %v122
    %v4544 = vmul.f32 %v4541, %v126
    %4545 = vrot.lane.b32.xlu0 %v4527, 30
    %v4546 = vpop.permute.xlu0 %4545
    %4547 = vrot.lane.b32.xlu0 %v4528, 30
    %v4548 = vpop.permute.xlu0 %4547
    %v4549 = vsel %vm135, %v4546, %v4548
    %v4550 = vsel %vm135, %v4548, %v4546
    %v4551 = vmul.f32 %v4550, %v142
    %v4552 = vmul.f32 %v4549, %v146
    %4553 = vrot.lane.b32.xlu0 %v4527, 2
    %v4554 = vpop.permute.xlu0 %4553
    %4555 = vrot.lane.b32.xlu0 %v4528, 2
    %v4556 = vpop.permute.xlu0 %4555
    %v4557 = vsel %vm155, %v4554, %v4556
    %v4558 = vsel %vm155, %v4556, %v4554
    %v4559 = vmul.f32 %v4558, %v162
    %v4560 = vmul.f32 %v4557, %v166
    %4561 = vrot.lane.b32.xlu0 %v4527, 126
    %v4562 = vpop.permute.xlu0 %4561
    %4563 = vrot.lane.b32.xlu0 %v4528, 126
    %v4564 = vpop.permute.xlu0 %4563
    %v4565 = vsel %vm175, %v4562, %v4564
    %v4566 = vsel %vm175, %v4564, %v4562
    %v4567 = vmul.f32 %v4565, %v182
    %v4568 = vmul.f32 %v4566, %v186
    %4569 = vrot.lane.b32.xlu0 %v4527, 98
    %v4570 = vpop.permute.xlu0 %4569
    %4571 = vrot.lane.b32.xlu0 %v4528, 98
    %v4572 = vpop.permute.xlu0 %4571
    %v4573 = vsel %vm195, %v4570, %v4572
    %v4574 = vsel %vm195, %v4572, %v4570
    %v4575 = vmul.f32 %v4573, %v202
    %v4576 = vmul.f32 %v4574, %v206
    %4577 = vrot.lane.b32.xlu0 %v4527, 96
    %v4578 = vpop.permute.xlu0 %4577
    %4579 = vrot.lane.b32.xlu0 %v4528, 96
    %v4580 = vpop.permute.xlu0 %4579
    %v4581 = vsel %vm215, %v4578, %v4580
    %v4582 = vsel %vm215, %v4580, %v4578
    %v4583 = vmul.f32 %v4581, %v222
    %v4584 = vmul.f32 %v4582, %v226
    %4585 = vrot.lane.b32.xlu0 %v4527, 94
    %v4586 = vpop.permute.xlu0 %4585
    %4587 = vrot.lane.b32.xlu0 %v4528, 94
    %v4588 = vpop.permute.xlu0 %4587
    %v4589 = vsel %vm235, %v4586, %v4588
    %v4590 = vsel %vm235, %v4588, %v4586
    %v4591 = vmul.f32 %v4589, %v242
    %v4592 = vmul.f32 %v4590, %v246
    %v4595 = vrot.slane %v4543, 2
    %v4596 = vrot.slane %v4544, 2
    %v4601 = vrot.slane %v4551, 4
    %v4602 = vrot.slane %v4552, 4
    %v4607 = vrot.slane %v4559, 6
    %v4608 = vrot.slane %v4560, 6
    %v4613 = vrot.slane %v4567, 2
    %v4614 = vrot.slane %v4568, 2
    %v4619 = vrot.slane %v4575, 4
    %v4620 = vrot.slane %v4576, 4
    %v4625 = vrot.slane %v4583, 6
    %v4626 = vrot.slane %v4584, 6
    %v4629 = vsel %vm292, %v4535, %v4595
    %v4630 = vsel %vm292, %v4536, %v4596
    %v4631 = vsel %vm298, %v4595, %v4601
    %v4632 = vsel %vm298, %v4596, %v4602
    %v4633 = vsel %vm304, %v4601, %v4607
    %v4634 = vsel %vm304, %v4602, %v4608
    %v4635 = vsel %vm292, %v4527, %v4613
    %v4636 = vsel %vm292, %v4528, %v4614
    %v4637 = vsel %vm298, %v4613, %v4619
    %v4638 = vsel %vm298, %v4614, %v4620
    %v4639 = vsel %vm304, %v4619, %v4625
    %v4640 = vsel %vm304, %v4620, %v4626
    %v4641 = vsel %vm292, %v4591, 0.0
    %v4642 = vsel %vm292, %v4592, 0.0
    %4643 = vst [vmem:[#allocation2 + $0xe0] sm:$0xff] %v4629
    %4644 = vst [vmem:[#allocation2 + $0xe8] sm:$0xff] %v4630
    %4645 = vst [vmem:[#allocation2 + $0xf0] sm:$0xff] %v4631
    %4646 = vst [vmem:[#allocation2 + $0xf8] sm:$0xff] %v4632
    %4647 = vst [vmem:[#allocation2 + $0x100] sm:$0xff] %v4633
    %4648 = vst [vmem:[#allocation2 + $0x108] sm:$0xff] %v4634
    %4649 = vst [vmem:[#allocation2 + $0x110] sm:$0xff] %v4635
    %4650 = vst [vmem:[#allocation2 + $0x118] sm:$0xff] %v4636
    %4651 = vst [vmem:[#allocation2 + $0x120] sm:$0xff] %v4637
    %4652 = vst [vmem:[#allocation2 + $0x128] sm:$0xff] %v4638
    %4653 = vst [vmem:[#allocation2 + $0x130] sm:$0xff] %v4639
    %4654 = vst [vmem:[#allocation2 + $0x138] sm:$0xff] %v4640
    %4655 = vst [vmem:[#allocation2 + $0x140] sm:$0xff] %v4641
    %4656 = vst [vmem:[#allocation2 + $0x148] sm:$0xff] %v4642
    %v4657 = vld [vmem:[%s5] sm:$0x3f]
    %v4658 = vld [vmem:[%s5 + $0x8] sm:$0x3f]
    %v4659 = vld [vmem:[#allocation2] sm:$0xff]
    %v4660 = vld [vmem:[#allocation2 + $0x8] sm:$0xff]
    %v4661 = vld [vmem:[#allocation2 + $0x10] sm:$0xff]
    %v4662 = vld [vmem:[#allocation2 + $0x18] sm:$0xff]
    %v4663 = vld [vmem:[#allocation2 + $0x20] sm:$0xff]
    %v4664 = vld [vmem:[#allocation2 + $0x28] sm:$0xff]
    %v4665 = vld [vmem:[#allocation2 + $0x30] sm:$0xff]
    %v4666 = vld [vmem:[#allocation2 + $0x38] sm:$0xff]
    %v4667 = vld [vmem:[#allocation2 + $0x40] sm:$0xff]
    %v4668 = vld [vmem:[#allocation2 + $0x48] sm:$0xff]
    %v4669 = vld [vmem:[#allocation2 + $0x50] sm:$0xff]
    %v4670 = vld [vmem:[#allocation2 + $0x58] sm:$0xff]
    %v4671 = vld [vmem:[#allocation2 + $0x60] sm:$0xff]
    %v4672 = vld [vmem:[#allocation2 + $0x68] sm:$0xff]
    %v4673 = vld [vmem:[#allocation2 + $0x70] sm:$0xff]
    %v4674 = vld [vmem:[#allocation2 + $0x78] sm:$0xff]
    %v4675 = vld [vmem:[#allocation2 + $0x80] sm:$0xff]
    %v4676 = vld [vmem:[#allocation2 + $0x88] sm:$0xff]
    %v4677 = vld [vmem:[#allocation2 + $0x90] sm:$0xff]
    %v4678 = vld [vmem:[#allocation2 + $0x98] sm:$0xff]
    %v4679 = vld [vmem:[#allocation2 + $0xa0] sm:$0xff]
    %v4680 = vld [vmem:[#allocation2 + $0xa8] sm:$0xff]
    %v4681 = vld [vmem:[#allocation2 + $0xb0] sm:$0xff]
    %v4682 = vld [vmem:[#allocation2 + $0xb8] sm:$0xff]
    %v4683 = vld [vmem:[#allocation2 + $0xc0] sm:$0xff]
    %v4684 = vld [vmem:[#allocation2 + $0xc8] sm:$0xff]
    %v4685 = vld [vmem:[#allocation2 + $0xd0] sm:$0xff]
    %v4686 = vld [vmem:[#allocation2 + $0xd8] sm:$0xff]
    %v4687 = vld [vmem:[#allocation2 + $0xe0] sm:$0xff]
    %v4688 = vld [vmem:[#allocation2 + $0xe8] sm:$0xff]
    %v4689 = vld [vmem:[#allocation2 + $0xf0] sm:$0xff]
    %v4690 = vld [vmem:[#allocation2 + $0xf8] sm:$0xff]
    %v4691 = vld [vmem:[#allocation2 + $0x100] sm:$0xff]
    %v4692 = vld [vmem:[#allocation2 + $0x108] sm:$0xff]
    %v4693 = vld [vmem:[#allocation2 + $0x110] sm:$0xff]
    %v4694 = vld [vmem:[#allocation2 + $0x118] sm:$0xff]
    %v4695 = vld [vmem:[#allocation2 + $0x120] sm:$0xff]
    %v4696 = vld [vmem:[#allocation2 + $0x128] sm:$0xff]
    %v4697 = vld [vmem:[#allocation2 + $0x130] sm:$0xff]
    %v4698 = vld [vmem:[#allocation2 + $0x138] sm:$0xff]
    %v4699 = vld [vmem:[#allocation2 + $0x140] sm:$0xff]
    %v4700 = vld [vmem:[#allocation2 + $0x148] sm:$0xff]
    %v4701 = vld [vmem:[%s1772] sm:$0x3f]
    %4703 = vset.pattern.permute.xlu0 0
    %4704 = vperm.xlu0 %4703, %v4701
    %v4705 = vpop.permute.xlu0 %4704
    %v4708 = vsel %vm1779, %v4658, 0
    %4710 = vmatprep.subr.mxu0 %v4660
    %4711 = vmatpush1.msra.mxu0 %v4659
    %4712 = vmatprep.subr.mxu0 %v4662
    %4713 = vmatpush1.msra.mxu0 %v4661
    %4714 = vmatprep.subr.mxu0 %v4664
    %4715 = vmatpush1.msra.mxu0 %v4663
    %4716 = vmatprep.subr.mxu0 %v4666
    %4717 = vmatpush1.msra.mxu0 %v4665
    %4718 = vmatprep.subr.mxu0 %v4668
    %4719 = vmatpush1.msra.mxu0 %v4667
    %4720 = vmatprep.subr.mxu0 %v4670
    %4721 = vmatpush1.msra.mxu0 %v4669
    %4722 = vmatprep.subr.mxu0 %v4672
    %4723 = vmatpush1.msra.mxu0 %v4671
    %4724 = vmatprep.subr.mxu0 %v4674
    %4725 = vmatpush1.msra.mxu0 %v4673
    %4726 = vmatprep.subr.mxu0 %v4676
    %4727 = vmatpush1.msra.mxu0 %v4675
    %4728 = vmatprep.subr.mxu0 %v4678
    %4729 = vmatpush1.msra.mxu0 %v4677
    %4730 = vmatprep.subr.mxu0 %v4680
    %4731 = vmatpush1.msra.mxu0 %v4679
    %4732 = vmatprep.subr.mxu0 %v4682
    %4733 = vmatpush1.msra.mxu0 %v4681
    %4734 = vmatprep.subr.mxu0 %v4684
    %4735 = vmatpush1.msra.mxu0 %v4683
    %4736 = vmatprep.subr.mxu0 %v4686
    %4737 = vmatpush1.msra.mxu0 %v4685
    %4738 = vmatprep.subr.mxu0 %v4688
    %4739 = vmatpush1.msra.mxu0 %v4687
    %4740 = vmatprep.subr.mxu0 %v4690
    %4741 = vmatpush1.msra.mxu0 %v4689
    %4742 = vmatprep.subr.mxu0 %v4692
    %4743 = vmatpush1.msra.mxu0 %v4691
    %4744 = vmatprep.subr.mxu0 %v4694
    %4745 = vmatpush1.msra.mxu0 %v4693
    %4746 = vmatprep.subr.mxu0 %v4696
    %4747 = vmatpush1.msra.mxu0 %v4695
    %4748 = vmatprep.subr.mxu0 %v4698
    %4749 = vmatpush1.msra.mxu0 %v4697
    %4750 = vmatprep.subr.mxu0 %v4700
    %4751 = vmatpush1.msra.mxu0 %v4699
    %4752 = vmatprep.subr.mxu0 0.0
    %4753 = vmatpush1.msra.mxu0 0.0
    %4754 = vmatprep.subr.mxu0 0.0
    %4755 = vmatpush1.msra.mxu0 0.0
    %4756 = vmatprep.subr.mxu0 0.0
    %4757 = vmatpush1.msra.mxu0 0.0
    %4758 = vmatprep.subr.mxu0 0.0
    %4759 = vmatpush1.msra.mxu0 0.0
    %4760 = vmatprep.subr.mxu0 0.0
    %4761 = vmatpush1.msra.mxu0 0.0
    %4762 = vmatprep.subr.mxu0 0.0
    %4763 = vmatpush1.msra.mxu0 0.0
    %4764 = vmatprep.subr.mxu0 0.0
    %4765 = vmatpush1.msra.mxu0 0.0
    %4766 = vmatprep.subr.mxu0 0.0
    %4767 = vmatpush1.msra.mxu0 0.0
    %4768 = vmatprep.subr.mxu0 0.0
    %4769 = vmatpush1.msra.mxu0 0.0
    %4770 = vmatprep.subr.mxu0 0.0
    %4771 = vmatpush1.msra.mxu0 0.0
    %4772 = vmatprep.subr.mxu0 0.0
    %4773 = vmatpush1.msra.mxu0 0.0
    %4774 = vmatprep.mubr.f32.mxu0 %v4708
    %4775 = vmatmul.mubr.f32.gmra.mrb[0].mxu0 %v4657
    %v4776 = vpop.f32.mrb[0].mxu0
    %v4777 = vadd.f32 %v4705, %v4776
    %v4778 = vpop.f32.mrb[0].mxu0
    %v4779 = vadd.f32 %v4705, %v4778
    %4780 = vdwg.mxu0
    %v4781 = vld [vmem:[%s1854] sm:$0x3f]
    %v4782 = vld [vmem:[%s1856] sm:$0x3f]
    %v4783 = vsel %vm292, %v4777, 0.0
    %v4784 = vsel %vm292, %v4779, 0.0
    %v4785 = vadd.f32 %v4783, %v4784
    %4786 = vadd.xlane.f32.xlu0 %v4785
    %v4787 = vpop.xlane.xlu0 %4786
    %v4788 = vmul.f32 %v4787, %v407
    %v4789 = vmul.f32 %v4777, %v4777
    %v4790 = vmul.f32 %v4779, %v4779
    %v4791 = vsel %vm292, %v4789, 0.0
    %v4792 = vsel %vm292, %v4790, 0.0
    %v4793 = vadd.f32 %v4791, %v4792
    %4794 = vadd.xlane.f32.xlu0 %v4793
    %v4795 = vpop.xlane.xlu0 %4794
    %v4796 = vmul.f32 %v4795, %v407
    %v4797 = vmul.f32 %v4788, %v4788
    %v4798 = vsub.f32 %v4796, %v4797
    %v4799 = vmax.f32 %v4798, 0.0
    %v4800 = vsub.f32 %v4777, %v4788
    %v4801 = vsub.f32 %v4779, %v4788
    %v4802 = vadd.f32 %v4799, 1e-05
    %v4803 = vrsqrt.pop %v4802
    %v4804 = vmul.f32 %v4800, %v4803
    %v4805 = vmul.f32 %v4801, %v4803
    %4807 = vset.pattern.permute.xlu0 0
    %4808 = vperm.xlu0 %4807, %v4781
    %v4809 = vpop.permute.xlu0 %4808
    %v4811 = vmul.f32 %v4804, %v4809
    %v4812 = vmul.f32 %v4805, %v4809
    %4814 = vset.pattern.permute.xlu0 0
    %4815 = vperm.xlu0 %4814, %v4782
    %v4816 = vpop.permute.xlu0 %4815
    %v4818 = vadd.f32 %v4811, %v4816
    %v4819 = vadd.f32 %v4812, %v4816
    %vm4820 = vcmp.ge.f32.partialorder %v4818, 0.0
    %vm4821 = vcmp.ge.f32.partialorder %v4819, 0.0
    %v4822 = vmul.f32 %v4818, 0.22916667
    %v4823 = vmul.f32 %v4819, 0.22916667
    %v4824 = vsel %vm4820, %v4818, %v4822
    %v4825 = vsel %vm4821, %v4819, %v4823
    %v4826 = vsel %vm292, %v4824, 0.0
    %v4827 = vrot.slane %v4826, 4
    %v4828 = vadd.f32 %v4826, %v4827
    %v4829 = vrot.slane %v4828, 2
    %v4830 = vadd.f32 %v4828, %v4829
    %v4831 = vrot.slane %v4830, 1
    %v4832 = vadd.f32 %v4830, %v4831
    %v4833 = vsel %vm292, %v4825, 0.0
    %v4834 = vrot.slane %v4833, 4
    %v4835 = vadd.f32 %v4833, %v4834
    %v4836 = vrot.slane %v4835, 2
    %v4837 = vadd.f32 %v4835, %v4836
    %v4838 = vrot.slane %v4837, 1
    %v4839 = vadd.f32 %v4837, %v4838
    %v4840 = vmul.f32 %v4832, %v732
    %v4841 = vmul.f32 %v4839, %v732
    %v4842 = vsel %vm292, %v4824, -inf
    %v4843 = vrot.slane %v4842, 4
    %v4844 = vmax.f32 %v4842, %v4843
    %v4845 = vrot.slane %v4844, 2
    %v4846 = vmax.f32 %v4844, %v4845
    %v4847 = vrot.slane %v4846, 1
    %v4848 = vmax.f32 %v4846, %v4847
    %v4849 = vsel %vm292, %v4825, -inf
    %v4850 = vrot.slane %v4849, 4
    %v4851 = vmax.f32 %v4849, %v4850
    %v4852 = vrot.slane %v4851, 2
    %v4853 = vmax.f32 %v4851, %v4852
    %v4854 = vrot.slane %v4853, 1
    %v4855 = vmax.f32 %v4853, %v4854
    %v4856 = vsel %vm295, %v4840, %v4848
    %v4857 = vsel %vm295, %v4841, %v4855
    %4858 = vrot.lane.b32.xlu0 %v4856, 17
    %v4859 = vpop.permute.xlu0 %4858
    %4860 = vrot.lane.b32.xlu0 %v4857, 17
    %v4861 = vpop.permute.xlu0 %4860
    %v4862 = vsel %vm755, %v4859, %v4861
    %v4863 = vsel %vm755, %v4861, %v4859
    %v4864 = vmul.f32 %v4863, %v762
    %v4865 = vmul.f32 %v4862, %v766
    %4866 = vrot.lane.b32.xlu0 %v4856, 16
    %v4867 = vpop.permute.xlu0 %4866
    %4868 = vrot.lane.b32.xlu0 %v4857, 16
    %v4869 = vpop.permute.xlu0 %4868
    %v4870 = vsel %vm775, %v4867, %v4869
    %v4871 = vsel %vm775, %v4869, %v4867
    %v4872 = vmul.f32 %v4871, %v782
    %v4873 = vmul.f32 %v4870, %v786
    %4874 = vrot.lane.b32.xlu0 %v4856, 15
    %v4875 = vpop.permute.xlu0 %4874
    %4876 = vrot.lane.b32.xlu0 %v4857, 15
    %v4877 = vpop.permute.xlu0 %4876
    %v4878 = vsel %vm795, %v4875, %v4877
    %v4879 = vsel %vm795, %v4877, %v4875
    %v4880 = vmul.f32 %v4879, %v802
    %v4881 = vmul.f32 %v4878, %v806
    %4882 = vrot.lane.b32.xlu0 %v4856, 1
    %v4883 = vpop.permute.xlu0 %4882
    %4884 = vrot.lane.b32.xlu0 %v4857, 1
    %v4885 = vpop.permute.xlu0 %4884
    %v4886 = vsel %vm815, %v4883, %v4885
    %v4887 = vsel %vm815, %v4885, %v4883
    %v4888 = vmul.f32 %v4887, %v822
    %v4889 = vmul.f32 %v4886, %v826
    %4890 = vrot.lane.b32.xlu0 %v4856, 127
    %v4891 = vpop.permute.xlu0 %4890
    %4892 = vrot.lane.b32.xlu0 %v4857, 127
    %v4893 = vpop.permute.xlu0 %4892
    %v4894 = vsel %vm835, %v4891, %v4893
    %v4895 = vsel %vm835, %v4893, %v4891
    %v4896 = vmul.f32 %v4894, %v842
    %v4897 = vmul.f32 %v4895, %v846
    %4898 = vrot.lane.b32.xlu0 %v4856, 113
    %v4899 = vpop.permute.xlu0 %4898
    %4900 = vrot.lane.b32.xlu0 %v4857, 113
    %v4901 = vpop.permute.xlu0 %4900
    %v4902 = vsel %vm855, %v4899, %v4901
    %v4903 = vsel %vm855, %v4901, %v4899
    %v4904 = vmul.f32 %v4902, %v862
    %v4905 = vmul.f32 %v4903, %v866
    %4906 = vrot.lane.b32.xlu0 %v4856, 112
    %v4907 = vpop.permute.xlu0 %4906
    %4908 = vrot.lane.b32.xlu0 %v4857, 112
    %v4909 = vpop.permute.xlu0 %4908
    %v4910 = vsel %vm875, %v4907, %v4909
    %v4911 = vsel %vm875, %v4909, %v4907
    %v4912 = vmul.f32 %v4910, %v882
    %v4913 = vmul.f32 %v4911, %v886
    %4914 = vrot.lane.b32.xlu0 %v4856, 111
    %v4915 = vpop.permute.xlu0 %4914
    %4916 = vrot.lane.b32.xlu0 %v4857, 111
    %v4917 = vpop.permute.xlu0 %4916
    %v4918 = vsel %vm895, %v4915, %v4917
    %v4919 = vsel %vm895, %v4917, %v4915
    %v4920 = vmul.f32 %v4918, %v902
    %v4921 = vmul.f32 %v4919, %v906
    %v4924 = vrot.slane %v4872, 6
    %v4925 = vrot.slane %v4873, 6
    %v4930 = vrot.slane %v4880, 4
    %v4931 = vrot.slane %v4881, 4
    %v4936 = vrot.slane %v4888, 2
    %v4937 = vrot.slane %v4889, 2
    %v4942 = vrot.slane %v4896, 6
    %v4943 = vrot.slane %v4897, 6
    %v4948 = vrot.slane %v4904, 4
    %v4949 = vrot.slane %v4905, 4
    %v4954 = vrot.slane %v4912, 2
    %v4955 = vrot.slane %v4913, 2
    %v4958 = vsel %vm304, %v4864, %v4924
    %v4959 = vsel %vm304, %v4865, %v4925
    %v4960 = vsel %vm298, %v4958, %v4930
    %v4961 = vsel %vm298, %v4959, %v4931
    %v4962 = vsel %vm292, %v4960, %v4936
    %v4963 = vsel %vm292, %v4961, %v4937
    %v4964 = vsel %vm304, %v4856, %v4942
    %v4965 = vsel %vm304, %v4857, %v4943
    %v4966 = vsel %vm298, %v4964, %v4948
    %v4967 = vsel %vm298, %v4965, %v4949
    %v4968 = vsel %vm292, %v4966, %v4954
    %v4969 = vsel %vm292, %v4967, %v4955
    %v4970 = vld [vmem:[%s10 + $0x2] sm:$0x1]
    %s4971 = sld [smem:[#allocation3 + $0x2]]
    %v4972 = vstv %s4971
    %v4974 = vsel %vm962, %v4970, 0
    %v4977 = vsel %vm304, %v4920, 0
    %v4980 = vsel %vm304, %v4921, 0
    %4982 = vmatprep.subr.mxu0 %v4963
    %4983 = vmatpush1.msra.mxu0 %v4962
    %4984 = vmatprep.subr.mxu0 %v4969
    %4985 = vmatpush1.msra.mxu0 %v4968
    %4986 = vmatprep.subr.mxu0 %v4980
    %4987 = vmatpush1.msra.mxu0 %v4977
    %4988 = vmatprep.subr.mxu0 0.0
    %4989 = vmatpush1.msra.mxu0 0.0
    %4990 = vmatprep.subr.mxu0 0.0
    %4991 = vmatpush1.msra.mxu0 0.0
    %4992 = vmatprep.subr.mxu0 0.0
    %4993 = vmatpush1.msra.mxu0 0.0
    %4994 = vmatprep.subr.mxu0 0.0
    %4995 = vmatpush1.msra.mxu0 0.0
    %4996 = vmatprep.subr.mxu0 0.0
    %4997 = vmatpush1.msra.mxu0 0.0
    %4998 = vmatprep.subr.mxu0 0.0
    %4999 = vmatpush1.msra.mxu0 0.0
    %5000 = vmatprep.subr.mxu0 0.0
    %5001 = vmatpush1.msra.mxu0 0.0
    %5002 = vmatprep.subr.mxu0 0.0
    %5003 = vmatpush1.msra.mxu0 0.0
    %5004 = vmatprep.subr.mxu0 0.0
    %5005 = vmatpush1.msra.mxu0 0.0
    %5006 = vmatprep.subr.mxu0 0.0
    %5007 = vmatpush1.msra.mxu0 0.0
    %5008 = vmatprep.subr.mxu0 0.0
    %5009 = vmatpush1.msra.mxu0 0.0
    %5010 = vmatprep.subr.mxu0 0.0
    %5011 = vmatpush1.msra.mxu0 0.0
    %5012 = vmatprep.subr.mxu0 0.0
    %5013 = vmatpush1.msra.mxu0 0.0
    %5014 = vmatprep.subr.mxu0 0.0
    %5015 = vmatpush1.msra.mxu0 0.0
    %5016 = vmatprep.subr.mxu0 0.0
    %5017 = vmatpush1.msra.mxu0 0.0
    %5018 = vmatprep.subr.mxu0 0.0
    %5019 = vmatpush1.msra.mxu0 0.0
    %5020 = vmatprep.subr.mxu0 0.0
    %5021 = vmatpush1.msra.mxu0 0.0
    %5022 = vmatprep.subr.mxu0 0.0
    %5023 = vmatpush1.msra.mxu0 0.0
    %5024 = vmatprep.subr.mxu0 0.0
    %5025 = vmatpush1.msra.mxu0 0.0
    %5026 = vmatprep.subr.mxu0 0.0
    %5027 = vmatpush1.msra.mxu0 0.0
    %5028 = vmatprep.subr.mxu0 0.0
    %5029 = vmatpush1.msra.mxu0 0.0
    %5030 = vmatprep.subr.mxu0 0.0
    %5031 = vmatpush1.msra.mxu0 0.0
    %5032 = vmatprep.subr.mxu0 0.0
    %5033 = vmatpush1.msra.mxu0 0.0
    %5034 = vmatprep.subr.mxu0 0.0
    %5035 = vmatpush1.msra.mxu0 0.0
    %5036 = vmatprep.subr.mxu0 0.0
    %5037 = vmatpush1.msra.mxu0 0.0
    %5038 = vmatprep.subr.mxu0 0.0
    %5039 = vmatpush1.msra.mxu0 0.0
    %5040 = vmatprep.subr.mxu0 0.0
    %5041 = vmatpush1.msra.mxu0 0.0
    %5042 = vmatprep.subr.mxu0 0.0
    %5043 = vmatpush1.msra.mxu0 0.0
    %5044 = vmatprep.subr.mxu0 0.0
    %5045 = vmatpush1.msra.mxu0 0.0
    %5046 = vmatprep.mubr.f32.mxu0 0.0
    %5047 = vmatmul.mubr.f32.gmra.mrb[0].mxu0 %v4974
    %v5048 = vpop.f32.mrb[0].mxu0
    %v5049 = vadd.f32 %v4972, %v5048
    %v5050 = vpop.f32.mrb[0].mxu0
    %v5051 = vadd.f32 %v4972, %v5050
    %5052 = vdwg.mxu0
    %v5053 = vxor.u32 %v5049, 2147483648
    %v5054 = vxor.u32 %v5051, 2147483648
    %v5055 = vmul.f32 %v5053, 1.442695
    %v5056 = vpow.pop %v5055
    %v5057 = vmul.f32 %v5054, 1.442695
    %v5058 = vpow.pop %v5057
    %v5059 = vadd.f32 %v5056, 1.0
    %v5060 = vadd.f32 %v5058, 1.0
    %v5061 = vrcp.pop %v5059
    %v5062 = vmul.f32 1.0, %v5061
    %v5063 = vrcp.pop %v5060
    %v5064 = vmul.f32 1.0, %v5063
    %v5065 = vlaneseq
    %v5066 = vshrl.u32 %v5065, 7
    %v5067 = vsub.s32 0, %v5066
    %v5068 = vrot.slane %v5062, %v5067
    %v5069 = vlaneseq
    %v5070 = vshrl.u32 %v5069, 7
    %v5071 = vsub.s32 0, %v5070
    %v5072 = vrot.slane %v5064, %v5071
    %v5073 = vmul.f32 %v4824, %v5068
    %v5074 = vmul.f32 %v4825, %v5072
    %v5077 = vrot.slane %v3996, 2
    %v5078 = vrot.slane %v3997, 2
    %v5083 = vrot.slane %v4527, 4
    %v5084 = vrot.slane %v4528, 4
    %v5089 = vrot.slane %v5073, 6
    %v5090 = vrot.slane %v5074, 6
    %v5093 = vsel %vm292, %v3479, %v5077
    %v5094 = vsel %vm292, %v3480, %v5078
    %v5095 = vsel %vm298, %v5077, %v5083
    %v5096 = vsel %vm298, %v5078, %v5084
    %v5097 = vsel %vm304, %v5083, %v5089
    %v5098 = vsel %vm304, %v5084, %v5090
    %v5099 = vmax.f32 %v5093, %v5094
    %5100 = vmax.xlane.f32.xlu0 %v5099
    %v5101 = vpop.xlane.xlu0 %5100
    %v5102 = vmax.f32 %v5095, %v5096
    %5103 = vmax.xlane.f32.xlu0 %v5102
    %v5104 = vpop.xlane.xlu0 %5103
    %v5105 = vmax.f32 %v5097, %v5098
    %5106 = vmax.xlane.f32.xlu0 %v5105
    %v5107 = vpop.xlane.xlu0 %5106
    %v5108 = vadd.f32 %v5093, %v5094
    %5109 = vadd.xlane.f32.xlu0 %v5108
    %v5110 = vpop.xlane.xlu0 %5109
    %v5111 = vadd.f32 %v5095, %v5096
    %5112 = vadd.xlane.f32.xlu0 %v5111
    %v5113 = vpop.xlane.xlu0 %5112
    %v5114 = vadd.f32 %v5097, %v5098
    %5115 = vadd.xlane.f32.xlu0 %v5114
    %v5116 = vpop.xlane.xlu0 %5115
    %v5117 = vmul.f32 %v5110, %v407
    %v5118 = vmul.f32 %v5113, %v407
    %v5119 = vmul.f32 %v5116, %v407
    %v5120 = vld [vmem:[%s9] sm:$0xff]
    %v5121 = vld [vmem:[%s9 + $0x8] sm:$0xff]
    %v5122 = vld [vmem:[%s9 + $0x10] sm:$0xff]
    %v5124 = vsel %vm2198, %v5120, 0
    %v5127 = vsel %vm2198, %v5121, 0
    %v5130 = vsel %vm2198, %v5122, 0
    %5132 = vmatprep.subr.mxu0 0.0
    %5133 = vmatpush1.msra.mxu0 %v5101
    %5134 = vmatprep.subr.mxu0 0.0
    %5135 = vmatpush1.msra.mxu0 %v5104
    %5136 = vmatprep.subr.mxu0 0.0
    %5137 = vmatpush1.msra.mxu0 %v5107
    %5138 = vmatprep.subr.mxu0 0.0
    %5139 = vmatpush1.msra.mxu0 %v5117
    %5140 = vmatprep.subr.mxu0 0.0
    %5141 = vmatpush1.msra.mxu0 %v5118
    %5142 = vmatprep.subr.mxu0 0.0
    %5143 = vmatpush1.msra.mxu0 %v5119
    %5144 = vmatprep.subr.mxu0 0.0
    %5145 = vmatpush1.msra.mxu0 0.0
    %5146 = vmatprep.subr.mxu0 0.0
    %5147 = vmatpush1.msra.mxu0 0.0
    %5148 = vmatprep.subr.mxu0 0.0
    %5149 = vmatpush1.msra.mxu0 0.0
    %5150 = vmatprep.subr.mxu0 0.0
    %5151 = vmatpush1.msra.mxu0 0.0
    %5152 = vmatprep.subr.mxu0 0.0
    %5153 = vmatpush1.msra.mxu0 0.0
    %5154 = vmatprep.subr.mxu0 0.0
    %5155 = vmatpush1.msra.mxu0 0.0
    %5156 = vmatprep.subr.mxu0 0.0
    %5157 = vmatpush1.msra.mxu0 0.0
    %5158 = vmatprep.subr.mxu0 0.0
    %5159 = vmatpush1.msra.mxu0 0.0
    %5160 = vmatprep.subr.mxu0 0.0
    %5161 = vmatpush1.msra.mxu0 0.0
    %5162 = vmatprep.subr.mxu0 0.0
    %5163 = vmatpush1.msra.mxu0 0.0
    %5164 = vmatprep.subr.mxu0 0.0
    %5165 = vmatpush1.msra.mxu0 0.0
    %5166 = vmatprep.subr.mxu0 0.0
    %5167 = vmatpush1.msra.mxu0 0.0
    %5168 = vmatprep.subr.mxu0 0.0
    %5169 = vmatpush1.msra.mxu0 0.0
    %5170 = vmatprep.subr.mxu0 0.0
    %5171 = vmatpush1.msra.mxu0 0.0
    %5172 = vmatprep.subr.mxu0 0.0
    %5173 = vmatpush1.msra.mxu0 0.0
    %5174 = vmatprep.subr.mxu0 0.0
    %5175 = vmatpush1.msra.mxu0 0.0
    %5176 = vmatprep.subr.mxu0 0.0
    %5177 = vmatpush1.msra.mxu0 0.0
    %5178 = vmatprep.subr.mxu0 0.0
    %5179 = vmatpush1.msra.mxu0 0.0
    %5180 = vmatprep.subr.mxu0 0.0
    %5181 = vmatpush1.msra.mxu0 0.0
    %5182 = vmatprep.subr.mxu0 0.0
    %5183 = vmatpush1.msra.mxu0 0.0
    %5184 = vmatprep.subr.mxu0 0.0
    %5185 = vmatpush1.msra.mxu0 0.0
    %5186 = vmatprep.subr.mxu0 0.0
    %5187 = vmatpush1.msra.mxu0 0.0
    %5188 = vmatprep.subr.mxu0 0.0
    %5189 = vmatpush1.msra.mxu0 0.0
    %5190 = vmatprep.subr.mxu0 0.0
    %5191 = vmatpush1.msra.mxu0 0.0
    %5192 = vmatprep.subr.mxu0 0.0
    %5193 = vmatpush1.msra.mxu0 0.0
    %5194 = vmatprep.subr.mxu0 0.0
    %5195 = vmatpush1.msra.mxu0 0.0
    %5196 = vmatprep.mubr.f32.mxu0 0.0
    %5197 = vmatmul.mubr.f32.gmra.mrb[0].mxu0 %v5124
    %v5198 = vpop.f32.mrb[0].mxu0
    %v5199 = vadd.f32 0.0, %v5198
    %v5200 = vpop.f32.mrb[0].mxu0
    %5201 = vmatprep.mubr.f32.mxu0 0.0
    %5202 = vmatmul.mubr.f32.gmra.mrb[0].mxu0 %v5127
    %v5203 = vpop.f32.mrb[0].mxu0
    %v5204 = vadd.f32 0.0, %v5203
    %v5205 = vpop.f32.mrb[0].mxu0
    %5206 = vmatprep.mubr.f32.mxu0 0.0
    %5207 = vmatmul.mubr.f32.gmra.mrb[0].mxu0 %v5130
    %v5208 = vpop.f32.mrb[0].mxu0
    %v5209 = vadd.f32 0.0, %v5208
    %v5210 = vpop.f32.mrb[0].mxu0
    %5211 = vdwg.mxu0
    %v5212 = vxor.u32 %v5199, 2147483648
    %v5213 = vxor.u32 %v5204, 2147483648
    %v5214 = vxor.u32 %v5209, 2147483648
    %v5215 = vmul.f32 %v5212, 1.442695
    %v5216 = vpow.pop %v5215
    %v5217 = vmul.f32 %v5213, 1.442695
    %v5218 = vpow.pop %v5217
    %v5219 = vmul.f32 %v5214, 1.442695
    %v5220 = vpow.pop %v5219
    %v5221 = vadd.f32 %v5216, 1.0
    %v5222 = vadd.f32 %v5218, 1.0
    %v5223 = vadd.f32 %v5220, 1.0
    %v5224 = vrcp.pop %v5221
    %v5225 = vmul.f32 1.0, %v5224
    %v5226 = vrcp.pop %v5222
    %v5227 = vmul.f32 1.0, %v5226
    %v5228 = vrcp.pop %v5223
    %v5229 = vmul.f32 1.0, %v5228
    %v5230 = vld [vmem:[%s7] sm:$0x7]
    %5232 = vset.pattern.permute.xlu0 0
    %5233 = vperm.xlu0 %5232, %v5225
    %v5234 = vpop.permute.xlu0 %5233
    %5237 = vset.pattern.permute.xlu0 0
    %5238 = vperm.xlu0 %5237, %v5227
    %v5239 = vpop.permute.xlu0 %5238
    %5242 = vset.pattern.permute.xlu0 0
    %5243 = vperm.xlu0 %5242, %v5229
    %v5244 = vpop.permute.xlu0 %5243
    %v5246 = vmul.f32 %v5093, %v5234
    %v5247 = vmul.f32 %v5094, %v5234
    %v5248 = vmul.f32 %v5095, %v5239
    %v5249 = vmul.f32 %v5096, %v5239
    %v5250 = vmul.f32 %v5097, %v5244
    %v5251 = vmul.f32 %v5098, %v5244
    %v5252 = vld [vmem:[%s8] sm:$0x7]
    %5254 = vset.pattern.permute.xlu0 0
    %5255 = vperm.xlu0 %5254, %v5252
    %v5256 = vpop.permute.xlu0 %5255
    %v5259 = vsel %vm2334, %v5230, 0
    %5261 = vmatprep.subr.mxu0 %v5247
    %5262 = vmatpush1.msra.mxu0 %v5246
    %5263 = vmatprep.subr.mxu0 %v5249
    %5264 = vmatpush1.msra.mxu0 %v5248
    %5265 = vmatprep.subr.mxu0 %v5251
    %5266 = vmatpush1.msra.mxu0 %v5250
    %5267 = vmatprep.subr.mxu0 0.0
    %5268 = vmatpush1.msra.mxu0 0.0
    %5269 = vmatprep.subr.mxu0 0.0
    %5270 = vmatpush1.msra.mxu0 0.0
    %5271 = vmatprep.subr.mxu0 0.0
    %5272 = vmatpush1.msra.mxu0 0.0
    %5273 = vmatprep.subr.mxu0 0.0
    %5274 = vmatpush1.msra.mxu0 0.0
    %5275 = vmatprep.subr.mxu0 0.0
    %5276 = vmatpush1.msra.mxu0 0.0
    %5277 = vmatprep.subr.mxu0 0.0
    %5278 = vmatpush1.msra.mxu0 0.0
    %5279 = vmatprep.subr.mxu0 0.0
    %5280 = vmatpush1.msra.mxu0 0.0
    %5281 = vmatprep.subr.mxu0 0.0
    %5282 = vmatpush1.msra.mxu0 0.0
    %5283 = vmatprep.subr.mxu0 0.0
    %5284 = vmatpush1.msra.mxu0 0.0
    %5285 = vmatprep.subr.mxu0 0.0
    %5286 = vmatpush1.msra.mxu0 0.0
    %5287 = vmatprep.subr.mxu0 0.0
    %5288 = vmatpush1.msra.mxu0 0.0
    %5289 = vmatprep.subr.mxu0 0.0
    %5290 = vmatpush1.msra.mxu0 0.0
    %5291 = vmatprep.subr.mxu0 0.0
    %5292 = vmatpush1.msra.mxu0 0.0
    %5293 = vmatprep.subr.mxu0 0.0
    %5294 = vmatpush1.msra.mxu0 0.0
    %5295 = vmatprep.subr.mxu0 0.0
    %5296 = vmatpush1.msra.mxu0 0.0
    %5297 = vmatprep.subr.mxu0 0.0
    %5298 = vmatpush1.msra.mxu0 0.0
    %5299 = vmatprep.subr.mxu0 0.0
    %5300 = vmatpush1.msra.mxu0 0.0
    %5301 = vmatprep.subr.mxu0 0.0
    %5302 = vmatpush1.msra.mxu0 0.0
    %5303 = vmatprep.subr.mxu0 0.0
    %5304 = vmatpush1.msra.mxu0 0.0
    %5305 = vmatprep.subr.mxu0 0.0
    %5306 = vmatpush1.msra.mxu0 0.0
    %5307 = vmatprep.subr.mxu0 0.0
    %5308 = vmatpush1.msra.mxu0 0.0
    %5309 = vmatprep.subr.mxu0 0.0
    %5310 = vmatpush1.msra.mxu0 0.0
    %5311 = vmatprep.subr.mxu0 0.0
    %5312 = vmatpush1.msra.mxu0 0.0
    %5313 = vmatprep.subr.mxu0 0.0
    %5314 = vmatpush1.msra.mxu0 0.0
    %5315 = vmatprep.subr.mxu0 0.0
    %5316 = vmatpush1.msra.mxu0 0.0
    %5317 = vmatprep.subr.mxu0 0.0
    %5318 = vmatpush1.msra.mxu0 0.0
    %5319 = vmatprep.subr.mxu0 0.0
    %5320 = vmatpush1.msra.mxu0 0.0
    %5321 = vmatprep.subr.mxu0 0.0
    %5322 = vmatpush1.msra.mxu0 0.0
    %5323 = vmatprep.subr.mxu0 0.0
    %5324 = vmatpush1.msra.mxu0 0.0
    %5325 = vmatprep.mubr.f32.mxu0 0.0
    %5326 = vmatmul.mubr.f32.gmra.mrb[0].mxu0 %v5259
    %v5327 = vpop.f32.mrb[0].mxu0
    %v5328 = vadd.f32 %v5256, %v5327
    %v5329 = vpop.f32.mrb[0].mxu0
    %v5330 = vadd.f32 %v5256, %v5329
    %5331 = vdwg.mxu0
    %v5332 = vld [vmem:[%s2409] sm:$0x7]
    %v5333 = vld [vmem:[%s2411] sm:$0x7]
    %v5334 = vsel %vm289, %v5328, 0.0
    %v5335 = vsel %vm289, %v5330, 0.0
    %v5336 = vadd.f32 %v5334, %v5335
    %5337 = vadd.xlane.f32.xlu0 %v5336
    %v5338 = vpop.xlane.xlu0 %5337
    %v5339 = vmul.f32 %v5338, %v407
    %v5340 = vmul.f32 %v5328, %v5328
    %v5341 = vmul.f32 %v5330, %v5330
    %v5342 = vsel %vm289, %v5340, 0.0
    %v5343 = vsel %vm289, %v5341, 0.0
    %v5344 = vadd.f32 %v5342, %v5343
    %5345 = vadd.xlane.f32.xlu0 %v5344
    %v5346 = vpop.xlane.xlu0 %5345
    %v5347 = vmul.f32 %v5346, %v407
    %v5348 = vmul.f32 %v5339, %v5339
    %v5349 = vsub.f32 %v5347, %v5348
    %v5350 = vmax.f32 %v5349, 0.0
    %v5351 = vsub.f32 %v5328, %v5339
    %v5352 = vsub.f32 %v5330, %v5339
    %v5353 = vadd.f32 %v5350, 1e-05
    %v5354 = vrsqrt.pop %v5353
    %v5355 = vmul.f32 %v5351, %v5354
    %v5356 = vmul.f32 %v5352, %v5354
    %5358 = vset.pattern.permute.xlu0 0
    %5359 = vperm.xlu0 %5358, %v5332
    %v5360 = vpop.permute.xlu0 %5359
    %v5362 = vmul.f32 %v5355, %v5360
    %v5363 = vmul.f32 %v5356, %v5360
    %5365 = vset.pattern.permute.xlu0 0
    %5366 = vperm.xlu0 %5365, %v5333
    %v5367 = vpop.permute.xlu0 %5366
    %v5369 = vadd.f32 %v5362, %v5367
    %v5370 = vadd.f32 %v5363, %v5367
    %v5371 = vsel %vm289, %v5369, 0.0
    %v5372 = vrot.slane %v5371, 4
    %v5373 = vadd.f32 %v5371, %v5372
    %v5374 = vrot.slane %v5373, 2
    %v5375 = vadd.f32 %v5373, %v5374
    %v5376 = vrot.slane %v5375, 1
    %v5377 = vadd.f32 %v5375, %v5376
    %v5378 = vsel %vm289, %v5370, 0.0
    %v5379 = vrot.slane %v5378, 4
    %v5380 = vadd.f32 %v5378, %v5379
    %v5381 = vrot.slane %v5380, 2
    %v5382 = vadd.f32 %v5380, %v5381
    %v5383 = vrot.slane %v5382, 1
    %v5384 = vadd.f32 %v5382, %v5383
    %v5385 = vmul.f32 %v5377, %v2464
    %v5386 = vmul.f32 %v5384, %v2464
    %v5387 = vsel %vm289, %v5369, -inf
    %v5388 = vrot.slane %v5387, 4
    %v5389 = vmax.f32 %v5387, %v5388
    %v5390 = vrot.slane %v5389, 2
    %v5391 = vmax.f32 %v5389, %v5390
    %v5392 = vrot.slane %v5391, 1
    %v5393 = vmax.f32 %v5391, %v5392
    %v5394 = vsel %vm289, %v5370, -inf
    %v5395 = vrot.slane %v5394, 4
    %v5396 = vmax.f32 %v5394, %v5395
    %v5397 = vrot.slane %v5396, 2
    %v5398 = vmax.f32 %v5396, %v5397
    %v5399 = vrot.slane %v5398, 1
    %v5400 = vmax.f32 %v5398, %v5399
    %v5401 = vsel %vm295, %v5385, %v5393
    %v5402 = vsel %vm295, %v5386, %v5400
    %5403 = vrot.lane.b32.xlu0 %v5401, 17
    %v5404 = vpop.permute.xlu0 %5403
    %5405 = vrot.lane.b32.xlu0 %v5402, 17
    %v5406 = vpop.permute.xlu0 %5405
    %v5407 = vsel %vm755, %v5404, %v5406
    %v5408 = vsel %vm755, %v5406, %v5404
    %v5409 = vmul.f32 %v5408, %v762
    %v5410 = vmul.f32 %v5407, %v766
    %5411 = vrot.lane.b32.xlu0 %v5401, 16
    %v5412 = vpop.permute.xlu0 %5411
    %5413 = vrot.lane.b32.xlu0 %v5402, 16
    %v5414 = vpop.permute.xlu0 %5413
    %v5415 = vsel %vm775, %v5412, %v5414
    %v5416 = vsel %vm775, %v5414, %v5412
    %v5417 = vmul.f32 %v5416, %v782
    %v5418 = vmul.f32 %v5415, %v786
    %5419 = vrot.lane.b32.xlu0 %v5401, 15
    %v5420 = vpop.permute.xlu0 %5419
    %5421 = vrot.lane.b32.xlu0 %v5402, 15
    %v5422 = vpop.permute.xlu0 %5421
    %v5423 = vsel %vm795, %v5420, %v5422
    %v5424 = vsel %vm795, %v5422, %v5420
    %v5425 = vmul.f32 %v5424, %v802
    %v5426 = vmul.f32 %v5423, %v806
    %5427 = vrot.lane.b32.xlu0 %v5401, 1
    %v5428 = vpop.permute.xlu0 %5427
    %5429 = vrot.lane.b32.xlu0 %v5402, 1
    %v5430 = vpop.permute.xlu0 %5429
    %v5431 = vsel %vm815, %v5428, %v5430
    %v5432 = vsel %vm815, %v5430, %v5428
    %v5433 = vmul.f32 %v5432, %v822
    %v5434 = vmul.f32 %v5431, %v826
    %5435 = vrot.lane.b32.xlu0 %v5401, 127
    %v5436 = vpop.permute.xlu0 %5435
    %5437 = vrot.lane.b32.xlu0 %v5402, 127
    %v5438 = vpop.permute.xlu0 %5437
    %v5439 = vsel %vm835, %v5436, %v5438
    %v5440 = vsel %vm835, %v5438, %v5436
    %v5441 = vmul.f32 %v5439, %v842
    %v5442 = vmul.f32 %v5440, %v846
    %5443 = vrot.lane.b32.xlu0 %v5401, 113
    %v5444 = vpop.permute.xlu0 %5443
    %5445 = vrot.lane.b32.xlu0 %v5402, 113
    %v5446 = vpop.permute.xlu0 %5445
    %v5447 = vsel %vm855, %v5444, %v5446
    %v5448 = vsel %vm855, %v5446, %v5444
    %v5449 = vmul.f32 %v5447, %v862
    %v5450 = vmul.f32 %v5448, %v866
    %5451 = vrot.lane.b32.xlu0 %v5401, 112
    %v5452 = vpop.permute.xlu0 %5451
    %5453 = vrot.lane.b32.xlu0 %v5402, 112
    %v5454 = vpop.permute.xlu0 %5453
    %v5455 = vsel %vm875, %v5452, %v5454
    %v5456 = vsel %vm875, %v5454, %v5452
    %v5457 = vmul.f32 %v5455, %v882
    %v5458 = vmul.f32 %v5456, %v886
    %5459 = vrot.lane.b32.xlu0 %v5401, 111
    %v5460 = vpop.permute.xlu0 %5459
    %5461 = vrot.lane.b32.xlu0 %v5402, 111
    %v5462 = vpop.permute.xlu0 %5461
    %v5463 = vsel %vm895, %v5460, %v5462
    %v5464 = vsel %vm895, %v5462, %v5460
    %v5465 = vmul.f32 %v5463, %v902
    %v5466 = vmul.f32 %v5464, %v906
    %v5469 = vrot.slane %v5417, 6
    %v5470 = vrot.slane %v5418, 6
    %v5475 = vrot.slane %v5425, 4
    %v5476 = vrot.slane %v5426, 4
    %v5481 = vrot.slane %v5433, 2
    %v5482 = vrot.slane %v5434, 2
    %v5487 = vrot.slane %v5441, 6
    %v5488 = vrot.slane %v5442, 6
    %v5493 = vrot.slane %v5449, 4
    %v5494 = vrot.slane %v5450, 4
    %v5499 = vrot.slane %v5457, 2
    %v5500 = vrot.slane %v5458, 2
    %v5503 = vsel %vm304, %v5409, %v5469
    %v5504 = vsel %vm304, %v5410, %v5470
    %v5505 = vsel %vm298, %v5503, %v5475
    %v5506 = vsel %vm298, %v5504, %v5476
    %v5507 = vsel %vm292, %v5505, %v5481
    %v5508 = vsel %vm292, %v5506, %v5482
    %v5509 = vsel %vm304, %v5401, %v5487
    %v5510 = vsel %vm304, %v5402, %v5488
    %v5511 = vsel %vm298, %v5509, %v5493
    %v5512 = vsel %vm298, %v5510, %v5494
    %v5513 = vsel %vm292, %v5511, %v5499
    %v5514 = vsel %vm292, %v5512, %v5500
    %v5515 = vld [vmem:[%s10 + $0x3] sm:$0x1]
    %s5516 = sld [smem:[#allocation3 + $0x3]]
    %v5517 = vstv %s5516
    %v5519 = vsel %vm962, %v5515, 0
    %v5522 = vsel %vm304, %v5465, 0
    %v5525 = vsel %vm304, %v5466, 0
    %5527 = vmatprep.subr.mxu0 %v5508
    %5528 = vmatpush1.msra.mxu0 %v5507
    %5529 = vmatprep.subr.mxu0 %v5514
    %5530 = vmatpush1.msra.mxu0 %v5513
    %5531 = vmatprep.subr.mxu0 %v5525
    %5532 = vmatpush1.msra.mxu0 %v5522
    %5533 = vmatprep.subr.mxu0 0.0
    %5534 = vmatpush1.msra.mxu0 0.0
    %5535 = vmatprep.subr.mxu0 0.0
    %5536 = vmatpush1.msra.mxu0 0.0
    %5537 = vmatprep.subr.mxu0 0.0
    %5538 = vmatpush1.msra.mxu0 0.0
    %5539 = vmatprep.subr.mxu0 0.0
    %5540 = vmatpush1.msra.mxu0 0.0
    %5541 = vmatprep.subr.mxu0 0.0
    %5542 = vmatpush1.msra.mxu0 0.0
    %5543 = vmatprep.subr.mxu0 0.0
    %5544 = vmatpush1.msra.mxu0 0.0
    %5545 = vmatprep.subr.mxu0 0.0
    %5546 = vmatpush1.msra.mxu0 0.0
    %5547 = vmatprep.subr.mxu0 0.0
    %5548 = vmatpush1.msra.mxu0 0.0
    %5549 = vmatprep.subr.mxu0 0.0
    %5550 = vmatpush1.msra.mxu0 0.0
    %5551 = vmatprep.subr.mxu0 0.0
    %5552 = vmatpush1.msra.mxu0 0.0
    %5553 = vmatprep.subr.mxu0 0.0
    %5554 = vmatpush1.msra.mxu0 0.0
    %5555 = vmatprep.subr.mxu0 0.0
    %5556 = vmatpush1.msra.mxu0 0.0
    %5557 = vmatprep.subr.mxu0 0.0
    %5558 = vmatpush1.msra.mxu0 0.0
    %5559 = vmatprep.subr.mxu0 0.0
    %5560 = vmatpush1.msra.mxu0 0.0
    %5561 = vmatprep.subr.mxu0 0.0
    %5562 = vmatpush1.msra.mxu0 0.0
    %5563 = vmatprep.subr.mxu0 0.0
    %5564 = vmatpush1.msra.mxu0 0.0
    %5565 = vmatprep.subr.mxu0 0.0
    %5566 = vmatpush1.msra.mxu0 0.0
    %5567 = vmatprep.subr.mxu0 0.0
    %5568 = vmatpush1.msra.mxu0 0.0
    %5569 = vmatprep.subr.mxu0 0.0
    %5570 = vmatpush1.msra.mxu0 0.0
    %5571 = vmatprep.subr.mxu0 0.0
    %5572 = vmatpush1.msra.mxu0 0.0
    %5573 = vmatprep.subr.mxu0 0.0
    %5574 = vmatpush1.msra.mxu0 0.0
    %5575 = vmatprep.subr.mxu0 0.0
    %5576 = vmatpush1.msra.mxu0 0.0
    %5577 = vmatprep.subr.mxu0 0.0
    %5578 = vmatpush1.msra.mxu0 0.0
    %5579 = vmatprep.subr.mxu0 0.0
    %5580 = vmatpush1.msra.mxu0 0.0
    %5581 = vmatprep.subr.mxu0 0.0
    %5582 = vmatpush1.msra.mxu0 0.0
    %5583 = vmatprep.subr.mxu0 0.0
    %5584 = vmatpush1.msra.mxu0 0.0
    %5585 = vmatprep.subr.mxu0 0.0
    %5586 = vmatpush1.msra.mxu0 0.0
    %5587 = vmatprep.subr.mxu0 0.0
    %5588 = vmatpush1.msra.mxu0 0.0
    %5589 = vmatprep.subr.mxu0 0.0
    %5590 = vmatpush1.msra.mxu0 0.0
    %5591 = vmatprep.mubr.f32.mxu0 0.0
    %5592 = vmatmul.mubr.f32.gmra.mrb[0].mxu0 %v5519
    %v5593 = vpop.f32.mrb[0].mxu0
    %v5594 = vadd.f32 %v5517, %v5593
    %v5595 = vpop.f32.mrb[0].mxu0
    %v5596 = vadd.f32 %v5517, %v5595
    %5597 = vdwg.mxu0
    %v5598 = vxor.u32 %v5594, 2147483648
    %v5599 = vxor.u32 %v5596, 2147483648
    %v5600 = vmul.f32 %v5598, 1.442695
    %v5601 = vpow.pop %v5600
    %v5602 = vmul.f32 %v5599, 1.442695
    %v5603 = vpow.pop %v5602
    %v5604 = vadd.f32 %v5601, 1.0
    %v5605 = vadd.f32 %v5603, 1.0
    %v5606 = vrcp.pop %v5604
    %v5607 = vmul.f32 1.0, %v5606
    %v5608 = vrcp.pop %v5605
    %v5609 = vmul.f32 1.0, %v5608
    %v5610 = vlaneseq
    %v5611 = vshrl.u32 %v5610, 7
    %v5612 = vsub.s32 0, %v5611
    %v5613 = vrot.slane %v5607, %v5612
    %v5614 = vlaneseq
    %v5615 = vshrl.u32 %v5614, 7
    %v5616 = vsub.s32 0, %v5615
    %v5617 = vrot.slane %v5609, %v5616
    %v5618 = vmul.f32 %v5369, %v5613
    %v5619 = vmul.f32 %v5370, %v5617
    %v5620 = vmax.f32 %v5618, 0.0
    %v5621 = vmax.f32 %v5619, 0.0
    %v5622 = vmin.f32 %v5620, 1.0
    %v5623 = vmin.f32 %v5621, 1.0
    %v5624 = vld [vmem:[%s2704] sm:$0xff]
    %v5625 = vld [vmem:[%s2704 + $0x8] sm:$0xff]
    %v5626 = vld [vmem:[%s2704 + $0x10] sm:$0xff]
    %v5628 = vsel %vm2198, %v5624, 0
    %v5631 = vsel %vm2198, %v5625, 0
    %v5634 = vsel %vm2198, %v5626, 0
    %5636 = vmatprep.subr.mxu0 0.0
    %5637 = vmatpush1.msra.mxu0 %v5101
    %5638 = vmatprep.subr.mxu0 0.0
    %5639 = vmatpush1.msra.mxu0 %v5104
    %5640 = vmatprep.subr.mxu0 0.0
    %5641 = vmatpush1.msra.mxu0 %v5107
    %5642 = vmatprep.subr.mxu0 0.0
    %5643 = vmatpush1.msra.mxu0 %v5117
    %5644 = vmatprep.subr.mxu0 0.0
    %5645 = vmatpush1.msra.mxu0 %v5118
    %5646 = vmatprep.subr.mxu0 0.0
    %5647 = vmatpush1.msra.mxu0 %v5119
    %5648 = vmatprep.subr.mxu0 0.0
    %5649 = vmatpush1.msra.mxu0 0.0
    %5650 = vmatprep.subr.mxu0 0.0
    %5651 = vmatpush1.msra.mxu0 0.0
    %5652 = vmatprep.subr.mxu0 0.0
    %5653 = vmatpush1.msra.mxu0 0.0
    %5654 = vmatprep.subr.mxu0 0.0
    %5655 = vmatpush1.msra.mxu0 0.0
    %5656 = vmatprep.subr.mxu0 0.0
    %5657 = vmatpush1.msra.mxu0 0.0
    %5658 = vmatprep.subr.mxu0 0.0
    %5659 = vmatpush1.msra.mxu0 0.0
    %5660 = vmatprep.subr.mxu0 0.0
    %5661 = vmatpush1.msra.mxu0 0.0
    %5662 = vmatprep.subr.mxu0 0.0
    %5663 = vmatpush1.msra.mxu0 0.0
    %5664 = vmatprep.subr.mxu0 0.0
    %5665 = vmatpush1.msra.mxu0 0.0
    %5666 = vmatprep.subr.mxu0 0.0
    %5667 = vmatpush1.msra.mxu0 0.0
    %5668 = vmatprep.subr.mxu0 0.0
    %5669 = vmatpush1.msra.mxu0 0.0
    %5670 = vmatprep.subr.mxu0 0.0
    %5671 = vmatpush1.msra.mxu0 0.0
    %5672 = vmatprep.subr.mxu0 0.0
    %5673 = vmatpush1.msra.mxu0 0.0
    %5674 = vmatprep.subr.mxu0 0.0
    %5675 = vmatpush1.msra.mxu0 0.0
    %5676 = vmatprep.subr.mxu0 0.0
    %5677 = vmatpush1.msra.mxu0 0.0
    %5678 = vmatprep.subr.mxu0 0.0
    %5679 = vmatpush1.msra.mxu0 0.0
    %5680 = vmatprep.subr.mxu0 0.0
    %5681 = vmatpush1.msra.mxu0 0.0
    %5682 = vmatprep.subr.mxu0 0.0
    %5683 = vmatpush1.msra.mxu0 0.0
    %5684 = vmatprep.subr.mxu0 0.0
    %5685 = vmatpush1.msra.mxu0 0.0
    %5686 = vmatprep.subr.mxu0 0.0
    %5687 = vmatpush1.msra.mxu0 0.0
    %5688 = vmatprep.subr.mxu0 0.0
    %5689 = vmatpush1.msra.mxu0 0.0
    %5690 = vmatprep.subr.mxu0 0.0
    %5691 = vmatpush1.msra.mxu0 0.0
    %5692 = vmatprep.subr.mxu0 0.0
    %5693 = vmatpush1.msra.mxu0 0.0
    %5694 = vmatprep.subr.mxu0 0.0
    %5695 = vmatpush1.msra.mxu0 0.0
    %5696 = vmatprep.subr.mxu0 0.0
    %5697 = vmatpush1.msra.mxu0 0.0
    %5698 = vmatprep.subr.mxu0 0.0
    %5699 = vmatpush1.msra.mxu0 0.0
    %5700 = vmatprep.mubr.f32.mxu0 0.0
    %5701 = vmatmul.mubr.f32.gmra.mrb[0].mxu0 %v5628
    %v5702 = vpop.f32.mrb[0].mxu0
    %v5703 = vadd.f32 0.0, %v5702
    %v5704 = vpop.f32.mrb[0].mxu0
    %5705 = vmatprep.mubr.f32.mxu0 0.0
    %5706 = vmatmul.mubr.f32.gmra.mrb[0].mxu0 %v5631
    %v5707 = vpop.f32.mrb[0].mxu0
    %v5708 = vadd.f32 0.0, %v5707
    %v5709 = vpop.f32.mrb[0].mxu0
    %5710 = vmatprep.mubr.f32.mxu0 0.0
    %5711 = vmatmul.mubr.f32.gmra.mrb[0].mxu0 %v5634
    %v5712 = vpop.f32.mrb[0].mxu0
    %v5713 = vadd.f32 0.0, %v5712
    %v5714 = vpop.f32.mrb[0].mxu0
    %5715 = vdwg.mxu0
    %v5716 = vxor.u32 %v5703, 2147483648
    %v5717 = vxor.u32 %v5708, 2147483648
    %v5718 = vxor.u32 %v5713, 2147483648
    %v5719 = vmul.f32 %v5716, 1.442695
    %v5720 = vpow.pop %v5719
    %v5721 = vmul.f32 %v5717, 1.442695
    %v5722 = vpow.pop %v5721
    %v5723 = vmul.f32 %v5718, 1.442695
    %v5724 = vpow.pop %v5723
    %v5725 = vadd.f32 %v5720, 1.0
    %v5726 = vadd.f32 %v5722, 1.0
    %v5727 = vadd.f32 %v5724, 1.0
    %v5728 = vrcp.pop %v5725
    %v5729 = vmul.f32 1.0, %v5728
    %v5730 = vrcp.pop %v5726
    %v5731 = vmul.f32 1.0, %v5730
    %v5732 = vrcp.pop %v5727
    %v5733 = vmul.f32 1.0, %v5732
    %v5734 = vld [vmem:[%s2815] sm:$0x7]
    %5736 = vset.pattern.permute.xlu0 0
    %5737 = vperm.xlu0 %5736, %v5729
    %v5738 = vpop.permute.xlu0 %5737
    %5741 = vset.pattern.permute.xlu0 0
    %5742 = vperm.xlu0 %5741, %v5731
    %v5743 = vpop.permute.xlu0 %5742
    %5746 = vset.pattern.permute.xlu0 0
    %5747 = vperm.xlu0 %5746, %v5733
    %v5748 = vpop.permute.xlu0 %5747
    %v5750 = vmul.f32 %v5093, %v5738
    %v5751 = vmul.f32 %v5094, %v5738
    %v5752 = vmul.f32 %v5095, %v5743
    %v5753 = vmul.f32 %v5096, %v5743
    %v5754 = vmul.f32 %v5097, %v5748
    %v5755 = vmul.f32 %v5098, %v5748
    %v5756 = vld [vmem:[%s2838] sm:$0x7]
    %5758 = vset.pattern.permute.xlu0 0
    %5759 = vperm.xlu0 %5758, %v5756
    %v5760 = vpop.permute.xlu0 %5759
    %v5763 = vsel %vm2334, %v5734, 0
    %5765 = vmatprep.subr.mxu0 %v5751
    %5766 = vmatpush1.msra.mxu0 %v5750
    %5767 = vmatprep.subr.mxu0 %v5753
    %5768 = vmatpush1.msra.mxu0 %v5752
    %5769 = vmatprep.subr.mxu0 %v5755
    %5770 = vmatpush1.msra.mxu0 %v5754
    %5771 = vmatprep.subr.mxu0 0.0
    %5772 = vmatpush1.msra.mxu0 0.0
    %5773 = vmatprep.subr.mxu0 0.0
    %5774 = vmatpush1.msra.mxu0 0.0
    %5775 = vmatprep.subr.mxu0 0.0
    %5776 = vmatpush1.msra.mxu0 0.0
    %5777 = vmatprep.subr.mxu0 0.0
    %5778 = vmatpush1.msra.mxu0 0.0
    %5779 = vmatprep.subr.mxu0 0.0
    %5780 = vmatpush1.msra.mxu0 0.0
    %5781 = vmatprep.subr.mxu0 0.0
    %5782 = vmatpush1.msra.mxu0 0.0
    %5783 = vmatprep.subr.mxu0 0.0
    %5784 = vmatpush1.msra.mxu0 0.0
    %5785 = vmatprep.subr.mxu0 0.0
    %5786 = vmatpush1.msra.mxu0 0.0
    %5787 = vmatprep.subr.mxu0 0.0
    %5788 = vmatpush1.msra.mxu0 0.0
    %5789 = vmatprep.subr.mxu0 0.0
    %5790 = vmatpush1.msra.mxu0 0.0
    %5791 = vmatprep.subr.mxu0 0.0
    %5792 = vmatpush1.msra.mxu0 0.0
    %5793 = vmatprep.subr.mxu0 0.0
    %5794 = vmatpush1.msra.mxu0 0.0
    %5795 = vmatprep.subr.mxu0 0.0
    %5796 = vmatpush1.msra.mxu0 0.0
    %5797 = vmatprep.subr.mxu0 0.0
    %5798 = vmatpush1.msra.mxu0 0.0
    %5799 = vmatprep.subr.mxu0 0.0
    %5800 = vmatpush1.msra.mxu0 0.0
    %5801 = vmatprep.subr.mxu0 0.0
    %5802 = vmatpush1.msra.mxu0 0.0
    %5803 = vmatprep.subr.mxu0 0.0
    %5804 = vmatpush1.msra.mxu0 0.0
    %5805 = vmatprep.subr.mxu0 0.0
    %5806 = vmatpush1.msra.mxu0 0.0
    %5807 = vmatprep.subr.mxu0 0.0
    %5808 = vmatpush1.msra.mxu0 0.0
    %5809 = vmatprep.subr.mxu0 0.0
    %5810 = vmatpush1.msra.mxu0 0.0
    %5811 = vmatprep.subr.mxu0 0.0
    %5812 = vmatpush1.msra.mxu0 0.0
    %5813 = vmatprep.subr.mxu0 0.0
    %5814 = vmatpush1.msra.mxu0 0.0
    %5815 = vmatprep.subr.mxu0 0.0
    %5816 = vmatpush1.msra.mxu0 0.0
    %5817 = vmatprep.subr.mxu0 0.0
    %5818 = vmatpush1.msra.mxu0 0.0
    %5819 = vmatprep.subr.mxu0 0.0
    %5820 = vmatpush1.msra.mxu0 0.0
    %5821 = vmatprep.subr.mxu0 0.0
    %5822 = vmatpush1.msra.mxu0 0.0
    %5823 = vmatprep.subr.mxu0 0.0
    %5824 = vmatpush1.msra.mxu0 0.0
    %5825 = vmatprep.subr.mxu0 0.0
    %5826 = vmatpush1.msra.mxu0 0.0
    %5827 = vmatprep.subr.mxu0 0.0
    %5828 = vmatpush1.msra.mxu0 0.0
    %5829 = vmatprep.mubr.f32.mxu0 0.0
    %5830 = vmatmul.mubr.f32.gmra.mrb[0].mxu0 %v5763
    %v5831 = vpop.f32.mrb[0].mxu0
    %v5832 = vadd.f32 %v5760, %v5831
    %v5833 = vpop.f32.mrb[0].mxu0
    %v5834 = vadd.f32 %v5760, %v5833
    %5835 = vdwg.mxu0
    %v5836 = vld [vmem:[%s2919] sm:$0x7]
    %v5837 = vld [vmem:[%s2921] sm:$0x7]
    %v5838 = vsel %vm289, %v5832, 0.0
    %v5839 = vsel %vm289, %v5834, 0.0
    %v5840 = vadd.f32 %v5838, %v5839
    %5841 = vadd.xlane.f32.xlu0 %v5840
    %v5842 = vpop.xlane.xlu0 %5841
    %v5843 = vmul.f32 %v5842, %v407
    %v5844 = vmul.f32 %v5832, %v5832
    %v5845 = vmul.f32 %v5834, %v5834
    %v5846 = vsel %vm289, %v5844, 0.0
    %v5847 = vsel %vm289, %v5845, 0.0
    %v5848 = vadd.f32 %v5846, %v5847
    %5849 = vadd.xlane.f32.xlu0 %v5848
    %v5850 = vpop.xlane.xlu0 %5849
    %v5851 = vmul.f32 %v5850, %v407
    %v5852 = vmul.f32 %v5843, %v5843
    %v5853 = vsub.f32 %v5851, %v5852
    %v5854 = vmax.f32 %v5853, 0.0
    %v5855 = vsub.f32 %v5832, %v5843
    %v5856 = vsub.f32 %v5834, %v5843
    %v5857 = vadd.f32 %v5854, 1e-05
    %v5858 = vrsqrt.pop %v5857
    %v5859 = vmul.f32 %v5855, %v5858
    %v5860 = vmul.f32 %v5856, %v5858
    %5862 = vset.pattern.permute.xlu0 0
    %5863 = vperm.xlu0 %5862, %v5836
    %v5864 = vpop.permute.xlu0 %5863
    %v5866 = vmul.f32 %v5859, %v5864
    %v5867 = vmul.f32 %v5860, %v5864
    %5869 = vset.pattern.permute.xlu0 0
    %5870 = vperm.xlu0 %5869, %v5837
    %v5871 = vpop.permute.xlu0 %5870
    %v5873 = vadd.f32 %v5866, %v5871
    %v5874 = vadd.f32 %v5867, %v5871
    %v5875 = vsel %vm289, %v5873, 0.0
    %v5876 = vrot.slane %v5875, 4
    %v5877 = vadd.f32 %v5875, %v5876
    %v5878 = vrot.slane %v5877, 2
    %v5879 = vadd.f32 %v5877, %v5878
    %v5880 = vrot.slane %v5879, 1
    %v5881 = vadd.f32 %v5879, %v5880
    %v5882 = vsel %vm289, %v5874, 0.0
    %v5883 = vrot.slane %v5882, 4
    %v5884 = vadd.f32 %v5882, %v5883
    %v5885 = vrot.slane %v5884, 2
    %v5886 = vadd.f32 %v5884, %v5885
    %v5887 = vrot.slane %v5886, 1
    %v5888 = vadd.f32 %v5886, %v5887
    %v5889 = vmul.f32 %v5881, %v2464
    %v5890 = vmul.f32 %v5888, %v2464
    %v5891 = vsel %vm289, %v5873, -inf
    %v5892 = vrot.slane %v5891, 4
    %v5893 = vmax.f32 %v5891, %v5892
    %v5894 = vrot.slane %v5893, 2
    %v5895 = vmax.f32 %v5893, %v5894
    %v5896 = vrot.slane %v5895, 1
    %v5897 = vmax.f32 %v5895, %v5896
    %v5898 = vsel %vm289, %v5874, -inf
    %v5899 = vrot.slane %v5898, 4
    %v5900 = vmax.f32 %v5898, %v5899
    %v5901 = vrot.slane %v5900, 2
    %v5902 = vmax.f32 %v5900, %v5901
    %v5903 = vrot.slane %v5902, 1
    %v5904 = vmax.f32 %v5902, %v5903
    %v5905 = vsel %vm295, %v5889, %v5897
    %v5906 = vsel %vm295, %v5890, %v5904
    %5907 = vrot.lane.b32.xlu0 %v5905, 17
    %v5908 = vpop.permute.xlu0 %5907
    %5909 = vrot.lane.b32.xlu0 %v5906, 17
    %v5910 = vpop.permute.xlu0 %5909
    %v5911 = vsel %vm755, %v5908, %v5910
    %v5912 = vsel %vm755, %v5910, %v5908
    %v5913 = vmul.f32 %v5912, %v762
    %v5914 = vmul.f32 %v5911, %v766
    %5915 = vrot.lane.b32.xlu0 %v5905, 16
    %v5916 = vpop.permute.xlu0 %5915
    %5917 = vrot.lane.b32.xlu0 %v5906, 16
    %v5918 = vpop.permute.xlu0 %5917
    %v5919 = vsel %vm775, %v5916, %v5918
    %v5920 = vsel %vm775, %v5918, %v5916
    %v5921 = vmul.f32 %v5920, %v782
    %v5922 = vmul.f32 %v5919, %v786
    %5923 = vrot.lane.b32.xlu0 %v5905, 15
    %v5924 = vpop.permute.xlu0 %5923
    %5925 = vrot.lane.b32.xlu0 %v5906, 15
    %v5926 = vpop.permute.xlu0 %5925
    %v5927 = vsel %vm795, %v5924, %v5926
    %v5928 = vsel %vm795, %v5926, %v5924
    %v5929 = vmul.f32 %v5928, %v802
    %v5930 = vmul.f32 %v5927, %v806
    %5931 = vrot.lane.b32.xlu0 %v5905, 1
    %v5932 = vpop.permute.xlu0 %5931
    %5933 = vrot.lane.b32.xlu0 %v5906, 1
    %v5934 = vpop.permute.xlu0 %5933
    %v5935 = vsel %vm815, %v5932, %v5934
    %v5936 = vsel %vm815, %v5934, %v5932
    %v5937 = vmul.f32 %v5936, %v822
    %v5938 = vmul.f32 %v5935, %v826
    %5939 = vrot.lane.b32.xlu0 %v5905, 127
    %v5940 = vpop.permute.xlu0 %5939
    %5941 = vrot.lane.b32.xlu0 %v5906, 127
    %v5942 = vpop.permute.xlu0 %5941
    %v5943 = vsel %vm835, %v5940, %v5942
    %v5944 = vsel %vm835, %v5942, %v5940
    %v5945 = vmul.f32 %v5943, %v842
    %v5946 = vmul.f32 %v5944, %v846
    %5947 = vrot.lane.b32.xlu0 %v5905, 113
    %v5948 = vpop.permute.xlu0 %5947
    %5949 = vrot.lane.b32.xlu0 %v5906, 113
    %v5950 = vpop.permute.xlu0 %5949
    %v5951 = vsel %vm855, %v5948, %v5950
    %v5952 = vsel %vm855, %v5950, %v5948
    %v5953 = vmul.f32 %v5951, %v862
    %v5954 = vmul.f32 %v5952, %v866
    %5955 = vrot.lane.b32.xlu0 %v5905, 112
    %v5956 = vpop.permute.xlu0 %5955
    %5957 = vrot.lane.b32.xlu0 %v5906, 112
    %v5958 = vpop.permute.xlu0 %5957
    %v5959 = vsel %vm875, %v5956, %v5958
    %v5960 = vsel %vm875, %v5958, %v5956
    %v5961 = vmul.f32 %v5959, %v882
    %v5962 = vmul.f32 %v5960, %v886
    %5963 = vrot.lane.b32.xlu0 %v5905, 111
    %v5964 = vpop.permute.xlu0 %5963
    %5965 = vrot.lane.b32.xlu0 %v5906, 111
    %v5966 = vpop.permute.xlu0 %5965
    %v5967 = vsel %vm895, %v5964, %v5966
    %v5968 = vsel %vm895, %v5966, %v5964
    %v5969 = vmul.f32 %v5967, %v902
    %v5970 = vmul.f32 %v5968, %v906
    %v5973 = vrot.slane %v5921, 6
    %v5974 = vrot.slane %v5922, 6
    %v5979 = vrot.slane %v5929, 4
    %v5980 = vrot.slane %v5930, 4
    %v5985 = vrot.slane %v5937, 2
    %v5986 = vrot.slane %v5938, 2
    %v5991 = vrot.slane %v5945, 6
    %v5992 = vrot.slane %v5946, 6
    %v5997 = vrot.slane %v5953, 4
    %v5998 = vrot.slane %v5954, 4
    %v6003 = vrot.slane %v5961, 2
    %v6004 = vrot.slane %v5962, 2
    %v6007 = vsel %vm304, %v5913, %v5973
    %v6008 = vsel %vm304, %v5914, %v5974
    %v6009 = vsel %vm298, %v6007, %v5979
    %v6010 = vsel %vm298, %v6008, %v5980
    %v6011 = vsel %vm292, %v6009, %v5985
    %v6012 = vsel %vm292, %v6010, %v5986
    %v6013 = vsel %vm304, %v5905, %v5991
    %v6014 = vsel %vm304, %v5906, %v5992
    %v6015 = vsel %vm298, %v6013, %v5997
    %v6016 = vsel %vm298, %v6014, %v5998
    %v6017 = vsel %vm292, %v6015, %v6003
    %v6018 = vsel %vm292, %v6016, %v6004
    %v6019 = vld [vmem:[%s10 + $0x4] sm:$0x1]
    %s6020 = sld [smem:[#allocation3 + $0x4]]
    %v6021 = vstv %s6020
    %v6023 = vsel %vm962, %v6019, 0
    %v6026 = vsel %vm304, %v5969, 0
    %v6029 = vsel %vm304, %v5970, 0
    %6031 = vmatprep.subr.mxu0 %v6012
    %6032 = vmatpush1.msra.mxu0 %v6011
    %6033 = vmatprep.subr.mxu0 %v6018
    %6034 = vmatpush1.msra.mxu0 %v6017
    %6035 = vmatprep.subr.mxu0 %v6029
    %6036 = vmatpush1.msra.mxu0 %v6026
    %6037 = vmatprep.subr.mxu0 0.0
    %6038 = vmatpush1.msra.mxu0 0.0
    %6039 = vmatprep.subr.mxu0 0.0
    %6040 = vmatpush1.msra.mxu0 0.0
    %6041 = vmatprep.subr.mxu0 0.0
    %6042 = vmatpush1.msra.mxu0 0.0
    %6043 = vmatprep.subr.mxu0 0.0
    %6044 = vmatpush1.msra.mxu0 0.0
    %6045 = vmatprep.subr.mxu0 0.0
    %6046 = vmatpush1.msra.mxu0 0.0
    %6047 = vmatprep.subr.mxu0 0.0
    %6048 = vmatpush1.msra.mxu0 0.0
    %6049 = vmatprep.subr.mxu0 0.0
    %6050 = vmatpush1.msra.mxu0 0.0
    %6051 = vmatprep.subr.mxu0 0.0
    %6052 = vmatpush1.msra.mxu0 0.0
    %6053 = vmatprep.subr.mxu0 0.0
    %6054 = vmatpush1.msra.mxu0 0.0
    %6055 = vmatprep.subr.mxu0 0.0
    %6056 = vmatpush1.msra.mxu0 0.0
    %6057 = vmatprep.subr.mxu0 0.0
    %6058 = vmatpush1.msra.mxu0 0.0
    %6059 = vmatprep.subr.mxu0 0.0
    %6060 = vmatpush1.msra.mxu0 0.0
    %6061 = vmatprep.subr.mxu0 0.0
    %6062 = vmatpush1.msra.mxu0 0.0
    %6063 = vmatprep.subr.mxu0 0.0
    %6064 = vmatpush1.msra.mxu0 0.0
    %6065 = vmatprep.subr.mxu0 0.0
    %6066 = vmatpush1.msra.mxu0 0.0
    %6067 = vmatprep.subr.mxu0 0.0
    %6068 = vmatpush1.msra.mxu0 0.0
    %6069 = vmatprep.subr.mxu0 0.0
    %6070 = vmatpush1.msra.mxu0 0.0
    %6071 = vmatprep.subr.mxu0 0.0
    %6072 = vmatpush1.msra.mxu0 0.0
    %6073 = vmatprep.subr.mxu0 0.0
    %6074 = vmatpush1.msra.mxu0 0.0
    %6075 = vmatprep.subr.mxu0 0.0
    %6076 = vmatpush1.msra.mxu0 0.0
    %6077 = vmatprep.subr.mxu0 0.0
    %6078 = vmatpush1.msra.mxu0 0.0
    %6079 = vmatprep.subr.mxu0 0.0
    %6080 = vmatpush1.msra.mxu0 0.0
    %6081 = vmatprep.subr.mxu0 0.0
    %6082 = vmatpush1.msra.mxu0 0.0
    %6083 = vmatprep.subr.mxu0 0.0
    %6084 = vmatpush1.msra.mxu0 0.0
    %6085 = vmatprep.subr.mxu0 0.0
    %6086 = vmatpush1.msra.mxu0 0.0
    %6087 = vmatprep.subr.mxu0 0.0
    %6088 = vmatpush1.msra.mxu0 0.0
    %6089 = vmatprep.subr.mxu0 0.0
    %6090 = vmatpush1.msra.mxu0 0.0
    %6091 = vmatprep.subr.mxu0 0.0
    %6092 = vmatpush1.msra.mxu0 0.0
    %6093 = vmatprep.subr.mxu0 0.0
    %6094 = vmatpush1.msra.mxu0 0.0
    %6095 = vmatprep.mubr.f32.mxu0 0.0
    %6096 = vmatmul.mubr.f32.gmra.mrb[0].mxu0 %v6023
    %v6097 = vpop.f32.mrb[0].mxu0
    %v6098 = vadd.f32 %v6021, %v6097
    %v6099 = vpop.f32.mrb[0].mxu0
    %v6100 = vadd.f32 %v6021, %v6099
    %6101 = vdwg.mxu0
    %v6102 = vxor.u32 %v6098, 2147483648
    %v6103 = vxor.u32 %v6100, 2147483648
    %v6104 = vmul.f32 %v6102, 1.442695
    %v6105 = vpow.pop %v6104
    %v6106 = vmul.f32 %v6103, 1.442695
    %v6107 = vpow.pop %v6106
    %v6108 = vadd.f32 %v6105, 1.0
    %v6109 = vadd.f32 %v6107, 1.0
    %v6110 = vrcp.pop %v6108
    %v6111 = vmul.f32 1.0, %v6110
    %v6112 = vrcp.pop %v6109
    %v6113 = vmul.f32 1.0, %v6112
    %v6114 = vlaneseq
    %v6115 = vshrl.u32 %v6114, 7
    %v6116 = vsub.s32 0, %v6115
    %v6117 = vrot.slane %v6111, %v6116
    %v6118 = vlaneseq
    %v6119 = vshrl.u32 %v6118, 7
    %v6120 = vsub.s32 0, %v6119
    %v6121 = vrot.slane %v6113, %v6120
    %v6122 = vmul.f32 %v5873, %v6117
    %v6123 = vmul.f32 %v5874, %v6121
    %v6124 = vmax.f32 %v6122, 0.0
    %v6125 = vmax.f32 %v6123, 0.0
    %v6126 = vmin.f32 %v6124, 1.0
    %v6127 = vmin.f32 %v6125, 1.0
    %v6128 = vmul.f32 %v5622, %v3229
    %v6129 = vmul.f32 %v5623, %v3231
    %v6130 = vsub.f32 %v6128, %v5622
    %v6131 = vsub.f32 %v6129, %v5623
    %v6132 = vadd.f32 %v6130, %v6126
    %v6133 = vadd.f32 %v6131, %v6127
    %v6134 = vadd.f32 %v6132, 1.0
    %v6135 = vadd.f32 %v6133, 1.0
    %v6136 = vmul.f32 %v6134, 0.5
    %v6137 = vmul.f32 %v6135, 0.5
    %v6140 = vcombine.low %v6136, %v6137
    %s6142 = scalar_lea.vmem %s12, 8
    %6143 = vst [vmem:[%s6142] sm:$0x77] %v6140
    // Predicated region
    $region54: #{mdehaze_forward.1} parent=1 // pred_check
      _
    $region55: #{mdehaze_forward.1} parent=1 // pred_check_branch
      %6145 = sbr.rel (0) target = $region57
    $region56: #{mdehaze_forward.1} parent=1 // pred_region
      _
    $region57: #{mdehaze_forward.1} parent=1 // pred_fallthru
      _
    // Predicated region
    $region58: #{mdehaze_forward.1} parent=1 // pred_check
      _
    $region59: #{mdehaze_forward.1} parent=1 // pred_check_branch
      %6147 = sbr.rel (0) target = $region61
    $region60: #{mdehaze_forward.1} parent=1 // pred_region
      _
    $region61: #{mdehaze_forward.1} parent=1 // pred_fallthru
      _
    %6148 = vsyncpa [#allocation4], 1

</llo_original>
